<compile_context>
chip_gen: v5e
topology: v5e:2x2
jax: 0.10.0
libtpu: 0.0.40
codegen_flags: <defaults>
</compile_context>

<pallas_src>
import math
import functools

import jax
import jax.numpy as jnp
from jax.experimental import pallas as pl
from jax.experimental.pallas import tpu as pltpu

N_GROUPS = 32
GN_EPS = 1e-6
LN_EPS = 1e-5

PARAM_ORDER = [
    "gn_g", "gn_b", "ci_w", "ci_b",
    "ln1_g", "ln1_b", "a1_wq", "a1_wk", "a1_wv", "a1_wo", "a1_bo",
    "ln2_g", "ln2_b", "a2_wq", "a2_wk", "a2_wv", "a2_wo", "a2_bo",
    "ln3_g", "ln3_b", "g1_w", "g1_b", "g2_w", "g2_b",
    "co_w", "co_b",
]


def _bf16(x):
    return x.astype(jnp.bfloat16)


def _dot(a, b):
    return jnp.dot(a, b, preferred_element_type=jnp.float32)


def _layernorm(x, g, b):
    m = jnp.mean(x, axis=-1, keepdims=True)
    v = jnp.mean(jnp.square(x - m), axis=-1, keepdims=True)
    return (x - m) * jax.lax.rsqrt(v + LN_EPS) * g + b


# -------------------------------------------------------------------------------------
# kernel 1: GroupNorm-affine + conv_input (1x1) + LayerNorm1 + fused QKV projection
#   - single lane-dense (t1, 3C) qkv store; bf16 activations to/from HBM.
# -------------------------------------------------------------------------------------
def _proj_kernel(x_ref, scale_ref, shift_ref, ci_w, ci_b, ln1_g, ln1_b, wqkv,
                 h_ref, qkv_ref):
    x = x_ref[0]                                    # (t1, C) bf16
    # GroupNorm folded into a per-channel affine (stats from the wrapper NCHW pre-pass)
    xn = x * scale_ref[0] + shift_ref[0]            # f32

    # conv_input: 1x1 conv == channel matmul (bf16 MXU operands, f32 accumulation)
    h = _dot(_bf16(xn), ci_w[...]) + ci_b[...]
    h_ref[0] = h.astype(h_ref.dtype)                # residue_short for kernel 2 (bf16)

    # LayerNorm1 + fused QKV (single (t1, C) @ (C, 3C) matmul; wq pre-scaled by 1/sqrt(dh))
    t = _layernorm(h, ln1_g[...], ln1_b[...])
    qkv_ref[0] = _dot(_bf16(t), wqkv[...]).astype(qkv_ref.dtype)   # lane-dense store


# -------------------------------------------------------------------------------------
# kernel 2: flash self-attention + cross-attention + GEGLU + conv_output + residuals
# -------------------------------------------------------------------------------------
def _make_attn_kernel(n_head, dh, exp_dtype):
    inv_sqrt2 = 1.0 / math.sqrt(2.0)

    def kernel(x_ref, h_ref, q_ref, k_ref, v_ref, kc_ref, vc_ref,
               a1_wo, a1_bo, ln2_g, ln2_b, a2_wq, a2_wo, a2_bo,
               ln3_g, ln3_b, g1v_w, g1v_b, g1g_w, g1g_b, g2_w, g2_b,
               co_w, co_b,
               out_ref, m_sc, l_sc, acc_sc):
        ki = pl.program_id(2)
        nk = pl.num_programs(2)

        @pl.when(ki == 0)
        def _init():
            m_sc[...] = jnp.full(m_sc.shape, -jnp.inf, m_sc.dtype)
            l_sc[...] = jnp.zeros(l_sc.shape, l_sc.dtype)
            acc_sc[...] = jnp.zeros(acc_sc.shape, acc_sc.dtype)

        # ---- flash self-attention step for this KV tile (all heads batched) ----
        # softmax scale is folded into the Q projection weights -> no scale here.
        s = jnp.einsum("hqd,hkd->hqk", q_ref[0], k_ref[0],
                       preferred_element_type=jnp.float32)          # (H, tq, tk) f32
        m_prev = m_sc[...]
        m_new = jnp.maximum(m_prev, jnp.max(s, axis=-1, keepdims=True))
        alpha = jnp.exp(m_prev - m_new)
        # bf16 exp on v6e/v7x (bf16 EUP ~2x), f32 on v5e/older (no bf16 EUP there).
        p = jnp.exp((s - m_new).astype(exp_dtype))
        # row-sum must stay accumulated in f32 regardless of exp dtype
        l_sc[...] = alpha * l_sc[...] + jnp.sum(p, axis=-1, keepdims=True,
                                                dtype=jnp.float32)
        acc_sc[...] = alpha * acc_sc[...] + jnp.einsum(
            "hqk,hkd->hqd", _bf16(p), v_ref[0], preferred_element_type=jnp.float32)
        m_sc[...] = m_new

        # ---- everything after self-attention runs once per q tile ----
        @pl.when(ki == nk - 1)
        def _finalize():
            o3 = acc_sc[...] * pl.reciprocal(l_sc[...], approx=True)   # (H, tq, dh) f32
            # head-batched out-projection, summed over heads (stays on MXU, no concat)
            h1 = jnp.sum(jnp.einsum("hqd,hdc->hqc", _bf16(o3), a1_wo[...],
                                    preferred_element_type=jnp.float32), axis=0)
            h1 = h1 + a1_bo[...] + h_ref[0]

            # cross-attention with per-batch precomputed head-major context K/V
            t2 = _bf16(_layernorm(h1, ln2_g[...], ln2_b[...]))
            q2 = _bf16(_dot(t2, a2_wq[...]))                           # (tq, C), scale folded
            # one bf16 head split of q2 (the only remaining lane relayout in this path)
            q2h = jnp.stack([q2[:, hd * dh:(hd + 1) * dh]
                             for hd in range(n_head)], axis=0)          # (H, tq, dh)
            s2 = jnp.einsum("hqd,hsd->hqs", q2h, kc_ref[0],
                            preferred_element_type=jnp.float32)         # (H, tq, S)
            s2 = s2 - jnp.max(s2, axis=-1, keepdims=True)
            p2 = jnp.exp(s2)
            p2 = p2 / jnp.sum(p2, axis=-1, keepdims=True)    # exact denom, once per q tile
            o2 = jnp.einsum("hqs,hsd->hqd", _bf16(p2), vc_ref[0],
                            preferred_element_type=jnp.float32)
            h2 = jnp.sum(jnp.einsum("hqd,hdc->hqc", _bf16(o2), a2_wo[...],
                                    preferred_element_type=jnp.float32), axis=0)
            h2 = h2 + a2_bo[...] + h1

            # GEGLU: separate value / gate matmuls (no (tq, 8C) slab, no big slices)
            t3 = _bf16(_layernorm(h2, ln3_g[...], ln3_b[...]))
            val = _dot(t3, g1v_w[...]) + g1v_b[...]
            gate = _dot(t3, g1g_w[...]) + g1g_b[...]
            gelu = 0.5 * gate * (1.0 + jax.lax.erf(gate * inv_sqrt2))   # exact GELU
            h3 = _dot(_bf16(val * gelu), g2_w[...]) + g2_b[...] + h2

            # conv_output (1x1) + long residual
            out = _dot(_bf16(h3), co_w[...]) + co_b[...] + x_ref[0]
            out_ref[0] = out.astype(out_ref.dtype)

    return kernel


# -------------------------------------------------------------------------------------
# wrapper
# -------------------------------------------------------------------------------------
def _pick_tile(total, target):
    t = math.gcd(total, target)
    if t % 8 != 0 and t != total:
        t = total
    return t


def _w_spec(a):
    # Grid-invariant operand: full-array block with constant index map (DMA'd once).
    # TODO(synk): switch to pipeline_mode=pl.Buffered(1) (single-buffer the invariant
    # weights) once verified on the target jaxlib; it halves resident weight VMEM, which
    # matters for C >= 1280 on v7x's 64 MiB VMEM.
    nd = a.ndim
    return pl.BlockSpec(a.shape, lambda *_, _nd=nd: (0,) * _nd)


@functools.partial(jax.jit, static_argnames=("n_head", "row_tile", "q_tile", "kv_tile"))
def unet_attention_block(x, context, params, n_head, *,
                         row_tile=None, q_tile=None, kv_tile=None):
    N, C, H, W = x.shape
    HW = H * W
    assert C % N_GROUPS == 0, "channels must be divisible by 32 (GroupNorm groups)"
    assert C % n_head == 0, "channels must be divisible by n_head"
    dh = C // n_head
    S = context.shape[1]
    inv_sqrt_dh = 1.0 / math.sqrt(dh)

    f32, bf16 = jnp.float32, jnp.bfloat16
    P = {k: v.astype(f32) for k, v in params.items()}

    kind = jax.devices()[0].device_kind.lower()
    is_v7 = ("v7" in kind) or ("7x" in kind)
    bf16_eup = ("v6" in kind) or is_v7            # v5e and older: keep f32 exp
    exp_dtype = bf16 if bf16_eup else f32
    vmem_limit = (48 if is_v7 else 100) * (1 << 20)   # 64 MiB physical VMEM on v7x

    # ---- GroupNorm statistics from the original NCHW tensor (one fused read of x) ----
    cg = C // N_GROUPS
    x32 = x.astype(f32)
    mean_c = jnp.mean(x32, axis=(2, 3))                        # (N, C)
    msq_c = jnp.mean(jnp.square(x32), axis=(2, 3))             # (N, C)
    mean_g = jnp.mean(mean_c.reshape(N, N_GROUPS, cg), axis=-1)
    msq_g = jnp.mean(msq_c.reshape(N, N_GROUPS, cg), axis=-1)
    var_g = jnp.maximum(msq_g - jnp.square(mean_g), 0.0)
    rstd_g = jax.lax.rsqrt(var_g + GN_EPS)
    mean_ch = jnp.repeat(mean_g, cg, axis=-1)                  # (N, C)
    rstd_ch = jnp.repeat(rstd_g, cg, axis=-1)
    gn_g = P["gn_g"].reshape(1, C)
    gn_b = P["gn_b"].reshape(1, C)
    gn_scale = (rstd_ch * gn_g)[:, None, :]                    # (N, 1, C)
    gn_shift = (gn_b - mean_ch * rstd_ch * gn_g)[:, None, :]   # (N, 1, C)

    # NCHW -> (N, HW, C) token layout, stored in bf16 (halves all later reads).
    # TODO(synk): accept/produce NHWC at the op boundary to drop these two transposes.
    x_tok = jnp.transpose(x32.reshape(N, C, HW), (0, 2, 1)).astype(bf16)

    # Cross-attention K/V: tiny (S, Dctx) @ (Dctx, C) matmuls, done once per batch
    # element, stored head-major (N, n_head, S, dh) in bf16.
    ctx = context.astype(f32)
    k_ctx = jnp.einsum("nsd,dc->nsc", ctx, P["a2_wk"])
    v_ctx = jnp.einsum("nsd,dc->nsc", ctx, P["a2_wv"])
    k_ctx_hm = jnp.transpose(k_ctx.reshape(N, S, n_head, dh), (0, 2, 1, 3)).astype(bf16)
    v_ctx_hm = jnp.transpose(v_ctx.reshape(N, S, n_head, dh), (0, 2, 1, 3)).astype(bf16)

    # Fold the 1/sqrt(dh) softmax scale into the Q projections; fuse self-attn QKV;
    # split GEGLU value/gate; reshape out-projections head-major; cast weights to bf16.
    wqkv = jnp.concatenate([P["a1_wq"] * inv_sqrt_dh, P["a1_wk"], P["a1_wv"]],
                           axis=1).astype(bf16)                       # (C, 3C)
    a1_wo_hm = P["a1_wo"].reshape(n_head, dh, C).astype(bf16)
    a2_wq_s = (P["a2_wq"] * inv_sqrt_dh).astype(bf16)
    a2_wo_hm = P["a2_wo"].reshape(n_head, dh, C).astype(bf16)
    g1v_w = P["g1_w"][:, : 4 * C].astype(bf16)
    g1g_w = P["g1_w"][:, 4 * C:].astype(bf16)
    g1v_b = P["g1_b"][:, : 4 * C]
    g1g_b = P["g1_b"][:, 4 * C:]

    t1 = row_tile or _pick_tile(HW, 512)                       # projection row tile
    tq = q_tile or _pick_tile(HW, 256 if is_v7 else 512)       # flash q tile
    tk = kv_tile or _pick_tile(HW, 512)                        # flash kv tile
    assert HW % t1 == 0 and HW % tq == 0 and HW % tk == 0

    # ================= kernel 1: GN-affine + conv_input + LN1 + fused QKV =============
    proj_in = [x_tok, gn_scale, gn_shift,
               P["ci_w"].astype(bf16), P["ci_b"], P["ln1_g"], P["ln1_b"], wqkv]
    proj_specs = [
        pl.BlockSpec((1, t1, C), lambda b, i: (b, i, 0)),
        pl.BlockSpec((1, 1, C), lambda b, i: (b, 0, 0)),
        pl.BlockSpec((1, 1, C), lambda b, i: (b, 0, 0)),
    ] + [_w_spec(a) for a in proj_in[3:]]

    h_tok, qkv = pl.pallas_call(
        _proj_kernel,
        grid=(N, HW // t1),
        in_specs=proj_specs,
        out_specs=[pl.BlockSpec((1, t1, C), lambda b, i: (b, i, 0)),
                   pl.BlockSpec((1, t1, 3 * C), lambda b, i: (b, i, 0))],
        out_shape=[jax.ShapeDtypeStruct((N, HW, C), bf16),
                   jax.ShapeDtypeStruct((N, HW, 3 * C), bf16)],
        compiler_params=pltpu.CompilerParams(
            dimension_semantics=("parallel", "parallel"),
            vmem_limit_bytes=vmem_limit),
    )(*proj_in)

    # head split (one bf16 XLA transpose) -> head-major q/k/v for batched attention
    qkv_hm = jnp.transpose(qkv.reshape(N, HW, 3, n_head, dh), (2, 0, 3, 1, 4))
    q_hm, k_hm, v_hm = qkv_hm[0], qkv_hm[1], qkv_hm[2]         # (N, n_head, HW, dh) bf16

    # ============ kernel 2: flash self-attn + cross-attn + GEGLU + conv_output ========
    # TODO(synk): for C >= ~960 on v7x, K-stream / split the GEGLU + conv_output weights
    # (third pallas_call or pltpu.emit_pipeline) -- one resident bf16 copy is too large
    # for the 48 MiB budget there.
    weights = [
        a1_wo_hm, P["a1_bo"], P["ln2_g"], P["ln2_b"],
        a2_wq_s, a2_wo_hm, P["a2_bo"],
        P["ln3_g"], P["ln3_b"],
        g1v_w, g1v_b, g1g_w, g1g_b,
        P["g2_w"].astype(bf16), P["g2_b"],
        P["co_w"].astype(bf16), P["co_b"],
    ]
    attn_in = [x_tok, h_tok, q_hm, k_hm, v_hm, k_ctx_hm, v_ctx_hm] + weights
    attn_specs = [
        pl.BlockSpec((1, tq, C), lambda b, qi, ki: (b, qi, 0)),               # x (long res)
        pl.BlockSpec((1, tq, C), lambda b, qi, ki: (b, qi, 0)),               # h (short res)
        pl.BlockSpec((1, n_head, tq, dh), lambda b, qi, ki: (b, 0, qi, 0)),   # q
        pl.BlockSpec((1, n_head, tk, dh), lambda b, qi, ki: (b, 0, ki, 0)),   # k
        pl.BlockSpec((1, n_head, tk, dh), lambda b, qi, ki: (b, 0, ki, 0)),   # v
        pl.BlockSpec((1, n_head, S, dh), lambda b, qi, ki: (b, 0, 0, 0)),     # k_ctx
        pl.BlockSpec((1, n_head, S, dh), lambda b, qi, ki: (b, 0, 0, 0)),     # v_ctx
    ] + [_w_spec(a) for a in weights]

    out_tok = pl.pallas_call(
        _make_attn_kernel(n_head, dh, exp_dtype),
        grid=(N, HW // tq, HW // tk),
        in_specs=attn_specs,
        out_specs=pl.BlockSpec((1, tq, C), lambda b, qi, ki: (b, qi, 0)),
        out_shape=jax.ShapeDtypeStruct((N, HW, C), f32),
        scratch_shapes=[
            pltpu.VMEM((n_head, tq, 1), f32),      # running max
            pltpu.VMEM((n_head, tq, 1), f32),      # running sum
            pltpu.VMEM((n_head, tq, dh), f32),     # attention accumulator
        ],
        compiler_params=pltpu.CompilerParams(
            dimension_semantics=("parallel", "parallel", "arbitrary"),
            vmem_limit_bytes=vmem_limit),
    )(*attn_in)

    return jnp.transpose(out_tok, (0, 2, 1)).reshape(N, C, H, W)


# -------------------------------------------------------------------------------------
# parameter init + plain-JAX reference (for a correctness check)
# -------------------------------------------------------------------------------------
def init_params(key, n_head, n_embd, d_context):
    C = n_head * n_embd
    ks = jax.random.split(key, len(PARAM_ORDER))
    kd = dict(zip(PARAM_ORDER, ks))

    def w(k, shape, scale=0.05):
        return jax.random.normal(k, shape, jnp.float32) * scale

    return {
        "gn_g": 1.0 + w(kd["gn_g"], (1, C), 0.1), "gn_b": w(kd["gn_b"], (1, C), 0.1),
        "ci_w": w(kd["ci_w"], (C, C)), "ci_b": w(kd["ci_b"], (1, C)),
        "ln1_g": 1.0 + w(kd["ln1_g"], (1, C), 0.1), "ln1_b": w(kd["ln1_b"], (1, C), 0.1),
        "a1_wq": w(kd["a1_wq"], (C, C)), "a1_wk": w(kd["a1_wk"], (C, C)),
        "a1_wv": w(kd["a1_wv"], (C, C)), "a1_wo": w(kd["a1_wo"], (C, C)),
        "a1_bo": w(kd["a1_bo"], (1, C)),
        "ln2_g": 1.0 + w(kd["ln2_g"], (1, C), 0.1), "ln2_b": w(kd["ln2_b"], (1, C), 0.1),
        "a2_wq": w(kd["a2_wq"], (C, C)), "a2_wk": w(kd["a2_wk"], (d_context, C)),
        "a2_wv": w(kd["a2_wv"], (d_context, C)), "a2_wo": w(kd["a2_wo"], (C, C)),
        "a2_bo": w(kd["a2_bo"], (1, C)),
        "ln3_g": 1.0 + w(kd["ln3_g"], (1, C), 0.1), "ln3_b": w(kd["ln3_b"], (1, C), 0.1),
        "g1_w": w(kd["g1_w"], (C, 8 * C)), "g1_b": w(kd["g1_b"], (1, 8 * C)),
        "g2_w": w(kd["g2_w"], (4 * C, C)), "g2_b": w(kd["g2_b"], (1, C)),
        "co_w": w(kd["co_w"], (C, C)), "co_b": w(kd["co_b"], (1, C)),
    }


def _mha_ref(q, k, v, wo, bo, n_head):
    C = q.shape[-1]
    dh = C // n_head
    outs = []
    for h in range(n_head):
        sl = slice(h * dh, (h + 1) * dh)
        qh, kh, vh = q[..., sl], k[..., sl], v[..., sl]
        s = jnp.einsum("nqd,nkd->nqk", qh, kh) / math.sqrt(dh)
        p = jax.nn.softmax(s, axis=-1)
        outs.append(jnp.einsum("nqk,nkd->nqd", p, vh))
    return jnp.concatenate(outs, axis=-1) @ wo + bo


def reference(x, context, P, n_head):
    N, C, H, W = x.shape
    HW = H * W
    xt = jnp.transpose(x.reshape(N, C, HW), (0, 2, 1))
    cg = C // N_GROUPS
    xg = xt.reshape(N, HW, N_GROUPS, cg)
    mean = xg.mean(axis=(1, 3), keepdims=True)
    var = jnp.mean((xg - mean) ** 2, axis=(1, 3), keepdims=True)
    xn = ((xg - mean) * jax.lax.rsqrt(var + GN_EPS)).reshape(N, HW, C) * P["gn_g"] + P["gn_b"]

    def ln(t, g, b):
        m = t.mean(-1, keepdims=True)
        v = jnp.mean((t - m) ** 2, -1, keepdims=True)
        return (t - m) * jax.lax.rsqrt(v + LN_EPS) * g + b

    h = xn @ P["ci_w"] + P["ci_b"]
    res = h
    t = ln(h, P["ln1_g"], P["ln1_b"])
    h = _mha_ref(t @ P["a1_wq"], t @ P["a1_wk"], t @ P["a1_wv"],
                 P["a1_wo"], P["a1_bo"], n_head) + res
    res = h
    t = ln(h, P["ln2_g"], P["ln2_b"])
    h = _mha_ref(t @ P["a2_wq"], context @ P["a2_wk"], context @ P["a2_wv"],
                 P["a2_wo"], P["a2_bo"], n_head) + res
    res = h
    t = ln(h, P["ln3_g"], P["ln3_b"])
    g = t @ P["g1_w"] + P["g1_b"]
    val, gate = g[..., : 4 * C], g[..., 4 * C:]
    t = val * (0.5 * gate * (1.0 + jax.lax.erf(gate / math.sqrt(2.0))))
    h = t @ P["g2_w"] + P["g2_b"] + res
    out_tok = h @ P["co_w"] + P["co_b"] + xt
    return jnp.transpose(out_tok, (0, 2, 1)).reshape(N, C, H, W)


if __name__ == "__main__":
    n_head, n_embd, d_context = 2, 32, 64      # channels = 64 (divisible by 32 groups)
    C = n_head * n_embd
    N, H, W, S_ctx = 2, 16, 16, 8              # HW = 256 -> multiple q/kv tiles below

    key = jax.random.PRNGKey(0)
    kx, kc, kp = jax.random.split(key, 3)
    x = jax.random.normal(kx, (N, C, H, W), jnp.float32)
    context = jax.random.normal(kc, (N, S_ctx, d_context), jnp.float32)
    params = init_params(kp, n_head, n_embd, d_context)

    # small tiles so the flash KV loop / pl.when init+finalize paths are exercised
    out = unet_attention_block(x, context, params, n_head,
                               row_tile=128, q_tile=64, kv_tile=64)
    jax.block_until_ready(out)

    ref = reference(x, context, params, n_head)
    assert out.shape == x.shape
    assert bool(jnp.all(jnp.isfinite(out)))
    err = float(jnp.max(jnp.abs(out - ref)))
    assert err < 1e-1, f"max abs error {err}"   # bf16 MXU inputs vs f32 reference
    print("KERNEL_OK")
</pallas_src>

<mosaic_0001>
module attributes {stable_mosaic.version = 11 : i64} {
  func.func @_proj_kernel(%arg0: i32, %arg1: i32, %arg2: memref<1x128x64xbf16, #tpu.memory_space<vmem>>, %arg3: memref<1x1x64xf32, #tpu.memory_space<vmem>>, %arg4: memref<1x1x64xf32, #tpu.memory_space<vmem>>, %arg5: memref<64x64xbf16, #tpu.memory_space<vmem>>, %arg6: memref<1x64xf32, #tpu.memory_space<vmem>>, %arg7: memref<1x64xf32, #tpu.memory_space<vmem>>, %arg8: memref<1x64xf32, #tpu.memory_space<vmem>>, %arg9: memref<64x192xbf16, #tpu.memory_space<vmem>>, %arg10: memref<1x128x64xbf16, #tpu.memory_space<vmem>>, %arg11: memref<1x128x192xbf16, #tpu.memory_space<vmem>>) attributes {dimension_semantics = [#tpu.dimension_semantics<parallel>, #tpu.dimension_semantics<parallel>], iteration_bounds = array<i64: 2, 2>, scalar_prefetch = 0 : i64, scratch_operands = 0 : i64, tpu.core_type = #tpu.core_type<tc>, window_params = [{transform_indices = @transform_0, window_bounds = array<i64: 1, 128, 64>}, {transform_indices = @transform_1, window_bounds = array<i64: 1, 1, 64>}, {transform_indices = @transform_2, window_bounds = array<i64: 1, 1, 64>}, {pipeline_mode = #tpu.pipeline_mode<synchronous>, transform_indices = @transform_3, window_bounds = array<i64: 64, 64>}, {pipeline_mode = #tpu.pipeline_mode<synchronous>, transform_indices = @transform_4, window_bounds = array<i64: 1, 64>}, {pipeline_mode = #tpu.pipeline_mode<synchronous>, transform_indices = @transform_5, window_bounds = array<i64: 1, 64>}, {pipeline_mode = #tpu.pipeline_mode<synchronous>, transform_indices = @transform_6, window_bounds = array<i64: 1, 64>}, {pipeline_mode = #tpu.pipeline_mode<synchronous>, transform_indices = @transform_7, window_bounds = array<i64: 64, 192>}, {transform_indices = @transform_8, window_bounds = array<i64: 1, 128, 64>}, {transform_indices = @transform_9, window_bounds = array<i64: 1, 128, 192>}]} {
    %c0 = arith.constant 0 : index
    %c0_0 = arith.constant 0 : index
    %c0_1 = arith.constant 0 : index
    %0 = vector.load %arg2[%c0, %c0_0, %c0_1] : memref<1x128x64xbf16, #tpu.memory_space<vmem>>, vector<1x128x64xbf16>
    %1 = vector.shape_cast %0 : vector<1x128x64xbf16> to vector<128x64xbf16>
    %c0_2 = arith.constant 0 : index
    %c0_3 = arith.constant 0 : index
    %c0_4 = arith.constant 0 : index
    %2 = vector.load %arg3[%c0_2, %c0_3, %c0_4] : memref<1x1x64xf32, #tpu.memory_space<vmem>>, vector<1x1x64xf32>
    %3 = vector.shape_cast %2 : vector<1x1x64xf32> to vector<1x64xf32>
    %4 = arith.extf %1 : vector<128x64xbf16> to vector<128x64xf32>
    %5 = vector.broadcast %3 : vector<1x64xf32> to vector<128x64xf32>
    %6 = arith.mulf %4, %5 : vector<128x64xf32>
    %c0_5 = arith.constant 0 : index
    %c0_6 = arith.constant 0 : index
    %c0_7 = arith.constant 0 : index
    %7 = vector.load %arg4[%c0_5, %c0_6, %c0_7] : memref<1x1x64xf32, #tpu.memory_space<vmem>>, vector<1x1x64xf32>
    %8 = vector.shape_cast %7 : vector<1x1x64xf32> to vector<1x64xf32>
    %9 = vector.broadcast %8 : vector<1x64xf32> to vector<128x64xf32>
    %10 = arith.addf %6, %9 : vector<128x64xf32>
    %11 = arith.truncf %10 : vector<128x64xf32> to vector<128x64xbf16>
    %c0_8 = arith.constant 0 : index
    %c0_9 = arith.constant 0 : index
    %12 = vector.load %arg5[%c0_8, %c0_9] : memref<64x64xbf16, #tpu.memory_space<vmem>>, vector<64x64xbf16>
    %cst = arith.constant dense<0.000000e+00> : vector<128x64xf32>
    %13 = tpu.matmul %11, %12, %cst {dimension_numbers = #tpu.dot_dimension_numbers<[1], [0], [0], [1], [0, 0, 1, 1], [], []>} : vector<128x64xbf16>, vector<64x64xbf16>, vector<128x64xf32> -> vector<128x64xf32>
    %c0_10 = arith.constant 0 : index
    %c0_11 = arith.constant 0 : index
    %14 = vector.load %arg6[%c0_10, %c0_11] : memref<1x64xf32, #tpu.memory_space<vmem>>, vector<1x64xf32>
    %15 = vector.broadcast %14 : vector<1x64xf32> to vector<128x64xf32>
    %16 = arith.addf %13, %15 : vector<128x64xf32>
    %17 = arith.truncf %16 : vector<128x64xf32> to vector<128x64xbf16>
    %c0_12 = arith.constant 0 : index
    %c0_13 = arith.constant 0 : index
    %c0_14 = arith.constant 0 : index
    %18 = vector.load %arg10[%c0_12, %c0_13, %c0_14] : memref<1x128x64xbf16, #tpu.memory_space<vmem>>, vector<1x128x64xbf16>
    %19 = vector.shape_cast %18 : vector<1x128x64xbf16> to vector<128x64xbf16>
    %20 = vector.shape_cast %17 : vector<128x64xbf16> to vector<1x128x64xbf16>
    tpu.vector_store %arg10[%c0_12, %c0_13, %c0_14], %20 {strides = array<i32>} : memref<1x128x64xbf16, #tpu.memory_space<vmem>>, vector<1x128x64xbf16>,
    %c0_15 = arith.constant 0 : index
    %c0_16 = arith.constant 0 : index
    %21 = vector.load %arg7[%c0_15, %c0_16] : memref<1x64xf32, #tpu.memory_space<vmem>>, vector<1x64xf32>
    %c0_17 = arith.constant 0 : index
    %c0_18 = arith.constant 0 : index
    %22 = vector.load %arg8[%c0_17, %c0_18] : memref<1x64xf32, #tpu.memory_space<vmem>>, vector<1x64xf32>
    %cst_19 = arith.constant dense<0.000000e+00> : vector<128xf32>
    %23 = vector.multi_reduction <add>, %16, %cst_19 [1] : vector<128x64xf32> to vector<128xf32>
    %24 = vector.shape_cast %23 : vector<128xf32> to vector<128x1xf32>
    %cst_20 = arith.constant 6.400000e+01 : f32
    %25 = vector.broadcast %cst_20 : f32 to vector<128x1xf32>
    %26 = arith.divf %24, %25 : vector<128x1xf32>
    %27 = vector.broadcast %26 : vector<128x1xf32> to vector<128x64xf32>
    %28 = arith.subf %16, %27 : vector<128x64xf32>
    %29 = arith.mulf %28, %28 : vector<128x64xf32>
    %cst_21 = arith.constant dense<0.000000e+00> : vector<128xf32>
    %30 = vector.multi_reduction <add>, %29, %cst_21 [1] : vector<128x64xf32> to vector<128xf32>
    %31 = vector.shape_cast %30 : vector<128xf32> to vector<128x1xf32>
    %cst_22 = arith.constant 6.400000e+01 : f32
    %32 = vector.broadcast %cst_22 : f32 to vector<128x1xf32>
    %33 = arith.divf %31, %32 : vector<128x1xf32>
    %34 = vector.broadcast %26 : vector<128x1xf32> to vector<128x64xf32>
    %35 = arith.subf %16, %34 : vector<128x64xf32>
    %cst_23 = arith.constant 9.99999974E-6 : f32
    %36 = vector.broadcast %cst_23 : f32 to vector<128x1xf32>
    %37 = arith.addf %33, %36 : vector<128x1xf32>
    %38 = math.rsqrt %37 : vector<128x1xf32>
    %39 = vector.broadcast %38 : vector<128x1xf32> to vector<128x64xf32>
    %40 = arith.mulf %35, %39 : vector<128x64xf32>
    %41 = vector.broadcast %21 : vector<1x64xf32> to vector<128x64xf32>
    %42 = arith.mulf %40, %41 : vector<128x64xf32>
    %43 = vector.broadcast %22 : vector<1x64xf32> to vector<128x64xf32>
    %44 = arith.addf %42, %43 : vector<128x64xf32>
    %45 = arith.truncf %44 : vector<128x64xf32> to vector<128x64xbf16>
    %c0_24 = arith.constant 0 : index
    %c0_25 = arith.constant 0 : index
    %46 = vector.load %arg9[%c0_24, %c0_25] : memref<64x192xbf16, #tpu.memory_space<vmem>>, vector<64x192xbf16>
    %cst_26 = arith.constant dense<0.000000e+00> : vector<128x192xf32>
    %47 = tpu.matmul %45, %46, %cst_26 {dimension_numbers = #tpu.dot_dimension_numbers<[1], [0], [0], [1], [0, 0, 1, 1], [], []>} : vector<128x64xbf16>, vector<64x192xbf16>, vector<128x192xf32> -> vector<128x192xf32>
    %48 = arith.truncf %47 : vector<128x192xf32> to vector<128x192xbf16>
    %c0_27 = arith.constant 0 : index
    %c0_28 = arith.constant 0 : index
    %c0_29 = arith.constant 0 : index
    %49 = vector.load %arg11[%c0_27, %c0_28, %c0_29] : memref<1x128x192xbf16, #tpu.memory_space<vmem>>, vector<1x128x192xbf16>
    %50 = vector.shape_cast %49 : vector<1x128x192xbf16> to vector<128x192xbf16>
    %51 = vector.shape_cast %48 : vector<128x192xbf16> to vector<1x128x192xbf16>
    tpu.vector_store %arg11[%c0_27, %c0_28, %c0_29], %51 {strides = array<i32>} : memref<1x128x192xbf16, #tpu.memory_space<vmem>>, vector<1x128x192xbf16>,
    return
  }
  func.func @transform_0(%arg0: i32, %arg1: i32) -> (i32, i32, i32) {
    %c0_i32 = arith.constant 0 : i32
    %c0_i32_0 = arith.constant 0 : i32
    return %arg0, %arg1, %c0_i32 : i32, i32, i32
  }
  func.func @transform_1(%arg0: i32, %arg1: i32) -> (i32, i32, i32) {
    %c0_i32 = arith.constant 0 : i32
    %c0_i32_0 = arith.constant 0 : i32
    %c0_i32_1 = arith.constant 0 : i32
    return %arg0, %c0_i32, %c0_i32_0 : i32, i32, i32
  }
  func.func @transform_2(%arg0: i32, %arg1: i32) -> (i32, i32, i32) {
    %c0_i32 = arith.constant 0 : i32
    %c0_i32_0 = arith.constant 0 : i32
    %c0_i32_1 = arith.constant 0 : i32
    return %arg0, %c0_i32, %c0_i32_0 : i32, i32, i32
  }
  func.func @transform_3(%arg0: i32, %arg1: i32) -> (i32, i32) {
    %c0_i32 = arith.constant 0 : i32
    %c0_i32_0 = arith.constant 0 : i32
    %c0_i32_1 = arith.constant 0 : i32
    return %c0_i32, %c0_i32_0 : i32, i32
  }
  func.func @transform_4(%arg0: i32, %arg1: i32) -> (i32, i32) {
    %c0_i32 = arith.constant 0 : i32
    %c0_i32_0 = arith.constant 0 : i32
    %c0_i32_1 = arith.constant 0 : i32
    return %c0_i32, %c0_i32_0 : i32, i32
  }
  func.func @transform_5(%arg0: i32, %arg1: i32) -> (i32, i32) {
    %c0_i32 = arith.constant 0 : i32
    %c0_i32_0 = arith.constant 0 : i32
    %c0_i32_1 = arith.constant 0 : i32
    return %c0_i32, %c0_i32_0 : i32, i32
  }
  func.func @transform_6(%arg0: i32, %arg1: i32) -> (i32, i32) {
    %c0_i32 = arith.constant 0 : i32
    %c0_i32_0 = arith.constant 0 : i32
    %c0_i32_1 = arith.constant 0 : i32
    return %c0_i32, %c0_i32_0 : i32, i32
  }
  func.func @transform_7(%arg0: i32, %arg1: i32) -> (i32, i32) {
    %c0_i32 = arith.constant 0 : i32
    %c0_i32_0 = arith.constant 0 : i32
    %c0_i32_1 = arith.constant 0 : i32
    return %c0_i32, %c0_i32_0 : i32, i32
  }
  func.func @transform_8(%arg0: i32, %arg1: i32) -> (i32, i32, i32) {
    %c0_i32 = arith.constant 0 : i32
    %c0_i32_0 = arith.constant 0 : i32
    return %arg0, %arg1, %c0_i32 : i32, i32, i32
  }
  func.func @transform_9(%arg0: i32, %arg1: i32) -> (i32, i32, i32) {
    %c0_i32 = arith.constant 0 : i32
    %c0_i32_0 = arith.constant 0 : i32
    return %arg0, %arg1, %c0_i32 : i32, i32, i32
  }
}

module attributes {stable_mosaic.version = 11 : i64} {
  func.func @kernel(%arg0: i32, %arg1: i32, %arg2: i32, %arg3: memref<1x64x64xbf16, #tpu.memory_space<vmem>>, %arg4: memref<1x64x64xbf16, #tpu.memory_space<vmem>>, %arg5: memref<1x2x64x32xbf16, #tpu.memory_space<vmem>>, %arg6: memref<1x2x64x32xbf16, #tpu.memory_space<vmem>>, %arg7: memref<1x2x64x32xbf16, #tpu.memory_space<vmem>>, %arg8: memref<1x2x8x32xbf16, #tpu.memory_space<vmem>>, %arg9: memref<1x2x8x32xbf16, #tpu.memory_space<vmem>>, %arg10: memref<2x32x64xbf16, #tpu.memory_space<vmem>>, %arg11: memref<1x64xf32, #tpu.memory_space<vmem>>, %arg12: memref<1x64xf32, #tpu.memory_space<vmem>>, %arg13: memref<1x64xf32, #tpu.memory_space<vmem>>, %arg14: memref<64x64xbf16, #tpu.memory_space<vmem>>, %arg15: memref<2x32x64xbf16, #tpu.memory_space<vmem>>, %arg16: memref<1x64xf32, #tpu.memory_space<vmem>>, %arg17: memref<1x64xf32, #tpu.memory_space<vmem>>, %arg18: memref<1x64xf32, #tpu.memory_space<vmem>>, %arg19: memref<64x256xbf16, #tpu.memory_space<vmem>>, %arg20: memref<1x256xf32, #tpu.memory_space<vmem>>, %arg21: memref<64x256xbf16, #tpu.memory_space<vmem>>, %arg22: memref<1x256xf32, #tpu.memory_space<vmem>>, %arg23: memref<256x64xbf16, #tpu.memory_space<vmem>>, %arg24: memref<1x64xf32, #tpu.memory_space<vmem>>, %arg25: memref<64x64xbf16, #tpu.memory_space<vmem>>, %arg26: memref<1x64xf32, #tpu.memory_space<vmem>>, %arg27: memref<1x64x64xf32, #tpu.memory_space<vmem>>, %arg28: memref<2x64x1xf32, #tpu.memory_space<vmem>>, %arg29: memref<2x64x1xf32, #tpu.memory_space<vmem>>, %arg30: memref<2x64x32xf32, #tpu.memory_space<vmem>>) attributes {dimension_semantics = [#tpu.dimension_semantics<parallel>, #tpu.dimension_semantics<parallel>, #tpu.dimension_semantics<arbitrary>], iteration_bounds = array<i64: 2, 4, 4>, scalar_prefetch = 0 : i64, scratch_operands = 3 : i64, tpu.core_type = #tpu.core_type<tc>, window_params = [{transform_indices = @transform_0, window_bounds = array<i64: 1, 64, 64>}, {transform_indices = @transform_1, window_bounds = array<i64: 1, 64, 64>}, {transform_indices = @transform_2, window_bounds = array<i64: 1, 2, 64, 32>}, {transform_indices = @transform_3, window_bounds = array<i64: 1, 2, 64, 32>}, {transform_indices = @transform_4, window_bounds = array<i64: 1, 2, 64, 32>}, {transform_indices = @transform_5, window_bounds = array<i64: 1, 2, 8, 32>}, {transform_indices = @transform_6, window_bounds = array<i64: 1, 2, 8, 32>}, {pipeline_mode = #tpu.pipeline_mode<synchronous>, transform_indices = @transform_7, window_bounds = array<i64: 2, 32, 64>}, {pipeline_mode = #tpu.pipeline_mode<synchronous>, transform_indices = @transform_8, window_bounds = array<i64: 1, 64>}, {pipeline_mode = #tpu.pipeline_mode<synchronous>, transform_indices = @transform_9, window_bounds = array<i64: 1, 64>}, {pipeline_mode = #tpu.pipeline_mode<synchronous>, transform_indices = @transform_10, window_bounds = array<i64: 1, 64>}, {pipeline_mode = #tpu.pipeline_mode<synchronous>, transform_indices = @transform_11, window_bounds = array<i64: 64, 64>}, {pipeline_mode = #tpu.pipeline_mode<synchronous>, transform_indices = @transform_12, window_bounds = array<i64: 2, 32, 64>}, {pipeline_mode = #tpu.pipeline_mode<synchronous>, transform_indices = @transform_13, window_bounds = array<i64: 1, 64>}, {pipeline_mode = #tpu.pipeline_mode<synchronous>, transform_indices = @transform_14, window_bounds = array<i64: 1, 64>}, {pipeline_mode = #tpu.pipeline_mode<synchronous>, transform_indices = @transform_15, window_bounds = array<i64: 1, 64>}, {pipeline_mode = #tpu.pipeline_mode<synchronous>, transform_indices = @transform_16, window_bounds = array<i64: 64, 256>}, {pipeline_mode = #tpu.pipeline_mode<synchronous>, transform_indices = @transform_17, window_bounds = array<i64: 1, 256>}, {pipeline_mode = #tpu.pipeline_mode<synchronous>, transform_indices = @transform_18, window_bounds = array<i64: 64, 256>}, {pipeline_mode = #tpu.pipeline_mode<synchronous>, transform_indices = @transform_19, window_bounds = array<i64: 1, 256>}, {pipeline_mode = #tpu.pipeline_mode<synchronous>, transform_indices = @transform_20, window_bounds = array<i64: 256, 64>}, {pipeline_mode = #tpu.pipeline_mode<synchronous>, transform_indices = @transform_21, window_bounds = array<i64: 1, 64>}, {pipeline_mode = #tpu.pipeline_mode<synchronous>, transform_indices = @transform_22, window_bounds = array<i64: 64, 64>}, {pipeline_mode = #tpu.pipeline_mode<synchronous>, transform_indices = @transform_23, window_bounds = array<i64: 1, 64>}, {transform_indices = @transform_24, window_bounds = array<i64: 1, 64, 64>}]} {
    %c0_i32 = arith.constant 0 : i32
    %0 = arith.cmpi eq, %arg2, %c0_i32 : i32
    %1 = arith.extui %0 : i1 to i32
    %c0_i32_0 = arith.constant 0 : i32
    %2 = arith.cmpi ne, %1, %c0_i32_0 : i32
    scf.if %2 {
      %cst_34 = arith.constant 0xFF800000 : f32
      %36 = vector.broadcast %cst_34 : f32 to vector<2x64x1xf32>
      %c0_35 = arith.constant 0 : index
      %c0_36 = arith.constant 0 : index
      %c0_37 = arith.constant 0 : index
      %37 = vector.load %arg28[%c0_35, %c0_36, %c0_37] : memref<2x64x1xf32, #tpu.memory_space<vmem>>, vector<2x64x1xf32>
      tpu.vector_store %arg28[%c0_35, %c0_36, %c0_37], %36 {strides = array<i32>} : memref<2x64x1xf32, #tpu.memory_space<vmem>>, vector<2x64x1xf32>,
      %cst_38 = arith.constant 0.000000e+00 : f32
      %38 = vector.broadcast %cst_38 : f32 to vector<2x64x1xf32>
      %c0_39 = arith.constant 0 : index
      %c0_40 = arith.constant 0 : index
      %c0_41 = arith.constant 0 : index
      %39 = vector.load %arg29[%c0_39, %c0_40, %c0_41] : memref<2x64x1xf32, #tpu.memory_space<vmem>>, vector<2x64x1xf32>
      tpu.vector_store %arg29[%c0_39, %c0_40, %c0_41], %38 {strides = array<i32>} : memref<2x64x1xf32, #tpu.memory_space<vmem>>, vector<2x64x1xf32>,
      %cst_42 = arith.constant 0.000000e+00 : f32
      %40 = vector.broadcast %cst_42 : f32 to vector<2x64x32xf32>
      %c0_43 = arith.constant 0 : index
      %c0_44 = arith.constant 0 : index
      %c0_45 = arith.constant 0 : index
      %41 = vector.load %arg30[%c0_43, %c0_44, %c0_45] : memref<2x64x32xf32, #tpu.memory_space<vmem>>, vector<2x64x32xf32>
      tpu.vector_store %arg30[%c0_43, %c0_44, %c0_45], %40 {strides = array<i32>} : memref<2x64x32xf32, #tpu.memory_space<vmem>>, vector<2x64x32xf32>,
    } else {
    }
    %c0 = arith.constant 0 : index
    %c0_1 = arith.constant 0 : index
    %c0_2 = arith.constant 0 : index
    %c0_3 = arith.constant 0 : index
    %3 = vector.load %arg5[%c0, %c0_1, %c0_2, %c0_3] : memref<1x2x64x32xbf16, #tpu.memory_space<vmem>>, vector<1x2x64x32xbf16>
    %4 = vector.shape_cast %3 : vector<1x2x64x32xbf16> to vector<2x64x32xbf16>
    %c0_4 = arith.constant 0 : index
    %c0_5 = arith.constant 0 : index
    %c0_6 = arith.constant 0 : index
    %c0_7 = arith.constant 0 : index
    %5 = vector.load %arg6[%c0_4, %c0_5, %c0_6, %c0_7] : memref<1x2x64x32xbf16, #tpu.memory_space<vmem>>, vector<1x2x64x32xbf16>
    %6 = vector.shape_cast %5 : vector<1x2x64x32xbf16> to vector<2x64x32xbf16>
    "tpu.trace_start"() <{level = 10 : i32, message = "hqd,hkd->hqk"}> : () -> ()
    %cst = arith.constant dense<0.000000e+00> : vector<2x64x64xf32>
    %7 = tpu.matmul %4, %6, %cst {dimension_numbers = #tpu.dot_dimension_numbers<[2], [2], [1], [1], [0, 0, 0, 1, 1, 1], [0], [0]>} : vector<2x64x32xbf16>, vector<2x64x32xbf16>, vector<2x64x64xf32> -> vector<2x64x64xf32>
    "tpu.trace_stop"() : () -> ()
    %c0_8 = arith.constant 0 : index
    %c0_9 = arith.constant 0 : index
    %c0_10 = arith.constant 0 : index
    %8 = vector.load %arg28[%c0_8, %c0_9, %c0_10] : memref<2x64x1xf32, #tpu.memory_space<vmem>>, vector<2x64x1xf32>
    %cst_11 = arith.constant dense<0xFF800000> : vector<2x64xf32>
    %9 = vector.multi_reduction <maximumf>, %7, %cst_11 [2] : vector<2x64x64xf32> to vector<2x64xf32>
    %10 = vector.shape_cast %9 : vector<2x64xf32> to vector<2x64x1xf32>
    %11 = arith.maximumf %8, %10 : vector<2x64x1xf32>
    %12 = arith.subf %8, %11 : vector<2x64x1xf32>
    %13 = math.exp %12 : vector<2x64x1xf32>
    %14 = vector.broadcast %11 : vector<2x64x1xf32> to vector<2x64x64xf32>
    %15 = arith.subf %7, %14 : vector<2x64x64xf32>
    %16 = math.exp %15 : vector<2x64x64xf32>
    %c0_12 = arith.constant 0 : index
    %c0_13 = arith.constant 0 : index
    %c0_14 = arith.constant 0 : index
    %17 = vector.load %arg29[%c0_12, %c0_13, %c0_14] : memref<2x64x1xf32, #tpu.memory_space<vmem>>, vector<2x64x1xf32>
    %18 = arith.mulf %13, %17 : vector<2x64x1xf32>
    %cst_15 = arith.constant dense<0.000000e+00> : vector<2x64xf32>
    %19 = vector.multi_reduction <add>, %16, %cst_15 [2] : vector<2x64x64xf32> to vector<2x64xf32>
    %20 = vector.shape_cast %19 : vector<2x64xf32> to vector<2x64x1xf32>
    %21 = arith.addf %18, %20 : vector<2x64x1xf32>
    %c0_16 = arith.constant 0 : index
    %c0_17 = arith.constant 0 : index
    %c0_18 = arith.constant 0 : index
    %22 = vector.load %arg29[%c0_16, %c0_17, %c0_18] : memref<2x64x1xf32, #tpu.memory_space<vmem>>, vector<2x64x1xf32>
    tpu.vector_store %arg29[%c0_16, %c0_17, %c0_18], %21 {strides = array<i32>} : memref<2x64x1xf32, #tpu.memory_space<vmem>>, vector<2x64x1xf32>,
    %c0_19 = arith.constant 0 : index
    %c0_20 = arith.constant 0 : index
    %c0_21 = arith.constant 0 : index
    %23 = vector.load %arg30[%c0_19, %c0_20, %c0_21] : memref<2x64x32xf32, #tpu.memory_space<vmem>>, vector<2x64x32xf32>
    %24 = vector.broadcast %13 : vector<2x64x1xf32> to vector<2x64x32xf32>
    %25 = arith.mulf %24, %23 : vector<2x64x32xf32>
    %26 = arith.truncf %16 : vector<2x64x64xf32> to vector<2x64x64xbf16>
    %c0_22 = arith.constant 0 : index
    %c0_23 = arith.constant 0 : index
    %c0_24 = arith.constant 0 : index
    %c0_25 = arith.constant 0 : index
    %27 = vector.load %arg7[%c0_22, %c0_23, %c0_24, %c0_25] : memref<1x2x64x32xbf16, #tpu.memory_space<vmem>>, vector<1x2x64x32xbf16>
    %28 = vector.shape_cast %27 : vector<1x2x64x32xbf16> to vector<2x64x32xbf16>
    "tpu.trace_start"() <{level = 10 : i32, message = "hqk,hkd->hqd"}> : () -> ()
    %cst_26 = arith.constant dense<0.000000e+00> : vector<2x64x32xf32>
    %29 = tpu.matmul %26, %28, %cst_26 {dimension_numbers = #tpu.dot_dimension_numbers<[2], [1], [1], [2], [0, 0, 0, 1, 1, 2], [0], [0]>} : vector<2x64x64xbf16>, vector<2x64x32xbf16>, vector<2x64x32xf32> -> vector<2x64x32xf32>
    "tpu.trace_stop"() : () -> ()
    %30 = arith.addf %25, %29 : vector<2x64x32xf32>
    %c0_27 = arith.constant 0 : index
    %c0_28 = arith.constant 0 : index
    %c0_29 = arith.constant 0 : index
    %31 = vector.load %arg30[%c0_27, %c0_28, %c0_29] : memref<2x64x32xf32, #tpu.memory_space<vmem>>, vector<2x64x32xf32>
    tpu.vector_store %arg30[%c0_27, %c0_28, %c0_29], %30 {strides = array<i32>} : memref<2x64x32xf32, #tpu.memory_space<vmem>>, vector<2x64x32xf32>,
    %c0_30 = arith.constant 0 : index
    %c0_31 = arith.constant 0 : index
    %c0_32 = arith.constant 0 : index
    %32 = vector.load %arg28[%c0_30, %c0_31, %c0_32] : memref<2x64x1xf32, #tpu.memory_space<vmem>>, vector<2x64x1xf32>
    tpu.vector_store %arg28[%c0_30, %c0_31, %c0_32], %11 {strides = array<i32>} : memref<2x64x1xf32, #tpu.memory_space<vmem>>, vector<2x64x1xf32>,
    %c3_i32 = arith.constant 3 : i32
    %33 = arith.cmpi eq, %arg2, %c3_i32 : i32
    %34 = arith.extui %33 : i1 to i32
    %c0_i32_33 = arith.constant 0 : i32
    %35 = arith.cmpi ne, %34, %c0_i32_33 : i32
    scf.if %35 {
      %c0_34 = arith.constant 0 : index
      %c0_35 = arith.constant 0 : index
      %c0_36 = arith.constant 0 : index
      %36 = vector.load %arg30[%c0_34, %c0_35, %c0_36] : memref<2x64x32xf32, #tpu.memory_space<vmem>>, vector<2x64x32xf32>
      %c0_37 = arith.constant 0 : index
      %c0_38 = arith.constant 0 : index
      %c0_39 = arith.constant 0 : index
      %37 = vector.load %arg29[%c0_37, %c0_38, %c0_39] : memref<2x64x1xf32, #tpu.memory_space<vmem>>, vector<2x64x1xf32>
      %38 = tpu.reciprocal %37 {approx = true} : vector<2x64x1xf32> -> vector<2x64x1xf32>
      %39 = vector.broadcast %38 : vector<2x64x1xf32> to vector<2x64x32xf32>
      %40 = arith.mulf %36, %39 : vector<2x64x32xf32>
      %41 = arith.truncf %40 : vector<2x64x32xf32> to vector<2x64x32xbf16>
      %c0_40 = arith.constant 0 : index
      %c0_41 = arith.constant 0 : index
      %c0_42 = arith.constant 0 : index
      %42 = vector.load %arg10[%c0_40, %c0_41, %c0_42] : memref<2x32x64xbf16, #tpu.memory_space<vmem>>, vector<2x32x64xbf16>
      "tpu.trace_start"() <{level = 10 : i32, message = "hqd,hdc->hqc"}> : () -> ()
      %cst_43 = arith.constant dense<0.000000e+00> : vector<2x64x64xf32>
      %43 = tpu.matmul %41, %42, %cst_43 {dimension_numbers = #tpu.dot_dimension_numbers<[2], [1], [1], [2], [0, 0, 0, 1, 1, 2], [0], [0]>} : vector<2x64x32xbf16>, vector<2x32x64xbf16>, vector<2x64x64xf32> -> vector<2x64x64xf32>
      "tpu.trace_stop"() : () -> ()
      %cst_44 = arith.constant dense<0.000000e+00> : vector<64x64xf32>
      %44 = vector.multi_reduction <add>, %43, %cst_44 [0] : vector<2x64x64xf32> to vector<64x64xf32>
      %c0_45 = arith.constant 0 : index
      %c0_46 = arith.constant 0 : index
      %45 = vector.load %arg11[%c0_45, %c0_46] : memref<1x64xf32, #tpu.memory_space<vmem>>, vector<1x64xf32>
      %46 = vector.broadcast %45 : vector<1x64xf32> to vector<64x64xf32>
      %47 = arith.addf %44, %46 : vector<64x64xf32>
      %c0_47 = arith.constant 0 : index
      %c0_48 = arith.constant 0 : index
      %c0_49 = arith.constant 0 : index
      %48 = vector.load %arg4[%c0_47, %c0_48, %c0_49] : memref<1x64x64xbf16, #tpu.memory_space<vmem>>, vector<1x64x64xbf16>
      %49 = vector.shape_cast %48 : vector<1x64x64xbf16> to vector<64x64xbf16>
      %50 = arith.extf %49 : vector<64x64xbf16> to vector<64x64xf32>
      %51 = arith.addf %47, %50 : vector<64x64xf32>
      %c0_50 = arith.constant 0 : index
      %c0_51 = arith.constant 0 : index
      %52 = vector.load %arg12[%c0_50, %c0_51] : memref<1x64xf32, #tpu.memory_space<vmem>>, vector<1x64xf32>
      %c0_52 = arith.constant 0 : index
      %c0_53 = arith.constant 0 : index
      %53 = vector.load %arg13[%c0_52, %c0_53] : memref<1x64xf32, #tpu.memory_space<vmem>>, vector<1x64xf32>
      %cst_54 = arith.constant dense<0.000000e+00> : vector<64xf32>
      %54 = vector.multi_reduction <add>, %51, %cst_54 [1] : vector<64x64xf32> to vector<64xf32>
      %55 = vector.shape_cast %54 : vector<64xf32> to vector<64x1xf32>
      %cst_55 = arith.constant 6.400000e+01 : f32
      %56 = vector.broadcast %cst_55 : f32 to vector<64x1xf32>
      %57 = arith.divf %55, %56 : vector<64x1xf32>
      %58 = vector.broadcast %57 : vector<64x1xf32> to vector<64x64xf32>
      %59 = arith.subf %51, %58 : vector<64x64xf32>
      %60 = arith.mulf %59, %59 : vector<64x64xf32>
      %cst_56 = arith.constant dense<0.000000e+00> : vector<64xf32>
      %61 = vector.multi_reduction <add>, %60, %cst_56 [1] : vector<64x64xf32> to vector<64xf32>
      %62 = vector.shape_cast %61 : vector<64xf32> to vector<64x1xf32>
      %cst_57 = arith.constant 6.400000e+01 : f32
      %63 = vector.broadcast %cst_57 : f32 to vector<64x1xf32>
      %64 = arith.divf %62, %63 : vector<64x1xf32>
      %65 = vector.broadcast %57 : vector<64x1xf32> to vector<64x64xf32>
      %66 = arith.subf %51, %65 : vector<64x64xf32>
      %cst_58 = arith.constant 9.99999974E-6 : f32
      %67 = vector.broadcast %cst_58 : f32 to vector<64x1xf32>
      %68 = arith.addf %64, %67 : vector<64x1xf32>
      %69 = math.rsqrt %68 : vector<64x1xf32>
      %70 = vector.broadcast %69 : vector<64x1xf32> to vector<64x64xf32>
      %71 = arith.mulf %66, %70 : vector<64x64xf32>
      %72 = vector.broadcast %52 : vector<1x64xf32> to vector<64x64xf32>
      %73 = arith.mulf %71, %72 : vector<64x64xf32>
      %74 = vector.broadcast %53 : vector<1x64xf32> to vector<64x64xf32>
      %75 = arith.addf %73, %74 : vector<64x64xf32>
      %76 = arith.truncf %75 : vector<64x64xf32> to vector<64x64xbf16>
      %c0_59 = arith.constant 0 : index
      %c0_60 = arith.constant 0 : index
      %77 = vector.load %arg14[%c0_59, %c0_60] : memref<64x64xbf16, #tpu.memory_space<vmem>>, vector<64x64xbf16>
      %cst_61 = arith.constant dense<0.000000e+00> : vector<64x64xf32>
      %78 = tpu.matmul %76, %77, %cst_61 {dimension_numbers = #tpu.dot_dimension_numbers<[1], [0], [0], [1], [0, 0, 1, 1], [], []>} : vector<64x64xbf16>, vector<64x64xbf16>, vector<64x64xf32> -> vector<64x64xf32>
      %79 = arith.truncf %78 : vector<64x64xf32> to vector<64x64xbf16>
      %80 = vector.extract_strided_slice %79 {offsets = [0, 0], sizes = [64, 32], strides = [1, 1]} : vector<64x64xbf16> to vector<64x32xbf16>
      %81 = vector.extract_strided_slice %79 {offsets = [0, 32], sizes = [64, 32], strides = [1, 1]} : vector<64x64xbf16> to vector<64x32xbf16>
      %82 = vector.shape_cast %80 : vector<64x32xbf16> to vector<1x64x32xbf16>
      %83 = vector.shape_cast %81 : vector<64x32xbf16> to vector<1x64x32xbf16>
      %84 = tpu.concatenate %82, %83 in 0 : vector<1x64x32xbf16>, vector<1x64x32xbf16> -> vector<2x64x32xbf16>
      %c0_62 = arith.constant 0 : index
      %c0_63 = arith.constant 0 : index
      %c0_64 = arith.constant 0 : index
      %c0_65 = arith.constant 0 : index
      %85 = vector.load %arg8[%c0_62, %c0_63, %c0_64, %c0_65] : memref<1x2x8x32xbf16, #tpu.memory_space<vmem>>, vector<1x2x8x32xbf16>
      %86 = vector.shape_cast %85 : vector<1x2x8x32xbf16> to vector<2x8x32xbf16>
      "tpu.trace_start"() <{level = 10 : i32, message = "hqd,hsd->hqs"}> : () -> ()
      %cst_66 = arith.constant dense<0.000000e+00> : vector<2x64x8xf32>
      %87 = tpu.matmul %84, %86, %cst_66 {dimension_numbers = #tpu.dot_dimension_numbers<[2], [2], [1], [1], [0, 0, 0, 1, 1, 1], [0], [0]>} : vector<2x64x32xbf16>, vector<2x8x32xbf16>, vector<2x64x8xf32> -> vector<2x64x8xf32>
      "tpu.trace_stop"() : () -> ()
      %cst_67 = arith.constant dense<0xFF800000> : vector<2x64xf32>
      %88 = vector.multi_reduction <maximumf>, %87, %cst_67 [2] : vector<2x64x8xf32> to vector<2x64xf32>
      %89 = vector.shape_cast %88 : vector<2x64xf32> to vector<2x64x1xf32>
      %90 = vector.broadcast %89 : vector<2x64x1xf32> to vector<2x64x8xf32>
      %91 = arith.subf %87, %90 : vector<2x64x8xf32>
      %92 = math.exp %91 : vector<2x64x8xf32>
      %cst_68 = arith.constant dense<0.000000e+00> : vector<2x64xf32>
      %93 = vector.multi_reduction <add>, %92, %cst_68 [2] : vector<2x64x8xf32> to vector<2x64xf32>
      %94 = vector.shape_cast %93 : vector<2x64xf32> to vector<2x64x1xf32>
      %95 = vector.broadcast %94 : vector<2x64x1xf32> to vector<2x64x8xf32>
      %96 = arith.divf %92, %95 : vector<2x64x8xf32>
      %97 = arith.truncf %96 : vector<2x64x8xf32> to vector<2x64x8xbf16>
      %c0_69 = arith.constant 0 : index
      %c0_70 = arith.constant 0 : index
      %c0_71 = arith.constant 0 : index
      %c0_72 = arith.constant 0 : index
      %98 = vector.load %arg9[%c0_69, %c0_70, %c0_71, %c0_72] : memref<1x2x8x32xbf16, #tpu.memory_space<vmem>>, vector<1x2x8x32xbf16>
      %99 = vector.shape_cast %98 : vector<1x2x8x32xbf16> to vector<2x8x32xbf16>
      "tpu.trace_start"() <{level = 10 : i32, message = "hqs,hsd->hqd"}> : () -> ()
      %cst_73 = arith.constant dense<0.000000e+00> : vector<2x64x32xf32>
      %100 = tpu.matmul %97, %99, %cst_73 {dimension_numbers = #tpu.dot_dimension_numbers<[2], [1], [1], [2], [0, 0, 0, 1, 1, 2], [0], [0]>} : vector<2x64x8xbf16>, vector<2x8x32xbf16>, vector<2x64x32xf32> -> vector<2x64x32xf32>
      "tpu.trace_stop"() : () -> ()
      %101 = arith.truncf %100 : vector<2x64x32xf32> to vector<2x64x32xbf16>
      %c0_74 = arith.constant 0 : index
      %c0_75 = arith.constant 0 : index
      %c0_76 = arith.constant 0 : index
      %102 = vector.load %arg15[%c0_74, %c0_75, %c0_76] : memref<2x32x64xbf16, #tpu.memory_space<vmem>>, vector<2x32x64xbf16>
      "tpu.trace_start"() <{level = 10 : i32, message = "hqd,hdc->hqc"}> : () -> ()
      %cst_77 = arith.constant dense<0.000000e+00> : vector<2x64x64xf32>
      %103 = tpu.matmul %101, %102, %cst_77 {dimension_numbers = #tpu.dot_dimension_numbers<[2], [1], [1], [2], [0, 0, 0, 1, 1, 2], [0], [0]>} : vector<2x64x32xbf16>, vector<2x32x64xbf16>, vector<2x64x64xf32> -> vector<2x64x64xf32>
      "tpu.trace_stop"() : () -> ()
      %cst_78 = arith.constant dense<0.000000e+00> : vector<64x64xf32>
      %104 = vector.multi_reduction <add>, %103, %cst_78 [0] : vector<2x64x64xf32> to vector<64x64xf32>
      %c0_79 = arith.constant 0 : index
      %c0_80 = arith.constant 0 : index
      %105 = vector.load %arg16[%c0_79, %c0_80] : memref<1x64xf32, #tpu.memory_space<vmem>>, vector<1x64xf32>
      %106 = vector.broadcast %105 : vector<1x64xf32> to vector<64x64xf32>
      %107 = arith.addf %104, %106 : vector<64x64xf32>
      %108 = arith.addf %107, %51 : vector<64x64xf32>
      %c0_81 = arith.constant 0 : index
      %c0_82 = arith.constant 0 : index
      %109 = vector.load %arg17[%c0_81, %c0_82] : memref<1x64xf32, #tpu.memory_space<vmem>>, vector<1x64xf32>
      %c0_83 = arith.constant 0 : index
      %c0_84 = arith.constant 0 : index
      %110 = vector.load %arg18[%c0_83, %c0_84] : memref<1x64xf32, #tpu.memory_space<vmem>>, vector<1x64xf32>
      %cst_85 = arith.constant dense<0.000000e+00> : vector<64xf32>
      %111 = vector.multi_reduction <add>, %108, %cst_85 [1] : vector<64x64xf32> to vector<64xf32>
      %112 = vector.shape_cast %111 : vector<64xf32> to vector<64x1xf32>
      %cst_86 = arith.constant 6.400000e+01 : f32
      %113 = vector.broadcast %cst_86 : f32 to vector<64x1xf32>
      %114 = arith.divf %112, %113 : vector<64x1xf32>
      %115 = vector.broadcast %114 : vector<64x1xf32> to vector<64x64xf32>
      %116 = arith.subf %108, %115 : vector<64x64xf32>
      %117 = arith.mulf %116, %116 : vector<64x64xf32>
      %cst_87 = arith.constant dense<0.000000e+00> : vector<64xf32>
      %118 = vector.multi_reduction <add>, %117, %cst_87 [1] : vector<64x64xf32> to vector<64xf32>
      %119 = vector.shape_cast %118 : vector<64xf32> to vector<64x1xf32>
      %cst_88 = arith.constant 6.400000e+01 : f32
      %120 = vector.broadcast %cst_88 : f32 to vector<64x1xf32>
      %121 = arith.divf %119, %120 : vector<64x1xf32>
      %122 = vector.broadcast %114 : vector<64x1xf32> to vector<64x64xf32>
      %123 = arith.subf %108, %122 : vector<64x64xf32>
      %cst_89 = arith.constant 9.99999974E-6 : f32
      %124 = vector.broadcast %cst_89 : f32 to vector<64x1xf32>
      %125 = arith.addf %121, %124 : vector<64x1xf32>
      %126 = math.rsqrt %125 : vector<64x1xf32>
      %127 = vector.broadcast %126 : vector<64x1xf32> to vector<64x64xf32>
      %128 = arith.mulf %123, %127 : vector<64x64xf32>
      %129 = vector.broadcast %109 : vector<1x64xf32> to vector<64x64xf32>
      %130 = arith.mulf %128, %129 : vector<64x64xf32>
      %131 = vector.broadcast %110 : vector<1x64xf32> to vector<64x64xf32>
      %132 = arith.addf %130, %131 : vector<64x64xf32>
      %133 = arith.truncf %132 : vector<64x64xf32> to vector<64x64xbf16>
      %c0_90 = arith.constant 0 : index
      %c0_91 = arith.constant 0 : index
      %134 = vector.load %arg19[%c0_90, %c0_91] : memref<64x256xbf16, #tpu.memory_space<vmem>>, vector<64x256xbf16>
      %cst_92 = arith.constant dense<0.000000e+00> : vector<64x256xf32>
      %135 = tpu.matmul %133, %134, %cst_92 {dimension_numbers = #tpu.dot_dimension_numbers<[1], [0], [0], [1], [0, 0, 1, 1], [], []>} : vector<64x64xbf16>, vector<64x256xbf16>, vector<64x256xf32> -> vector<64x256xf32>
      %c0_93 = arith.constant 0 : index
      %c0_94 = arith.constant 0 : index
      %136 = vector.load %arg20[%c0_93, %c0_94] : memref<1x256xf32, #tpu.memory_space<vmem>>, vector<1x256xf32>
      %137 = vector.broadcast %136 : vector<1x256xf32> to vector<64x256xf32>
      %138 = arith.addf %135, %137 : vector<64x256xf32>
      %c0_95 = arith.constant 0 : index
      %c0_96 = arith.constant 0 : index
      %139 = vector.load %arg21[%c0_95, %c0_96] : memref<64x256xbf16, #tpu.memory_space<vmem>>, vector<64x256xbf16>
      %cst_97 = arith.constant dense<0.000000e+00> : vector<64x256xf32>
      %140 = tpu.matmul %133, %139, %cst_97 {dimension_numbers = #tpu.dot_dimension_numbers<[1], [0], [0], [1], [0, 0, 1, 1], [], []>} : vector<64x64xbf16>, vector<64x256xbf16>, vector<64x256xf32> -> vector<64x256xf32>
      %c0_98 = arith.constant 0 : index
      %c0_99 = arith.constant 0 : index
      %141 = vector.load %arg22[%c0_98, %c0_99] : memref<1x256xf32, #tpu.memory_space<vmem>>, vector<1x256xf32>
      %142 = vector.broadcast %141 : vector<1x256xf32> to vector<64x256xf32>
      %143 = arith.addf %140, %142 : vector<64x256xf32>
      %cst_100 = arith.constant 5.000000e-01 : f32
      %144 = vector.broadcast %cst_100 : f32 to vector<64x256xf32>
      %145 = arith.mulf %144, %143 : vector<64x256xf32>
      %cst_101 = arith.constant 0.707106769 : f32
      %146 = vector.broadcast %cst_101 : f32 to vector<64x256xf32>
      %147 = arith.mulf %143, %146 : vector<64x256xf32>
      %148 = math.erf %147 : vector<64x256xf32>
      %cst_102 = arith.constant 1.000000e+00 : f32
      %149 = vector.broadcast %cst_102 : f32 to vector<64x256xf32>
      %150 = arith.addf %149, %148 : vector<64x256xf32>
      %151 = arith.mulf %145, %150 : vector<64x256xf32>
      %152 = arith.mulf %138, %151 : vector<64x256xf32>
      %153 = arith.truncf %152 : vector<64x256xf32> to vector<64x256xbf16>
      %c0_103 = arith.constant 0 : index
      %c0_104 = arith.constant 0 : index
      %154 = vector.load %arg23[%c0_103, %c0_104] : memref<256x64xbf16, #tpu.memory_space<vmem>>, vector<256x64xbf16>
      %cst_105 = arith.constant dense<0.000000e+00> : vector<64x64xf32>
      %155 = tpu.matmul %153, %154, %cst_105 {dimension_numbers = #tpu.dot_dimension_numbers<[1], [0], [0], [1], [0, 0, 1, 1], [], []>} : vector<64x256xbf16>, vector<256x64xbf16>, vector<64x64xf32> -> vector<64x64xf32>
      %c0_106 = arith.constant 0 : index
      %c0_107 = arith.constant 0 : index
      %156 = vector.load %arg24[%c0_106, %c0_107] : memref<1x64xf32, #tpu.memory_space<vmem>>, vector<1x64xf32>
      %157 = vector.broadcast %156 : vector<1x64xf32> to vector<64x64xf32>
      %158 = arith.addf %155, %157 : vector<64x64xf32>
      %159 = arith.addf %158, %108 : vector<64x64xf32>
      %160 = arith.truncf %159 : vector<64x64xf32> to vector<64x64xbf16>
      %c0_108 = arith.constant 0 : index
      %c0_109 = arith.constant 0 : index
      %161 = vector.load %arg25[%c0_108, %c0_109] : memref<64x64xbf16, #tpu.memory_space<vmem>>, vector<64x64xbf16>
      %cst_110 = arith.constant dense<0.000000e+00> : vector<64x64xf32>
      %162 = tpu.matmul %160, %161, %cst_110 {dimension_numbers = #tpu.dot_dimension_numbers<[1], [0], [0], [1], [0, 0, 1, 1], [], []>} : vector<64x64xbf16>, vector<64x64xbf16>, vector<64x64xf32> -> vector<64x64xf32>
      %c0_111 = arith.constant 0 : index
      %c0_112 = arith.constant 0 : index
      %163 = vector.load %arg26[%c0_111, %c0_112] : memref<1x64xf32, #tpu.memory_space<vmem>>, vector<1x64xf32>
      %164 = vector.broadcast %163 : vector<1x64xf32> to vector<64x64xf32>
      %165 = arith.addf %162, %164 : vector<64x64xf32>
      %c0_113 = arith.constant 0 : index
      %c0_114 = arith.constant 0 : index
      %c0_115 = arith.constant 0 : index
      %166 = vector.load %arg3[%c0_113, %c0_114, %c0_115] : memref<1x64x64xbf16, #tpu.memory_space<vmem>>, vector<1x64x64xbf16>
      %167 = vector.shape_cast %166 : vector<1x64x64xbf16> to vector<64x64xbf16>
      %168 = arith.extf %167 : vector<64x64xbf16> to vector<64x64xf32>
      %169 = arith.addf %165, %168 : vector<64x64xf32>
      %c0_116 = arith.constant 0 : index
      %c0_117 = arith.constant 0 : index
      %c0_118 = arith.constant 0 : index
      %170 = vector.load %arg27[%c0_116, %c0_117, %c0_118] : memref<1x64x64xf32, #tpu.memory_space<vmem>>, vector<1x64x64xf32>
      %171 = vector.shape_cast %170 : vector<1x64x64xf32> to vector<64x64xf32>
      %172 = vector.shape_cast %169 : vector<64x64xf32> to vector<1x64x64xf32>
      tpu.vector_store %arg27[%c0_116, %c0_117, %c0_118], %172 {strides = array<i32>} : memref<1x64x64xf32, #tpu.memory_space<vmem>>, vector<1x64x64xf32>,
    } else {
    }
    return
  }
  func.func @transform_0(%arg0: i32, %arg1: i32, %arg2: i32) -> (i32, i32, i32) {
    %c0_i32 = arith.constant 0 : i32
    %c0_i32_0 = arith.constant 0 : i32
    return %arg0, %arg1, %c0_i32 : i32, i32, i32
  }
  func.func @transform_1(%arg0: i32, %arg1: i32, %arg2: i32) -> (i32, i32, i32) {
    %c0_i32 = arith.constant 0 : i32
    %c0_i32_0 = arith.constant 0 : i32
    return %arg0, %arg1, %c0_i32 : i32, i32, i32
  }
  func.func @transform_2(%arg0: i32, %arg1: i32, %arg2: i32) -> (i32, i32, i32, i32) {
    %c0_i32 = arith.constant 0 : i32
    %c0_i32_0 = arith.constant 0 : i32
    %c0_i32_1 = arith.constant 0 : i32
    return %arg0, %c0_i32, %arg1, %c0_i32_0 : i32, i32, i32, i32
  }
  func.func @transform_3(%arg0: i32, %arg1: i32, %arg2: i32) -> (i32, i32, i32, i32) {
    %c0_i32 = arith.constant 0 : i32
    %c0_i32_0 = arith.constant 0 : i32
    %c0_i32_1 = arith.constant 0 : i32
    return %arg0, %c0_i32, %arg2, %c0_i32_0 : i32, i32, i32, i32
  }
  func.func @transform_4(%arg0: i32, %arg1: i32, %arg2: i32) -> (i32, i32, i32, i32) {
    %c0_i32 = arith.constant 0 : i32
    %c0_i32_0 = arith.constant 0 : i32
    %c0_i32_1 = arith.constant 0 : i32
    return %arg0, %c0_i32, %arg2, %c0_i32_0 : i32, i32, i32, i32
  }
  func.func @transform_5(%arg0: i32, %arg1: i32, %arg2: i32) -> (i32, i32, i32, i32) {
    %c0_i32 = arith.constant 0 : i32
    %c0_i32_0 = arith.constant 0 : i32
    %c0_i32_1 = arith.constant 0 : i32
    %c0_i32_2 = arith.constant 0 : i32
    return %arg0, %c0_i32, %c0_i32_0, %c0_i32_1 : i32, i32, i32, i32
  }
  func.func @transform_6(%arg0: i32, %arg1: i32, %arg2: i32) -> (i32, i32, i32, i32) {
    %c0_i32 = arith.constant 0 : i32
    %c0_i32_0 = arith.constant 0 : i32
    %c0_i32_1 = arith.constant 0 : i32
    %c0_i32_2 = arith.constant 0 : i32
    return %arg0, %c0_i32, %c0_i32_0, %c0_i32_1 : i32, i32, i32, i32
  }
  func.func @transform_7(%arg0: i32, %arg1: i32, %arg2: i32) -> (i32, i32, i32) {
    %c0_i32 = arith.constant 0 : i32
    %c0_i32_0 = arith.constant 0 : i32
    %c0_i32_1 = arith.constant 0 : i32
    %c0_i32_2 = arith.constant 0 : i32
    return %c0_i32, %c0_i32_0, %c0_i32_1 : i32, i32, i32
  }
  func.func @transform_8(%arg0: i32, %arg1: i32, %arg2: i32) -> (i32, i32) {
    %c0_i32 = arith.constant 0 : i32
    %c0_i32_0 = arith.constant 0 : i32
    %c0_i32_1 = arith.constant 0 : i32
    return %c0_i32, %c0_i32_0 : i32, i32
  }
  func.func @transform_9(%arg0: i32, %arg1: i32, %arg2: i32) -> (i32, i32) {
    %c0_i32 = arith.constant 0 : i32
    %c0_i32_0 = arith.constant 0 : i32
    %c0_i32_1 = arith.constant 0 : i32
    return %c0_i32, %c0_i32_0 : i32, i32
  }
  func.func @transform_10(%arg0: i32, %arg1: i32, %arg2: i32) -> (i32, i32) {
    %c0_i32 = arith.constant 0 : i32
    %c0_i32_0 = arith.constant 0 : i32
    %c0_i32_1 = arith.constant 0 : i32
    return %c0_i32, %c0_i32_0 : i32, i32
  }
  func.func @transform_11(%arg0: i32, %arg1: i32, %arg2: i32) -> (i32, i32) {
    %c0_i32 = arith.constant 0 : i32
    %c0_i32_0 = arith.constant 0 : i32
    %c0_i32_1 = arith.constant 0 : i32
    return %c0_i32, %c0_i32_0 : i32, i32
  }
  func.func @transform_12(%arg0: i32, %arg1: i32, %arg2: i32) -> (i32, i32, i32) {
    %c0_i32 = arith.constant 0 : i32
    %c0_i32_0 = arith.constant 0 : i32
    %c0_i32_1 = arith.constant 0 : i32
    %c0_i32_2 = arith.constant 0 : i32
    return %c0_i32, %c0_i32_0, %c0_i32_1 : i32, i32, i32
  }
  func.func @transform_13(%arg0: i32, %arg1: i32, %arg2: i32) -> (i32, i32) {
    %c0_i32 = arith.constant 0 : i32
    %c0_i32_0 = arith.constant 0 : i32
    %c0_i32_1 = arith.constant 0 : i32
    return %c0_i32, %c0_i32_0 : i32, i32
  }
  func.func @transform_14(%arg0: i32, %arg1: i32, %arg2: i32) -> (i32, i32) {
    %c0_i32 = arith.constant 0 : i32
    %c0_i32_0 = arith.constant 0 : i32
    %c0_i32_1 = arith.constant 0 : i32
    return %c0_i32, %c0_i32_0 : i32, i32
  }
  func.func @transform_15(%arg0: i32, %arg1: i32, %arg2: i32) -> (i32, i32) {
    %c0_i32 = arith.constant 0 : i32
    %c0_i32_0 = arith.constant 0 : i32
    %c0_i32_1 = arith.constant 0 : i32
    return %c0_i32, %c0_i32_0 : i32, i32
  }
  func.func @transform_16(%arg0: i32, %arg1: i32, %arg2: i32) -> (i32, i32) {
    %c0_i32 = arith.constant 0 : i32
    %c0_i32_0 = arith.constant 0 : i32
    %c0_i32_1 = arith.constant 0 : i32
    return %c0_i32, %c0_i32_0 : i32, i32
  }
  func.func @transform_17(%arg0: i32, %arg1: i32, %arg2: i32) -> (i32, i32) {
    %c0_i32 = arith.constant 0 : i32
    %c0_i32_0 = arith.constant 0 : i32
    %c0_i32_1 = arith.constant 0 : i32
    return %c0_i32, %c0_i32_0 : i32, i32
  }
  func.func @transform_18(%arg0: i32, %arg1: i32, %arg2: i32) -> (i32, i32) {
    %c0_i32 = arith.constant 0 : i32
    %c0_i32_0 = arith.constant 0 : i32
    %c0_i32_1 = arith.constant 0 : i32
    return %c0_i32, %c0_i32_0 : i32, i32
  }
  func.func @transform_19(%arg0: i32, %arg1: i32, %arg2: i32) -> (i32, i32) {
    %c0_i32 = arith.constant 0 : i32
    %c0_i32_0 = arith.constant 0 : i32
    %c0_i32_1 = arith.constant 0 : i32
    return %c0_i32, %c0_i32_0 : i32, i32
  }
  func.func @transform_20(%arg0: i32, %arg1: i32, %arg2: i32) -> (i32, i32) {
    %c0_i32 = arith.constant 0 : i32
    %c0_i32_0 = arith.constant 0 : i32
    %c0_i32_1 = arith.constant 0 : i32
    return %c0_i32, %c0_i32_0 : i32, i32
  }
  func.func @transform_21(%arg0: i32, %arg1: i32, %arg2: i32) -> (i32, i32) {
    %c0_i32 = arith.constant 0 : i32
    %c0_i32_0 = arith.constant 0 : i32
    %c0_i32_1 = arith.constant 0 : i32
    return %c0_i32, %c0_i32_0 : i32, i32
  }
  func.func @transform_22(%arg0: i32, %arg1: i32, %arg2: i32) -> (i32, i32) {
    %c0_i32 = arith.constant 0 : i32
    %c0_i32_0 = arith.constant 0 : i32
    %c0_i32_1 = arith.constant 0 : i32
    return %c0_i32, %c0_i32_0 : i32, i32
  }
  func.func @transform_23(%arg0: i32, %arg1: i32, %arg2: i32) -> (i32, i32) {
    %c0_i32 = arith.constant 0 : i32
    %c0_i32_0 = arith.constant 0 : i32
    %c0_i32_1 = arith.constant 0 : i32
    return %c0_i32, %c0_i32_0 : i32, i32
  }
  func.func @transform_24(%arg0: i32, %arg1: i32, %arg2: i32) -> (i32, i32, i32) {
    %c0_i32 = arith.constant 0 : i32
    %c0_i32_0 = arith.constant 0 : i32
    return %arg0, %arg1, %c0_i32 : i32, i32, i32
  }
}

</mosaic_0001>

<llo_original>
// kernel: unet_attention_block.2
$region0: #{unet_attention_block.2}
  #allocation0 [shape = 'u32[]', space=smem, size = 0x4, offset = 0x4, fixed_abs, tag = 'smem constant byte address 0x4 - core index']
  #allocation1 [shape = 'u32[72,128]{1,0:T(1,128)}', space=vmem, size = 0x9000, scoped, tag = 'internal scratch']
  %s0 = inlined_call_operand.vmem [shape: bf16[2,256,64], index: 0, kind: input, shape index: {}]
  %s1 = inlined_call_operand.vmem [shape: f32[2,1,64], index: 1, kind: input, shape index: {}]
  %s2 = inlined_call_operand.vmem [shape: f32[2,1,64], index: 2, kind: input, shape index: {}]
  %s3 = inlined_call_operand.vmem [shape: bf16[64,64], index: 3, kind: input, shape index: {}]
  %s4 = inlined_call_operand.vmem [shape: f32[1,64], index: 4, kind: input, shape index: {}]
  %s5 = inlined_call_operand.vmem [shape: f32[1,64], index: 5, kind: input, shape index: {}]
  %s6 = inlined_call_operand.vmem [shape: f32[1,64], index: 6, kind: input, shape index: {}]
  %s7 = inlined_call_operand.vmem [shape: bf16[64,192], index: 7, kind: input, shape index: {}]
  %s8 = inlined_call_operand.vmem [shape: bf16[2,256,64], index: 8, kind: output, shape index: {0}]
  %s9 = inlined_call_operand.vmem [shape: bf16[2,256,192], index: 9, kind: output, shape index: {1}]
  %10 = xla_tuple %s8, %s9
  %s11 = sld [smem:[#allocation0]]
  $region73: #{unet_attention_block.2} parent=0
    _
  %s13 = ssub.s32 1, %s11
  %s14 = scalar_select 0, %s13, %s11
  loop: start=0, step=1, limit=6
  $region2: #{unet_attention_block.2} parent=0 // loop_pre_header
    _
  $region3: #{unet_attention_block.2} parent=0 // loop_header
    %s16 = sphi 0, %s20
    %p17 = scmp.ge.s32.totalorder %s16, 6
    %s23 = sphi 0, %s35
    %s24 = sphi 0, %s31
    %s25 = sphi 0, %s23
    %s26 = sphi 0, %s24
    %s27 = sphi 0, %s25
    %s28 = sphi 0, %s26
    %s40 = sphi 0, %s42
    %s43 = sphi 0, %s40
    %s44 = sphi 0, %s43
    %s60 = sphi 0, %s44
    %s66 = sphi 0, %s68
    %s69 = sphi 0, %s66
    %s70 = sphi 0, %s69
    %s86 = sphi 0, %s70
    %s92 = sphi 0, %s94
    %s95 = sphi 0, %s92
    %s96 = sphi 0, %s95
    %s112 = sphi 0, %s96
    %s116 = sphi 0, %s116
    %s118 = sphi 0, %s116
    %s119 = sphi 0, %s118
    %s133 = sphi 0, %s119
    %s137 = sphi 0, %s137
    %s139 = sphi 0, %s137
    %s140 = sphi 0, %s139
    %s154 = sphi 0, %s140
    %s158 = sphi 0, %s158
    %s160 = sphi 0, %s158
    %s161 = sphi 0, %s160
    %s175 = sphi 0, %s161
    %s179 = sphi 0, %s179
    %s181 = sphi 0, %s179
    %s182 = sphi 0, %s181
    %s196 = sphi 0, %s182
    %s200 = sphi 0, %s200
    %s202 = sphi 0, %s200
    %s203 = sphi 0, %s202
    %s217 = sphi 0, %s203
    %s225 = sphi 0, %s227
    %s228 = sphi 0, %s225
    %s229 = sphi 0, %s228
    %s245 = sphi 0, %s229
    %s253 = sphi 0, %s255
    %s256 = sphi 0, %s253
    %s257 = sphi 0, %s256
    %s273 = sphi 0, %s257
  $region4: #{unet_attention_block.2} parent=0 // loop_header_branch
    %19 = sbr.rel (%p17) target = $region8
  $region5: #{unet_attention_block.2} parent=0 // loop_body
    %s21 = ssub.s32 %s16, 1
    %s22 = ssub.s32 %s16, 2
    %s29 = sadd.s32 1, %s24
    %p30 = scmp.ge.s32.totalorder %s29, 2
    %s31 = scalar_select %p30, 0, %s29
    %s32 = sadd.s32 1, %s23
    %s33 = scalar_select %p30, %s32, %s23
    %p34 = scmp.ge.s32.totalorder %s33, 2
    %s35 = scalar_select %p34, 0, %s33
    %s36 = ssub.s32 %s23, %s35
    %s37 = ssub.s32 %s24, %s31
    %s38 = sor.u32 %s36, %s37
    %p39 = scmp.eq.s32.totalorder %s38, 0
    %s41 = sadd.s32 %s40, 1
    %s42 = scalar_select %p39, %s40, %s41
    %p45 = pneg %p39
    %p46 = scmp.eq.s32.totalorder %s16, 3
    %p47 = por %p45, %p46
    %p48 = scmp.ne.s32.totalorder %s40, %s43
    %p49 = scmp.eq.s32.totalorder %s16, 0
    %p50 = por %p48, %p49
    %p51 = scmp.ne.s32.totalorder %s40, %s43
    %p52 = scmp.eq.s32.totalorder %s21, 3
    %p53 = por %p51, %p52
    %p54 = scmp.ne.s32.totalorder %s43, %s44
    %p55 = scmp.eq.s32.totalorder %s21, 0
    %p56 = por %p54, %p55
    %p57 = scmp.ne.s32.totalorder %s43, %s44
    %p58 = scmp.eq.s32.totalorder %s22, 3
    %p59 = por %p57, %p58
    %p61 = scmp.ne.s32.totalorder %s44, %s60
    %p62 = scmp.eq.s32.totalorder %s22, 0
    %p63 = por %p61, %p62
    %s64 = ssub.s32 %s23, %s35
    %p65 = scmp.eq.s32.totalorder %s64, 0
    %s67 = sadd.s32 %s66, 1
    %s68 = scalar_select %p65, %s66, %s67
    %p71 = pneg %p65
    %p72 = scmp.eq.s32.totalorder %s16, 3
    %p73 = por %p71, %p72
    %p74 = scmp.ne.s32.totalorder %s66, %s69
    %p75 = scmp.eq.s32.totalorder %s16, 0
    %p76 = por %p74, %p75
    %p77 = scmp.ne.s32.totalorder %s66, %s69
    %p78 = scmp.eq.s32.totalorder %s21, 3
    %p79 = por %p77, %p78
    %p80 = scmp.ne.s32.totalorder %s69, %s70
    %p81 = scmp.eq.s32.totalorder %s21, 0
    %p82 = por %p80, %p81
    %p83 = scmp.ne.s32.totalorder %s69, %s70
    %p84 = scmp.eq.s32.totalorder %s22, 3
    %p85 = por %p83, %p84
    %p87 = scmp.ne.s32.totalorder %s70, %s86
    %p88 = scmp.eq.s32.totalorder %s22, 0
    %p89 = por %p87, %p88
    %s90 = ssub.s32 %s23, %s35
    %p91 = scmp.eq.s32.totalorder %s90, 0
    %s93 = sadd.s32 %s92, 1
    %s94 = scalar_select %p91, %s92, %s93
    %p97 = pneg %p91
    %p98 = scmp.eq.s32.totalorder %s16, 3
    %p99 = por %p97, %p98
    %p100 = scmp.ne.s32.totalorder %s92, %s95
    %p101 = scmp.eq.s32.totalorder %s16, 0
    %p102 = por %p100, %p101
    %p103 = scmp.ne.s32.totalorder %s92, %s95
    %p104 = scmp.eq.s32.totalorder %s21, 3
    %p105 = por %p103, %p104
    %p106 = scmp.ne.s32.totalorder %s95, %s96
    %p107 = scmp.eq.s32.totalorder %s21, 0
    %p108 = por %p106, %p107
    %p109 = scmp.ne.s32.totalorder %s95, %s96
    %p110 = scmp.eq.s32.totalorder %s22, 3
    %p111 = por %p109, %p110
    %p113 = scmp.ne.s32.totalorder %s96, %s112
    %p114 = scmp.eq.s32.totalorder %s22, 0
    %p115 = por %p113, %p114
    %s117 = sadd.s32 %s116, 1
    %p120 = scmp.eq.s32.totalorder %s16, 3
    %p121 = scmp.ne.s32.totalorder %s116, %s118
    %p122 = scmp.eq.s32.totalorder %s16, 0
    %p123 = por %p121, %p122
    %p124 = scmp.ne.s32.totalorder %s116, %s118
    %p125 = scmp.eq.s32.totalorder %s21, 3
    %p126 = por %p124, %p125
    %p127 = scmp.ne.s32.totalorder %s118, %s119
    %p128 = scmp.eq.s32.totalorder %s21, 0
    %p129 = por %p127, %p128
    %p130 = scmp.ne.s32.totalorder %s118, %s119
    %p131 = scmp.eq.s32.totalorder %s22, 3
    %p132 = por %p130, %p131
    %p134 = scmp.ne.s32.totalorder %s119, %s133
    %p135 = scmp.eq.s32.totalorder %s22, 0
    %p136 = por %p134, %p135
    %s138 = sadd.s32 %s137, 1
    %p141 = scmp.eq.s32.totalorder %s16, 3
    %p142 = scmp.ne.s32.totalorder %s137, %s139
    %p143 = scmp.eq.s32.totalorder %s16, 0
    %p144 = por %p142, %p143
    %p145 = scmp.ne.s32.totalorder %s137, %s139
    %p146 = scmp.eq.s32.totalorder %s21, 3
    %p147 = por %p145, %p146
    %p148 = scmp.ne.s32.totalorder %s139, %s140
    %p149 = scmp.eq.s32.totalorder %s21, 0
    %p150 = por %p148, %p149
    %p151 = scmp.ne.s32.totalorder %s139, %s140
    %p152 = scmp.eq.s32.totalorder %s22, 3
    %p153 = por %p151, %p152
    %p155 = scmp.ne.s32.totalorder %s140, %s154
    %p156 = scmp.eq.s32.totalorder %s22, 0
    %p157 = por %p155, %p156
    %s159 = sadd.s32 %s158, 1
    %p162 = scmp.eq.s32.totalorder %s16, 3
    %p163 = scmp.ne.s32.totalorder %s158, %s160
    %p164 = scmp.eq.s32.totalorder %s16, 0
    %p165 = por %p163, %p164
    %p166 = scmp.ne.s32.totalorder %s158, %s160
    %p167 = scmp.eq.s32.totalorder %s21, 3
    %p168 = por %p166, %p167
    %p169 = scmp.ne.s32.totalorder %s160, %s161
    %p170 = scmp.eq.s32.totalorder %s21, 0
    %p171 = por %p169, %p170
    %p172 = scmp.ne.s32.totalorder %s160, %s161
    %p173 = scmp.eq.s32.totalorder %s22, 3
    %p174 = por %p172, %p173
    %p176 = scmp.ne.s32.totalorder %s161, %s175
    %p177 = scmp.eq.s32.totalorder %s22, 0
    %p178 = por %p176, %p177
    %s180 = sadd.s32 %s179, 1
    %p183 = scmp.eq.s32.totalorder %s16, 3
    %p184 = scmp.ne.s32.totalorder %s179, %s181
    %p185 = scmp.eq.s32.totalorder %s16, 0
    %p186 = por %p184, %p185
    %p187 = scmp.ne.s32.totalorder %s179, %s181
    %p188 = scmp.eq.s32.totalorder %s21, 3
    %p189 = por %p187, %p188
    %p190 = scmp.ne.s32.totalorder %s181, %s182
    %p191 = scmp.eq.s32.totalorder %s21, 0
    %p192 = por %p190, %p191
    %p193 = scmp.ne.s32.totalorder %s181, %s182
    %p194 = scmp.eq.s32.totalorder %s22, 3
    %p195 = por %p193, %p194
    %p197 = scmp.ne.s32.totalorder %s182, %s196
    %p198 = scmp.eq.s32.totalorder %s22, 0
    %p199 = por %p197, %p198
    %s201 = sadd.s32 %s200, 1
    %p204 = scmp.eq.s32.totalorder %s16, 3
    %p205 = scmp.ne.s32.totalorder %s200, %s202
    %p206 = scmp.eq.s32.totalorder %s16, 0
    %p207 = por %p205, %p206
    %p208 = scmp.ne.s32.totalorder %s200, %s202
    %p209 = scmp.eq.s32.totalorder %s21, 3
    %p210 = por %p208, %p209
    %p211 = scmp.ne.s32.totalorder %s202, %s203
    %p212 = scmp.eq.s32.totalorder %s21, 0
    %p213 = por %p211, %p212
    %p214 = scmp.ne.s32.totalorder %s202, %s203
    %p215 = scmp.eq.s32.totalorder %s22, 3
    %p216 = por %p214, %p215
    %p218 = scmp.ne.s32.totalorder %s203, %s217
    %p219 = scmp.eq.s32.totalorder %s22, 0
    %p220 = por %p218, %p219
    %s221 = ssub.s32 %s23, %s35
    %s222 = ssub.s32 %s24, %s31
    %s223 = sor.u32 %s221, %s222
    %p224 = scmp.eq.s32.totalorder %s223, 0
    %s226 = sadd.s32 %s225, 1
    %s227 = scalar_select %p224, %s225, %s226
    %p230 = pneg %p224
    %p231 = scmp.eq.s32.totalorder %s16, 3
    %p232 = por %p230, %p231
    %p233 = scmp.ne.s32.totalorder %s225, %s228
    %p234 = scmp.eq.s32.totalorder %s16, 0
    %p235 = por %p233, %p234
    %p236 = scmp.ne.s32.totalorder %s225, %s228
    %p237 = scmp.eq.s32.totalorder %s21, 3
    %p238 = por %p236, %p237
    %p239 = scmp.ne.s32.totalorder %s228, %s229
    %p240 = scmp.eq.s32.totalorder %s21, 0
    %p241 = por %p239, %p240
    %p242 = scmp.ne.s32.totalorder %s228, %s229
    %p243 = scmp.eq.s32.totalorder %s22, 3
    %p244 = por %p242, %p243
    %p246 = scmp.ne.s32.totalorder %s229, %s245
    %p247 = scmp.eq.s32.totalorder %s22, 0
    %p248 = por %p246, %p247
    %s249 = ssub.s32 %s23, %s35
    %s250 = ssub.s32 %s24, %s31
    %s251 = sor.u32 %s249, %s250
    %p252 = scmp.eq.s32.totalorder %s251, 0
    %s254 = sadd.s32 %s253, 1
    %s255 = scalar_select %p252, %s253, %s254
    %p258 = pneg %p252
    %p259 = scmp.eq.s32.totalorder %s16, 3
    %p260 = por %p258, %p259
    %p261 = scmp.ne.s32.totalorder %s253, %s256
    %p262 = scmp.eq.s32.totalorder %s16, 0
    %p263 = por %p261, %p262
    %p264 = scmp.ne.s32.totalorder %s253, %s256
    %p265 = scmp.eq.s32.totalorder %s21, 3
    %p266 = por %p264, %p265
    %p267 = scmp.ne.s32.totalorder %s256, %s257
    %p268 = scmp.eq.s32.totalorder %s21, 0
    %p269 = por %p267, %p268
    %p270 = scmp.ne.s32.totalorder %s256, %s257
    %p271 = scmp.eq.s32.totalorder %s22, 3
    %p272 = por %p270, %p271
    %p274 = scmp.ne.s32.totalorder %s257, %s273
    %p275 = scmp.eq.s32.totalorder %s22, 0
    %p276 = por %p274, %p275
    %p277 = scmp.le.s32.totalorder 1, %s16
    %p278 = scmp.lt.s32.totalorder %s16, 5
    %p279 = pnand %p277, %p278
    %p280 = pneg %p279
    // Predicated region
    $region9: #{unet_attention_block.2} parent=5 // pred_check
      _
    $region10: #{unet_attention_block.2} parent=5 // pred_check_branch
      %282 = sbr.rel (%p279) target = $region12
    $region11: #{unet_attention_block.2} parent=5 // pred_region
      %s283 = ssub.s32 %s16, 1
      // Predicated region
      $region13: #{unet_attention_block.2} parent=11 // pred_check
        %p284 = pneg %p129
      $region14: #{unet_attention_block.2} parent=11 // pred_check_branch
        %286 = sbr.rel (%p284) target = $region16
      $region15: #{unet_attention_block.2} parent=11 // pred_region
        _
      $region16: #{unet_attention_block.2} parent=11 // pred_fallthru
        _
      // Predicated region
      $region17: #{unet_attention_block.2} parent=11 // pred_check
        %p287 = pneg %p150
      $region18: #{unet_attention_block.2} parent=11 // pred_check_branch
        %289 = sbr.rel (%p287) target = $region20
      $region19: #{unet_attention_block.2} parent=11 // pred_region
        _
      $region20: #{unet_attention_block.2} parent=11 // pred_fallthru
        _
      // Predicated region
      $region21: #{unet_attention_block.2} parent=11 // pred_check
        %p290 = pneg %p171
      $region22: #{unet_attention_block.2} parent=11 // pred_check_branch
        %292 = sbr.rel (%p290) target = $region24
      $region23: #{unet_attention_block.2} parent=11 // pred_region
        _
      $region24: #{unet_attention_block.2} parent=11 // pred_fallthru
        _
      // Predicated region
      $region25: #{unet_attention_block.2} parent=11 // pred_check
        %p293 = pneg %p192
      $region26: #{unet_attention_block.2} parent=11 // pred_check_branch
        %295 = sbr.rel (%p293) target = $region28
      $region27: #{unet_attention_block.2} parent=11 // pred_region
        _
      $region28: #{unet_attention_block.2} parent=11 // pred_fallthru
        _
      // Predicated region
      $region29: #{unet_attention_block.2} parent=11 // pred_check
        %p296 = pneg %p213
      $region30: #{unet_attention_block.2} parent=11 // pred_check_branch
        %298 = sbr.rel (%p296) target = $region32
      $region31: #{unet_attention_block.2} parent=11 // pred_region
        _
      $region32: #{unet_attention_block.2} parent=11 // pred_fallthru
        _
    $region12: #{unet_attention_block.2} parent=5 // pred_fallthru
      _
    %p299 = scmp.lt.s32.totalorder %s16, 4
    // Predicated region
    $region33: #{unet_attention_block.2} parent=5 // pred_check
      %p300 = pneg %p299
    $region34: #{unet_attention_block.2} parent=5 // pred_check_branch
      %302 = sbr.rel (%p300) target = $region36
    $region35: #{unet_attention_block.2} parent=5 // pred_region
      // Predicated region
      $region37: #{unet_attention_block.2} parent=35 // pred_check
        %p303 = pneg %p50
      $region38: #{unet_attention_block.2} parent=35 // pred_check_branch
        %305 = sbr.rel (%p303) target = $region40
      $region39: #{unet_attention_block.2} parent=35 // pred_region
        %s306 = smul.u32 16, %s24
        %p307 = scmp.lt.s32.totalorder %s23, 1
        %s308 = scalar_select %p307, %s23, 1
        %p309 = scmp.lt.s32.totalorder %s306, 31
        %s310 = scalar_select %p309, %s306, 31
        %s311 = smul.addr %s308, 32
        %s312 = sadd.s32 %s310, %s311
        %s313 = smul.addr %s312, 4
        %s314 = scalar_lea.vmem %s0, %s313
        %s315 = smul.u32 16, %s24
      $region40: #{unet_attention_block.2} parent=35 // pred_fallthru
        _
      // Predicated region
      $region41: #{unet_attention_block.2} parent=35 // pred_check
        %p316 = pneg %p76
      $region42: #{unet_attention_block.2} parent=35 // pred_check_branch
        %318 = sbr.rel (%p316) target = $region44
      $region43: #{unet_attention_block.2} parent=35 // pred_region
        %p319 = scmp.lt.s32.totalorder %s23, 1
        %s320 = scalar_select %p319, %s23, 1
        %s321 = scalar_lea.vmem %s1, %s320
      $region44: #{unet_attention_block.2} parent=35 // pred_fallthru
        _
      // Predicated region
      $region45: #{unet_attention_block.2} parent=35 // pred_check
        %p322 = pneg %p102
      $region46: #{unet_attention_block.2} parent=35 // pred_check_branch
        %324 = sbr.rel (%p322) target = $region48
      $region47: #{unet_attention_block.2} parent=35 // pred_region
        %p325 = scmp.lt.s32.totalorder %s23, 1
        %s326 = scalar_select %p325, %s23, 1
        %s327 = scalar_lea.vmem %s2, %s326
      $region48: #{unet_attention_block.2} parent=35 // pred_fallthru
        _
    $region36: #{unet_attention_block.2} parent=5 // pred_fallthru
      _
    %p328 = scmp.le.s32.totalorder 1, %s16
    %p329 = scmp.lt.s32.totalorder %s16, 5
    %p330 = pnand %p328, %p329
    %p331 = pneg %p330
    // Predicated region
    $region49: #{unet_attention_block.2} parent=5 // pred_check
      _
    $region50: #{unet_attention_block.2} parent=5 // pred_check_branch
      %333 = sbr.rel (%p330) target = $region52
    $region51: #{unet_attention_block.2} parent=5 // pred_region
      %s334 = ssub.s32 %s16, 1
      %s335 = smul.u32 16, %s26
      %p336 = scmp.lt.s32.totalorder %s25, 1
      %s337 = scalar_select %p336, %s25, 1
      %p338 = scmp.lt.s32.totalorder %s335, 31
      %s339 = scalar_select %p338, %s335, 31
      %s340 = smul.addr %s337, 32
      %s341 = sadd.s32 %s339, %s340
      %s342 = smul.addr %s341, 4
      %s343 = scalar_lea.vmem %s0, %s342
      %p344 = pneg %p56
      %p345 = pneg %p53
      %p346 = scmp.lt.s32.totalorder %s25, 1
      %s347 = scalar_select %p346, %s25, 1
      %s348 = scalar_lea.vmem %s1, %s347
      %p349 = pneg %p82
      %p350 = pneg %p79
      %p351 = scmp.lt.s32.totalorder %s25, 1
      %s352 = scalar_select %p351, %s25, 1
      %s353 = scalar_lea.vmem %s2, %s352
      %p354 = pneg %p108
      %p355 = pneg %p105
      %p356 = pneg %p129
      %p357 = pneg %p126
      %p358 = pneg %p150
      %p359 = pneg %p147
      %p360 = pneg %p171
      %p361 = pneg %p168
      %p362 = pneg %p192
      %p363 = pneg %p189
      %p364 = pneg %p213
      %p365 = pneg %p210
      %p366 = pneg %p241
      %p367 = pneg %p238
      %s368 = smul.u32 16, %s26
      %p369 = scmp.lt.s32.totalorder %s25, 1
      %s370 = scalar_select %p369, %s25, 1
      %p371 = scmp.lt.s32.totalorder %s368, 31
      %s372 = scalar_select %p371, %s368, 31
      %s373 = smul.addr %s370, 32
      %s374 = sadd.s32 %s372, %s373
      %s375 = smul.addr %s374, 4
      %s376 = scalar_lea.vmem %s8, %s375
      %p377 = pneg %p269
      %p378 = pneg %p266
      %s379 = smul.u32 16, %s26
      %p380 = scmp.lt.s32.totalorder %s25, 1
      %s381 = scalar_select %p380, %s25, 1
      %p382 = scmp.lt.s32.totalorder %s379, 31
      %s383 = scalar_select %p382, %s379, 31
      %s384 = smul.addr %s383, 2
      %s385 = smul.addr %s381, 64
      %s386 = sadd.s32 %s384, %s385
      %s387 = smul.addr %s386, 4
      %s388 = scalar_lea.vmem %s9, %s387
      %s389 = smul.u32 16, %s26
      %p390 = scmp.lt.s32.totalorder %s25, 1
      %s391 = scalar_select %p390, %s25, 1
      %p392 = scmp.lt.s32.totalorder %s389, 31
      %s393 = scalar_select %p392, %s389, 31
      %s394 = smul.addr %s391, 32
      %s395 = sadd.s32 %s393, %s394
      %s396 = smul.addr %s395, 4
      %s397 = scalar_lea.vmem %s0, %s396
      %s398 = smul.u32 16, %s26
      %p399 = scmp.lt.s32.totalorder %s25, 1
      %s400 = scalar_select %p399, %s25, 1
      %s401 = scalar_lea.vmem %s1, %s400
      %p402 = scmp.lt.s32.totalorder %s25, 1
      %s403 = scalar_select %p402, %s25, 1
      %s404 = scalar_lea.vmem %s2, %s403
      %s405 = smul.u32 16, %s26
      %p406 = scmp.lt.s32.totalorder %s25, 1
      %s407 = scalar_select %p406, %s25, 1
      %p408 = scmp.lt.s32.totalorder %s405, 31
      %s409 = scalar_select %p408, %s405, 31
      %s410 = smul.addr %s407, 32
      %s411 = sadd.s32 %s409, %s410
      %s412 = smul.addr %s411, 4
      %s413 = scalar_lea.vmem %s8, %s412
      %s414 = smul.u32 16, %s26
      %s415 = smul.u32 16, %s26
      %p416 = scmp.lt.s32.totalorder %s25, 1
      %s417 = scalar_select %p416, %s25, 1
      %p418 = scmp.lt.s32.totalorder %s415, 31
      %s419 = scalar_select %p418, %s415, 31
      %s420 = smul.addr %s419, 2
      %s421 = smul.addr %s417, 64
      %s422 = sadd.s32 %s420, %s421
      %s423 = smul.addr %s422, 4
      %s424 = scalar_lea.vmem %s9, %s423
      %s425 = smul.u32 16, %s26
      %v427 = vld [vmem:[%s397] sm:$0xf]
      %v428 = vld [vmem:[%s397 + $0x4] sm:$0xf]
      %v429 = vld [vmem:[%s397 + $0x8] sm:$0xf]
      %v430 = vld [vmem:[%s397 + $0xc] sm:$0xf]
      %v431 = vld [vmem:[%s397 + $0x10] sm:$0xf]
      %v432 = vld [vmem:[%s397 + $0x14] sm:$0xf]
      %v433 = vld [vmem:[%s397 + $0x18] sm:$0xf]
      %v434 = vld [vmem:[%s397 + $0x1c] sm:$0xf]
      %v435 = vld [vmem:[%s397 + $0x20] sm:$0xf]
      %v436 = vld [vmem:[%s397 + $0x24] sm:$0xf]
      %v437 = vld [vmem:[%s397 + $0x28] sm:$0xf]
      %v438 = vld [vmem:[%s397 + $0x2c] sm:$0xf]
      %v439 = vld [vmem:[%s397 + $0x30] sm:$0xf]
      %v440 = vld [vmem:[%s397 + $0x34] sm:$0xf]
      %v441 = vld [vmem:[%s397 + $0x38] sm:$0xf]
      %v442 = vld [vmem:[%s397 + $0x3c] sm:$0xf]
      %v443 = vld [vmem:[%s401] sm:$0x1]
      %v444 = vunpack.c.l.bf16 %v427
      %v445 = vunpack.c.l.bf16 %v428
      %v446 = vunpack.c.l.bf16 %v429
      %v447 = vunpack.c.l.bf16 %v430
      %v448 = vunpack.c.l.bf16 %v431
      %v449 = vunpack.c.l.bf16 %v432
      %v450 = vunpack.c.l.bf16 %v433
      %v451 = vunpack.c.l.bf16 %v434
      %v452 = vunpack.c.l.bf16 %v435
      %v453 = vunpack.c.l.bf16 %v436
      %v454 = vunpack.c.l.bf16 %v437
      %v455 = vunpack.c.l.bf16 %v438
      %v456 = vunpack.c.l.bf16 %v439
      %v457 = vunpack.c.l.bf16 %v440
      %v458 = vunpack.c.l.bf16 %v441
      %v459 = vunpack.c.l.bf16 %v442
      %v461 = vperm.slane %v443, 0
      %v463 = vmul.f32 %v444, %v461
      %v464 = vmul.f32 %v445, %v461
      %v465 = vmul.f32 %v446, %v461
      %v466 = vmul.f32 %v447, %v461
      %v467 = vmul.f32 %v448, %v461
      %v468 = vmul.f32 %v449, %v461
      %v469 = vmul.f32 %v450, %v461
      %v470 = vmul.f32 %v451, %v461
      %v471 = vmul.f32 %v452, %v461
      %v472 = vmul.f32 %v453, %v461
      %v473 = vmul.f32 %v454, %v461
      %v474 = vmul.f32 %v455, %v461
      %v475 = vmul.f32 %v456, %v461
      %v476 = vmul.f32 %v457, %v461
      %v477 = vmul.f32 %v458, %v461
      %v478 = vmul.f32 %v459, %v461
      %v479 = vld [vmem:[%s404] sm:$0x1]
      %v481 = vperm.slane %v479, 0
      %v483 = vadd.f32 %v463, %v481
      %v484 = vadd.f32 %v464, %v481
      %v485 = vadd.f32 %v465, %v481
      %v486 = vadd.f32 %v466, %v481
      %v487 = vadd.f32 %v467, %v481
      %v488 = vadd.f32 %v468, %v481
      %v489 = vadd.f32 %v469, %v481
      %v490 = vadd.f32 %v470, %v481
      %v491 = vadd.f32 %v471, %v481
      %v492 = vadd.f32 %v472, %v481
      %v493 = vadd.f32 %v473, %v481
      %v494 = vadd.f32 %v474, %v481
      %v495 = vadd.f32 %v475, %v481
      %v496 = vadd.f32 %v476, %v481
      %v497 = vadd.f32 %v477, %v481
      %v498 = vadd.f32 %v478, %v481
      %v499 = vpack.c.bf16 %v484, %v483
      %v500 = vpack.c.bf16 %v486, %v485
      %v501 = vpack.c.bf16 %v488, %v487
      %v502 = vpack.c.bf16 %v490, %v489
      %v503 = vpack.c.bf16 %v492, %v491
      %v504 = vpack.c.bf16 %v494, %v493
      %v505 = vpack.c.bf16 %v496, %v495
      %v506 = vpack.c.bf16 %v498, %v497
      %v507 = vld [vmem:[%s3] sm:$0xf]
      %v508 = vld [vmem:[%s3 + $0x4] sm:$0xf]
      %v509 = vld [vmem:[%s3 + $0x8] sm:$0xf]
      %v510 = vld [vmem:[%s3 + $0xc] sm:$0xf]
      %v511 = vld [vmem:[%s3 + $0x10] sm:$0xf]
      %v512 = vld [vmem:[%s3 + $0x14] sm:$0xf]
      %v513 = vld [vmem:[%s3 + $0x18] sm:$0xf]
      %v514 = vld [vmem:[%s3 + $0x1c] sm:$0xf]
      %v515 = vld [vmem:[%s4] sm:$0x1]
      %v517 = vperm.slane %v515, 0
      %v527 = vunpack.c.l.b16 %v507
      %v528 = vunpack.c.l.b16 %v508
      %v529 = vunpack.c.l.b16 %v509
      %v530 = vunpack.c.l.b16 %v510
      %v531 = vunpack.c.l.b16 %v511
      %v532 = vunpack.c.l.b16 %v512
      %v533 = vunpack.c.l.b16 %v513
      %v534 = vunpack.c.l.b16 %v514
      %v535 = vpack.c.b16 %v528, %v527
      %v536 = vpack.c.b16 %v530, %v529
      %v537 = vpack.c.b16 %v532, %v531
      %v538 = vpack.c.b16 %v534, %v533
      %vm543 = vcmask 523264
      %v545 = vsel %vm543, %v499, 0
      %v548 = vsel %vm543, %v500, 0
      %v551 = vsel %vm543, %v501, 0
      %v554 = vsel %vm543, %v502, 0
      %v557 = vsel %vm543, %v503, 0
      %v560 = vsel %vm543, %v504, 0
      %v563 = vsel %vm543, %v505, 0
      %v566 = vsel %vm543, %v506, 0
      %568 = vmatpush.bf16.msra.mxu0 0
      %569 = vmatpush.bf16.msra.mxu0 0
      %570 = vmatpush.bf16.msra.mxu0 0
      %571 = vmatpush.bf16.msra.mxu0 0
      %572 = vmatpush.bf16.msra.mxu0 %v538
      %573 = vmatpush.bf16.msra.mxu0 %v537
      %574 = vmatpush.bf16.msra.mxu0 %v536
      %575 = vmatpush.bf16.msra.mxu0 %v535
      %576 = vmatmul.bf16.gmra.mxu0 %v545
      %v577 = vpop.f32.mrf.mxu0
      %v578 = vadd.f32 %v517, %v577
      %v579 = vpop.f32.mrf.mxu0
      %v580 = vadd.f32 %v517, %v579
      %581 = vmatmul.bf16.gmra.mxu0 %v548
      %v582 = vpop.f32.mrf.mxu0
      %v583 = vadd.f32 %v517, %v582
      %v584 = vpop.f32.mrf.mxu0
      %v585 = vadd.f32 %v517, %v584
      %586 = vmatmul.bf16.gmra.mxu0 %v551
      %v587 = vpop.f32.mrf.mxu0
      %v588 = vadd.f32 %v517, %v587
      %v589 = vpop.f32.mrf.mxu0
      %v590 = vadd.f32 %v517, %v589
      %591 = vmatmul.bf16.gmra.mxu0 %v554
      %v592 = vpop.f32.mrf.mxu0
      %v593 = vadd.f32 %v517, %v592
      %v594 = vpop.f32.mrf.mxu0
      %v595 = vadd.f32 %v517, %v594
      %596 = vmatmul.bf16.gmra.mxu0 %v557
      %v597 = vpop.f32.mrf.mxu0
      %v598 = vadd.f32 %v517, %v597
      %v599 = vpop.f32.mrf.mxu0
      %v600 = vadd.f32 %v517, %v599
      %601 = vmatmul.bf16.gmra.mxu0 %v560
      %v602 = vpop.f32.mrf.mxu0
      %v603 = vadd.f32 %v517, %v602
      %v604 = vpop.f32.mrf.mxu0
      %v605 = vadd.f32 %v517, %v604
      %606 = vmatmul.bf16.gmra.mxu0 %v563
      %v607 = vpop.f32.mrf.mxu0
      %v608 = vadd.f32 %v517, %v607
      %v609 = vpop.f32.mrf.mxu0
      %v610 = vadd.f32 %v517, %v609
      %611 = vmatmul.bf16.gmra.mxu0 %v566
      %v612 = vpop.f32.mrf.mxu0
      %v613 = vadd.f32 %v517, %v612
      %v614 = vpop.f32.mrf.mxu0
      %v615 = vadd.f32 %v517, %v614
      %616 = vdwg.mxu0
      %v617 = vpack.c.bf16 %v578, %v578
      %v618 = vpack.c.bf16 %v580, %v580
      %v619 = vpack.c.bf16 %v583, %v583
      %v620 = vpack.c.bf16 %v585, %v585
      %v621 = vpack.c.bf16 %v588, %v588
      %v622 = vpack.c.bf16 %v590, %v590
      %v623 = vpack.c.bf16 %v593, %v593
      %v624 = vpack.c.bf16 %v595, %v595
      %v625 = vpack.c.bf16 %v598, %v598
      %v626 = vpack.c.bf16 %v600, %v600
      %v627 = vpack.c.bf16 %v603, %v603
      %v628 = vpack.c.bf16 %v605, %v605
      %v629 = vpack.c.bf16 %v608, %v608
      %v630 = vpack.c.bf16 %v610, %v610
      %v631 = vpack.c.bf16 %v613, %v613
      %v632 = vpack.c.bf16 %v615, %v615
      %vm633 = vcmask 519168
      %634 = vst.msk [vmem:[%s413] sm:$0xf] %vm633, %v617
      %635 = vst.msk [vmem:[%s413 + $0x4] sm:$0xf] %vm633, %v618
      %636 = vst.msk [vmem:[%s413 + $0x8] sm:$0xf] %vm633, %v619
      %637 = vst.msk [vmem:[%s413 + $0xc] sm:$0xf] %vm633, %v620
      %638 = vst.msk [vmem:[%s413 + $0x10] sm:$0xf] %vm633, %v621
      %639 = vst.msk [vmem:[%s413 + $0x14] sm:$0xf] %vm633, %v622
      %640 = vst.msk [vmem:[%s413 + $0x18] sm:$0xf] %vm633, %v623
      %641 = vst.msk [vmem:[%s413 + $0x1c] sm:$0xf] %vm633, %v624
      %642 = vst.msk [vmem:[%s413 + $0x20] sm:$0xf] %vm633, %v625
      %643 = vst.msk [vmem:[%s413 + $0x24] sm:$0xf] %vm633, %v626
      %644 = vst.msk [vmem:[%s413 + $0x28] sm:$0xf] %vm633, %v627
      %645 = vst.msk [vmem:[%s413 + $0x2c] sm:$0xf] %vm633, %v628
      %646 = vst.msk [vmem:[%s413 + $0x30] sm:$0xf] %vm633, %v629
      %647 = vst.msk [vmem:[%s413 + $0x34] sm:$0xf] %vm633, %v630
      %648 = vst.msk [vmem:[%s413 + $0x38] sm:$0xf] %vm633, %v631
      %649 = vst.msk [vmem:[%s413 + $0x3c] sm:$0xf] %vm633, %v632
      %v650 = vld [vmem:[%s5] sm:$0x1]
      %v651 = vld [vmem:[%s6] sm:$0x1]
      %v652 = vsel %vm543, %v578, 0.0
      %653 = vadd.xlane.f32.xlu0 %v652
      %v654 = vpop.xlane.xlu0 %653
      %v655 = vsel %vm543, %v580, 0.0
      %656 = vadd.xlane.f32.xlu0 %v655
      %v657 = vpop.xlane.xlu0 %656
      %v658 = vsel %vm543, %v583, 0.0
      %659 = vadd.xlane.f32.xlu0 %v658
      %v660 = vpop.xlane.xlu0 %659
      %v661 = vsel %vm543, %v585, 0.0
      %662 = vadd.xlane.f32.xlu0 %v661
      %v663 = vpop.xlane.xlu0 %662
      %v664 = vsel %vm543, %v588, 0.0
      %665 = vadd.xlane.f32.xlu0 %v664
      %v666 = vpop.xlane.xlu0 %665
      %v667 = vsel %vm543, %v590, 0.0
      %668 = vadd.xlane.f32.xlu0 %v667
      %v669 = vpop.xlane.xlu0 %668
      %v670 = vsel %vm543, %v593, 0.0
      %671 = vadd.xlane.f32.xlu0 %v670
      %v672 = vpop.xlane.xlu0 %671
      %v673 = vsel %vm543, %v595, 0.0
      %674 = vadd.xlane.f32.xlu0 %v673
      %v675 = vpop.xlane.xlu0 %674
      %v676 = vsel %vm543, %v598, 0.0
      %677 = vadd.xlane.f32.xlu0 %v676
      %v678 = vpop.xlane.xlu0 %677
      %v679 = vsel %vm543, %v600, 0.0
      %680 = vadd.xlane.f32.xlu0 %v679
      %v681 = vpop.xlane.xlu0 %680
      %v682 = vsel %vm543, %v603, 0.0
      %683 = vadd.xlane.f32.xlu0 %v682
      %v684 = vpop.xlane.xlu0 %683
      %v685 = vsel %vm543, %v605, 0.0
      %686 = vadd.xlane.f32.xlu0 %v685
      %v687 = vpop.xlane.xlu0 %686
      %v688 = vsel %vm543, %v608, 0.0
      %689 = vadd.xlane.f32.xlu0 %v688
      %v690 = vpop.xlane.xlu0 %689
      %v691 = vsel %vm543, %v610, 0.0
      %692 = vadd.xlane.f32.xlu0 %v691
      %v693 = vpop.xlane.xlu0 %692
      %v694 = vsel %vm543, %v613, 0.0
      %695 = vadd.xlane.f32.xlu0 %v694
      %v696 = vpop.xlane.xlu0 %695
      %v697 = vsel %vm543, %v615, 0.0
      %698 = vadd.xlane.f32.xlu0 %v697
      %v699 = vpop.xlane.xlu0 %698
      %v700 = vrcp.pop 64.0
      %v701 = vmul.f32 64.0, %v700
      %v702 = vsub.f32 1.0, %v701
      %v703 = vmul.f32 %v700, %v702
      %v704 = vadd.f32 %v700, %v703
      %vm705 = vweird.f32 %v700
      %v706 = vsel %vm705, %v700, %v704
      %v707 = vmul.f32 %v654, %v706
      %v708 = vmul.f32 %v657, %v706
      %v709 = vmul.f32 %v660, %v706
      %v710 = vmul.f32 %v663, %v706
      %v711 = vmul.f32 %v666, %v706
      %v712 = vmul.f32 %v669, %v706
      %v713 = vmul.f32 %v672, %v706
      %v714 = vmul.f32 %v675, %v706
      %v715 = vmul.f32 %v678, %v706
      %v716 = vmul.f32 %v681, %v706
      %v717 = vmul.f32 %v684, %v706
      %v718 = vmul.f32 %v687, %v706
      %v719 = vmul.f32 %v690, %v706
      %v720 = vmul.f32 %v693, %v706
      %v721 = vmul.f32 %v696, %v706
      %v722 = vmul.f32 %v699, %v706
      %v723 = vsub.f32 %v578, %v707
      %v724 = vsub.f32 %v580, %v708
      %v725 = vsub.f32 %v583, %v709
      %v726 = vsub.f32 %v585, %v710
      %v727 = vsub.f32 %v588, %v711
      %v728 = vsub.f32 %v590, %v712
      %v729 = vsub.f32 %v593, %v713
      %v730 = vsub.f32 %v595, %v714
      %v731 = vsub.f32 %v598, %v715
      %v732 = vsub.f32 %v600, %v716
      %v733 = vsub.f32 %v603, %v717
      %v734 = vsub.f32 %v605, %v718
      %v735 = vsub.f32 %v608, %v719
      %v736 = vsub.f32 %v610, %v720
      %v737 = vsub.f32 %v613, %v721
      %v738 = vsub.f32 %v615, %v722
      %v739 = vmul.f32 %v723, %v723
      %v740 = vmul.f32 %v724, %v724
      %v741 = vmul.f32 %v725, %v725
      %v742 = vmul.f32 %v726, %v726
      %v743 = vmul.f32 %v727, %v727
      %v744 = vmul.f32 %v728, %v728
      %v745 = vmul.f32 %v729, %v729
      %v746 = vmul.f32 %v730, %v730
      %v747 = vmul.f32 %v731, %v731
      %v748 = vmul.f32 %v732, %v732
      %v749 = vmul.f32 %v733, %v733
      %v750 = vmul.f32 %v734, %v734
      %v751 = vmul.f32 %v735, %v735
      %v752 = vmul.f32 %v736, %v736
      %v753 = vmul.f32 %v737, %v737
      %v754 = vmul.f32 %v738, %v738
      %v755 = vsel %vm543, %v739, 0.0
      %756 = vadd.xlane.f32.xlu0 %v755
      %v757 = vpop.xlane.xlu0 %756
      %v758 = vsel %vm543, %v740, 0.0
      %759 = vadd.xlane.f32.xlu0 %v758
      %v760 = vpop.xlane.xlu0 %759
      %v761 = vsel %vm543, %v741, 0.0
      %762 = vadd.xlane.f32.xlu0 %v761
      %v763 = vpop.xlane.xlu0 %762
      %v764 = vsel %vm543, %v742, 0.0
      %765 = vadd.xlane.f32.xlu0 %v764
      %v766 = vpop.xlane.xlu0 %765
      %v767 = vsel %vm543, %v743, 0.0
      %768 = vadd.xlane.f32.xlu0 %v767
      %v769 = vpop.xlane.xlu0 %768
      %v770 = vsel %vm543, %v744, 0.0
      %771 = vadd.xlane.f32.xlu0 %v770
      %v772 = vpop.xlane.xlu0 %771
      %v773 = vsel %vm543, %v745, 0.0
      %774 = vadd.xlane.f32.xlu0 %v773
      %v775 = vpop.xlane.xlu0 %774
      %v776 = vsel %vm543, %v746, 0.0
      %777 = vadd.xlane.f32.xlu0 %v776
      %v778 = vpop.xlane.xlu0 %777
      %v779 = vsel %vm543, %v747, 0.0
      %780 = vadd.xlane.f32.xlu0 %v779
      %v781 = vpop.xlane.xlu0 %780
      %v782 = vsel %vm543, %v748, 0.0
      %783 = vadd.xlane.f32.xlu0 %v782
      %v784 = vpop.xlane.xlu0 %783
      %v785 = vsel %vm543, %v749, 0.0
      %786 = vadd.xlane.f32.xlu0 %v785
      %v787 = vpop.xlane.xlu0 %786
      %v788 = vsel %vm543, %v750, 0.0
      %789 = vadd.xlane.f32.xlu0 %v788
      %v790 = vpop.xlane.xlu0 %789
      %v791 = vsel %vm543, %v751, 0.0
      %792 = vadd.xlane.f32.xlu0 %v791
      %v793 = vpop.xlane.xlu0 %792
      %v794 = vsel %vm543, %v752, 0.0
      %795 = vadd.xlane.f32.xlu0 %v794
      %v796 = vpop.xlane.xlu0 %795
      %v797 = vsel %vm543, %v753, 0.0
      %798 = vadd.xlane.f32.xlu0 %v797
      %v799 = vpop.xlane.xlu0 %798
      %v800 = vsel %vm543, %v754, 0.0
      %801 = vadd.xlane.f32.xlu0 %v800
      %v802 = vpop.xlane.xlu0 %801
      %v803 = vmul.f32 %v757, %v706
      %v804 = vmul.f32 %v760, %v706
      %v805 = vmul.f32 %v763, %v706
      %v806 = vmul.f32 %v766, %v706
      %v807 = vmul.f32 %v769, %v706
      %v808 = vmul.f32 %v772, %v706
      %v809 = vmul.f32 %v775, %v706
      %v810 = vmul.f32 %v778, %v706
      %v811 = vmul.f32 %v781, %v706
      %v812 = vmul.f32 %v784, %v706
      %v813 = vmul.f32 %v787, %v706
      %v814 = vmul.f32 %v790, %v706
      %v815 = vmul.f32 %v793, %v706
      %v816 = vmul.f32 %v796, %v706
      %v817 = vmul.f32 %v799, %v706
      %v818 = vmul.f32 %v802, %v706
      %v819 = vadd.f32 %v803, 1e-05
      %v820 = vadd.f32 %v804, 1e-05
      %v821 = vadd.f32 %v805, 1e-05
      %v822 = vadd.f32 %v806, 1e-05
      %v823 = vadd.f32 %v807, 1e-05
      %v824 = vadd.f32 %v808, 1e-05
      %v825 = vadd.f32 %v809, 1e-05
      %v826 = vadd.f32 %v810, 1e-05
      %v827 = vadd.f32 %v811, 1e-05
      %v828 = vadd.f32 %v812, 1e-05
      %v829 = vadd.f32 %v813, 1e-05
      %v830 = vadd.f32 %v814, 1e-05
      %v831 = vadd.f32 %v815, 1e-05
      %v832 = vadd.f32 %v816, 1e-05
      %v833 = vadd.f32 %v817, 1e-05
      %v834 = vadd.f32 %v818, 1e-05
      %v835 = vrsqrt.pop %v819
      %v836 = vmul.f32 %v835, %v819
      %v837 = vmul.f32 %v836, %v835
      %v838 = vmul.f32 0.5, %v837
      %v839 = vsub.f32 1.5, %v838
      %v840 = vmul.f32 %v835, %v839
      %vm841 = vweird.f32 %v819
      %vm842 = vweird.f32 %v835
      %vm843 = vmor %vm841, %vm842
      %v844 = vsel %vm843, %v835, %v840
      %v845 = vrsqrt.pop %v820
      %v846 = vmul.f32 %v845, %v820
      %v847 = vmul.f32 %v846, %v845
      %v848 = vmul.f32 0.5, %v847
      %v849 = vsub.f32 1.5, %v848
      %v850 = vmul.f32 %v845, %v849
      %vm851 = vweird.f32 %v820
      %vm852 = vweird.f32 %v845
      %vm853 = vmor %vm851, %vm852
      %v854 = vsel %vm853, %v845, %v850
      %v855 = vrsqrt.pop %v821
      %v856 = vmul.f32 %v855, %v821
      %v857 = vmul.f32 %v856, %v855
      %v858 = vmul.f32 0.5, %v857
      %v859 = vsub.f32 1.5, %v858
      %v860 = vmul.f32 %v855, %v859
      %vm861 = vweird.f32 %v821
      %vm862 = vweird.f32 %v855
      %vm863 = vmor %vm861, %vm862
      %v864 = vsel %vm863, %v855, %v860
      %v865 = vrsqrt.pop %v822
      %v866 = vmul.f32 %v865, %v822
      %v867 = vmul.f32 %v866, %v865
      %v868 = vmul.f32 0.5, %v867
      %v869 = vsub.f32 1.5, %v868
      %v870 = vmul.f32 %v865, %v869
      %vm871 = vweird.f32 %v822
      %vm872 = vweird.f32 %v865
      %vm873 = vmor %vm871, %vm872
      %v874 = vsel %vm873, %v865, %v870
      %v875 = vrsqrt.pop %v823
      %v876 = vmul.f32 %v875, %v823
      %v877 = vmul.f32 %v876, %v875
      %v878 = vmul.f32 0.5, %v877
      %v879 = vsub.f32 1.5, %v878
      %v880 = vmul.f32 %v875, %v879
      %vm881 = vweird.f32 %v823
      %vm882 = vweird.f32 %v875
      %vm883 = vmor %vm881, %vm882
      %v884 = vsel %vm883, %v875, %v880
      %v885 = vrsqrt.pop %v824
      %v886 = vmul.f32 %v885, %v824
      %v887 = vmul.f32 %v886, %v885
      %v888 = vmul.f32 0.5, %v887
      %v889 = vsub.f32 1.5, %v888
      %v890 = vmul.f32 %v885, %v889
      %vm891 = vweird.f32 %v824
      %vm892 = vweird.f32 %v885
      %vm893 = vmor %vm891, %vm892
      %v894 = vsel %vm893, %v885, %v890
      %v895 = vrsqrt.pop %v825
      %v896 = vmul.f32 %v895, %v825
      %v897 = vmul.f32 %v896, %v895
      %v898 = vmul.f32 0.5, %v897
      %v899 = vsub.f32 1.5, %v898
      %v900 = vmul.f32 %v895, %v899
      %vm901 = vweird.f32 %v825
      %vm902 = vweird.f32 %v895
      %vm903 = vmor %vm901, %vm902
      %v904 = vsel %vm903, %v895, %v900
      %v905 = vrsqrt.pop %v826
      %v906 = vmul.f32 %v905, %v826
      %v907 = vmul.f32 %v906, %v905
      %v908 = vmul.f32 0.5, %v907
      %v909 = vsub.f32 1.5, %v908
      %v910 = vmul.f32 %v905, %v909
      %vm911 = vweird.f32 %v826
      %vm912 = vweird.f32 %v905
      %vm913 = vmor %vm911, %vm912
      %v914 = vsel %vm913, %v905, %v910
      %v915 = vrsqrt.pop %v827
      %v916 = vmul.f32 %v915, %v827
      %v917 = vmul.f32 %v916, %v915
      %v918 = vmul.f32 0.5, %v917
      %v919 = vsub.f32 1.5, %v918
      %v920 = vmul.f32 %v915, %v919
      %vm921 = vweird.f32 %v827
      %vm922 = vweird.f32 %v915
      %vm923 = vmor %vm921, %vm922
      %v924 = vsel %vm923, %v915, %v920
      %v925 = vrsqrt.pop %v828
      %v926 = vmul.f32 %v925, %v828
      %v927 = vmul.f32 %v926, %v925
      %v928 = vmul.f32 0.5, %v927
      %v929 = vsub.f32 1.5, %v928
      %v930 = vmul.f32 %v925, %v929
      %vm931 = vweird.f32 %v828
      %vm932 = vweird.f32 %v925
      %vm933 = vmor %vm931, %vm932
      %v934 = vsel %vm933, %v925, %v930
      %v935 = vrsqrt.pop %v829
      %v936 = vmul.f32 %v935, %v829
      %v937 = vmul.f32 %v936, %v935
      %v938 = vmul.f32 0.5, %v937
      %v939 = vsub.f32 1.5, %v938
      %v940 = vmul.f32 %v935, %v939
      %vm941 = vweird.f32 %v829
      %vm942 = vweird.f32 %v935
      %vm943 = vmor %vm941, %vm942
      %v944 = vsel %vm943, %v935, %v940
      %v945 = vrsqrt.pop %v830
      %v946 = vmul.f32 %v945, %v830
      %v947 = vmul.f32 %v946, %v945
      %v948 = vmul.f32 0.5, %v947
      %v949 = vsub.f32 1.5, %v948
      %v950 = vmul.f32 %v945, %v949
      %vm951 = vweird.f32 %v830
      %vm952 = vweird.f32 %v945
      %vm953 = vmor %vm951, %vm952
      %v954 = vsel %vm953, %v945, %v950
      %v955 = vrsqrt.pop %v831
      %v956 = vmul.f32 %v955, %v831
      %v957 = vmul.f32 %v956, %v955
      %v958 = vmul.f32 0.5, %v957
      %v959 = vsub.f32 1.5, %v958
      %v960 = vmul.f32 %v955, %v959
      %vm961 = vweird.f32 %v831
      %vm962 = vweird.f32 %v955
      %vm963 = vmor %vm961, %vm962
      %v964 = vsel %vm963, %v955, %v960
      %v965 = vrsqrt.pop %v832
      %v966 = vmul.f32 %v965, %v832
      %v967 = vmul.f32 %v966, %v965
      %v968 = vmul.f32 0.5, %v967
      %v969 = vsub.f32 1.5, %v968
      %v970 = vmul.f32 %v965, %v969
      %vm971 = vweird.f32 %v832
      %vm972 = vweird.f32 %v965
      %vm973 = vmor %vm971, %vm972
      %v974 = vsel %vm973, %v965, %v970
      %v975 = vrsqrt.pop %v833
      %v976 = vmul.f32 %v975, %v833
      %v977 = vmul.f32 %v976, %v975
      %v978 = vmul.f32 0.5, %v977
      %v979 = vsub.f32 1.5, %v978
      %v980 = vmul.f32 %v975, %v979
      %vm981 = vweird.f32 %v833
      %vm982 = vweird.f32 %v975
      %vm983 = vmor %vm981, %vm982
      %v984 = vsel %vm983, %v975, %v980
      %v985 = vrsqrt.pop %v834
      %v986 = vmul.f32 %v985, %v834
      %v987 = vmul.f32 %v986, %v985
      %v988 = vmul.f32 0.5, %v987
      %v989 = vsub.f32 1.5, %v988
      %v990 = vmul.f32 %v985, %v989
      %vm991 = vweird.f32 %v834
      %vm992 = vweird.f32 %v985
      %vm993 = vmor %vm991, %vm992
      %v994 = vsel %vm993, %v985, %v990
      %v995 = vmul.f32 %v723, %v844
      %v996 = vmul.f32 %v724, %v854
      %v997 = vmul.f32 %v725, %v864
      %v998 = vmul.f32 %v726, %v874
      %v999 = vmul.f32 %v727, %v884
      %v1000 = vmul.f32 %v728, %v894
      %v1001 = vmul.f32 %v729, %v904
      %v1002 = vmul.f32 %v730, %v914
      %v1003 = vmul.f32 %v731, %v924
      %v1004 = vmul.f32 %v732, %v934
      %v1005 = vmul.f32 %v733, %v944
      %v1006 = vmul.f32 %v734, %v954
      %v1007 = vmul.f32 %v735, %v964
      %v1008 = vmul.f32 %v736, %v974
      %v1009 = vmul.f32 %v737, %v984
      %v1010 = vmul.f32 %v738, %v994
      %v1012 = vperm.slane %v650, 0
      %v1014 = vmul.f32 %v995, %v1012
      %v1015 = vmul.f32 %v996, %v1012
      %v1016 = vmul.f32 %v997, %v1012
      %v1017 = vmul.f32 %v998, %v1012
      %v1018 = vmul.f32 %v999, %v1012
      %v1019 = vmul.f32 %v1000, %v1012
      %v1020 = vmul.f32 %v1001, %v1012
      %v1021 = vmul.f32 %v1002, %v1012
      %v1022 = vmul.f32 %v1003, %v1012
      %v1023 = vmul.f32 %v1004, %v1012
      %v1024 = vmul.f32 %v1005, %v1012
      %v1025 = vmul.f32 %v1006, %v1012
      %v1026 = vmul.f32 %v1007, %v1012
      %v1027 = vmul.f32 %v1008, %v1012
      %v1028 = vmul.f32 %v1009, %v1012
      %v1029 = vmul.f32 %v1010, %v1012
      %v1031 = vperm.slane %v651, 0
      %v1033 = vadd.f32 %v1014, %v1031
      %v1034 = vadd.f32 %v1015, %v1031
      %v1035 = vadd.f32 %v1016, %v1031
      %v1036 = vadd.f32 %v1017, %v1031
      %v1037 = vadd.f32 %v1018, %v1031
      %v1038 = vadd.f32 %v1019, %v1031
      %v1039 = vadd.f32 %v1020, %v1031
      %v1040 = vadd.f32 %v1021, %v1031
      %v1041 = vadd.f32 %v1022, %v1031
      %v1042 = vadd.f32 %v1023, %v1031
      %v1043 = vadd.f32 %v1024, %v1031
      %v1044 = vadd.f32 %v1025, %v1031
      %v1045 = vadd.f32 %v1026, %v1031
      %v1046 = vadd.f32 %v1027, %v1031
      %v1047 = vadd.f32 %v1028, %v1031
      %v1048 = vadd.f32 %v1029, %v1031
      %v1049 = vpack.c.bf16 %v1034, %v1033
      %v1050 = vpack.c.bf16 %v1036, %v1035
      %v1051 = vpack.c.bf16 %v1038, %v1037
      %v1052 = vpack.c.bf16 %v1040, %v1039
      %v1053 = vpack.c.bf16 %v1042, %v1041
      %v1054 = vpack.c.bf16 %v1044, %v1043
      %v1055 = vpack.c.bf16 %v1046, %v1045
      %v1056 = vpack.c.bf16 %v1048, %v1047
      %v1057 = vld [vmem:[%s7] sm:$0xff]
      %v1058 = vld [vmem:[%s7 + $0x8] sm:$0xff]
      %v1059 = vld [vmem:[%s7 + $0x10] sm:$0xff]
      %v1060 = vld [vmem:[%s7 + $0x18] sm:$0xff]
      %v1061 = vld [vmem:[%s7 + $0x20] sm:$0xff]
      %v1062 = vld [vmem:[%s7 + $0x28] sm:$0xff]
      %v1063 = vld [vmem:[%s7 + $0x30] sm:$0xff]
      %v1064 = vld [vmem:[%s7 + $0x38] sm:$0xff]
      %v1073 = vunpack.c.l.b16 %v1057
      %v1074 = vunpack.c.h.b16 %v1057
      %v1075 = vunpack.c.l.b16 %v1058
      %v1076 = vunpack.c.h.b16 %v1058
      %v1077 = vunpack.c.l.b16 %v1059
      %v1078 = vunpack.c.h.b16 %v1059
      %v1079 = vunpack.c.l.b16 %v1060
      %v1080 = vunpack.c.h.b16 %v1060
      %v1081 = vunpack.c.l.b16 %v1061
      %v1082 = vunpack.c.h.b16 %v1061
      %v1083 = vunpack.c.l.b16 %v1062
      %v1084 = vunpack.c.h.b16 %v1062
      %v1085 = vunpack.c.l.b16 %v1063
      %v1086 = vunpack.c.h.b16 %v1063
      %v1087 = vunpack.c.l.b16 %v1064
      %v1088 = vunpack.c.h.b16 %v1064
      %v1089 = vpack.c.b16 %v1075, %v1073
      %v1090 = vpack.c.b16 %v1076, %v1074
      %v1091 = vpack.c.b16 %v1079, %v1077
      %v1092 = vpack.c.b16 %v1080, %v1078
      %v1093 = vpack.c.b16 %v1083, %v1081
      %v1094 = vpack.c.b16 %v1084, %v1082
      %v1095 = vpack.c.b16 %v1087, %v1085
      %v1096 = vpack.c.b16 %v1088, %v1086
      %v1106 = vsel %vm543, %v1049, 0
      %v1109 = vsel %vm543, %v1050, 0
      %v1112 = vsel %vm543, %v1051, 0
      %v1115 = vsel %vm543, %v1052, 0
      %v1118 = vsel %vm543, %v1053, 0
      %v1121 = vsel %vm543, %v1054, 0
      %v1124 = vsel %vm543, %v1055, 0
      %v1127 = vsel %vm543, %v1056, 0
      %1129 = vmatpush.bf16.msra.mxu0 0
      %1130 = vmatpush.bf16.msra.mxu0 0
      %1131 = vmatpush.bf16.msra.mxu0 0
      %1132 = vmatpush.bf16.msra.mxu0 0
      %1133 = vmatpush.bf16.msra.mxu0 %v1095
      %1134 = vmatpush.bf16.msra.mxu0 %v1093
      %1135 = vmatpush.bf16.msra.mxu0 %v1091
      %1136 = vmatpush.bf16.msra.mxu0 %v1089
      %1137 = vmatmul.bf16.gmra.mxu0 %v1106
      %v1138 = vpop.f32.mrf.mxu0
      %v1139 = vadd.f32 0.0, %v1138
      %v1140 = vpop.f32.mrf.mxu0
      %v1141 = vadd.f32 0.0, %v1140
      %1142 = vmatmul.bf16.gmra.mxu0 %v1109
      %v1143 = vpop.f32.mrf.mxu0
      %v1144 = vadd.f32 0.0, %v1143
      %v1145 = vpop.f32.mrf.mxu0
      %v1146 = vadd.f32 0.0, %v1145
      %1147 = vmatmul.bf16.gmra.mxu0 %v1112
      %v1148 = vpop.f32.mrf.mxu0
      %v1149 = vadd.f32 0.0, %v1148
      %v1150 = vpop.f32.mrf.mxu0
      %v1151 = vadd.f32 0.0, %v1150
      %1152 = vmatmul.bf16.gmra.mxu0 %v1115
      %v1153 = vpop.f32.mrf.mxu0
      %v1154 = vadd.f32 0.0, %v1153
      %v1155 = vpop.f32.mrf.mxu0
      %v1156 = vadd.f32 0.0, %v1155
      %1157 = vmatmul.bf16.gmra.mxu0 %v1118
      %v1158 = vpop.f32.mrf.mxu0
      %v1159 = vadd.f32 0.0, %v1158
      %v1160 = vpop.f32.mrf.mxu0
      %v1161 = vadd.f32 0.0, %v1160
      %1162 = vmatmul.bf16.gmra.mxu0 %v1121
      %v1163 = vpop.f32.mrf.mxu0
      %v1164 = vadd.f32 0.0, %v1163
      %v1165 = vpop.f32.mrf.mxu0
      %v1166 = vadd.f32 0.0, %v1165
      %1167 = vmatmul.bf16.gmra.mxu0 %v1124
      %v1168 = vpop.f32.mrf.mxu0
      %v1169 = vadd.f32 0.0, %v1168
      %v1170 = vpop.f32.mrf.mxu0
      %v1171 = vadd.f32 0.0, %v1170
      %1172 = vmatmul.bf16.gmra.mxu0 %v1127
      %v1173 = vpop.f32.mrf.mxu0
      %v1174 = vadd.f32 0.0, %v1173
      %v1175 = vpop.f32.mrf.mxu0
      %v1176 = vadd.f32 0.0, %v1175
      %1177 = vdwg.mxu0
      %1178 = vmatpush.bf16.msra.mxu0 0
      %1179 = vmatpush.bf16.msra.mxu0 0
      %1180 = vmatpush.bf16.msra.mxu0 0
      %1181 = vmatpush.bf16.msra.mxu0 0
      %1182 = vmatpush.bf16.msra.mxu0 %v1096
      %1183 = vmatpush.bf16.msra.mxu0 %v1094
      %1184 = vmatpush.bf16.msra.mxu0 %v1092
      %1185 = vmatpush.bf16.msra.mxu0 %v1090
      %1186 = vmatmul.bf16.gmra.mxu0 %v1106
      %v1187 = vpop.f32.mrf.mxu0
      %v1188 = vadd.f32 0.0, %v1187
      %v1189 = vpop.f32.mrf.mxu0
      %v1190 = vadd.f32 0.0, %v1189
      %1191 = vmatmul.bf16.gmra.mxu0 %v1109
      %v1192 = vpop.f32.mrf.mxu0
      %v1193 = vadd.f32 0.0, %v1192
      %v1194 = vpop.f32.mrf.mxu0
      %v1195 = vadd.f32 0.0, %v1194
      %1196 = vmatmul.bf16.gmra.mxu0 %v1112
      %v1197 = vpop.f32.mrf.mxu0
      %v1198 = vadd.f32 0.0, %v1197
      %v1199 = vpop.f32.mrf.mxu0
      %v1200 = vadd.f32 0.0, %v1199
      %1201 = vmatmul.bf16.gmra.mxu0 %v1115
      %v1202 = vpop.f32.mrf.mxu0
      %v1203 = vadd.f32 0.0, %v1202
      %v1204 = vpop.f32.mrf.mxu0
      %v1205 = vadd.f32 0.0, %v1204
      %1206 = vmatmul.bf16.gmra.mxu0 %v1118
      %v1207 = vpop.f32.mrf.mxu0
      %v1208 = vadd.f32 0.0, %v1207
      %v1209 = vpop.f32.mrf.mxu0
      %v1210 = vadd.f32 0.0, %v1209
      %1211 = vmatmul.bf16.gmra.mxu0 %v1121
      %v1212 = vpop.f32.mrf.mxu0
      %v1213 = vadd.f32 0.0, %v1212
      %v1214 = vpop.f32.mrf.mxu0
      %v1215 = vadd.f32 0.0, %v1214
      %1216 = vmatmul.bf16.gmra.mxu0 %v1124
      %v1217 = vpop.f32.mrf.mxu0
      %v1218 = vadd.f32 0.0, %v1217
      %v1219 = vpop.f32.mrf.mxu0
      %v1220 = vadd.f32 0.0, %v1219
      %1221 = vmatmul.bf16.gmra.mxu0 %v1127
      %v1222 = vpop.f32.mrf.mxu0
      %v1223 = vadd.f32 0.0, %v1222
      %v1224 = vpop.f32.mrf.mxu0
      %v1225 = vadd.f32 0.0, %v1224
      %1226 = vdwg.mxu0
      %v1227 = vpack.c.bf16 %v1188, %v1139
      %v1228 = vpack.c.bf16 %v1190, %v1141
      %v1229 = vpack.c.bf16 %v1193, %v1144
      %v1230 = vpack.c.bf16 %v1195, %v1146
      %v1231 = vpack.c.bf16 %v1198, %v1149
      %v1232 = vpack.c.bf16 %v1200, %v1151
      %v1233 = vpack.c.bf16 %v1203, %v1154
      %v1234 = vpack.c.bf16 %v1205, %v1156
      %v1235 = vpack.c.bf16 %v1208, %v1159
      %v1236 = vpack.c.bf16 %v1210, %v1161
      %v1237 = vpack.c.bf16 %v1213, %v1164
      %v1238 = vpack.c.bf16 %v1215, %v1166
      %v1239 = vpack.c.bf16 %v1218, %v1169
      %v1240 = vpack.c.bf16 %v1220, %v1171
      %v1241 = vpack.c.bf16 %v1223, %v1174
      %v1242 = vpack.c.bf16 %v1225, %v1176
      %vm1243 = vcmask 1043456
      %vm1244 = vcmask 523268
      %vm1245 = vmor %vm1244, %vm1243
      %1246 = vst.msk [vmem:[%s424] sm:$0xff] %vm1245, %v1227
      %1247 = vst.msk [vmem:[%s424 + $0x8] sm:$0xff] %vm1245, %v1228
      %1248 = vst.msk [vmem:[%s424 + $0x10] sm:$0xff] %vm1245, %v1229
      %1249 = vst.msk [vmem:[%s424 + $0x18] sm:$0xff] %vm1245, %v1230
      %1250 = vst.msk [vmem:[%s424 + $0x20] sm:$0xff] %vm1245, %v1231
      %1251 = vst.msk [vmem:[%s424 + $0x28] sm:$0xff] %vm1245, %v1232
      %1252 = vst.msk [vmem:[%s424 + $0x30] sm:$0xff] %vm1245, %v1233
      %1253 = vst.msk [vmem:[%s424 + $0x38] sm:$0xff] %vm1245, %v1234
      %1254 = vst.msk [vmem:[%s424 + $0x40] sm:$0xff] %vm1245, %v1235
      %1255 = vst.msk [vmem:[%s424 + $0x48] sm:$0xff] %vm1245, %v1236
      %1256 = vst.msk [vmem:[%s424 + $0x50] sm:$0xff] %vm1245, %v1237
      %1257 = vst.msk [vmem:[%s424 + $0x58] sm:$0xff] %vm1245, %v1238
      %1258 = vst.msk [vmem:[%s424 + $0x60] sm:$0xff] %vm1245, %v1239
      %1259 = vst.msk [vmem:[%s424 + $0x68] sm:$0xff] %vm1245, %v1240
      %1260 = vst.msk [vmem:[%s424 + $0x70] sm:$0xff] %vm1245, %v1241
      %1261 = vst.msk [vmem:[%s424 + $0x78] sm:$0xff] %vm1245, %v1242
      %s1262 = smul.u32 16, %s26
      %p1263 = scmp.lt.s32.totalorder %s25, 1
      %s1264 = scalar_select %p1263, %s25, 1
      %p1265 = scmp.lt.s32.totalorder %s1262, 31
      %s1266 = scalar_select %p1265, %s1262, 31
      %s1267 = smul.addr %s1264, 32
      %s1268 = sadd.s32 %s1266, %s1267
      %s1269 = smul.addr %s1268, 4
      %s1270 = scalar_lea.vmem %s8, %s1269
      %s1271 = smul.u32 16, %s26
      %p1272 = scmp.lt.s32.totalorder %s25, 1
      %s1273 = scalar_select %p1272, %s25, 1
      %p1274 = scmp.lt.s32.totalorder %s1271, 31
      %s1275 = scalar_select %p1274, %s1271, 31
      %s1276 = smul.addr %s1275, 2
      %s1277 = smul.addr %s1273, 64
      %s1278 = sadd.s32 %s1276, %s1277
      %s1279 = smul.addr %s1278, 4
      %s1280 = scalar_lea.vmem %s9, %s1279
      // Predicated region
      $region53: #{unet_attention_block.2} parent=51 // pred_check
        %p1281 = pneg %p238
      $region54: #{unet_attention_block.2} parent=51 // pred_check_branch
        %1283 = sbr.rel (%p1281) target = $region56
      $region55: #{unet_attention_block.2} parent=51 // pred_region
        %s1284 = smul.u32 16, %s26
      $region56: #{unet_attention_block.2} parent=51 // pred_fallthru
        _
      // Predicated region
      $region57: #{unet_attention_block.2} parent=51 // pred_check
        %p1285 = pneg %p266
      $region58: #{unet_attention_block.2} parent=51 // pred_check_branch
        %1287 = sbr.rel (%p1285) target = $region60
      $region59: #{unet_attention_block.2} parent=51 // pred_region
        %s1288 = smul.u32 16, %s26
      $region60: #{unet_attention_block.2} parent=51 // pred_fallthru
        _
    $region52: #{unet_attention_block.2} parent=5 // pred_fallthru
      _
    %p1289 = scmp.le.s32.totalorder 2, %s16
    // Predicated region
    $region61: #{unet_attention_block.2} parent=5 // pred_check
      %p1290 = pneg %p1289
    $region62: #{unet_attention_block.2} parent=5 // pred_check_branch
      %1292 = sbr.rel (%p1290) target = $region64
    $region63: #{unet_attention_block.2} parent=5 // pred_region
      %s1293 = ssub.s32 %s16, 2
      // Predicated region
      $region65: #{unet_attention_block.2} parent=63 // pred_check
        %p1294 = pneg %p244
      $region66: #{unet_attention_block.2} parent=63 // pred_check_branch
        %1296 = sbr.rel (%p1294) target = $region68
      $region67: #{unet_attention_block.2} parent=63 // pred_region
        %s1297 = smul.u32 16, %s28
        %p1298 = scmp.lt.s32.totalorder %s27, 1
        %s1299 = scalar_select %p1298, %s27, 1
        %p1300 = scmp.lt.s32.totalorder %s1297, 31
        %s1301 = scalar_select %p1300, %s1297, 31
        %s1302 = smul.addr %s1299, 32
        %s1303 = sadd.s32 %s1301, %s1302
        %s1304 = smul.addr %s1303, 4
        %s1305 = scalar_lea.vmem %s8, %s1304
      $region68: #{unet_attention_block.2} parent=63 // pred_fallthru
        _
      // Predicated region
      $region69: #{unet_attention_block.2} parent=63 // pred_check
        %p1306 = pneg %p272
      $region70: #{unet_attention_block.2} parent=63 // pred_check_branch
        %1308 = sbr.rel (%p1306) target = $region72
      $region71: #{unet_attention_block.2} parent=63 // pred_region
        %s1309 = smul.u32 16, %s28
        %p1310 = scmp.lt.s32.totalorder %s27, 1
        %s1311 = scalar_select %p1310, %s27, 1
        %p1312 = scmp.lt.s32.totalorder %s1309, 31
        %s1313 = scalar_select %p1312, %s1309, 31
        %s1314 = smul.addr %s1313, 2
        %s1315 = smul.addr %s1311, 64
        %s1316 = sadd.s32 %s1314, %s1315
        %s1317 = smul.addr %s1316, 4
        %s1318 = scalar_lea.vmem %s9, %s1317
      $region72: #{unet_attention_block.2} parent=63 // pred_fallthru
        _
    $region64: #{unet_attention_block.2} parent=5 // pred_fallthru
      _
  $region6: #{unet_attention_block.2} parent=0 // loop_footer
    %s20 = sadd.s32 1, %s16
  $region7: #{unet_attention_block.2} parent=0 // loop_footer_branch
    %15 = sbr.rel target = $region3
  $region8: #{unet_attention_block.2} parent=0 // loop_exit
    _

// kernel: unet_attention_block.3
$region0: #{unet_attention_block.3}
  #allocation0 [shape = 'u32[]', space=smem, size = 0x4, offset = 0x4, fixed_abs, tag = 'smem constant byte address 0x4 - core index']
  #allocation1 [shape = 'u32[72,128]{1,0:T(1,128)}', space=vmem, size = 0x9000, scoped, tag = 'internal scratch']
  #allocation2 [shape = 'f32[2,64,1]{2,1,0:T(8,128)}', space=vmem, size = 0x10000, scoped, tag = 'scratch operand']
  #allocation3 [shape = 'f32[2,64,1]{2,1,0:T(8,128)}', space=vmem, size = 0x10000, scoped, tag = 'scratch operand']
  #allocation4 [shape = 'f32[2,64,32]{2,1,0:T(8,128)}', space=vmem, size = 0x10000, scoped, tag = 'scratch operand']
  %s0 = inlined_call_operand.vmem [shape: bf16[2,256,64], index: 0, kind: input, shape index: {}]
  %s1 = inlined_call_operand.vmem [shape: bf16[2,256,64], index: 1, kind: input, shape index: {}]
  %s2 = inlined_call_operand.vmem [shape: bf16[2,2,256,32], index: 2, kind: input, shape index: {}]
  %s3 = inlined_call_operand.vmem [shape: bf16[2,2,256,32], index: 3, kind: input, shape index: {}]
  %s4 = inlined_call_operand.vmem [shape: bf16[2,2,256,32], index: 4, kind: input, shape index: {}]
  %s5 = inlined_call_operand.vmem [shape: bf16[2,2,8,32], index: 5, kind: input, shape index: {}]
  %s6 = inlined_call_operand.vmem [shape: bf16[2,2,8,32], index: 6, kind: input, shape index: {}]
  %s7 = inlined_call_operand.vmem [shape: bf16[2,32,64], index: 7, kind: input, shape index: {}]
  %s8 = inlined_call_operand.vmem [shape: f32[1,64], index: 8, kind: input, shape index: {}]
  %s9 = inlined_call_operand.vmem [shape: f32[1,64], index: 9, kind: input, shape index: {}]
  %s10 = inlined_call_operand.vmem [shape: f32[1,64], index: 10, kind: input, shape index: {}]
  %s11 = inlined_call_operand.vmem [shape: bf16[64,64], index: 11, kind: input, shape index: {}]
  %s12 = inlined_call_operand.vmem [shape: bf16[2,32,64], index: 12, kind: input, shape index: {}]
  %s13 = inlined_call_operand.vmem [shape: f32[1,64], index: 13, kind: input, shape index: {}]
  %s14 = inlined_call_operand.vmem [shape: f32[1,64], index: 14, kind: input, shape index: {}]
  %s15 = inlined_call_operand.vmem [shape: f32[1,64], index: 15, kind: input, shape index: {}]
  %s16 = inlined_call_operand.vmem [shape: bf16[64,256], index: 16, kind: input, shape index: {}]
  %s17 = inlined_call_operand.vmem [shape: f32[1,256], index: 17, kind: input, shape index: {}]
  %s18 = inlined_call_operand.vmem [shape: bf16[64,256], index: 18, kind: input, shape index: {}]
  %s19 = inlined_call_operand.vmem [shape: f32[1,256], index: 19, kind: input, shape index: {}]
  %s20 = inlined_call_operand.vmem [shape: bf16[256,64], index: 20, kind: input, shape index: {}]
  %s21 = inlined_call_operand.vmem [shape: f32[1,64], index: 21, kind: input, shape index: {}]
  %s22 = inlined_call_operand.vmem [shape: bf16[64,64], index: 22, kind: input, shape index: {}]
  %s23 = inlined_call_operand.vmem [shape: f32[1,64], index: 23, kind: input, shape index: {}]
  %s24 = inlined_call_operand.hbm [shape: f32[2,256,64], index: 24, kind: output, shape index: {}]
  %s25 = sld [smem:[#allocation0]]
  $region260: #{unet_attention_block.3} parent=0
    _
  %s27 = ssub.s32 1, %s25
  %s28 = scalar_select 0, %s27, %s25
  $region1: #{unet_attention_block.3} parent=0
    #allocation5 [shape = 'u8[65536]{0}', space=vmem, size = 0x10000, scoped, tag = 'input window, operand 2']
    #allocation6 [shape = 'u8[65536]{0}', space=vmem, size = 0x10000, scoped, tag = 'input window, operand 3']
    #allocation7 [shape = 'u8[65536]{0}', space=vmem, size = 0x10000, scoped, tag = 'input window, operand 4']
    #allocation8 [shape = 'u8[65536]{0}', space=vmem, size = 0x10000, scoped, tag = 'output window, operand 0']
    #allocation9 [shape = 's32[2]{0}', space=sflag, size = 0x8, scoped, tag = 'scoped memory for unet_attention_block.3']
    %29 = vsyncpa [#allocation9], 0
    %s30 = scalar_lea.sflag [#allocation9], 1
    %31 = vsyncpa %s30, 0
    loop: start=0, step=1, limit=34
    $region2: #{unet_attention_block.3} parent=1 // loop_pre_header
      _
    $region3: #{unet_attention_block.3} parent=1 // loop_header
      %s33 = sphi 0, %s37
      %p34 = scmp.ge.s32.totalorder %s33, 34
      %s40 = sphi 0, %s59
      %s41 = sphi 0, %s55
      %s42 = sphi 0, %s51
      %s43 = sphi 0, %s40
      %s44 = sphi 0, %s41
      %s45 = sphi 0, %s42
      %s46 = sphi 0, %s43
      %s47 = sphi 0, %s44
      %s48 = sphi 0, %s45
      %s64 = sphi 0, %s66
      %s67 = sphi 0, %s64
      %s68 = sphi 0, %s67
      %s84 = sphi 0, %s68
      %s92 = sphi 0, %s94
      %s95 = sphi 0, %s92
      %s96 = sphi 0, %s95
      %s112 = sphi 0, %s96
      %s120 = sphi 0, %s122
      %s123 = sphi 0, %s120
      %s124 = sphi 0, %s123
      %s140 = sphi 0, %s124
      %s148 = sphi 0, %s150
      %s151 = sphi 0, %s148
      %s152 = sphi 0, %s151
      %s168 = sphi 0, %s152
      %s176 = sphi 0, %s178
      %s179 = sphi 0, %s176
      %s180 = sphi 0, %s179
      %s196 = sphi 0, %s180
      %s202 = sphi 0, %s204
      %s205 = sphi 0, %s202
      %s206 = sphi 0, %s205
      %s222 = sphi 0, %s206
      %s228 = sphi 0, %s230
      %s231 = sphi 0, %s228
      %s232 = sphi 0, %s231
      %s248 = sphi 0, %s232
      %s252 = sphi 0, %s252
      %s254 = sphi 0, %s252
      %s255 = sphi 0, %s254
      %s269 = sphi 0, %s255
      %s273 = sphi 0, %s273
      %s275 = sphi 0, %s273
      %s276 = sphi 0, %s275
      %s290 = sphi 0, %s276
      %s294 = sphi 0, %s294
      %s296 = sphi 0, %s294
      %s297 = sphi 0, %s296
      %s311 = sphi 0, %s297
      %s315 = sphi 0, %s315
      %s317 = sphi 0, %s315
      %s318 = sphi 0, %s317
      %s332 = sphi 0, %s318
      %s336 = sphi 0, %s336
      %s338 = sphi 0, %s336
      %s339 = sphi 0, %s338
      %s353 = sphi 0, %s339
      %s357 = sphi 0, %s357
      %s359 = sphi 0, %s357
      %s360 = sphi 0, %s359
      %s374 = sphi 0, %s360
      %s378 = sphi 0, %s378
      %s380 = sphi 0, %s378
      %s381 = sphi 0, %s380
      %s395 = sphi 0, %s381
      %s399 = sphi 0, %s399
      %s401 = sphi 0, %s399
      %s402 = sphi 0, %s401
      %s416 = sphi 0, %s402
      %s420 = sphi 0, %s420
      %s422 = sphi 0, %s420
      %s423 = sphi 0, %s422
      %s437 = sphi 0, %s423
      %s441 = sphi 0, %s441
      %s443 = sphi 0, %s441
      %s444 = sphi 0, %s443
      %s458 = sphi 0, %s444
      %s462 = sphi 0, %s462
      %s464 = sphi 0, %s462
      %s465 = sphi 0, %s464
      %s479 = sphi 0, %s465
      %s483 = sphi 0, %s483
      %s485 = sphi 0, %s483
      %s486 = sphi 0, %s485
      %s500 = sphi 0, %s486
      %s504 = sphi 0, %s504
      %s506 = sphi 0, %s504
      %s507 = sphi 0, %s506
      %s521 = sphi 0, %s507
      %s525 = sphi 0, %s525
      %s527 = sphi 0, %s525
      %s528 = sphi 0, %s527
      %s542 = sphi 0, %s528
      %s546 = sphi 0, %s546
      %s548 = sphi 0, %s546
      %s549 = sphi 0, %s548
      %s563 = sphi 0, %s549
      %s567 = sphi 0, %s567
      %s569 = sphi 0, %s567
      %s570 = sphi 0, %s569
      %s584 = sphi 0, %s570
      %s588 = sphi 0, %s588
      %s590 = sphi 0, %s588
      %s591 = sphi 0, %s590
      %s605 = sphi 0, %s591
      %s613 = sphi 0, %s615
      %s616 = sphi 0, %s613
      %s617 = sphi 0, %s616
      %s633 = sphi 0, %s617
    $region4: #{unet_attention_block.3} parent=1 // loop_header_branch
      %36 = sbr.rel (%p34) target = $region8
    $region5: #{unet_attention_block.3} parent=1 // loop_body
      %s38 = ssub.s32 %s33, 1
      %s39 = ssub.s32 %s33, 2
      %s49 = sadd.s32 1, %s42
      %p50 = scmp.ge.s32.totalorder %s49, 4
      %s51 = scalar_select %p50, 0, %s49
      %s52 = sadd.s32 1, %s41
      %s53 = scalar_select %p50, %s52, %s41
      %p54 = scmp.ge.s32.totalorder %s53, 4
      %s55 = scalar_select %p54, 0, %s53
      %s56 = sadd.s32 1, %s40
      %s57 = scalar_select %p54, %s56, %s40
      %p58 = scmp.ge.s32.totalorder %s57, 2
      %s59 = scalar_select %p58, 0, %s57
      %s60 = ssub.s32 %s40, %s59
      %s61 = ssub.s32 %s41, %s55
      %s62 = sor.u32 %s60, %s61
      %p63 = scmp.eq.s32.totalorder %s62, 0
      %s65 = sadd.s32 %s64, 1
      %s66 = scalar_select %p63, %s64, %s65
      %p69 = pneg %p63
      %p70 = scmp.eq.s32.totalorder %s33, 31
      %p71 = por %p69, %p70
      %p72 = scmp.ne.s32.totalorder %s64, %s67
      %p73 = scmp.eq.s32.totalorder %s33, 0
      %p74 = por %p72, %p73
      %p75 = scmp.ne.s32.totalorder %s64, %s67
      %p76 = scmp.eq.s32.totalorder %s38, 31
      %p77 = por %p75, %p76
      %p78 = scmp.ne.s32.totalorder %s67, %s68
      %p79 = scmp.eq.s32.totalorder %s38, 0
      %p80 = por %p78, %p79
      %p81 = scmp.ne.s32.totalorder %s67, %s68
      %p82 = scmp.eq.s32.totalorder %s39, 31
      %p83 = por %p81, %p82
      %p85 = scmp.ne.s32.totalorder %s68, %s84
      %p86 = scmp.eq.s32.totalorder %s39, 0
      %p87 = por %p85, %p86
      %s88 = ssub.s32 %s40, %s59
      %s89 = ssub.s32 %s41, %s55
      %s90 = sor.u32 %s88, %s89
      %p91 = scmp.eq.s32.totalorder %s90, 0
      %s93 = sadd.s32 %s92, 1
      %s94 = scalar_select %p91, %s92, %s93
      %p97 = pneg %p91
      %p98 = scmp.eq.s32.totalorder %s33, 31
      %p99 = por %p97, %p98
      %p100 = scmp.ne.s32.totalorder %s92, %s95
      %p101 = scmp.eq.s32.totalorder %s33, 0
      %p102 = por %p100, %p101
      %p103 = scmp.ne.s32.totalorder %s92, %s95
      %p104 = scmp.eq.s32.totalorder %s38, 31
      %p105 = por %p103, %p104
      %p106 = scmp.ne.s32.totalorder %s95, %s96
      %p107 = scmp.eq.s32.totalorder %s38, 0
      %p108 = por %p106, %p107
      %p109 = scmp.ne.s32.totalorder %s95, %s96
      %p110 = scmp.eq.s32.totalorder %s39, 31
      %p111 = por %p109, %p110
      %p113 = scmp.ne.s32.totalorder %s96, %s112
      %p114 = scmp.eq.s32.totalorder %s39, 0
      %p115 = por %p113, %p114
      %s116 = ssub.s32 %s40, %s59
      %s117 = ssub.s32 %s41, %s55
      %s118 = sor.u32 %s116, %s117
      %p119 = scmp.eq.s32.totalorder %s118, 0
      %s121 = sadd.s32 %s120, 1
      %s122 = scalar_select %p119, %s120, %s121
      %p125 = pneg %p119
      %p126 = scmp.eq.s32.totalorder %s33, 31
      %p127 = por %p125, %p126
      %p128 = scmp.ne.s32.totalorder %s120, %s123
      %p129 = scmp.eq.s32.totalorder %s33, 0
      %p130 = por %p128, %p129
      %p131 = scmp.ne.s32.totalorder %s120, %s123
      %p132 = scmp.eq.s32.totalorder %s38, 31
      %p133 = por %p131, %p132
      %p134 = scmp.ne.s32.totalorder %s123, %s124
      %p135 = scmp.eq.s32.totalorder %s38, 0
      %p136 = por %p134, %p135
      %p137 = scmp.ne.s32.totalorder %s123, %s124
      %p138 = scmp.eq.s32.totalorder %s39, 31
      %p139 = por %p137, %p138
      %p141 = scmp.ne.s32.totalorder %s124, %s140
      %p142 = scmp.eq.s32.totalorder %s39, 0
      %p143 = por %p141, %p142
      %s144 = ssub.s32 %s40, %s59
      %s145 = ssub.s32 %s42, %s51
      %s146 = sor.u32 %s144, %s145
      %p147 = scmp.eq.s32.totalorder %s146, 0
      %s149 = sadd.s32 %s148, 1
      %s150 = scalar_select %p147, %s148, %s149
      %p153 = pneg %p147
      %p154 = scmp.eq.s32.totalorder %s33, 31
      %p155 = por %p153, %p154
      %p156 = scmp.ne.s32.totalorder %s148, %s151
      %p157 = scmp.eq.s32.totalorder %s33, 0
      %p158 = por %p156, %p157
      %p159 = scmp.ne.s32.totalorder %s148, %s151
      %p160 = scmp.eq.s32.totalorder %s38, 31
      %p161 = por %p159, %p160
      %p162 = scmp.ne.s32.totalorder %s151, %s152
      %p163 = scmp.eq.s32.totalorder %s38, 0
      %p164 = por %p162, %p163
      %p165 = scmp.ne.s32.totalorder %s151, %s152
      %p166 = scmp.eq.s32.totalorder %s39, 31
      %p167 = por %p165, %p166
      %p169 = scmp.ne.s32.totalorder %s152, %s168
      %p170 = scmp.eq.s32.totalorder %s39, 0
      %p171 = por %p169, %p170
      %s172 = ssub.s32 %s40, %s59
      %s173 = ssub.s32 %s42, %s51
      %s174 = sor.u32 %s172, %s173
      %p175 = scmp.eq.s32.totalorder %s174, 0
      %s177 = sadd.s32 %s176, 1
      %s178 = scalar_select %p175, %s176, %s177
      %p181 = pneg %p175
      %p182 = scmp.eq.s32.totalorder %s33, 31
      %p183 = por %p181, %p182
      %p184 = scmp.ne.s32.totalorder %s176, %s179
      %p185 = scmp.eq.s32.totalorder %s33, 0
      %p186 = por %p184, %p185
      %p187 = scmp.ne.s32.totalorder %s176, %s179
      %p188 = scmp.eq.s32.totalorder %s38, 31
      %p189 = por %p187, %p188
      %p190 = scmp.ne.s32.totalorder %s179, %s180
      %p191 = scmp.eq.s32.totalorder %s38, 0
      %p192 = por %p190, %p191
      %p193 = scmp.ne.s32.totalorder %s179, %s180
      %p194 = scmp.eq.s32.totalorder %s39, 31
      %p195 = por %p193, %p194
      %p197 = scmp.ne.s32.totalorder %s180, %s196
      %p198 = scmp.eq.s32.totalorder %s39, 0
      %p199 = por %p197, %p198
      %s200 = ssub.s32 %s40, %s59
      %p201 = scmp.eq.s32.totalorder %s200, 0
      %s203 = sadd.s32 %s202, 1
      %s204 = scalar_select %p201, %s202, %s203
      %p207 = pneg %p201
      %p208 = scmp.eq.s32.totalorder %s33, 31
      %p209 = por %p207, %p208
      %p210 = scmp.ne.s32.totalorder %s202, %s205
      %p211 = scmp.eq.s32.totalorder %s33, 0
      %p212 = por %p210, %p211
      %p213 = scmp.ne.s32.totalorder %s202, %s205
      %p214 = scmp.eq.s32.totalorder %s38, 31
      %p215 = por %p213, %p214
      %p216 = scmp.ne.s32.totalorder %s205, %s206
      %p217 = scmp.eq.s32.totalorder %s38, 0
      %p218 = por %p216, %p217
      %p219 = scmp.ne.s32.totalorder %s205, %s206
      %p220 = scmp.eq.s32.totalorder %s39, 31
      %p221 = por %p219, %p220
      %p223 = scmp.ne.s32.totalorder %s206, %s222
      %p224 = scmp.eq.s32.totalorder %s39, 0
      %p225 = por %p223, %p224
      %s226 = ssub.s32 %s40, %s59
      %p227 = scmp.eq.s32.totalorder %s226, 0
      %s229 = sadd.s32 %s228, 1
      %s230 = scalar_select %p227, %s228, %s229
      %p233 = pneg %p227
      %p234 = scmp.eq.s32.totalorder %s33, 31
      %p235 = por %p233, %p234
      %p236 = scmp.ne.s32.totalorder %s228, %s231
      %p237 = scmp.eq.s32.totalorder %s33, 0
      %p238 = por %p236, %p237
      %p239 = scmp.ne.s32.totalorder %s228, %s231
      %p240 = scmp.eq.s32.totalorder %s38, 31
      %p241 = por %p239, %p240
      %p242 = scmp.ne.s32.totalorder %s231, %s232
      %p243 = scmp.eq.s32.totalorder %s38, 0
      %p244 = por %p242, %p243
      %p245 = scmp.ne.s32.totalorder %s231, %s232
      %p246 = scmp.eq.s32.totalorder %s39, 31
      %p247 = por %p245, %p246
      %p249 = scmp.ne.s32.totalorder %s232, %s248
      %p250 = scmp.eq.s32.totalorder %s39, 0
      %p251 = por %p249, %p250
      %s253 = sadd.s32 %s252, 1
      %p256 = scmp.eq.s32.totalorder %s33, 31
      %p257 = scmp.ne.s32.totalorder %s252, %s254
      %p258 = scmp.eq.s32.totalorder %s33, 0
      %p259 = por %p257, %p258
      %p260 = scmp.ne.s32.totalorder %s252, %s254
      %p261 = scmp.eq.s32.totalorder %s38, 31
      %p262 = por %p260, %p261
      %p263 = scmp.ne.s32.totalorder %s254, %s255
      %p264 = scmp.eq.s32.totalorder %s38, 0
      %p265 = por %p263, %p264
      %p266 = scmp.ne.s32.totalorder %s254, %s255
      %p267 = scmp.eq.s32.totalorder %s39, 31
      %p268 = por %p266, %p267
      %p270 = scmp.ne.s32.totalorder %s255, %s269
      %p271 = scmp.eq.s32.totalorder %s39, 0
      %p272 = por %p270, %p271
      %s274 = sadd.s32 %s273, 1
      %p277 = scmp.eq.s32.totalorder %s33, 31
      %p278 = scmp.ne.s32.totalorder %s273, %s275
      %p279 = scmp.eq.s32.totalorder %s33, 0
      %p280 = por %p278, %p279
      %p281 = scmp.ne.s32.totalorder %s273, %s275
      %p282 = scmp.eq.s32.totalorder %s38, 31
      %p283 = por %p281, %p282
      %p284 = scmp.ne.s32.totalorder %s275, %s276
      %p285 = scmp.eq.s32.totalorder %s38, 0
      %p286 = por %p284, %p285
      %p287 = scmp.ne.s32.totalorder %s275, %s276
      %p288 = scmp.eq.s32.totalorder %s39, 31
      %p289 = por %p287, %p288
      %p291 = scmp.ne.s32.totalorder %s276, %s290
      %p292 = scmp.eq.s32.totalorder %s39, 0
      %p293 = por %p291, %p292
      %s295 = sadd.s32 %s294, 1
      %p298 = scmp.eq.s32.totalorder %s33, 31
      %p299 = scmp.ne.s32.totalorder %s294, %s296
      %p300 = scmp.eq.s32.totalorder %s33, 0
      %p301 = por %p299, %p300
      %p302 = scmp.ne.s32.totalorder %s294, %s296
      %p303 = scmp.eq.s32.totalorder %s38, 31
      %p304 = por %p302, %p303
      %p305 = scmp.ne.s32.totalorder %s296, %s297
      %p306 = scmp.eq.s32.totalorder %s38, 0
      %p307 = por %p305, %p306
      %p308 = scmp.ne.s32.totalorder %s296, %s297
      %p309 = scmp.eq.s32.totalorder %s39, 31
      %p310 = por %p308, %p309
      %p312 = scmp.ne.s32.totalorder %s297, %s311
      %p313 = scmp.eq.s32.totalorder %s39, 0
      %p314 = por %p312, %p313
      %s316 = sadd.s32 %s315, 1
      %p319 = scmp.eq.s32.totalorder %s33, 31
      %p320 = scmp.ne.s32.totalorder %s315, %s317
      %p321 = scmp.eq.s32.totalorder %s33, 0
      %p322 = por %p320, %p321
      %p323 = scmp.ne.s32.totalorder %s315, %s317
      %p324 = scmp.eq.s32.totalorder %s38, 31
      %p325 = por %p323, %p324
      %p326 = scmp.ne.s32.totalorder %s317, %s318
      %p327 = scmp.eq.s32.totalorder %s38, 0
      %p328 = por %p326, %p327
      %p329 = scmp.ne.s32.totalorder %s317, %s318
      %p330 = scmp.eq.s32.totalorder %s39, 31
      %p331 = por %p329, %p330
      %p333 = scmp.ne.s32.totalorder %s318, %s332
      %p334 = scmp.eq.s32.totalorder %s39, 0
      %p335 = por %p333, %p334
      %s337 = sadd.s32 %s336, 1
      %p340 = scmp.eq.s32.totalorder %s33, 31
      %p341 = scmp.ne.s32.totalorder %s336, %s338
      %p342 = scmp.eq.s32.totalorder %s33, 0
      %p343 = por %p341, %p342
      %p344 = scmp.ne.s32.totalorder %s336, %s338
      %p345 = scmp.eq.s32.totalorder %s38, 31
      %p346 = por %p344, %p345
      %p347 = scmp.ne.s32.totalorder %s338, %s339
      %p348 = scmp.eq.s32.totalorder %s38, 0
      %p349 = por %p347, %p348
      %p350 = scmp.ne.s32.totalorder %s338, %s339
      %p351 = scmp.eq.s32.totalorder %s39, 31
      %p352 = por %p350, %p351
      %p354 = scmp.ne.s32.totalorder %s339, %s353
      %p355 = scmp.eq.s32.totalorder %s39, 0
      %p356 = por %p354, %p355
      %s358 = sadd.s32 %s357, 1
      %p361 = scmp.eq.s32.totalorder %s33, 31
      %p362 = scmp.ne.s32.totalorder %s357, %s359
      %p363 = scmp.eq.s32.totalorder %s33, 0
      %p364 = por %p362, %p363
      %p365 = scmp.ne.s32.totalorder %s357, %s359
      %p366 = scmp.eq.s32.totalorder %s38, 31
      %p367 = por %p365, %p366
      %p368 = scmp.ne.s32.totalorder %s359, %s360
      %p369 = scmp.eq.s32.totalorder %s38, 0
      %p370 = por %p368, %p369
      %p371 = scmp.ne.s32.totalorder %s359, %s360
      %p372 = scmp.eq.s32.totalorder %s39, 31
      %p373 = por %p371, %p372
      %p375 = scmp.ne.s32.totalorder %s360, %s374
      %p376 = scmp.eq.s32.totalorder %s39, 0
      %p377 = por %p375, %p376
      %s379 = sadd.s32 %s378, 1
      %p382 = scmp.eq.s32.totalorder %s33, 31
      %p383 = scmp.ne.s32.totalorder %s378, %s380
      %p384 = scmp.eq.s32.totalorder %s33, 0
      %p385 = por %p383, %p384
      %p386 = scmp.ne.s32.totalorder %s378, %s380
      %p387 = scmp.eq.s32.totalorder %s38, 31
      %p388 = por %p386, %p387
      %p389 = scmp.ne.s32.totalorder %s380, %s381
      %p390 = scmp.eq.s32.totalorder %s38, 0
      %p391 = por %p389, %p390
      %p392 = scmp.ne.s32.totalorder %s380, %s381
      %p393 = scmp.eq.s32.totalorder %s39, 31
      %p394 = por %p392, %p393
      %p396 = scmp.ne.s32.totalorder %s381, %s395
      %p397 = scmp.eq.s32.totalorder %s39, 0
      %p398 = por %p396, %p397
      %s400 = sadd.s32 %s399, 1
      %p403 = scmp.eq.s32.totalorder %s33, 31
      %p404 = scmp.ne.s32.totalorder %s399, %s401
      %p405 = scmp.eq.s32.totalorder %s33, 0
      %p406 = por %p404, %p405
      %p407 = scmp.ne.s32.totalorder %s399, %s401
      %p408 = scmp.eq.s32.totalorder %s38, 31
      %p409 = por %p407, %p408
      %p410 = scmp.ne.s32.totalorder %s401, %s402
      %p411 = scmp.eq.s32.totalorder %s38, 0
      %p412 = por %p410, %p411
      %p413 = scmp.ne.s32.totalorder %s401, %s402
      %p414 = scmp.eq.s32.totalorder %s39, 31
      %p415 = por %p413, %p414
      %p417 = scmp.ne.s32.totalorder %s402, %s416
      %p418 = scmp.eq.s32.totalorder %s39, 0
      %p419 = por %p417, %p418
      %s421 = sadd.s32 %s420, 1
      %p424 = scmp.eq.s32.totalorder %s33, 31
      %p425 = scmp.ne.s32.totalorder %s420, %s422
      %p426 = scmp.eq.s32.totalorder %s33, 0
      %p427 = por %p425, %p426
      %p428 = scmp.ne.s32.totalorder %s420, %s422
      %p429 = scmp.eq.s32.totalorder %s38, 31
      %p430 = por %p428, %p429
      %p431 = scmp.ne.s32.totalorder %s422, %s423
      %p432 = scmp.eq.s32.totalorder %s38, 0
      %p433 = por %p431, %p432
      %p434 = scmp.ne.s32.totalorder %s422, %s423
      %p435 = scmp.eq.s32.totalorder %s39, 31
      %p436 = por %p434, %p435
      %p438 = scmp.ne.s32.totalorder %s423, %s437
      %p439 = scmp.eq.s32.totalorder %s39, 0
      %p440 = por %p438, %p439
      %s442 = sadd.s32 %s441, 1
      %p445 = scmp.eq.s32.totalorder %s33, 31
      %p446 = scmp.ne.s32.totalorder %s441, %s443
      %p447 = scmp.eq.s32.totalorder %s33, 0
      %p448 = por %p446, %p447
      %p449 = scmp.ne.s32.totalorder %s441, %s443
      %p450 = scmp.eq.s32.totalorder %s38, 31
      %p451 = por %p449, %p450
      %p452 = scmp.ne.s32.totalorder %s443, %s444
      %p453 = scmp.eq.s32.totalorder %s38, 0
      %p454 = por %p452, %p453
      %p455 = scmp.ne.s32.totalorder %s443, %s444
      %p456 = scmp.eq.s32.totalorder %s39, 31
      %p457 = por %p455, %p456
      %p459 = scmp.ne.s32.totalorder %s444, %s458
      %p460 = scmp.eq.s32.totalorder %s39, 0
      %p461 = por %p459, %p460
      %s463 = sadd.s32 %s462, 1
      %p466 = scmp.eq.s32.totalorder %s33, 31
      %p467 = scmp.ne.s32.totalorder %s462, %s464
      %p468 = scmp.eq.s32.totalorder %s33, 0
      %p469 = por %p467, %p468
      %p470 = scmp.ne.s32.totalorder %s462, %s464
      %p471 = scmp.eq.s32.totalorder %s38, 31
      %p472 = por %p470, %p471
      %p473 = scmp.ne.s32.totalorder %s464, %s465
      %p474 = scmp.eq.s32.totalorder %s38, 0
      %p475 = por %p473, %p474
      %p476 = scmp.ne.s32.totalorder %s464, %s465
      %p477 = scmp.eq.s32.totalorder %s39, 31
      %p478 = por %p476, %p477
      %p480 = scmp.ne.s32.totalorder %s465, %s479
      %p481 = scmp.eq.s32.totalorder %s39, 0
      %p482 = por %p480, %p481
      %s484 = sadd.s32 %s483, 1
      %p487 = scmp.eq.s32.totalorder %s33, 31
      %p488 = scmp.ne.s32.totalorder %s483, %s485
      %p489 = scmp.eq.s32.totalorder %s33, 0
      %p490 = por %p488, %p489
      %p491 = scmp.ne.s32.totalorder %s483, %s485
      %p492 = scmp.eq.s32.totalorder %s38, 31
      %p493 = por %p491, %p492
      %p494 = scmp.ne.s32.totalorder %s485, %s486
      %p495 = scmp.eq.s32.totalorder %s38, 0
      %p496 = por %p494, %p495
      %p497 = scmp.ne.s32.totalorder %s485, %s486
      %p498 = scmp.eq.s32.totalorder %s39, 31
      %p499 = por %p497, %p498
      %p501 = scmp.ne.s32.totalorder %s486, %s500
      %p502 = scmp.eq.s32.totalorder %s39, 0
      %p503 = por %p501, %p502
      %s505 = sadd.s32 %s504, 1
      %p508 = scmp.eq.s32.totalorder %s33, 31
      %p509 = scmp.ne.s32.totalorder %s504, %s506
      %p510 = scmp.eq.s32.totalorder %s33, 0
      %p511 = por %p509, %p510
      %p512 = scmp.ne.s32.totalorder %s504, %s506
      %p513 = scmp.eq.s32.totalorder %s38, 31
      %p514 = por %p512, %p513
      %p515 = scmp.ne.s32.totalorder %s506, %s507
      %p516 = scmp.eq.s32.totalorder %s38, 0
      %p517 = por %p515, %p516
      %p518 = scmp.ne.s32.totalorder %s506, %s507
      %p519 = scmp.eq.s32.totalorder %s39, 31
      %p520 = por %p518, %p519
      %p522 = scmp.ne.s32.totalorder %s507, %s521
      %p523 = scmp.eq.s32.totalorder %s39, 0
      %p524 = por %p522, %p523
      %s526 = sadd.s32 %s525, 1
      %p529 = scmp.eq.s32.totalorder %s33, 31
      %p530 = scmp.ne.s32.totalorder %s525, %s527
      %p531 = scmp.eq.s32.totalorder %s33, 0
      %p532 = por %p530, %p531
      %p533 = scmp.ne.s32.totalorder %s525, %s527
      %p534 = scmp.eq.s32.totalorder %s38, 31
      %p535 = por %p533, %p534
      %p536 = scmp.ne.s32.totalorder %s527, %s528
      %p537 = scmp.eq.s32.totalorder %s38, 0
      %p538 = por %p536, %p537
      %p539 = scmp.ne.s32.totalorder %s527, %s528
      %p540 = scmp.eq.s32.totalorder %s39, 31
      %p541 = por %p539, %p540
      %p543 = scmp.ne.s32.totalorder %s528, %s542
      %p544 = scmp.eq.s32.totalorder %s39, 0
      %p545 = por %p543, %p544
      %s547 = sadd.s32 %s546, 1
      %p550 = scmp.eq.s32.totalorder %s33, 31
      %p551 = scmp.ne.s32.totalorder %s546, %s548
      %p552 = scmp.eq.s32.totalorder %s33, 0
      %p553 = por %p551, %p552
      %p554 = scmp.ne.s32.totalorder %s546, %s548
      %p555 = scmp.eq.s32.totalorder %s38, 31
      %p556 = por %p554, %p555
      %p557 = scmp.ne.s32.totalorder %s548, %s549
      %p558 = scmp.eq.s32.totalorder %s38, 0
      %p559 = por %p557, %p558
      %p560 = scmp.ne.s32.totalorder %s548, %s549
      %p561 = scmp.eq.s32.totalorder %s39, 31
      %p562 = por %p560, %p561
      %p564 = scmp.ne.s32.totalorder %s549, %s563
      %p565 = scmp.eq.s32.totalorder %s39, 0
      %p566 = por %p564, %p565
      %s568 = sadd.s32 %s567, 1
      %p571 = scmp.eq.s32.totalorder %s33, 31
      %p572 = scmp.ne.s32.totalorder %s567, %s569
      %p573 = scmp.eq.s32.totalorder %s33, 0
      %p574 = por %p572, %p573
      %p575 = scmp.ne.s32.totalorder %s567, %s569
      %p576 = scmp.eq.s32.totalorder %s38, 31
      %p577 = por %p575, %p576
      %p578 = scmp.ne.s32.totalorder %s569, %s570
      %p579 = scmp.eq.s32.totalorder %s38, 0
      %p580 = por %p578, %p579
      %p581 = scmp.ne.s32.totalorder %s569, %s570
      %p582 = scmp.eq.s32.totalorder %s39, 31
      %p583 = por %p581, %p582
      %p585 = scmp.ne.s32.totalorder %s570, %s584
      %p586 = scmp.eq.s32.totalorder %s39, 0
      %p587 = por %p585, %p586
      %s589 = sadd.s32 %s588, 1
      %p592 = scmp.eq.s32.totalorder %s33, 31
      %p593 = scmp.ne.s32.totalorder %s588, %s590
      %p594 = scmp.eq.s32.totalorder %s33, 0
      %p595 = por %p593, %p594
      %p596 = scmp.ne.s32.totalorder %s588, %s590
      %p597 = scmp.eq.s32.totalorder %s38, 31
      %p598 = por %p596, %p597
      %p599 = scmp.ne.s32.totalorder %s590, %s591
      %p600 = scmp.eq.s32.totalorder %s38, 0
      %p601 = por %p599, %p600
      %p602 = scmp.ne.s32.totalorder %s590, %s591
      %p603 = scmp.eq.s32.totalorder %s39, 31
      %p604 = por %p602, %p603
      %p606 = scmp.ne.s32.totalorder %s591, %s605
      %p607 = scmp.eq.s32.totalorder %s39, 0
      %p608 = por %p606, %p607
      %s609 = ssub.s32 %s40, %s59
      %s610 = ssub.s32 %s41, %s55
      %s611 = sor.u32 %s609, %s610
      %p612 = scmp.eq.s32.totalorder %s611, 0
      %s614 = sadd.s32 %s613, 1
      %s615 = scalar_select %p612, %s613, %s614
      %p618 = pneg %p612
      %p619 = scmp.eq.s32.totalorder %s33, 31
      %p620 = por %p618, %p619
      %p621 = scmp.ne.s32.totalorder %s613, %s616
      %p622 = scmp.eq.s32.totalorder %s33, 0
      %p623 = por %p621, %p622
      %p624 = scmp.ne.s32.totalorder %s613, %s616
      %p625 = scmp.eq.s32.totalorder %s38, 31
      %p626 = por %p624, %p625
      %p627 = scmp.ne.s32.totalorder %s616, %s617
      %p628 = scmp.eq.s32.totalorder %s38, 0
      %p629 = por %p627, %p628
      %p630 = scmp.ne.s32.totalorder %s616, %s617
      %p631 = scmp.eq.s32.totalorder %s39, 31
      %p632 = por %p630, %p631
      %p634 = scmp.ne.s32.totalorder %s617, %s633
      %p635 = scmp.eq.s32.totalorder %s39, 0
      %p636 = por %p634, %p635
      %p637 = scmp.le.s32.totalorder 1, %s33
      %p638 = scmp.lt.s32.totalorder %s33, 33
      %p639 = pnand %p637, %p638
      %p640 = pneg %p639
      // Predicated region
      $region9: #{unet_attention_block.3} parent=5 // pred_check
        _
      $region10: #{unet_attention_block.3} parent=5 // pred_check_branch
        %642 = sbr.rel (%p639) target = $region12
      $region11: #{unet_attention_block.3} parent=5 // pred_region
        %s643 = ssub.s32 %s33, 1
        // Predicated region
        $region13: #{unet_attention_block.3} parent=11 // pred_check
          %p644 = pneg %p265
        $region14: #{unet_attention_block.3} parent=11 // pred_check_branch
          %646 = sbr.rel (%p644) target = $region16
        $region15: #{unet_attention_block.3} parent=11 // pred_region
          _
        $region16: #{unet_attention_block.3} parent=11 // pred_fallthru
          _
        // Predicated region
        $region17: #{unet_attention_block.3} parent=11 // pred_check
          %p647 = pneg %p286
        $region18: #{unet_attention_block.3} parent=11 // pred_check_branch
          %649 = sbr.rel (%p647) target = $region20
        $region19: #{unet_attention_block.3} parent=11 // pred_region
          _
        $region20: #{unet_attention_block.3} parent=11 // pred_fallthru
          _
        // Predicated region
        $region21: #{unet_attention_block.3} parent=11 // pred_check
          %p650 = pneg %p307
        $region22: #{unet_attention_block.3} parent=11 // pred_check_branch
          %652 = sbr.rel (%p650) target = $region24
        $region23: #{unet_attention_block.3} parent=11 // pred_region
          _
        $region24: #{unet_attention_block.3} parent=11 // pred_fallthru
          _
        // Predicated region
        $region25: #{unet_attention_block.3} parent=11 // pred_check
          %p653 = pneg %p328
        $region26: #{unet_attention_block.3} parent=11 // pred_check_branch
          %655 = sbr.rel (%p653) target = $region28
        $region27: #{unet_attention_block.3} parent=11 // pred_region
          _
        $region28: #{unet_attention_block.3} parent=11 // pred_fallthru
          _
        // Predicated region
        $region29: #{unet_attention_block.3} parent=11 // pred_check
          %p656 = pneg %p349
        $region30: #{unet_attention_block.3} parent=11 // pred_check_branch
          %658 = sbr.rel (%p656) target = $region32
        $region31: #{unet_attention_block.3} parent=11 // pred_region
          _
        $region32: #{unet_attention_block.3} parent=11 // pred_fallthru
          _
        // Predicated region
        $region33: #{unet_attention_block.3} parent=11 // pred_check
          %p659 = pneg %p370
        $region34: #{unet_attention_block.3} parent=11 // pred_check_branch
          %661 = sbr.rel (%p659) target = $region36
        $region35: #{unet_attention_block.3} parent=11 // pred_region
          _
        $region36: #{unet_attention_block.3} parent=11 // pred_fallthru
          _
        // Predicated region
        $region37: #{unet_attention_block.3} parent=11 // pred_check
          %p662 = pneg %p391
        $region38: #{unet_attention_block.3} parent=11 // pred_check_branch
          %664 = sbr.rel (%p662) target = $region40
        $region39: #{unet_attention_block.3} parent=11 // pred_region
          _
        $region40: #{unet_attention_block.3} parent=11 // pred_fallthru
          _
        // Predicated region
        $region41: #{unet_attention_block.3} parent=11 // pred_check
          %p665 = pneg %p412
        $region42: #{unet_attention_block.3} parent=11 // pred_check_branch
          %667 = sbr.rel (%p665) target = $region44
        $region43: #{unet_attention_block.3} parent=11 // pred_region
          _
        $region44: #{unet_attention_block.3} parent=11 // pred_fallthru
          _
        // Predicated region
        $region45: #{unet_attention_block.3} parent=11 // pred_check
          %p668 = pneg %p433
        $region46: #{unet_attention_block.3} parent=11 // pred_check_branch
          %670 = sbr.rel (%p668) target = $region48
        $region47: #{unet_attention_block.3} parent=11 // pred_region
          _
        $region48: #{unet_attention_block.3} parent=11 // pred_fallthru
          _
        // Predicated region
        $region49: #{unet_attention_block.3} parent=11 // pred_check
          %p671 = pneg %p454
        $region50: #{unet_attention_block.3} parent=11 // pred_check_branch
          %673 = sbr.rel (%p671) target = $region52
        $region51: #{unet_attention_block.3} parent=11 // pred_region
          _
        $region52: #{unet_attention_block.3} parent=11 // pred_fallthru
          _
        // Predicated region
        $region53: #{unet_attention_block.3} parent=11 // pred_check
          %p674 = pneg %p475
        $region54: #{unet_attention_block.3} parent=11 // pred_check_branch
          %676 = sbr.rel (%p674) target = $region56
        $region55: #{unet_attention_block.3} parent=11 // pred_region
          _
        $region56: #{unet_attention_block.3} parent=11 // pred_fallthru
          _
        // Predicated region
        $region57: #{unet_attention_block.3} parent=11 // pred_check
          %p677 = pneg %p496
        $region58: #{unet_attention_block.3} parent=11 // pred_check_branch
          %679 = sbr.rel (%p677) target = $region60
        $region59: #{unet_attention_block.3} parent=11 // pred_region
          _
        $region60: #{unet_attention_block.3} parent=11 // pred_fallthru
          _
        // Predicated region
        $region61: #{unet_attention_block.3} parent=11 // pred_check
          %p680 = pneg %p517
        $region62: #{unet_attention_block.3} parent=11 // pred_check_branch
          %682 = sbr.rel (%p680) target = $region64
        $region63: #{unet_attention_block.3} parent=11 // pred_region
          _
        $region64: #{unet_attention_block.3} parent=11 // pred_fallthru
          _
        // Predicated region
        $region65: #{unet_attention_block.3} parent=11 // pred_check
          %p683 = pneg %p538
        $region66: #{unet_attention_block.3} parent=11 // pred_check_branch
          %685 = sbr.rel (%p683) target = $region68
        $region67: #{unet_attention_block.3} parent=11 // pred_region
          _
        $region68: #{unet_attention_block.3} parent=11 // pred_fallthru
          _
        // Predicated region
        $region69: #{unet_attention_block.3} parent=11 // pred_check
          %p686 = pneg %p559
        $region70: #{unet_attention_block.3} parent=11 // pred_check_branch
          %688 = sbr.rel (%p686) target = $region72
        $region71: #{unet_attention_block.3} parent=11 // pred_region
          _
        $region72: #{unet_attention_block.3} parent=11 // pred_fallthru
          _
        // Predicated region
        $region73: #{unet_attention_block.3} parent=11 // pred_check
          %p689 = pneg %p580
        $region74: #{unet_attention_block.3} parent=11 // pred_check_branch
          %691 = sbr.rel (%p689) target = $region76
        $region75: #{unet_attention_block.3} parent=11 // pred_region
          _
        $region76: #{unet_attention_block.3} parent=11 // pred_fallthru
          _
        // Predicated region
        $region77: #{unet_attention_block.3} parent=11 // pred_check
          %p692 = pneg %p601
        $region78: #{unet_attention_block.3} parent=11 // pred_check_branch
          %694 = sbr.rel (%p692) target = $region80
        $region79: #{unet_attention_block.3} parent=11 // pred_region
          _
        $region80: #{unet_attention_block.3} parent=11 // pred_fallthru
          _
      $region12: #{unet_attention_block.3} parent=5 // pred_fallthru
        _
      %p695 = scmp.lt.s32.totalorder %s33, 32
      // Predicated region
      $region81: #{unet_attention_block.3} parent=5 // pred_check
        %p696 = pneg %p695
      $region82: #{unet_attention_block.3} parent=5 // pred_check_branch
        %698 = sbr.rel (%p696) target = $region84
      $region83: #{unet_attention_block.3} parent=5 // pred_region
        // Predicated region
        $region85: #{unet_attention_block.3} parent=83 // pred_check
          %p699 = pneg %p74
        $region86: #{unet_attention_block.3} parent=83 // pred_check_branch
          %701 = sbr.rel (%p699) target = $region88
        $region87: #{unet_attention_block.3} parent=83 // pred_region
          %s702 = smul.u32 8, %s41
          %p703 = scmp.lt.s32.totalorder %s40, 1
          %s704 = scalar_select %p703, %s40, 1
          %p705 = scmp.lt.s32.totalorder %s702, 31
          %s706 = scalar_select %p705, %s702, 31
          %s707 = smul.addr %s704, 32
          %s708 = sadd.s32 %s706, %s707
          %s709 = smul.addr %s708, 4
          %s710 = scalar_lea.vmem %s0, %s709
          %s711 = smul.u32 8, %s41
        $region88: #{unet_attention_block.3} parent=83 // pred_fallthru
          _
        // Predicated region
        $region89: #{unet_attention_block.3} parent=83 // pred_check
          %p712 = pneg %p102
        $region90: #{unet_attention_block.3} parent=83 // pred_check_branch
          %714 = sbr.rel (%p712) target = $region92
        $region91: #{unet_attention_block.3} parent=83 // pred_region
          %s715 = smul.u32 8, %s41
          %p716 = scmp.lt.s32.totalorder %s40, 1
          %s717 = scalar_select %p716, %s40, 1
          %p718 = scmp.lt.s32.totalorder %s715, 31
          %s719 = scalar_select %p718, %s715, 31
          %s720 = smul.addr %s717, 32
          %s721 = sadd.s32 %s719, %s720
          %s722 = smul.addr %s721, 4
          %s723 = scalar_lea.vmem %s1, %s722
          %s724 = smul.u32 8, %s41
        $region92: #{unet_attention_block.3} parent=83 // pred_fallthru
          _
        // Predicated region
        $region93: #{unet_attention_block.3} parent=83 // pred_check
          %p725 = pneg %p130
        $region94: #{unet_attention_block.3} parent=83 // pred_check_branch
          %727 = sbr.rel (%p725) target = $region96
        $region95: #{unet_attention_block.3} parent=83 // pred_region
          %s728 = sand.u32 %s120, 1
          %s729 = sand.u32 %s120, 1
          %s730 = smul.addr %s729, 64
          %s731 = scalar_lea.vmem [#allocation5], %s730
          %s732 = smul.u32 8, %s41
          %s733 = smul.addr %s40, 64
          %s734 = sadd.s32 %s732, %s733
          %s735 = smul.addr %s734, 4
          %s736 = scalar_lea.vmem %s2, %s735
          // Predicated region
          $region97: #{unet_attention_block.3} parent=95 // pred_check
            _
          $region98: #{unet_attention_block.3} parent=95 // pred_check_branch
            %738 = sbr.rel (0) target = $region100
          $region99: #{unet_attention_block.3} parent=95 // pred_region
            // Predicated region
            $region101: #{unet_attention_block.3} parent=99 // pred_check
              _
            $region102: #{unet_attention_block.3} parent=99 // pred_check_branch
              %740 = sbr.rel target = $region104
            $region103: #{unet_attention_block.3} parent=99 // pred_region
              // Predicated region
              $region116: #{unet_attention_block.3} parent=103 // pred_check
                _
              $region117: #{unet_attention_block.3} parent=103 // pred_check_branch
                %786 = sbr.rel (0) target = $region119
              $region118: #{unet_attention_block.3} parent=103 // pred_region
                loop: start=0, step=1, limit=1
                $region120: #{unet_attention_block.3} parent=118 // loop_pre_header
                  _
                $region121: #{unet_attention_block.3} parent=118 // loop_header
                  %s788 = sphi 0, %s792
                  %p789 = scmp.ge.s32.totalorder %s788, 1
                  %s793 = sphi %s736, %s736
                  %s794 = sphi %s731, %s731
                $region122: #{unet_attention_block.3} parent=118 // loop_header_branch
                  %791 = sbr.rel (%p789) target = $region126
                $region123: #{unet_attention_block.3} parent=118 // loop_body
                  _
                $region124: #{unet_attention_block.3} parent=118 // loop_footer
                  %s792 = sadd.s32 1, %s788
                $region125: #{unet_attention_block.3} parent=118 // loop_footer_branch
                  %787 = sbr.rel target = $region121
                $region126: #{unet_attention_block.3} parent=118 // loop_exit
                  _
                %s796 = ssub.s32 16, 1
                loop: start=0, step=1, limit=1
                $region127: #{unet_attention_block.3} parent=118 // loop_pre_header
                  _
                $region128: #{unet_attention_block.3} parent=118 // loop_header
                  %s798 = sphi 0, %s802
                  %p799 = scmp.ge.s32.totalorder %s798, 1
                  %s803 = sphi %s736, %s736
                  %s804 = sphi %s731, %s731
                $region129: #{unet_attention_block.3} parent=118 // loop_header_branch
                  %801 = sbr.rel (%p799) target = $region133
                $region130: #{unet_attention_block.3} parent=118 // loop_body
                  %v805 = vld [vmem:[%s803] sm:%s796]
                  %806 = vst [vmem:[%s804] sm:%s796] %v805
                  %v807 = vld [vmem:[%s803 + $0x4] sm:%s796]
                  %808 = vst [vmem:[%s804 + $0x4] sm:%s796] %v807
                  %v809 = vld [vmem:[%s803 + $0x8] sm:%s796]
                  %810 = vst [vmem:[%s804 + $0x8] sm:%s796] %v809
                  %v811 = vld [vmem:[%s803 + $0xc] sm:%s796]
                  %812 = vst [vmem:[%s804 + $0xc] sm:%s796] %v811
                  %v813 = vld [vmem:[%s803 + $0x10] sm:%s796]
                  %814 = vst [vmem:[%s804 + $0x10] sm:%s796] %v813
                  %v815 = vld [vmem:[%s803 + $0x14] sm:%s796]
                  %816 = vst [vmem:[%s804 + $0x14] sm:%s796] %v815
                  %v817 = vld [vmem:[%s803 + $0x18] sm:%s796]
                  %818 = vst [vmem:[%s804 + $0x18] sm:%s796] %v817
                  %v819 = vld [vmem:[%s803 + $0x1c] sm:%s796]
                  %820 = vst [vmem:[%s804 + $0x1c] sm:%s796] %v819
                  %v821 = vld [vmem:[%s803 + $0x80] sm:%s796]
                  %822 = vst [vmem:[%s804 + $0x20] sm:%s796] %v821
                  %v823 = vld [vmem:[%s803 + $0x84] sm:%s796]
                  %824 = vst [vmem:[%s804 + $0x24] sm:%s796] %v823
                  %v825 = vld [vmem:[%s803 + $0x88] sm:%s796]
                  %826 = vst [vmem:[%s804 + $0x28] sm:%s796] %v825
                  %v827 = vld [vmem:[%s803 + $0x8c] sm:%s796]
                  %828 = vst [vmem:[%s804 + $0x2c] sm:%s796] %v827
                  %v829 = vld [vmem:[%s803 + $0x90] sm:%s796]
                  %830 = vst [vmem:[%s804 + $0x30] sm:%s796] %v829
                  %v831 = vld [vmem:[%s803 + $0x94] sm:%s796]
                  %832 = vst [vmem:[%s804 + $0x34] sm:%s796] %v831
                  %v833 = vld [vmem:[%s803 + $0x98] sm:%s796]
                  %834 = vst [vmem:[%s804 + $0x38] sm:%s796] %v833
                  %v835 = vld [vmem:[%s803 + $0x9c] sm:%s796]
                  %836 = vst [vmem:[%s804 + $0x3c] sm:%s796] %v835
                $region131: #{unet_attention_block.3} parent=118 // loop_footer
                  %s802 = sadd.s32 1, %s798
                $region132: #{unet_attention_block.3} parent=118 // loop_footer_branch
                  %797 = sbr.rel target = $region128
                $region133: #{unet_attention_block.3} parent=118 // loop_exit
                  _
              $region119: #{unet_attention_block.3} parent=103 // pred_fallthru
                _
            $region104: #{unet_attention_block.3} parent=99 // pred_fallthru
              _
            // Predicated region
            $region105: #{unet_attention_block.3} parent=99 // pred_check
              _
            $region106: #{unet_attention_block.3} parent=99 // pred_check_branch
              %742 = sbr.rel (0) target = $region108
            $region107: #{unet_attention_block.3} parent=99 // pred_region
              %s744 = ssub.s32 16, 1
              loop: start=0, step=1, limit=1
              $region109: #{unet_attention_block.3} parent=107 // loop_pre_header
                _
              $region110: #{unet_attention_block.3} parent=107 // loop_header
                %s746 = sphi 0, %s750
                %p747 = scmp.ge.s32.totalorder %s746, 1
                %s751 = sphi %s736, %s736
                %s752 = sphi %s731, %s731
              $region111: #{unet_attention_block.3} parent=107 // loop_header_branch
                %749 = sbr.rel (%p747) target = $region115
              $region112: #{unet_attention_block.3} parent=107 // loop_body
                %v753 = vld [vmem:[%s751] sm:%s744]
                %754 = vst [vmem:[%s752] sm:%s744] %v753
                %v755 = vld [vmem:[%s751 + $0x4] sm:%s744]
                %756 = vst [vmem:[%s752 + $0x4] sm:%s744] %v755
                %v757 = vld [vmem:[%s751 + $0x8] sm:%s744]
                %758 = vst [vmem:[%s752 + $0x8] sm:%s744] %v757
                %v759 = vld [vmem:[%s751 + $0xc] sm:%s744]
                %760 = vst [vmem:[%s752 + $0xc] sm:%s744] %v759
                %v761 = vld [vmem:[%s751 + $0x10] sm:%s744]
                %762 = vst [vmem:[%s752 + $0x10] sm:%s744] %v761
                %v763 = vld [vmem:[%s751 + $0x14] sm:%s744]
                %764 = vst [vmem:[%s752 + $0x14] sm:%s744] %v763
                %v765 = vld [vmem:[%s751 + $0x18] sm:%s744]
                %766 = vst [vmem:[%s752 + $0x18] sm:%s744] %v765
                %v767 = vld [vmem:[%s751 + $0x1c] sm:%s744]
                %768 = vst [vmem:[%s752 + $0x1c] sm:%s744] %v767
                %v769 = vld [vmem:[%s751 + $0x80] sm:%s744]
                %770 = vst [vmem:[%s752 + $0x20] sm:%s744] %v769
                %v771 = vld [vmem:[%s751 + $0x84] sm:%s744]
                %772 = vst [vmem:[%s752 + $0x24] sm:%s744] %v771
                %v773 = vld [vmem:[%s751 + $0x88] sm:%s744]
                %774 = vst [vmem:[%s752 + $0x28] sm:%s744] %v773
                %v775 = vld [vmem:[%s751 + $0x8c] sm:%s744]
                %776 = vst [vmem:[%s752 + $0x2c] sm:%s744] %v775
                %v777 = vld [vmem:[%s751 + $0x90] sm:%s744]
                %778 = vst [vmem:[%s752 + $0x30] sm:%s744] %v777
                %v779 = vld [vmem:[%s751 + $0x94] sm:%s744]
                %780 = vst [vmem:[%s752 + $0x34] sm:%s744] %v779
                %v781 = vld [vmem:[%s751 + $0x98] sm:%s744]
                %782 = vst [vmem:[%s752 + $0x38] sm:%s744] %v781
                %v783 = vld [vmem:[%s751 + $0x9c] sm:%s744]
                %784 = vst [vmem:[%s752 + $0x3c] sm:%s744] %v783
              $region113: #{unet_attention_block.3} parent=107 // loop_footer
                %s750 = sadd.s32 1, %s746
              $region114: #{unet_attention_block.3} parent=107 // loop_footer_branch
                %745 = sbr.rel target = $region110
              $region115: #{unet_attention_block.3} parent=107 // loop_exit
                _
            $region108: #{unet_attention_block.3} parent=99 // pred_fallthru
              _
          $region100: #{unet_attention_block.3} parent=95 // pred_fallthru
            _
          %837 = vnop
        $region96: #{unet_attention_block.3} parent=83 // pred_fallthru
          _
        // Predicated region
        $region134: #{unet_attention_block.3} parent=83 // pred_check
          %p838 = pneg %p158
        $region135: #{unet_attention_block.3} parent=83 // pred_check_branch
          %840 = sbr.rel (%p838) target = $region137
        $region136: #{unet_attention_block.3} parent=83 // pred_region
          %s841 = sand.u32 %s148, 1
          %s842 = sand.u32 %s148, 1
          %s843 = smul.addr %s842, 64
          %s844 = scalar_lea.vmem [#allocation6], %s843
          %s845 = smul.u32 8, %s42
          %s846 = smul.addr %s40, 64
          %s847 = sadd.s32 %s845, %s846
          %s848 = smul.addr %s847, 4
          %s849 = scalar_lea.vmem %s3, %s848
          // Predicated region
          $region138: #{unet_attention_block.3} parent=136 // pred_check
            _
          $region139: #{unet_attention_block.3} parent=136 // pred_check_branch
            %851 = sbr.rel (0) target = $region141
          $region140: #{unet_attention_block.3} parent=136 // pred_region
            // Predicated region
            $region142: #{unet_attention_block.3} parent=140 // pred_check
              _
            $region143: #{unet_attention_block.3} parent=140 // pred_check_branch
              %853 = sbr.rel target = $region145
            $region144: #{unet_attention_block.3} parent=140 // pred_region
              // Predicated region
              $region157: #{unet_attention_block.3} parent=144 // pred_check
                _
              $region158: #{unet_attention_block.3} parent=144 // pred_check_branch
                %899 = sbr.rel (0) target = $region160
              $region159: #{unet_attention_block.3} parent=144 // pred_region
                loop: start=0, step=1, limit=1
                $region161: #{unet_attention_block.3} parent=159 // loop_pre_header
                  _
                $region162: #{unet_attention_block.3} parent=159 // loop_header
                  %s901 = sphi 0, %s905
                  %p902 = scmp.ge.s32.totalorder %s901, 1
                  %s906 = sphi %s849, %s849
                  %s907 = sphi %s844, %s844
                $region163: #{unet_attention_block.3} parent=159 // loop_header_branch
                  %904 = sbr.rel (%p902) target = $region167
                $region164: #{unet_attention_block.3} parent=159 // loop_body
                  _
                $region165: #{unet_attention_block.3} parent=159 // loop_footer
                  %s905 = sadd.s32 1, %s901
                $region166: #{unet_attention_block.3} parent=159 // loop_footer_branch
                  %900 = sbr.rel target = $region162
                $region167: #{unet_attention_block.3} parent=159 // loop_exit
                  _
                %s909 = ssub.s32 16, 1
                loop: start=0, step=1, limit=1
                $region168: #{unet_attention_block.3} parent=159 // loop_pre_header
                  _
                $region169: #{unet_attention_block.3} parent=159 // loop_header
                  %s911 = sphi 0, %s915
                  %p912 = scmp.ge.s32.totalorder %s911, 1
                  %s916 = sphi %s849, %s849
                  %s917 = sphi %s844, %s844
                $region170: #{unet_attention_block.3} parent=159 // loop_header_branch
                  %914 = sbr.rel (%p912) target = $region174
                $region171: #{unet_attention_block.3} parent=159 // loop_body
                  %v918 = vld [vmem:[%s916] sm:%s909]
                  %919 = vst [vmem:[%s917] sm:%s909] %v918
                  %v920 = vld [vmem:[%s916 + $0x4] sm:%s909]
                  %921 = vst [vmem:[%s917 + $0x4] sm:%s909] %v920
                  %v922 = vld [vmem:[%s916 + $0x8] sm:%s909]
                  %923 = vst [vmem:[%s917 + $0x8] sm:%s909] %v922
                  %v924 = vld [vmem:[%s916 + $0xc] sm:%s909]
                  %925 = vst [vmem:[%s917 + $0xc] sm:%s909] %v924
                  %v926 = vld [vmem:[%s916 + $0x10] sm:%s909]
                  %927 = vst [vmem:[%s917 + $0x10] sm:%s909] %v926
                  %v928 = vld [vmem:[%s916 + $0x14] sm:%s909]
                  %929 = vst [vmem:[%s917 + $0x14] sm:%s909] %v928
                  %v930 = vld [vmem:[%s916 + $0x18] sm:%s909]
                  %931 = vst [vmem:[%s917 + $0x18] sm:%s909] %v930
                  %v932 = vld [vmem:[%s916 + $0x1c] sm:%s909]
                  %933 = vst [vmem:[%s917 + $0x1c] sm:%s909] %v932
                  %v934 = vld [vmem:[%s916 + $0x80] sm:%s909]
                  %935 = vst [vmem:[%s917 + $0x20] sm:%s909] %v934
                  %v936 = vld [vmem:[%s916 + $0x84] sm:%s909]
                  %937 = vst [vmem:[%s917 + $0x24] sm:%s909] %v936
                  %v938 = vld [vmem:[%s916 + $0x88] sm:%s909]
                  %939 = vst [vmem:[%s917 + $0x28] sm:%s909] %v938
                  %v940 = vld [vmem:[%s916 + $0x8c] sm:%s909]
                  %941 = vst [vmem:[%s917 + $0x2c] sm:%s909] %v940
                  %v942 = vld [vmem:[%s916 + $0x90] sm:%s909]
                  %943 = vst [vmem:[%s917 + $0x30] sm:%s909] %v942
                  %v944 = vld [vmem:[%s916 + $0x94] sm:%s909]
                  %945 = vst [vmem:[%s917 + $0x34] sm:%s909] %v944
                  %v946 = vld [vmem:[%s916 + $0x98] sm:%s909]
                  %947 = vst [vmem:[%s917 + $0x38] sm:%s909] %v946
                  %v948 = vld [vmem:[%s916 + $0x9c] sm:%s909]
                  %949 = vst [vmem:[%s917 + $0x3c] sm:%s909] %v948
                $region172: #{unet_attention_block.3} parent=159 // loop_footer
                  %s915 = sadd.s32 1, %s911
                $region173: #{unet_attention_block.3} parent=159 // loop_footer_branch
                  %910 = sbr.rel target = $region169
                $region174: #{unet_attention_block.3} parent=159 // loop_exit
                  _
              $region160: #{unet_attention_block.3} parent=144 // pred_fallthru
                _
            $region145: #{unet_attention_block.3} parent=140 // pred_fallthru
              _
            // Predicated region
            $region146: #{unet_attention_block.3} parent=140 // pred_check
              _
            $region147: #{unet_attention_block.3} parent=140 // pred_check_branch
              %855 = sbr.rel (0) target = $region149
            $region148: #{unet_attention_block.3} parent=140 // pred_region
              %s857 = ssub.s32 16, 1
              loop: start=0, step=1, limit=1
              $region150: #{unet_attention_block.3} parent=148 // loop_pre_header
                _
              $region151: #{unet_attention_block.3} parent=148 // loop_header
                %s859 = sphi 0, %s863
                %p860 = scmp.ge.s32.totalorder %s859, 1
                %s864 = sphi %s849, %s849
                %s865 = sphi %s844, %s844
              $region152: #{unet_attention_block.3} parent=148 // loop_header_branch
                %862 = sbr.rel (%p860) target = $region156
              $region153: #{unet_attention_block.3} parent=148 // loop_body
                %v866 = vld [vmem:[%s864] sm:%s857]
                %867 = vst [vmem:[%s865] sm:%s857] %v866
                %v868 = vld [vmem:[%s864 + $0x4] sm:%s857]
                %869 = vst [vmem:[%s865 + $0x4] sm:%s857] %v868
                %v870 = vld [vmem:[%s864 + $0x8] sm:%s857]
                %871 = vst [vmem:[%s865 + $0x8] sm:%s857] %v870
                %v872 = vld [vmem:[%s864 + $0xc] sm:%s857]
                %873 = vst [vmem:[%s865 + $0xc] sm:%s857] %v872
                %v874 = vld [vmem:[%s864 + $0x10] sm:%s857]
                %875 = vst [vmem:[%s865 + $0x10] sm:%s857] %v874
                %v876 = vld [vmem:[%s864 + $0x14] sm:%s857]
                %877 = vst [vmem:[%s865 + $0x14] sm:%s857] %v876
                %v878 = vld [vmem:[%s864 + $0x18] sm:%s857]
                %879 = vst [vmem:[%s865 + $0x18] sm:%s857] %v878
                %v880 = vld [vmem:[%s864 + $0x1c] sm:%s857]
                %881 = vst [vmem:[%s865 + $0x1c] sm:%s857] %v880
                %v882 = vld [vmem:[%s864 + $0x80] sm:%s857]
                %883 = vst [vmem:[%s865 + $0x20] sm:%s857] %v882
                %v884 = vld [vmem:[%s864 + $0x84] sm:%s857]
                %885 = vst [vmem:[%s865 + $0x24] sm:%s857] %v884
                %v886 = vld [vmem:[%s864 + $0x88] sm:%s857]
                %887 = vst [vmem:[%s865 + $0x28] sm:%s857] %v886
                %v888 = vld [vmem:[%s864 + $0x8c] sm:%s857]
                %889 = vst [vmem:[%s865 + $0x2c] sm:%s857] %v888
                %v890 = vld [vmem:[%s864 + $0x90] sm:%s857]
                %891 = vst [vmem:[%s865 + $0x30] sm:%s857] %v890
                %v892 = vld [vmem:[%s864 + $0x94] sm:%s857]
                %893 = vst [vmem:[%s865 + $0x34] sm:%s857] %v892
                %v894 = vld [vmem:[%s864 + $0x98] sm:%s857]
                %895 = vst [vmem:[%s865 + $0x38] sm:%s857] %v894
                %v896 = vld [vmem:[%s864 + $0x9c] sm:%s857]
                %897 = vst [vmem:[%s865 + $0x3c] sm:%s857] %v896
              $region154: #{unet_attention_block.3} parent=148 // loop_footer
                %s863 = sadd.s32 1, %s859
              $region155: #{unet_attention_block.3} parent=148 // loop_footer_branch
                %858 = sbr.rel target = $region151
              $region156: #{unet_attention_block.3} parent=148 // loop_exit
                _
            $region149: #{unet_attention_block.3} parent=140 // pred_fallthru
              _
          $region141: #{unet_attention_block.3} parent=136 // pred_fallthru
            _
          %950 = vnop
        $region137: #{unet_attention_block.3} parent=83 // pred_fallthru
          _
        // Predicated region
        $region175: #{unet_attention_block.3} parent=83 // pred_check
          %p951 = pneg %p186
        $region176: #{unet_attention_block.3} parent=83 // pred_check_branch
          %953 = sbr.rel (%p951) target = $region178
        $region177: #{unet_attention_block.3} parent=83 // pred_region
          %s954 = sand.u32 %s176, 1
          %s955 = sand.u32 %s176, 1
          %s956 = smul.addr %s955, 64
          %s957 = scalar_lea.vmem [#allocation7], %s956
          %s958 = smul.u32 8, %s42
          %s959 = smul.addr %s40, 64
          %s960 = sadd.s32 %s958, %s959
          %s961 = smul.addr %s960, 4
          %s962 = scalar_lea.vmem %s4, %s961
          // Predicated region
          $region179: #{unet_attention_block.3} parent=177 // pred_check
            _
          $region180: #{unet_attention_block.3} parent=177 // pred_check_branch
            %964 = sbr.rel (0) target = $region182
          $region181: #{unet_attention_block.3} parent=177 // pred_region
            // Predicated region
            $region183: #{unet_attention_block.3} parent=181 // pred_check
              _
            $region184: #{unet_attention_block.3} parent=181 // pred_check_branch
              %966 = sbr.rel target = $region186
            $region185: #{unet_attention_block.3} parent=181 // pred_region
              // Predicated region
              $region198: #{unet_attention_block.3} parent=185 // pred_check
                _
              $region199: #{unet_attention_block.3} parent=185 // pred_check_branch
                %1012 = sbr.rel (0) target = $region201
              $region200: #{unet_attention_block.3} parent=185 // pred_region
                loop: start=0, step=1, limit=1
                $region202: #{unet_attention_block.3} parent=200 // loop_pre_header
                  _
                $region203: #{unet_attention_block.3} parent=200 // loop_header
                  %s1014 = sphi 0, %s1018
                  %p1015 = scmp.ge.s32.totalorder %s1014, 1
                  %s1019 = sphi %s962, %s962
                  %s1020 = sphi %s957, %s957
                $region204: #{unet_attention_block.3} parent=200 // loop_header_branch
                  %1017 = sbr.rel (%p1015) target = $region208
                $region205: #{unet_attention_block.3} parent=200 // loop_body
                  _
                $region206: #{unet_attention_block.3} parent=200 // loop_footer
                  %s1018 = sadd.s32 1, %s1014
                $region207: #{unet_attention_block.3} parent=200 // loop_footer_branch
                  %1013 = sbr.rel target = $region203
                $region208: #{unet_attention_block.3} parent=200 // loop_exit
                  _
                %s1022 = ssub.s32 16, 1
                loop: start=0, step=1, limit=1
                $region209: #{unet_attention_block.3} parent=200 // loop_pre_header
                  _
                $region210: #{unet_attention_block.3} parent=200 // loop_header
                  %s1024 = sphi 0, %s1028
                  %p1025 = scmp.ge.s32.totalorder %s1024, 1
                  %s1029 = sphi %s962, %s962
                  %s1030 = sphi %s957, %s957
                $region211: #{unet_attention_block.3} parent=200 // loop_header_branch
                  %1027 = sbr.rel (%p1025) target = $region215
                $region212: #{unet_attention_block.3} parent=200 // loop_body
                  %v1031 = vld [vmem:[%s1029] sm:%s1022]
                  %1032 = vst [vmem:[%s1030] sm:%s1022] %v1031
                  %v1033 = vld [vmem:[%s1029 + $0x4] sm:%s1022]
                  %1034 = vst [vmem:[%s1030 + $0x4] sm:%s1022] %v1033
                  %v1035 = vld [vmem:[%s1029 + $0x8] sm:%s1022]
                  %1036 = vst [vmem:[%s1030 + $0x8] sm:%s1022] %v1035
                  %v1037 = vld [vmem:[%s1029 + $0xc] sm:%s1022]
                  %1038 = vst [vmem:[%s1030 + $0xc] sm:%s1022] %v1037
                  %v1039 = vld [vmem:[%s1029 + $0x10] sm:%s1022]
                  %1040 = vst [vmem:[%s1030 + $0x10] sm:%s1022] %v1039
                  %v1041 = vld [vmem:[%s1029 + $0x14] sm:%s1022]
                  %1042 = vst [vmem:[%s1030 + $0x14] sm:%s1022] %v1041
                  %v1043 = vld [vmem:[%s1029 + $0x18] sm:%s1022]
                  %1044 = vst [vmem:[%s1030 + $0x18] sm:%s1022] %v1043
                  %v1045 = vld [vmem:[%s1029 + $0x1c] sm:%s1022]
                  %1046 = vst [vmem:[%s1030 + $0x1c] sm:%s1022] %v1045
                  %v1047 = vld [vmem:[%s1029 + $0x80] sm:%s1022]
                  %1048 = vst [vmem:[%s1030 + $0x20] sm:%s1022] %v1047
                  %v1049 = vld [vmem:[%s1029 + $0x84] sm:%s1022]
                  %1050 = vst [vmem:[%s1030 + $0x24] sm:%s1022] %v1049
                  %v1051 = vld [vmem:[%s1029 + $0x88] sm:%s1022]
                  %1052 = vst [vmem:[%s1030 + $0x28] sm:%s1022] %v1051
                  %v1053 = vld [vmem:[%s1029 + $0x8c] sm:%s1022]
                  %1054 = vst [vmem:[%s1030 + $0x2c] sm:%s1022] %v1053
                  %v1055 = vld [vmem:[%s1029 + $0x90] sm:%s1022]
                  %1056 = vst [vmem:[%s1030 + $0x30] sm:%s1022] %v1055
                  %v1057 = vld [vmem:[%s1029 + $0x94] sm:%s1022]
                  %1058 = vst [vmem:[%s1030 + $0x34] sm:%s1022] %v1057
                  %v1059 = vld [vmem:[%s1029 + $0x98] sm:%s1022]
                  %1060 = vst [vmem:[%s1030 + $0x38] sm:%s1022] %v1059
                  %v1061 = vld [vmem:[%s1029 + $0x9c] sm:%s1022]
                  %1062 = vst [vmem:[%s1030 + $0x3c] sm:%s1022] %v1061
                $region213: #{unet_attention_block.3} parent=200 // loop_footer
                  %s1028 = sadd.s32 1, %s1024
                $region214: #{unet_attention_block.3} parent=200 // loop_footer_branch
                  %1023 = sbr.rel target = $region210
                $region215: #{unet_attention_block.3} parent=200 // loop_exit
                  _
              $region201: #{unet_attention_block.3} parent=185 // pred_fallthru
                _
            $region186: #{unet_attention_block.3} parent=181 // pred_fallthru
              _
            // Predicated region
            $region187: #{unet_attention_block.3} parent=181 // pred_check
              _
            $region188: #{unet_attention_block.3} parent=181 // pred_check_branch
              %968 = sbr.rel (0) target = $region190
            $region189: #{unet_attention_block.3} parent=181 // pred_region
              %s970 = ssub.s32 16, 1
              loop: start=0, step=1, limit=1
              $region191: #{unet_attention_block.3} parent=189 // loop_pre_header
                _
              $region192: #{unet_attention_block.3} parent=189 // loop_header
                %s972 = sphi 0, %s976
                %p973 = scmp.ge.s32.totalorder %s972, 1
                %s977 = sphi %s962, %s962
                %s978 = sphi %s957, %s957
              $region193: #{unet_attention_block.3} parent=189 // loop_header_branch
                %975 = sbr.rel (%p973) target = $region197
              $region194: #{unet_attention_block.3} parent=189 // loop_body
                %v979 = vld [vmem:[%s977] sm:%s970]
                %980 = vst [vmem:[%s978] sm:%s970] %v979
                %v981 = vld [vmem:[%s977 + $0x4] sm:%s970]
                %982 = vst [vmem:[%s978 + $0x4] sm:%s970] %v981
                %v983 = vld [vmem:[%s977 + $0x8] sm:%s970]
                %984 = vst [vmem:[%s978 + $0x8] sm:%s970] %v983
                %v985 = vld [vmem:[%s977 + $0xc] sm:%s970]
                %986 = vst [vmem:[%s978 + $0xc] sm:%s970] %v985
                %v987 = vld [vmem:[%s977 + $0x10] sm:%s970]
                %988 = vst [vmem:[%s978 + $0x10] sm:%s970] %v987
                %v989 = vld [vmem:[%s977 + $0x14] sm:%s970]
                %990 = vst [vmem:[%s978 + $0x14] sm:%s970] %v989
                %v991 = vld [vmem:[%s977 + $0x18] sm:%s970]
                %992 = vst [vmem:[%s978 + $0x18] sm:%s970] %v991
                %v993 = vld [vmem:[%s977 + $0x1c] sm:%s970]
                %994 = vst [vmem:[%s978 + $0x1c] sm:%s970] %v993
                %v995 = vld [vmem:[%s977 + $0x80] sm:%s970]
                %996 = vst [vmem:[%s978 + $0x20] sm:%s970] %v995
                %v997 = vld [vmem:[%s977 + $0x84] sm:%s970]
                %998 = vst [vmem:[%s978 + $0x24] sm:%s970] %v997
                %v999 = vld [vmem:[%s977 + $0x88] sm:%s970]
                %1000 = vst [vmem:[%s978 + $0x28] sm:%s970] %v999
                %v1001 = vld [vmem:[%s977 + $0x8c] sm:%s970]
                %1002 = vst [vmem:[%s978 + $0x2c] sm:%s970] %v1001
                %v1003 = vld [vmem:[%s977 + $0x90] sm:%s970]
                %1004 = vst [vmem:[%s978 + $0x30] sm:%s970] %v1003
                %v1005 = vld [vmem:[%s977 + $0x94] sm:%s970]
                %1006 = vst [vmem:[%s978 + $0x34] sm:%s970] %v1005
                %v1007 = vld [vmem:[%s977 + $0x98] sm:%s970]
                %1008 = vst [vmem:[%s978 + $0x38] sm:%s970] %v1007
                %v1009 = vld [vmem:[%s977 + $0x9c] sm:%s970]
                %1010 = vst [vmem:[%s978 + $0x3c] sm:%s970] %v1009
              $region195: #{unet_attention_block.3} parent=189 // loop_footer
                %s976 = sadd.s32 1, %s972
              $region196: #{unet_attention_block.3} parent=189 // loop_footer_branch
                %971 = sbr.rel target = $region192
              $region197: #{unet_attention_block.3} parent=189 // loop_exit
                _
            $region190: #{unet_attention_block.3} parent=181 // pred_fallthru
              _
          $region182: #{unet_attention_block.3} parent=177 // pred_fallthru
            _
          %1063 = vnop
        $region178: #{unet_attention_block.3} parent=83 // pred_fallthru
          _
        // Predicated region
        $region216: #{unet_attention_block.3} parent=83 // pred_check
          %p1064 = pneg %p212
        $region217: #{unet_attention_block.3} parent=83 // pred_check_branch
          %1066 = sbr.rel (%p1064) target = $region219
        $region218: #{unet_attention_block.3} parent=83 // pred_region
          %p1067 = scmp.lt.s32.totalorder %s40, 1
          %s1068 = scalar_select %p1067, %s40, 1
          %s1069 = smul.addr %s1068, 2
          %s1070 = smul.addr %s1069, 4
          %s1071 = scalar_lea.vmem %s5, %s1070
        $region219: #{unet_attention_block.3} parent=83 // pred_fallthru
          _
        // Predicated region
        $region220: #{unet_attention_block.3} parent=83 // pred_check
          %p1072 = pneg %p238
        $region221: #{unet_attention_block.3} parent=83 // pred_check_branch
          %1074 = sbr.rel (%p1072) target = $region223
        $region222: #{unet_attention_block.3} parent=83 // pred_region
          %p1075 = scmp.lt.s32.totalorder %s40, 1
          %s1076 = scalar_select %p1075, %s40, 1
          %s1077 = smul.addr %s1076, 2
          %s1078 = smul.addr %s1077, 4
          %s1079 = scalar_lea.vmem %s6, %s1078
        $region223: #{unet_attention_block.3} parent=83 // pred_fallthru
          _
      $region84: #{unet_attention_block.3} parent=5 // pred_fallthru
        _
      %p1080 = scmp.le.s32.totalorder 1, %s33
      %p1081 = scmp.lt.s32.totalorder %s33, 33
      %p1082 = pnand %p1080, %p1081
      %p1083 = pneg %p1082
      // Predicated region
      $region224: #{unet_attention_block.3} parent=5 // pred_check
        _
      $region225: #{unet_attention_block.3} parent=5 // pred_check_branch
        %1085 = sbr.rel (%p1082) target = $region227
      $region226: #{unet_attention_block.3} parent=5 // pred_region
        %s1086 = ssub.s32 %s33, 1
        %s1087 = sand.u32 %s123, 1
        %s1088 = sand.u32 %s123, 1
        %s1089 = smul.addr %s1088, 64
        %s1090 = scalar_lea.vmem [#allocation5], %s1089
        // Predicated region
        $region228: #{unet_attention_block.3} parent=226 // pred_check
          %p1091 = pneg %p136
        $region229: #{unet_attention_block.3} parent=226 // pred_check_branch
          %1093 = sbr.rel (%p1091) target = $region231
        $region230: #{unet_attention_block.3} parent=226 // pred_region
          _
        $region231: #{unet_attention_block.3} parent=226 // pred_fallthru
          _
        %s1094 = sand.u32 %s151, 1
        %s1095 = sand.u32 %s151, 1
        %s1096 = smul.addr %s1095, 64
        %s1097 = scalar_lea.vmem [#allocation6], %s1096
        // Predicated region
        $region232: #{unet_attention_block.3} parent=226 // pred_check
          %p1098 = pneg %p164
        $region233: #{unet_attention_block.3} parent=226 // pred_check_branch
          %1100 = sbr.rel (%p1098) target = $region235
        $region234: #{unet_attention_block.3} parent=226 // pred_region
          _
        $region235: #{unet_attention_block.3} parent=226 // pred_fallthru
          _
        %s1101 = sand.u32 %s179, 1
        %s1102 = sand.u32 %s179, 1
        %s1103 = smul.addr %s1102, 64
        %s1104 = scalar_lea.vmem [#allocation7], %s1103
        // Predicated region
        $region236: #{unet_attention_block.3} parent=226 // pred_check
          %p1105 = pneg %p192
        $region237: #{unet_attention_block.3} parent=226 // pred_check_branch
          %1107 = sbr.rel (%p1105) target = $region239
        $region238: #{unet_attention_block.3} parent=226 // pred_region
          _
        $region239: #{unet_attention_block.3} parent=226 // pred_fallthru
          _
        %s1108 = smul.u32 8, %s44
        %p1109 = scmp.lt.s32.totalorder %s43, 1
        %s1110 = scalar_select %p1109, %s43, 1
        %p1111 = scmp.lt.s32.totalorder %s1108, 31
        %s1112 = scalar_select %p1111, %s1108, 31
        %s1113 = smul.addr %s1110, 32
        %s1114 = sadd.s32 %s1112, %s1113
        %s1115 = smul.addr %s1114, 4
        %s1116 = scalar_lea.vmem %s0, %s1115
        %p1117 = pneg %p80
        %p1118 = pneg %p77
        %s1119 = smul.u32 8, %s44
        %p1120 = scmp.lt.s32.totalorder %s43, 1
        %s1121 = scalar_select %p1120, %s43, 1
        %p1122 = scmp.lt.s32.totalorder %s1119, 31
        %s1123 = scalar_select %p1122, %s1119, 31
        %s1124 = smul.addr %s1121, 32
        %s1125 = sadd.s32 %s1123, %s1124
        %s1126 = smul.addr %s1125, 4
        %s1127 = scalar_lea.vmem %s1, %s1126
        %p1128 = pneg %p108
        %p1129 = pneg %p105
        %s1130 = sand.u32 %s123, 1
        %s1131 = sand.u32 %s123, 1
        %s1132 = smul.addr %s1131, 64
        %s1133 = scalar_lea.vmem [#allocation5], %s1132
        %p1134 = pneg %p136
        %p1135 = pneg %p133
        %s1136 = sand.u32 %s151, 1
        %s1137 = sand.u32 %s151, 1
        %s1138 = smul.addr %s1137, 64
        %s1139 = scalar_lea.vmem [#allocation6], %s1138
        %p1140 = pneg %p164
        %p1141 = pneg %p161
        %s1142 = sand.u32 %s179, 1
        %s1143 = sand.u32 %s179, 1
        %s1144 = smul.addr %s1143, 64
        %s1145 = scalar_lea.vmem [#allocation7], %s1144
        %p1146 = pneg %p192
        %p1147 = pneg %p189
        %p1148 = scmp.lt.s32.totalorder %s43, 1
        %s1149 = scalar_select %p1148, %s43, 1
        %s1150 = smul.addr %s1149, 2
        %s1151 = smul.addr %s1150, 4
        %s1152 = scalar_lea.vmem %s5, %s1151
        %p1153 = pneg %p218
        %p1154 = pneg %p215
        %p1155 = scmp.lt.s32.totalorder %s43, 1
        %s1156 = scalar_select %p1155, %s43, 1
        %s1157 = smul.addr %s1156, 2
        %s1158 = smul.addr %s1157, 4
        %s1159 = scalar_lea.vmem %s6, %s1158
        %p1160 = pneg %p244
        %p1161 = pneg %p241
        %p1162 = pneg %p265
        %p1163 = pneg %p262
        %p1164 = pneg %p286
        %p1165 = pneg %p283
        %p1166 = pneg %p307
        %p1167 = pneg %p304
        %p1168 = pneg %p328
        %p1169 = pneg %p325
        %p1170 = pneg %p349
        %p1171 = pneg %p346
        %p1172 = pneg %p370
        %p1173 = pneg %p367
        %p1174 = pneg %p391
        %p1175 = pneg %p388
        %p1176 = pneg %p412
        %p1177 = pneg %p409
        %p1178 = pneg %p433
        %p1179 = pneg %p430
        %p1180 = pneg %p454
        %p1181 = pneg %p451
        %p1182 = pneg %p475
        %p1183 = pneg %p472
        %p1184 = pneg %p496
        %p1185 = pneg %p493
        %p1186 = pneg %p517
        %p1187 = pneg %p514
        %p1188 = pneg %p538
        %p1189 = pneg %p535
        %p1190 = pneg %p559
        %p1191 = pneg %p556
        %p1192 = pneg %p580
        %p1193 = pneg %p577
        %p1194 = pneg %p601
        %p1195 = pneg %p598
        %p1196 = pneg %p629
        %p1197 = pneg %p626
        %s1198 = sand.u32 %s616, 1
        %s1199 = scalar_lea.sflag [#allocation9], %s1198
        %s1200 = sand.u32 %s616, 1
        %s1201 = smul.addr %s1200, 64
        %s1202 = scalar_lea.vmem [#allocation8], %s1201
        %s1203 = smul.u32 8, %s44
        %p1204 = scmp.lt.s32.totalorder %s43, 1
        %s1205 = scalar_select %p1204, %s43, 1
        %p1206 = scmp.lt.s32.totalorder %s1203, 31
        %s1207 = scalar_select %p1206, %s1203, 31
        %s1208 = smul.addr %s1205, 32
        %s1209 = sadd.s32 %s1207, %s1208
        %s1210 = smul.addr %s1209, 4
        %s1211 = scalar_lea.vmem %s0, %s1210
        %s1212 = smul.u32 8, %s44
        %s1213 = smul.u32 8, %s44
        %p1214 = scmp.lt.s32.totalorder %s43, 1
        %s1215 = scalar_select %p1214, %s43, 1
        %p1216 = scmp.lt.s32.totalorder %s1213, 31
        %s1217 = scalar_select %p1216, %s1213, 31
        %s1218 = smul.addr %s1215, 32
        %s1219 = sadd.s32 %s1217, %s1218
        %s1220 = smul.addr %s1219, 4
        %s1221 = scalar_lea.vmem %s1, %s1220
        %s1222 = smul.u32 8, %s44
        %s1223 = smul.u32 8, %s44
        %s1224 = smul.u32 8, %s45
        %s1225 = smul.u32 8, %s45
        %p1226 = scmp.lt.s32.totalorder %s43, 1
        %s1227 = scalar_select %p1226, %s43, 1
        %s1228 = smul.addr %s1227, 2
        %s1229 = smul.addr %s1228, 4
        %s1230 = scalar_lea.vmem %s5, %s1229
        %p1231 = scmp.lt.s32.totalorder %s43, 1
        %s1232 = scalar_select %p1231, %s43, 1
        %s1233 = smul.addr %s1232, 2
        %s1234 = smul.addr %s1233, 4
        %s1235 = scalar_lea.vmem %s6, %s1234
        %s1236 = smul.u32 8, %s44
        %p1238 = scmp.eq.s32.totalorder %s45, 0
        // Predicated region
        $region240: #{unet_attention_block.3} parent=226 // pred_check
          %p1239 = pneg %p1238
        $region241: #{unet_attention_block.3} parent=226 // pred_check_branch
          %1241 = sbr.rel (%p1239) target = $region243
        $region242: #{unet_attention_block.3} parent=226 // pred_region
          %vm1242 = vcmask 7168
          %1243 = vst.msk [vmem:[#allocation2] sm:$0xff] %vm1242, -inf
          %1244 = vst.msk [vmem:[#allocation2 + $0x8] sm:$0xff] %vm1242, -inf
          %1245 = vst.msk [vmem:[#allocation2 + $0x10] sm:$0xff] %vm1242, -inf
          %1246 = vst.msk [vmem:[#allocation2 + $0x18] sm:$0xff] %vm1242, -inf
          %1247 = vst.msk [vmem:[#allocation2 + $0x20] sm:$0xff] %vm1242, -inf
          %1248 = vst.msk [vmem:[#allocation2 + $0x28] sm:$0xff] %vm1242, -inf
          %1249 = vst.msk [vmem:[#allocation2 + $0x30] sm:$0xff] %vm1242, -inf
          %1250 = vst.msk [vmem:[#allocation2 + $0x38] sm:$0xff] %vm1242, -inf
          %1251 = vst.msk [vmem:[#allocation2 + $0x40] sm:$0xff] %vm1242, -inf
          %1252 = vst.msk [vmem:[#allocation2 + $0x48] sm:$0xff] %vm1242, -inf
          %1253 = vst.msk [vmem:[#allocation2 + $0x50] sm:$0xff] %vm1242, -inf
          %1254 = vst.msk [vmem:[#allocation2 + $0x58] sm:$0xff] %vm1242, -inf
          %1255 = vst.msk [vmem:[#allocation2 + $0x60] sm:$0xff] %vm1242, -inf
          %1256 = vst.msk [vmem:[#allocation2 + $0x68] sm:$0xff] %vm1242, -inf
          %1257 = vst.msk [vmem:[#allocation2 + $0x70] sm:$0xff] %vm1242, -inf
          %1258 = vst.msk [vmem:[#allocation2 + $0x78] sm:$0xff] %vm1242, -inf
          %1259 = vst.msk [vmem:[#allocation3] sm:$0xff] %vm1242, 0.0
          %1260 = vst.msk [vmem:[#allocation3 + $0x8] sm:$0xff] %vm1242, 0.0
          %1261 = vst.msk [vmem:[#allocation3 + $0x10] sm:$0xff] %vm1242, 0.0
          %1262 = vst.msk [vmem:[#allocation3 + $0x18] sm:$0xff] %vm1242, 0.0
          %1263 = vst.msk [vmem:[#allocation3 + $0x20] sm:$0xff] %vm1242, 0.0
          %1264 = vst.msk [vmem:[#allocation3 + $0x28] sm:$0xff] %vm1242, 0.0
          %1265 = vst.msk [vmem:[#allocation3 + $0x30] sm:$0xff] %vm1242, 0.0
          %1266 = vst.msk [vmem:[#allocation3 + $0x38] sm:$0xff] %vm1242, 0.0
          %1267 = vst.msk [vmem:[#allocation3 + $0x40] sm:$0xff] %vm1242, 0.0
          %1268 = vst.msk [vmem:[#allocation3 + $0x48] sm:$0xff] %vm1242, 0.0
          %1269 = vst.msk [vmem:[#allocation3 + $0x50] sm:$0xff] %vm1242, 0.0
          %1270 = vst.msk [vmem:[#allocation3 + $0x58] sm:$0xff] %vm1242, 0.0
          %1271 = vst.msk [vmem:[#allocation3 + $0x60] sm:$0xff] %vm1242, 0.0
          %1272 = vst.msk [vmem:[#allocation3 + $0x68] sm:$0xff] %vm1242, 0.0
          %1273 = vst.msk [vmem:[#allocation3 + $0x70] sm:$0xff] %vm1242, 0.0
          %1274 = vst.msk [vmem:[#allocation3 + $0x78] sm:$0xff] %vm1242, 0.0
          %vm1275 = vcmask 261120
          %1276 = vst.msk [vmem:[#allocation4] sm:$0xff] %vm1275, 0.0
          %1277 = vst.msk [vmem:[#allocation4 + $0x8] sm:$0xff] %vm1275, 0.0
          %1278 = vst.msk [vmem:[#allocation4 + $0x10] sm:$0xff] %vm1275, 0.0
          %1279 = vst.msk [vmem:[#allocation4 + $0x18] sm:$0xff] %vm1275, 0.0
          %1280 = vst.msk [vmem:[#allocation4 + $0x20] sm:$0xff] %vm1275, 0.0
          %1281 = vst.msk [vmem:[#allocation4 + $0x28] sm:$0xff] %vm1275, 0.0
          %1282 = vst.msk [vmem:[#allocation4 + $0x30] sm:$0xff] %vm1275, 0.0
          %1283 = vst.msk [vmem:[#allocation4 + $0x38] sm:$0xff] %vm1275, 0.0
          %1284 = vst.msk [vmem:[#allocation4 + $0x40] sm:$0xff] %vm1275, 0.0
          %1285 = vst.msk [vmem:[#allocation4 + $0x48] sm:$0xff] %vm1275, 0.0
          %1286 = vst.msk [vmem:[#allocation4 + $0x50] sm:$0xff] %vm1275, 0.0
          %1287 = vst.msk [vmem:[#allocation4 + $0x58] sm:$0xff] %vm1275, 0.0
          %1288 = vst.msk [vmem:[#allocation4 + $0x60] sm:$0xff] %vm1275, 0.0
          %1289 = vst.msk [vmem:[#allocation4 + $0x68] sm:$0xff] %vm1275, 0.0
          %1290 = vst.msk [vmem:[#allocation4 + $0x70] sm:$0xff] %vm1275, 0.0
          %1291 = vst.msk [vmem:[#allocation4 + $0x78] sm:$0xff] %vm1275, 0.0
        $region243: #{unet_attention_block.3} parent=226 // pred_fallthru
          _
        %v1292 = vld [vmem:[%s1090] sm:$0xf]
        %v1293 = vld [vmem:[%s1090 + $0x4] sm:$0xf]
        %v1294 = vld [vmem:[%s1090 + $0x8] sm:$0xf]
        %v1295 = vld [vmem:[%s1090 + $0xc] sm:$0xf]
        %v1296 = vld [vmem:[%s1090 + $0x10] sm:$0xf]
        %v1297 = vld [vmem:[%s1090 + $0x14] sm:$0xf]
        %v1298 = vld [vmem:[%s1090 + $0x18] sm:$0xf]
        %v1299 = vld [vmem:[%s1090 + $0x1c] sm:$0xf]
        %v1300 = vld [vmem:[%s1090 + $0x20] sm:$0xf]
        %v1301 = vld [vmem:[%s1090 + $0x24] sm:$0xf]
        %v1302 = vld [vmem:[%s1090 + $0x28] sm:$0xf]
        %v1303 = vld [vmem:[%s1090 + $0x2c] sm:$0xf]
        %v1304 = vld [vmem:[%s1090 + $0x30] sm:$0xf]
        %v1305 = vld [vmem:[%s1090 + $0x34] sm:$0xf]
        %v1306 = vld [vmem:[%s1090 + $0x38] sm:$0xf]
        %v1307 = vld [vmem:[%s1090 + $0x3c] sm:$0xf]
        %v1308 = vld [vmem:[%s1097] sm:$0xf]
        %v1309 = vld [vmem:[%s1097 + $0x4] sm:$0xf]
        %v1310 = vld [vmem:[%s1097 + $0x8] sm:$0xf]
        %v1311 = vld [vmem:[%s1097 + $0xc] sm:$0xf]
        %v1312 = vld [vmem:[%s1097 + $0x10] sm:$0xf]
        %v1313 = vld [vmem:[%s1097 + $0x14] sm:$0xf]
        %v1314 = vld [vmem:[%s1097 + $0x18] sm:$0xf]
        %v1315 = vld [vmem:[%s1097 + $0x1c] sm:$0xf]
        %v1316 = vld [vmem:[%s1097 + $0x20] sm:$0xf]
        %v1317 = vld [vmem:[%s1097 + $0x24] sm:$0xf]
        %v1318 = vld [vmem:[%s1097 + $0x28] sm:$0xf]
        %v1319 = vld [vmem:[%s1097 + $0x2c] sm:$0xf]
        %v1320 = vld [vmem:[%s1097 + $0x30] sm:$0xf]
        %v1321 = vld [vmem:[%s1097 + $0x34] sm:$0xf]
        %v1322 = vld [vmem:[%s1097 + $0x38] sm:$0xf]
        %v1323 = vld [vmem:[%s1097 + $0x3c] sm:$0xf]
        %v1332 = vunpack.c.l.b16 %v1292
        %v1333 = vunpack.c.l.b16 %v1293
        %v1334 = vunpack.c.l.b16 %v1294
        %v1335 = vunpack.c.l.b16 %v1295
        %v1336 = vunpack.c.l.b16 %v1296
        %v1337 = vunpack.c.l.b16 %v1297
        %v1338 = vunpack.c.l.b16 %v1298
        %v1339 = vunpack.c.l.b16 %v1299
        %v1340 = vpack.c.b16 %v1333, %v1332
        %v1341 = vpack.c.b16 %v1335, %v1334
        %v1342 = vpack.c.b16 %v1337, %v1336
        %v1343 = vpack.c.b16 %v1339, %v1338
        %v1352 = vunpack.c.l.b16 %v1308
        %v1353 = vunpack.c.l.b16 %v1309
        %v1354 = vunpack.c.l.b16 %v1310
        %v1355 = vunpack.c.l.b16 %v1311
        %v1356 = vunpack.c.l.b16 %v1312
        %v1357 = vunpack.c.l.b16 %v1313
        %v1358 = vunpack.c.l.b16 %v1314
        %v1359 = vunpack.c.l.b16 %v1315
        %v1360 = vpack.c.b16 %v1353, %v1352
        %v1361 = vpack.c.b16 %v1355, %v1354
        %v1362 = vpack.c.b16 %v1357, %v1356
        %v1363 = vpack.c.b16 %v1359, %v1358
        %vm1364 = vcmask 261120
        %v1366 = vsel %vm1364, %v1340, 0
        %v1369 = vsel %vm1364, %v1341, 0
        %v1372 = vsel %vm1364, %v1342, 0
        %v1375 = vsel %vm1364, %v1343, 0
        %v1378 = vsel %vm1364, %v1360, 0
        %v1381 = vsel %vm1364, %v1361, 0
        %v1384 = vsel %vm1364, %v1362, 0
        %v1387 = vsel %vm1364, %v1363, 0
        %1389 = vmatpush.bf16.xpose.msra.mxu0 0
        %1390 = vmatpush.bf16.xpose.msra.mxu0 0
        %1391 = vmatpush.bf16.xpose.msra.mxu0 0
        %1392 = vmatpush.bf16.xpose.msra.mxu0 0
        %1393 = vmatpush.bf16.xpose.msra.mxu0 %v1387
        %1394 = vmatpush.bf16.xpose.msra.mxu0 %v1384
        %1395 = vmatpush.bf16.xpose.msra.mxu0 %v1381
        %1396 = vmatpush.bf16.xpose.msra.mxu0 %v1378
        %1397 = vmatmul.bf16.gmra.mxu0 %v1366
        %v1398 = vpop.f32.mrf.mxu0
        %v1399 = vadd.f32 0.0, %v1398
        %v1400 = vpop.f32.mrf.mxu0
        %v1401 = vadd.f32 0.0, %v1400
        %1402 = vmatmul.bf16.gmra.mxu0 %v1369
        %v1403 = vpop.f32.mrf.mxu0
        %v1404 = vadd.f32 0.0, %v1403
        %v1405 = vpop.f32.mrf.mxu0
        %v1406 = vadd.f32 0.0, %v1405
        %1407 = vmatmul.bf16.gmra.mxu0 %v1372
        %v1408 = vpop.f32.mrf.mxu0
        %v1409 = vadd.f32 0.0, %v1408
        %v1410 = vpop.f32.mrf.mxu0
        %v1411 = vadd.f32 0.0, %v1410
        %1412 = vmatmul.bf16.gmra.mxu0 %v1375
        %v1413 = vpop.f32.mrf.mxu0
        %v1414 = vadd.f32 0.0, %v1413
        %v1415 = vpop.f32.mrf.mxu0
        %v1416 = vadd.f32 0.0, %v1415
        %1417 = vdwg.mxu0
        %v1426 = vunpack.c.l.b16 %v1300
        %v1427 = vunpack.c.l.b16 %v1301
        %v1428 = vunpack.c.l.b16 %v1302
        %v1429 = vunpack.c.l.b16 %v1303
        %v1430 = vunpack.c.l.b16 %v1304
        %v1431 = vunpack.c.l.b16 %v1305
        %v1432 = vunpack.c.l.b16 %v1306
        %v1433 = vunpack.c.l.b16 %v1307
        %v1434 = vpack.c.b16 %v1427, %v1426
        %v1435 = vpack.c.b16 %v1429, %v1428
        %v1436 = vpack.c.b16 %v1431, %v1430
        %v1437 = vpack.c.b16 %v1433, %v1432
        %v1446 = vunpack.c.l.b16 %v1316
        %v1447 = vunpack.c.l.b16 %v1317
        %v1448 = vunpack.c.l.b16 %v1318
        %v1449 = vunpack.c.l.b16 %v1319
        %v1450 = vunpack.c.l.b16 %v1320
        %v1451 = vunpack.c.l.b16 %v1321
        %v1452 = vunpack.c.l.b16 %v1322
        %v1453 = vunpack.c.l.b16 %v1323
        %v1454 = vpack.c.b16 %v1447, %v1446
        %v1455 = vpack.c.b16 %v1449, %v1448
        %v1456 = vpack.c.b16 %v1451, %v1450
        %v1457 = vpack.c.b16 %v1453, %v1452
        %v1459 = vsel %vm1364, %v1434, 0
        %v1462 = vsel %vm1364, %v1435, 0
        %v1465 = vsel %vm1364, %v1436, 0
        %v1468 = vsel %vm1364, %v1437, 0
        %v1471 = vsel %vm1364, %v1454, 0
        %v1474 = vsel %vm1364, %v1455, 0
        %v1477 = vsel %vm1364, %v1456, 0
        %v1480 = vsel %vm1364, %v1457, 0
        %1482 = vmatpush.bf16.xpose.msra.mxu0 0
        %1483 = vmatpush.bf16.xpose.msra.mxu0 0
        %1484 = vmatpush.bf16.xpose.msra.mxu0 0
        %1485 = vmatpush.bf16.xpose.msra.mxu0 0
        %1486 = vmatpush.bf16.xpose.msra.mxu0 %v1480
        %1487 = vmatpush.bf16.xpose.msra.mxu0 %v1477
        %1488 = vmatpush.bf16.xpose.msra.mxu0 %v1474
        %1489 = vmatpush.bf16.xpose.msra.mxu0 %v1471
        %1490 = vmatmul.bf16.gmra.mxu0 %v1459
        %v1491 = vpop.f32.mrf.mxu0
        %v1492 = vadd.f32 0.0, %v1491
        %v1493 = vpop.f32.mrf.mxu0
        %v1494 = vadd.f32 0.0, %v1493
        %1495 = vmatmul.bf16.gmra.mxu0 %v1462
        %v1496 = vpop.f32.mrf.mxu0
        %v1497 = vadd.f32 0.0, %v1496
        %v1498 = vpop.f32.mrf.mxu0
        %v1499 = vadd.f32 0.0, %v1498
        %1500 = vmatmul.bf16.gmra.mxu0 %v1465
        %v1501 = vpop.f32.mrf.mxu0
        %v1502 = vadd.f32 0.0, %v1501
        %v1503 = vpop.f32.mrf.mxu0
        %v1504 = vadd.f32 0.0, %v1503
        %1505 = vmatmul.bf16.gmra.mxu0 %v1468
        %v1506 = vpop.f32.mrf.mxu0
        %v1507 = vadd.f32 0.0, %v1506
        %v1508 = vpop.f32.mrf.mxu0
        %v1509 = vadd.f32 0.0, %v1508
        %1510 = vdwg.mxu0
        %v1511 = vld [vmem:[#allocation2] sm:$0xff]
        %v1512 = vld [vmem:[#allocation2 + $0x8] sm:$0xff]
        %v1513 = vld [vmem:[#allocation2 + $0x10] sm:$0xff]
        %v1514 = vld [vmem:[#allocation2 + $0x18] sm:$0xff]
        %v1515 = vld [vmem:[#allocation2 + $0x20] sm:$0xff]
        %v1516 = vld [vmem:[#allocation2 + $0x28] sm:$0xff]
        %v1517 = vld [vmem:[#allocation2 + $0x30] sm:$0xff]
        %v1518 = vld [vmem:[#allocation2 + $0x38] sm:$0xff]
        %v1519 = vld [vmem:[#allocation2 + $0x40] sm:$0xff]
        %v1520 = vld [vmem:[#allocation2 + $0x48] sm:$0xff]
        %v1521 = vld [vmem:[#allocation2 + $0x50] sm:$0xff]
        %v1522 = vld [vmem:[#allocation2 + $0x58] sm:$0xff]
        %v1523 = vld [vmem:[#allocation2 + $0x60] sm:$0xff]
        %v1524 = vld [vmem:[#allocation2 + $0x68] sm:$0xff]
        %v1525 = vld [vmem:[#allocation2 + $0x70] sm:$0xff]
        %v1526 = vld [vmem:[#allocation2 + $0x78] sm:$0xff]
        %vm1527 = vcmask 523264
        %v1528 = vsel %vm1527, %v1399, -inf
        %1529 = vmax.xlane.f32.xlu0 %v1528
        %v1530 = vpop.xlane.xlu0 %1529
        %v1531 = vsel %vm1527, %v1401, -inf
        %1532 = vmax.xlane.f32.xlu0 %v1531
        %v1533 = vpop.xlane.xlu0 %1532
        %v1534 = vsel %vm1527, %v1404, -inf
        %1535 = vmax.xlane.f32.xlu0 %v1534
        %v1536 = vpop.xlane.xlu0 %1535
        %v1537 = vsel %vm1527, %v1406, -inf
        %1538 = vmax.xlane.f32.xlu0 %v1537
        %v1539 = vpop.xlane.xlu0 %1538
        %v1540 = vsel %vm1527, %v1409, -inf
        %1541 = vmax.xlane.f32.xlu0 %v1540
        %v1542 = vpop.xlane.xlu0 %1541
        %v1543 = vsel %vm1527, %v1411, -inf
        %1544 = vmax.xlane.f32.xlu0 %v1543
        %v1545 = vpop.xlane.xlu0 %1544
        %v1546 = vsel %vm1527, %v1414, -inf
        %1547 = vmax.xlane.f32.xlu0 %v1546
        %v1548 = vpop.xlane.xlu0 %1547
        %v1549 = vsel %vm1527, %v1416, -inf
        %1550 = vmax.xlane.f32.xlu0 %v1549
        %v1551 = vpop.xlane.xlu0 %1550
        %v1552 = vsel %vm1527, %v1492, -inf
        %1553 = vmax.xlane.f32.xlu0 %v1552
        %v1554 = vpop.xlane.xlu0 %1553
        %v1555 = vsel %vm1527, %v1494, -inf
        %1556 = vmax.xlane.f32.xlu0 %v1555
        %v1557 = vpop.xlane.xlu0 %1556
        %v1558 = vsel %vm1527, %v1497, -inf
        %1559 = vmax.xlane.f32.xlu0 %v1558
        %v1560 = vpop.xlane.xlu0 %1559
        %v1561 = vsel %vm1527, %v1499, -inf
        %1562 = vmax.xlane.f32.xlu0 %v1561
        %v1563 = vpop.xlane.xlu0 %1562
        %v1564 = vsel %vm1527, %v1502, -inf
        %1565 = vmax.xlane.f32.xlu0 %v1564
        %v1566 = vpop.xlane.xlu0 %1565
        %v1567 = vsel %vm1527, %v1504, -inf
        %1568 = vmax.xlane.f32.xlu0 %v1567
        %v1569 = vpop.xlane.xlu0 %1568
        %v1570 = vsel %vm1527, %v1507, -inf
        %1571 = vmax.xlane.f32.xlu0 %v1570
        %v1572 = vpop.xlane.xlu0 %1571
        %v1573 = vsel %vm1527, %v1509, -inf
        %1574 = vmax.xlane.f32.xlu0 %v1573
        %v1575 = vpop.xlane.xlu0 %1574
        %v1576 = vmax.f32 %v1511, %v1530
        %v1577 = vmax.f32 %v1512, %v1533
        %v1578 = vmax.f32 %v1513, %v1536
        %v1579 = vmax.f32 %v1514, %v1539
        %v1580 = vmax.f32 %v1515, %v1542
        %v1581 = vmax.f32 %v1516, %v1545
        %v1582 = vmax.f32 %v1517, %v1548
        %v1583 = vmax.f32 %v1518, %v1551
        %v1584 = vmax.f32 %v1519, %v1554
        %v1585 = vmax.f32 %v1520, %v1557
        %v1586 = vmax.f32 %v1521, %v1560
        %v1587 = vmax.f32 %v1522, %v1563
        %v1588 = vmax.f32 %v1523, %v1566
        %v1589 = vmax.f32 %v1524, %v1569
        %v1590 = vmax.f32 %v1525, %v1572
        %v1591 = vmax.f32 %v1526, %v1575
        %v1592 = vsub.f32 %v1511, %v1576
        %v1593 = vsub.f32 %v1512, %v1577
        %v1594 = vsub.f32 %v1513, %v1578
        %v1595 = vsub.f32 %v1514, %v1579
        %v1596 = vsub.f32 %v1515, %v1580
        %v1597 = vsub.f32 %v1516, %v1581
        %v1598 = vsub.f32 %v1517, %v1582
        %v1599 = vsub.f32 %v1518, %v1583
        %v1600 = vsub.f32 %v1519, %v1584
        %v1601 = vsub.f32 %v1520, %v1585
        %v1602 = vsub.f32 %v1521, %v1586
        %v1603 = vsub.f32 %v1522, %v1587
        %v1604 = vsub.f32 %v1523, %v1588
        %v1605 = vsub.f32 %v1524, %v1589
        %v1606 = vsub.f32 %v1525, %v1590
        %v1607 = vsub.f32 %v1526, %v1591
        %v1608 = vmul.f32 %v1592, 1.442695
        %v1609 = vpow.pop %v1608
        %v1610 = vmul.f32 %v1593, 1.442695
        %v1611 = vpow.pop %v1610
        %v1612 = vmul.f32 %v1594, 1.442695
        %v1613 = vpow.pop %v1612
        %v1614 = vmul.f32 %v1595, 1.442695
        %v1615 = vpow.pop %v1614
        %v1616 = vmul.f32 %v1596, 1.442695
        %v1617 = vpow.pop %v1616
        %v1618 = vmul.f32 %v1597, 1.442695
        %v1619 = vpow.pop %v1618
        %v1620 = vmul.f32 %v1598, 1.442695
        %v1621 = vpow.pop %v1620
        %v1622 = vmul.f32 %v1599, 1.442695
        %v1623 = vpow.pop %v1622
        %v1624 = vmul.f32 %v1600, 1.442695
        %v1625 = vpow.pop %v1624
        %v1626 = vmul.f32 %v1601, 1.442695
        %v1627 = vpow.pop %v1626
        %v1628 = vmul.f32 %v1602, 1.442695
        %v1629 = vpow.pop %v1628
        %v1630 = vmul.f32 %v1603, 1.442695
        %v1631 = vpow.pop %v1630
        %v1632 = vmul.f32 %v1604, 1.442695
        %v1633 = vpow.pop %v1632
        %v1634 = vmul.f32 %v1605, 1.442695
        %v1635 = vpow.pop %v1634
        %v1636 = vmul.f32 %v1606, 1.442695
        %v1637 = vpow.pop %v1636
        %v1638 = vmul.f32 %v1607, 1.442695
        %v1639 = vpow.pop %v1638
        %1641 = vset.pattern.permute.xlu0 0
        %1642 = vperm.xlu0 %1641, %v1576
        %v1643 = vpop.permute.xlu0 %1642
        %1646 = vset.pattern.permute.xlu0 0
        %1647 = vperm.xlu0 %1646, %v1577
        %v1648 = vpop.permute.xlu0 %1647
        %1651 = vset.pattern.permute.xlu0 0
        %1652 = vperm.xlu0 %1651, %v1578
        %v1653 = vpop.permute.xlu0 %1652
        %1656 = vset.pattern.permute.xlu0 0
        %1657 = vperm.xlu0 %1656, %v1579
        %v1658 = vpop.permute.xlu0 %1657
        %1661 = vset.pattern.permute.xlu0 0
        %1662 = vperm.xlu0 %1661, %v1580
        %v1663 = vpop.permute.xlu0 %1662
        %1666 = vset.pattern.permute.xlu0 0
        %1667 = vperm.xlu0 %1666, %v1581
        %v1668 = vpop.permute.xlu0 %1667
        %1671 = vset.pattern.permute.xlu0 0
        %1672 = vperm.xlu0 %1671, %v1582
        %v1673 = vpop.permute.xlu0 %1672
        %1676 = vset.pattern.permute.xlu0 0
        %1677 = vperm.xlu0 %1676, %v1583
        %v1678 = vpop.permute.xlu0 %1677
        %1681 = vset.pattern.permute.xlu0 0
        %1682 = vperm.xlu0 %1681, %v1584
        %v1683 = vpop.permute.xlu0 %1682
        %1686 = vset.pattern.permute.xlu0 0
        %1687 = vperm.xlu0 %1686, %v1585
        %v1688 = vpop.permute.xlu0 %1687
        %1691 = vset.pattern.permute.xlu0 0
        %1692 = vperm.xlu0 %1691, %v1586
        %v1693 = vpop.permute.xlu0 %1692
        %1696 = vset.pattern.permute.xlu0 0
        %1697 = vperm.xlu0 %1696, %v1587
        %v1698 = vpop.permute.xlu0 %1697
        %1701 = vset.pattern.permute.xlu0 0
        %1702 = vperm.xlu0 %1701, %v1588
        %v1703 = vpop.permute.xlu0 %1702
        %1706 = vset.pattern.permute.xlu0 0
        %1707 = vperm.xlu0 %1706, %v1589
        %v1708 = vpop.permute.xlu0 %1707
        %1711 = vset.pattern.permute.xlu0 0
        %1712 = vperm.xlu0 %1711, %v1590
        %v1713 = vpop.permute.xlu0 %1712
        %1716 = vset.pattern.permute.xlu0 0
        %1717 = vperm.xlu0 %1716, %v1591
        %v1718 = vpop.permute.xlu0 %1717
        %v1720 = vsub.f32 %v1399, %v1643
        %v1721 = vsub.f32 %v1401, %v1648
        %v1722 = vsub.f32 %v1404, %v1653
        %v1723 = vsub.f32 %v1406, %v1658
        %v1724 = vsub.f32 %v1409, %v1663
        %v1725 = vsub.f32 %v1411, %v1668
        %v1726 = vsub.f32 %v1414, %v1673
        %v1727 = vsub.f32 %v1416, %v1678
        %v1728 = vsub.f32 %v1492, %v1683
        %v1729 = vsub.f32 %v1494, %v1688
        %v1730 = vsub.f32 %v1497, %v1693
        %v1731 = vsub.f32 %v1499, %v1698
        %v1732 = vsub.f32 %v1502, %v1703
        %v1733 = vsub.f32 %v1504, %v1708
        %v1734 = vsub.f32 %v1507, %v1713
        %v1735 = vsub.f32 %v1509, %v1718
        %v1736 = vmul.f32 %v1720, 1.442695
        %v1737 = vpow.pop %v1736
        %v1738 = vmul.f32 %v1721, 1.442695
        %v1739 = vpow.pop %v1738
        %v1740 = vmul.f32 %v1722, 1.442695
        %v1741 = vpow.pop %v1740
        %v1742 = vmul.f32 %v1723, 1.442695
        %v1743 = vpow.pop %v1742
        %v1744 = vmul.f32 %v1724, 1.442695
        %v1745 = vpow.pop %v1744
        %v1746 = vmul.f32 %v1725, 1.442695
        %v1747 = vpow.pop %v1746
        %v1748 = vmul.f32 %v1726, 1.442695
        %v1749 = vpow.pop %v1748
        %v1750 = vmul.f32 %v1727, 1.442695
        %v1751 = vpow.pop %v1750
        %v1752 = vmul.f32 %v1728, 1.442695
        %v1753 = vpow.pop %v1752
        %v1754 = vmul.f32 %v1729, 1.442695
        %v1755 = vpow.pop %v1754
        %v1756 = vmul.f32 %v1730, 1.442695
        %v1757 = vpow.pop %v1756
        %v1758 = vmul.f32 %v1731, 1.442695
        %v1759 = vpow.pop %v1758
        %v1760 = vmul.f32 %v1732, 1.442695
        %v1761 = vpow.pop %v1760
        %v1762 = vmul.f32 %v1733, 1.442695
        %v1763 = vpow.pop %v1762
        %v1764 = vmul.f32 %v1734, 1.442695
        %v1765 = vpow.pop %v1764
        %v1766 = vmul.f32 %v1735, 1.442695
        %v1767 = vpow.pop %v1766
        %v1768 = vld [vmem:[#allocation3] sm:$0xff]
        %v1769 = vld [vmem:[#allocation3 + $0x8] sm:$0xff]
        %v1770 = vld [vmem:[#allocation3 + $0x10] sm:$0xff]
        %v1771 = vld [vmem:[#allocation3 + $0x18] sm:$0xff]
        %v1772 = vld [vmem:[#allocation3 + $0x20] sm:$0xff]
        %v1773 = vld [vmem:[#allocation3 + $0x28] sm:$0xff]
        %v1774 = vld [vmem:[#allocation3 + $0x30] sm:$0xff]
        %v1775 = vld [vmem:[#allocation3 + $0x38] sm:$0xff]
        %v1776 = vld [vmem:[#allocation3 + $0x40] sm:$0xff]
        %v1777 = vld [vmem:[#allocation3 + $0x48] sm:$0xff]
        %v1778 = vld [vmem:[#allocation3 + $0x50] sm:$0xff]
        %v1779 = vld [vmem:[#allocation3 + $0x58] sm:$0xff]
        %v1780 = vld [vmem:[#allocation3 + $0x60] sm:$0xff]
        %v1781 = vld [vmem:[#allocation3 + $0x68] sm:$0xff]
        %v1782 = vld [vmem:[#allocation3 + $0x70] sm:$0xff]
        %v1783 = vld [vmem:[#allocation3 + $0x78] sm:$0xff]
        %v1784 = vmul.f32 %v1609, %v1768
        %v1785 = vmul.f32 %v1611, %v1769
        %v1786 = vmul.f32 %v1613, %v1770
        %v1787 = vmul.f32 %v1615, %v1771
        %v1788 = vmul.f32 %v1617, %v1772
        %v1789 = vmul.f32 %v1619, %v1773
        %v1790 = vmul.f32 %v1621, %v1774
        %v1791 = vmul.f32 %v1623, %v1775
        %v1792 = vmul.f32 %v1625, %v1776
        %v1793 = vmul.f32 %v1627, %v1777
        %v1794 = vmul.f32 %v1629, %v1778
        %v1795 = vmul.f32 %v1631, %v1779
        %v1796 = vmul.f32 %v1633, %v1780
        %v1797 = vmul.f32 %v1635, %v1781
        %v1798 = vmul.f32 %v1637, %v1782
        %v1799 = vmul.f32 %v1639, %v1783
        %v1800 = vsel %vm1527, %v1737, 0.0
        %1801 = vadd.xlane.f32.xlu0 %v1800
        %v1802 = vpop.xlane.xlu0 %1801
        %v1803 = vsel %vm1527, %v1739, 0.0
        %1804 = vadd.xlane.f32.xlu0 %v1803
        %v1805 = vpop.xlane.xlu0 %1804
        %v1806 = vsel %vm1527, %v1741, 0.0
        %1807 = vadd.xlane.f32.xlu0 %v1806
        %v1808 = vpop.xlane.xlu0 %1807
        %v1809 = vsel %vm1527, %v1743, 0.0
        %1810 = vadd.xlane.f32.xlu0 %v1809
        %v1811 = vpop.xlane.xlu0 %1810
        %v1812 = vsel %vm1527, %v1745, 0.0
        %1813 = vadd.xlane.f32.xlu0 %v1812
        %v1814 = vpop.xlane.xlu0 %1813
        %v1815 = vsel %vm1527, %v1747, 0.0
        %1816 = vadd.xlane.f32.xlu0 %v1815
        %v1817 = vpop.xlane.xlu0 %1816
        %v1818 = vsel %vm1527, %v1749, 0.0
        %1819 = vadd.xlane.f32.xlu0 %v1818
        %v1820 = vpop.xlane.xlu0 %1819
        %v1821 = vsel %vm1527, %v1751, 0.0
        %1822 = vadd.xlane.f32.xlu0 %v1821
        %v1823 = vpop.xlane.xlu0 %1822
        %v1824 = vsel %vm1527, %v1753, 0.0
        %1825 = vadd.xlane.f32.xlu0 %v1824
        %v1826 = vpop.xlane.xlu0 %1825
        %v1827 = vsel %vm1527, %v1755, 0.0
        %1828 = vadd.xlane.f32.xlu0 %v1827
        %v1829 = vpop.xlane.xlu0 %1828
        %v1830 = vsel %vm1527, %v1757, 0.0
        %1831 = vadd.xlane.f32.xlu0 %v1830
        %v1832 = vpop.xlane.xlu0 %1831
        %v1833 = vsel %vm1527, %v1759, 0.0
        %1834 = vadd.xlane.f32.xlu0 %v1833
        %v1835 = vpop.xlane.xlu0 %1834
        %v1836 = vsel %vm1527, %v1761, 0.0
        %1837 = vadd.xlane.f32.xlu0 %v1836
        %v1838 = vpop.xlane.xlu0 %1837
        %v1839 = vsel %vm1527, %v1763, 0.0
        %1840 = vadd.xlane.f32.xlu0 %v1839
        %v1841 = vpop.xlane.xlu0 %1840
        %v1842 = vsel %vm1527, %v1765, 0.0
        %1843 = vadd.xlane.f32.xlu0 %v1842
        %v1844 = vpop.xlane.xlu0 %1843
        %v1845 = vsel %vm1527, %v1767, 0.0
        %1846 = vadd.xlane.f32.xlu0 %v1845
        %v1847 = vpop.xlane.xlu0 %1846
        %v1848 = vadd.f32 %v1784, %v1802
        %v1849 = vadd.f32 %v1785, %v1805
        %v1850 = vadd.f32 %v1786, %v1808
        %v1851 = vadd.f32 %v1787, %v1811
        %v1852 = vadd.f32 %v1788, %v1814
        %v1853 = vadd.f32 %v1789, %v1817
        %v1854 = vadd.f32 %v1790, %v1820
        %v1855 = vadd.f32 %v1791, %v1823
        %v1856 = vadd.f32 %v1792, %v1826
        %v1857 = vadd.f32 %v1793, %v1829
        %v1858 = vadd.f32 %v1794, %v1832
        %v1859 = vadd.f32 %v1795, %v1835
        %v1860 = vadd.f32 %v1796, %v1838
        %v1861 = vadd.f32 %v1797, %v1841
        %v1862 = vadd.f32 %v1798, %v1844
        %v1863 = vadd.f32 %v1799, %v1847
        %vm1864 = vcmask 7168
        %1865 = vst.msk [vmem:[#allocation3] sm:$0xff] %vm1864, %v1848
        %1866 = vst.msk [vmem:[#allocation3 + $0x8] sm:$0xff] %vm1864, %v1849
        %1867 = vst.msk [vmem:[#allocation3 + $0x10] sm:$0xff] %vm1864, %v1850
        %1868 = vst.msk [vmem:[#allocation3 + $0x18] sm:$0xff] %vm1864, %v1851
        %1869 = vst.msk [vmem:[#allocation3 + $0x20] sm:$0xff] %vm1864, %v1852
        %1870 = vst.msk [vmem:[#allocation3 + $0x28] sm:$0xff] %vm1864, %v1853
        %1871 = vst.msk [vmem:[#allocation3 + $0x30] sm:$0xff] %vm1864, %v1854
        %1872 = vst.msk [vmem:[#allocation3 + $0x38] sm:$0xff] %vm1864, %v1855
        %1873 = vst.msk [vmem:[#allocation3 + $0x40] sm:$0xff] %vm1864, %v1856
        %1874 = vst.msk [vmem:[#allocation3 + $0x48] sm:$0xff] %vm1864, %v1857
        %1875 = vst.msk [vmem:[#allocation3 + $0x50] sm:$0xff] %vm1864, %v1858
        %1876 = vst.msk [vmem:[#allocation3 + $0x58] sm:$0xff] %vm1864, %v1859
        %1877 = vst.msk [vmem:[#allocation3 + $0x60] sm:$0xff] %vm1864, %v1860
        %1878 = vst.msk [vmem:[#allocation3 + $0x68] sm:$0xff] %vm1864, %v1861
        %1879 = vst.msk [vmem:[#allocation3 + $0x70] sm:$0xff] %vm1864, %v1862
        %1880 = vst.msk [vmem:[#allocation3 + $0x78] sm:$0xff] %vm1864, %v1863
        %v1881 = vld [vmem:[#allocation4] sm:$0xff]
        %v1882 = vld [vmem:[#allocation4 + $0x8] sm:$0xff]
        %v1883 = vld [vmem:[#allocation4 + $0x10] sm:$0xff]
        %v1884 = vld [vmem:[#allocation4 + $0x18] sm:$0xff]
        %v1885 = vld [vmem:[#allocation4 + $0x20] sm:$0xff]
        %v1886 = vld [vmem:[#allocation4 + $0x28] sm:$0xff]
        %v1887 = vld [vmem:[#allocation4 + $0x30] sm:$0xff]
        %v1888 = vld [vmem:[#allocation4 + $0x38] sm:$0xff]
        %v1889 = vld [vmem:[#allocation4 + $0x40] sm:$0xff]
        %v1890 = vld [vmem:[#allocation4 + $0x48] sm:$0xff]
        %v1891 = vld [vmem:[#allocation4 + $0x50] sm:$0xff]
        %v1892 = vld [vmem:[#allocation4 + $0x58] sm:$0xff]
        %v1893 = vld [vmem:[#allocation4 + $0x60] sm:$0xff]
        %v1894 = vld [vmem:[#allocation4 + $0x68] sm:$0xff]
        %v1895 = vld [vmem:[#allocation4 + $0x70] sm:$0xff]
        %v1896 = vld [vmem:[#allocation4 + $0x78] sm:$0xff]
        %1898 = vset.pattern.permute.xlu0 0
        %1899 = vperm.xlu0 %1898, %v1609
        %v1900 = vpop.permute.xlu0 %1899
        %1903 = vset.pattern.permute.xlu0 0
        %1904 = vperm.xlu0 %1903, %v1611
        %v1905 = vpop.permute.xlu0 %1904
        %1908 = vset.pattern.permute.xlu0 0
        %1909 = vperm.xlu0 %1908, %v1613
        %v1910 = vpop.permute.xlu0 %1909
        %1913 = vset.pattern.permute.xlu0 0
        %1914 = vperm.xlu0 %1913, %v1615
        %v1915 = vpop.permute.xlu0 %1914
        %1918 = vset.pattern.permute.xlu0 0
        %1919 = vperm.xlu0 %1918, %v1617
        %v1920 = vpop.permute.xlu0 %1919
        %1923 = vset.pattern.permute.xlu0 0
        %1924 = vperm.xlu0 %1923, %v1619
        %v1925 = vpop.permute.xlu0 %1924
        %1928 = vset.pattern.permute.xlu0 0
        %1929 = vperm.xlu0 %1928, %v1621
        %v1930 = vpop.permute.xlu0 %1929
        %1933 = vset.pattern.permute.xlu0 0
        %1934 = vperm.xlu0 %1933, %v1623
        %v1935 = vpop.permute.xlu0 %1934
        %1938 = vset.pattern.permute.xlu0 0
        %1939 = vperm.xlu0 %1938, %v1625
        %v1940 = vpop.permute.xlu0 %1939
        %1943 = vset.pattern.permute.xlu0 0
        %1944 = vperm.xlu0 %1943, %v1627
        %v1945 = vpop.permute.xlu0 %1944
        %1948 = vset.pattern.permute.xlu0 0
        %1949 = vperm.xlu0 %1948, %v1629
        %v1950 = vpop.permute.xlu0 %1949
        %1953 = vset.pattern.permute.xlu0 0
        %1954 = vperm.xlu0 %1953, %v1631
        %v1955 = vpop.permute.xlu0 %1954
        %1958 = vset.pattern.permute.xlu0 0
        %1959 = vperm.xlu0 %1958, %v1633
        %v1960 = vpop.permute.xlu0 %1959
        %1963 = vset.pattern.permute.xlu0 0
        %1964 = vperm.xlu0 %1963, %v1635
        %v1965 = vpop.permute.xlu0 %1964
        %1968 = vset.pattern.permute.xlu0 0
        %1969 = vperm.xlu0 %1968, %v1637
        %v1970 = vpop.permute.xlu0 %1969
        %1973 = vset.pattern.permute.xlu0 0
        %1974 = vperm.xlu0 %1973, %v1639
        %v1975 = vpop.permute.xlu0 %1974
        %v1977 = vmul.f32 %v1900, %v1881
        %v1978 = vmul.f32 %v1905, %v1882
        %v1979 = vmul.f32 %v1910, %v1883
        %v1980 = vmul.f32 %v1915, %v1884
        %v1981 = vmul.f32 %v1920, %v1885
        %v1982 = vmul.f32 %v1925, %v1886
        %v1983 = vmul.f32 %v1930, %v1887
        %v1984 = vmul.f32 %v1935, %v1888
        %v1985 = vmul.f32 %v1940, %v1889
        %v1986 = vmul.f32 %v1945, %v1890
        %v1987 = vmul.f32 %v1950, %v1891
        %v1988 = vmul.f32 %v1955, %v1892
        %v1989 = vmul.f32 %v1960, %v1893
        %v1990 = vmul.f32 %v1965, %v1894
        %v1991 = vmul.f32 %v1970, %v1895
        %v1992 = vmul.f32 %v1975, %v1896
        %v1993 = vpack.c.bf16 %v1737, %v1737
        %v1994 = vpack.c.bf16 %v1739, %v1739
        %v1995 = vpack.c.bf16 %v1741, %v1741
        %v1996 = vpack.c.bf16 %v1743, %v1743
        %v1997 = vpack.c.bf16 %v1745, %v1745
        %v1998 = vpack.c.bf16 %v1747, %v1747
        %v1999 = vpack.c.bf16 %v1749, %v1749
        %v2000 = vpack.c.bf16 %v1751, %v1751
        %v2001 = vpack.c.bf16 %v1753, %v1753
        %v2002 = vpack.c.bf16 %v1755, %v1755
        %v2003 = vpack.c.bf16 %v1757, %v1757
        %v2004 = vpack.c.bf16 %v1759, %v1759
        %v2005 = vpack.c.bf16 %v1761, %v1761
        %v2006 = vpack.c.bf16 %v1763, %v1763
        %v2007 = vpack.c.bf16 %v1765, %v1765
        %v2008 = vpack.c.bf16 %v1767, %v1767
        %v2009 = vld [vmem:[%s1104] sm:$0xf]
        %v2010 = vld [vmem:[%s1104 + $0x4] sm:$0xf]
        %v2011 = vld [vmem:[%s1104 + $0x8] sm:$0xf]
        %v2012 = vld [vmem:[%s1104 + $0xc] sm:$0xf]
        %v2013 = vld [vmem:[%s1104 + $0x10] sm:$0xf]
        %v2014 = vld [vmem:[%s1104 + $0x14] sm:$0xf]
        %v2015 = vld [vmem:[%s1104 + $0x18] sm:$0xf]
        %v2016 = vld [vmem:[%s1104 + $0x1c] sm:$0xf]
        %v2017 = vld [vmem:[%s1104 + $0x20] sm:$0xf]
        %v2018 = vld [vmem:[%s1104 + $0x24] sm:$0xf]
        %v2019 = vld [vmem:[%s1104 + $0x28] sm:$0xf]
        %v2020 = vld [vmem:[%s1104 + $0x2c] sm:$0xf]
        %v2021 = vld [vmem:[%s1104 + $0x30] sm:$0xf]
        %v2022 = vld [vmem:[%s1104 + $0x34] sm:$0xf]
        %v2023 = vld [vmem:[%s1104 + $0x38] sm:$0xf]
        %v2024 = vld [vmem:[%s1104 + $0x3c] sm:$0xf]
        %v2033 = vunpack.c.l.b16 %v1993
        %v2034 = vunpack.c.l.b16 %v1994
        %v2035 = vunpack.c.l.b16 %v1995
        %v2036 = vunpack.c.l.b16 %v1996
        %v2037 = vunpack.c.l.b16 %v1997
        %v2038 = vunpack.c.l.b16 %v1998
        %v2039 = vunpack.c.l.b16 %v1999
        %v2040 = vunpack.c.l.b16 %v2000
        %v2041 = vpack.c.b16 %v2034, %v2033
        %v2042 = vpack.c.b16 %v2036, %v2035
        %v2043 = vpack.c.b16 %v2038, %v2037
        %v2044 = vpack.c.b16 %v2040, %v2039
        %v2053 = vunpack.c.l.b16 %v2009
        %v2054 = vunpack.c.l.b16 %v2010
        %v2055 = vunpack.c.l.b16 %v2011
        %v2056 = vunpack.c.l.b16 %v2012
        %v2057 = vunpack.c.l.b16 %v2013
        %v2058 = vunpack.c.l.b16 %v2014
        %v2059 = vunpack.c.l.b16 %v2015
        %v2060 = vunpack.c.l.b16 %v2016
        %v2061 = vpack.c.b16 %v2054, %v2053
        %v2062 = vpack.c.b16 %v2056, %v2055
        %v2063 = vpack.c.b16 %v2058, %v2057
        %v2064 = vpack.c.b16 %v2060, %v2059
        %v2070 = vsel %vm1527, %v2041, 0
        %v2073 = vsel %vm1527, %v2042, 0
        %v2076 = vsel %vm1527, %v2043, 0
        %v2079 = vsel %vm1527, %v2044, 0
        %2081 = vmatpush.bf16.msra.mxu0 0
        %2082 = vmatpush.bf16.msra.mxu0 0
        %2083 = vmatpush.bf16.msra.mxu0 0
        %2084 = vmatpush.bf16.msra.mxu0 0
        %2085 = vmatpush.bf16.msra.mxu0 %v2064
        %2086 = vmatpush.bf16.msra.mxu0 %v2063
        %2087 = vmatpush.bf16.msra.mxu0 %v2062
        %2088 = vmatpush.bf16.msra.mxu0 %v2061
        %2089 = vmatmul.bf16.gmra.mxu0 %v2070
        %v2090 = vpop.f32.mrf.mxu0
        %v2091 = vadd.f32 0.0, %v2090
        %v2092 = vpop.f32.mrf.mxu0
        %v2093 = vadd.f32 0.0, %v2092
        %2094 = vmatmul.bf16.gmra.mxu0 %v2073
        %v2095 = vpop.f32.mrf.mxu0
        %v2096 = vadd.f32 0.0, %v2095
        %v2097 = vpop.f32.mrf.mxu0
        %v2098 = vadd.f32 0.0, %v2097
        %2099 = vmatmul.bf16.gmra.mxu0 %v2076
        %v2100 = vpop.f32.mrf.mxu0
        %v2101 = vadd.f32 0.0, %v2100
        %v2102 = vpop.f32.mrf.mxu0
        %v2103 = vadd.f32 0.0, %v2102
        %2104 = vmatmul.bf16.gmra.mxu0 %v2079
        %v2105 = vpop.f32.mrf.mxu0
        %v2106 = vadd.f32 0.0, %v2105
        %v2107 = vpop.f32.mrf.mxu0
        %v2108 = vadd.f32 0.0, %v2107
        %2109 = vdwg.mxu0
        %v2118 = vunpack.c.l.b16 %v2001
        %v2119 = vunpack.c.l.b16 %v2002
        %v2120 = vunpack.c.l.b16 %v2003
        %v2121 = vunpack.c.l.b16 %v2004
        %v2122 = vunpack.c.l.b16 %v2005
        %v2123 = vunpack.c.l.b16 %v2006
        %v2124 = vunpack.c.l.b16 %v2007
        %v2125 = vunpack.c.l.b16 %v2008
        %v2126 = vpack.c.b16 %v2119, %v2118
        %v2127 = vpack.c.b16 %v2121, %v2120
        %v2128 = vpack.c.b16 %v2123, %v2122
        %v2129 = vpack.c.b16 %v2125, %v2124
        %v2138 = vunpack.c.l.b16 %v2017
        %v2139 = vunpack.c.l.b16 %v2018
        %v2140 = vunpack.c.l.b16 %v2019
        %v2141 = vunpack.c.l.b16 %v2020
        %v2142 = vunpack.c.l.b16 %v2021
        %v2143 = vunpack.c.l.b16 %v2022
        %v2144 = vunpack.c.l.b16 %v2023
        %v2145 = vunpack.c.l.b16 %v2024
        %v2146 = vpack.c.b16 %v2139, %v2138
        %v2147 = vpack.c.b16 %v2141, %v2140
        %v2148 = vpack.c.b16 %v2143, %v2142
        %v2149 = vpack.c.b16 %v2145, %v2144
        %v2155 = vsel %vm1527, %v2126, 0
        %v2158 = vsel %vm1527, %v2127, 0
        %v2161 = vsel %vm1527, %v2128, 0
        %v2164 = vsel %vm1527, %v2129, 0
        %2166 = vmatpush.bf16.msra.mxu0 0
        %2167 = vmatpush.bf16.msra.mxu0 0
        %2168 = vmatpush.bf16.msra.mxu0 0
        %2169 = vmatpush.bf16.msra.mxu0 0
        %2170 = vmatpush.bf16.msra.mxu0 %v2149
        %2171 = vmatpush.bf16.msra.mxu0 %v2148
        %2172 = vmatpush.bf16.msra.mxu0 %v2147
        %2173 = vmatpush.bf16.msra.mxu0 %v2146
        %2174 = vmatmul.bf16.gmra.mxu0 %v2155
        %v2175 = vpop.f32.mrf.mxu0
        %v2176 = vadd.f32 0.0, %v2175
        %v2177 = vpop.f32.mrf.mxu0
        %v2178 = vadd.f32 0.0, %v2177
        %2179 = vmatmul.bf16.gmra.mxu0 %v2158
        %v2180 = vpop.f32.mrf.mxu0
        %v2181 = vadd.f32 0.0, %v2180
        %v2182 = vpop.f32.mrf.mxu0
        %v2183 = vadd.f32 0.0, %v2182
        %2184 = vmatmul.bf16.gmra.mxu0 %v2161
        %v2185 = vpop.f32.mrf.mxu0
        %v2186 = vadd.f32 0.0, %v2185
        %v2187 = vpop.f32.mrf.mxu0
        %v2188 = vadd.f32 0.0, %v2187
        %2189 = vmatmul.bf16.gmra.mxu0 %v2164
        %v2190 = vpop.f32.mrf.mxu0
        %v2191 = vadd.f32 0.0, %v2190
        %v2192 = vpop.f32.mrf.mxu0
        %v2193 = vadd.f32 0.0, %v2192
        %2194 = vdwg.mxu0
        %v2195 = vadd.f32 %v1977, %v2091
        %v2196 = vadd.f32 %v1978, %v2093
        %v2197 = vadd.f32 %v1979, %v2096
        %v2198 = vadd.f32 %v1980, %v2098
        %v2199 = vadd.f32 %v1981, %v2101
        %v2200 = vadd.f32 %v1982, %v2103
        %v2201 = vadd.f32 %v1983, %v2106
        %v2202 = vadd.f32 %v1984, %v2108
        %v2203 = vadd.f32 %v1985, %v2176
        %v2204 = vadd.f32 %v1986, %v2178
        %v2205 = vadd.f32 %v1987, %v2181
        %v2206 = vadd.f32 %v1988, %v2183
        %v2207 = vadd.f32 %v1989, %v2186
        %v2208 = vadd.f32 %v1990, %v2188
        %v2209 = vadd.f32 %v1991, %v2191
        %v2210 = vadd.f32 %v1992, %v2193
        %2211 = vst.msk [vmem:[#allocation4] sm:$0xff] %vm1364, %v2195
        %2212 = vst.msk [vmem:[#allocation4 + $0x8] sm:$0xff] %vm1364, %v2196
        %2213 = vst.msk [vmem:[#allocation4 + $0x10] sm:$0xff] %vm1364, %v2197
        %2214 = vst.msk [vmem:[#allocation4 + $0x18] sm:$0xff] %vm1364, %v2198
        %2215 = vst.msk [vmem:[#allocation4 + $0x20] sm:$0xff] %vm1364, %v2199
        %2216 = vst.msk [vmem:[#allocation4 + $0x28] sm:$0xff] %vm1364, %v2200
        %2217 = vst.msk [vmem:[#allocation4 + $0x30] sm:$0xff] %vm1364, %v2201
        %2218 = vst.msk [vmem:[#allocation4 + $0x38] sm:$0xff] %vm1364, %v2202
        %2219 = vst.msk [vmem:[#allocation4 + $0x40] sm:$0xff] %vm1364, %v2203
        %2220 = vst.msk [vmem:[#allocation4 + $0x48] sm:$0xff] %vm1364, %v2204
        %2221 = vst.msk [vmem:[#allocation4 + $0x50] sm:$0xff] %vm1364, %v2205
        %2222 = vst.msk [vmem:[#allocation4 + $0x58] sm:$0xff] %vm1364, %v2206
        %2223 = vst.msk [vmem:[#allocation4 + $0x60] sm:$0xff] %vm1364, %v2207
        %2224 = vst.msk [vmem:[#allocation4 + $0x68] sm:$0xff] %vm1364, %v2208
        %2225 = vst.msk [vmem:[#allocation4 + $0x70] sm:$0xff] %vm1364, %v2209
        %2226 = vst.msk [vmem:[#allocation4 + $0x78] sm:$0xff] %vm1364, %v2210
        %2227 = vst.msk [vmem:[#allocation2] sm:$0xff] %vm1864, %v1576
        %2228 = vst.msk [vmem:[#allocation2 + $0x8] sm:$0xff] %vm1864, %v1577
        %2229 = vst.msk [vmem:[#allocation2 + $0x10] sm:$0xff] %vm1864, %v1578
        %2230 = vst.msk [vmem:[#allocation2 + $0x18] sm:$0xff] %vm1864, %v1579
        %2231 = vst.msk [vmem:[#allocation2 + $0x20] sm:$0xff] %vm1864, %v1580
        %2232 = vst.msk [vmem:[#allocation2 + $0x28] sm:$0xff] %vm1864, %v1581
        %2233 = vst.msk [vmem:[#allocation2 + $0x30] sm:$0xff] %vm1864, %v1582
        %2234 = vst.msk [vmem:[#allocation2 + $0x38] sm:$0xff] %vm1864, %v1583
        %2235 = vst.msk [vmem:[#allocation2 + $0x40] sm:$0xff] %vm1864, %v1584
        %2236 = vst.msk [vmem:[#allocation2 + $0x48] sm:$0xff] %vm1864, %v1585
        %2237 = vst.msk [vmem:[#allocation2 + $0x50] sm:$0xff] %vm1864, %v1586
        %2238 = vst.msk [vmem:[#allocation2 + $0x58] sm:$0xff] %vm1864, %v1587
        %2239 = vst.msk [vmem:[#allocation2 + $0x60] sm:$0xff] %vm1864, %v1588
        %2240 = vst.msk [vmem:[#allocation2 + $0x68] sm:$0xff] %vm1864, %v1589
        %2241 = vst.msk [vmem:[#allocation2 + $0x70] sm:$0xff] %vm1864, %v1590
        %2242 = vst.msk [vmem:[#allocation2 + $0x78] sm:$0xff] %vm1864, %v1591
        %p2243 = scmp.eq.s32.totalorder %s45, 3
        // Predicated region
        $region244: #{unet_attention_block.3} parent=226 // pred_check
          %p2244 = pneg %p2243
        $region245: #{unet_attention_block.3} parent=226 // pred_check_branch
          %2246 = sbr.rel (%p2244) target = $region247
        $region246: #{unet_attention_block.3} parent=226 // pred_region
          %v2247 = vld [vmem:[#allocation4] sm:$0xff]
          %v2248 = vld [vmem:[#allocation4 + $0x8] sm:$0xff]
          %v2249 = vld [vmem:[#allocation4 + $0x10] sm:$0xff]
          %v2250 = vld [vmem:[#allocation4 + $0x18] sm:$0xff]
          %v2251 = vld [vmem:[#allocation4 + $0x20] sm:$0xff]
          %v2252 = vld [vmem:[#allocation4 + $0x28] sm:$0xff]
          %v2253 = vld [vmem:[#allocation4 + $0x30] sm:$0xff]
          %v2254 = vld [vmem:[#allocation4 + $0x38] sm:$0xff]
          %v2255 = vld [vmem:[#allocation4 + $0x40] sm:$0xff]
          %v2256 = vld [vmem:[#allocation4 + $0x48] sm:$0xff]
          %v2257 = vld [vmem:[#allocation4 + $0x50] sm:$0xff]
          %v2258 = vld [vmem:[#allocation4 + $0x58] sm:$0xff]
          %v2259 = vld [vmem:[#allocation4 + $0x60] sm:$0xff]
          %v2260 = vld [vmem:[#allocation4 + $0x68] sm:$0xff]
          %v2261 = vld [vmem:[#allocation4 + $0x70] sm:$0xff]
          %v2262 = vld [vmem:[#allocation4 + $0x78] sm:$0xff]
          %v2263 = vld [vmem:[#allocation3] sm:$0xff]
          %v2264 = vld [vmem:[#allocation3 + $0x8] sm:$0xff]
          %v2265 = vld [vmem:[#allocation3 + $0x10] sm:$0xff]
          %v2266 = vld [vmem:[#allocation3 + $0x18] sm:$0xff]
          %v2267 = vld [vmem:[#allocation3 + $0x20] sm:$0xff]
          %v2268 = vld [vmem:[#allocation3 + $0x28] sm:$0xff]
          %v2269 = vld [vmem:[#allocation3 + $0x30] sm:$0xff]
          %v2270 = vld [vmem:[#allocation3 + $0x38] sm:$0xff]
          %v2271 = vld [vmem:[#allocation3 + $0x40] sm:$0xff]
          %v2272 = vld [vmem:[#allocation3 + $0x48] sm:$0xff]
          %v2273 = vld [vmem:[#allocation3 + $0x50] sm:$0xff]
          %v2274 = vld [vmem:[#allocation3 + $0x58] sm:$0xff]
          %v2275 = vld [vmem:[#allocation3 + $0x60] sm:$0xff]
          %v2276 = vld [vmem:[#allocation3 + $0x68] sm:$0xff]
          %v2277 = vld [vmem:[#allocation3 + $0x70] sm:$0xff]
          %v2278 = vld [vmem:[#allocation3 + $0x78] sm:$0xff]
          %v2279 = vrcp.pop %v2263
          %v2280 = vrcp.pop %v2264
          %v2281 = vrcp.pop %v2265
          %v2282 = vrcp.pop %v2266
          %v2283 = vrcp.pop %v2267
          %v2284 = vrcp.pop %v2268
          %v2285 = vrcp.pop %v2269
          %v2286 = vrcp.pop %v2270
          %v2287 = vrcp.pop %v2271
          %v2288 = vrcp.pop %v2272
          %v2289 = vrcp.pop %v2273
          %v2290 = vrcp.pop %v2274
          %v2291 = vrcp.pop %v2275
          %v2292 = vrcp.pop %v2276
          %v2293 = vrcp.pop %v2277
          %v2294 = vrcp.pop %v2278
          %2296 = vset.pattern.permute.xlu0 0
          %2297 = vperm.xlu0 %2296, %v2279
          %v2298 = vpop.permute.xlu0 %2297
          %2301 = vset.pattern.permute.xlu0 0
          %2302 = vperm.xlu0 %2301, %v2280
          %v2303 = vpop.permute.xlu0 %2302
          %2306 = vset.pattern.permute.xlu0 0
          %2307 = vperm.xlu0 %2306, %v2281
          %v2308 = vpop.permute.xlu0 %2307
          %2311 = vset.pattern.permute.xlu0 0
          %2312 = vperm.xlu0 %2311, %v2282
          %v2313 = vpop.permute.xlu0 %2312
          %2316 = vset.pattern.permute.xlu0 0
          %2317 = vperm.xlu0 %2316, %v2283
          %v2318 = vpop.permute.xlu0 %2317
          %2321 = vset.pattern.permute.xlu0 0
          %2322 = vperm.xlu0 %2321, %v2284
          %v2323 = vpop.permute.xlu0 %2322
          %2326 = vset.pattern.permute.xlu0 0
          %2327 = vperm.xlu0 %2326, %v2285
          %v2328 = vpop.permute.xlu0 %2327
          %2331 = vset.pattern.permute.xlu0 0
          %2332 = vperm.xlu0 %2331, %v2286
          %v2333 = vpop.permute.xlu0 %2332
          %2336 = vset.pattern.permute.xlu0 0
          %2337 = vperm.xlu0 %2336, %v2287
          %v2338 = vpop.permute.xlu0 %2337
          %2341 = vset.pattern.permute.xlu0 0
          %2342 = vperm.xlu0 %2341, %v2288
          %v2343 = vpop.permute.xlu0 %2342
          %2346 = vset.pattern.permute.xlu0 0
          %2347 = vperm.xlu0 %2346, %v2289
          %v2348 = vpop.permute.xlu0 %2347
          %2351 = vset.pattern.permute.xlu0 0
          %2352 = vperm.xlu0 %2351, %v2290
          %v2353 = vpop.permute.xlu0 %2352
          %2356 = vset.pattern.permute.xlu0 0
          %2357 = vperm.xlu0 %2356, %v2291
          %v2358 = vpop.permute.xlu0 %2357
          %2361 = vset.pattern.permute.xlu0 0
          %2362 = vperm.xlu0 %2361, %v2292
          %v2363 = vpop.permute.xlu0 %2362
          %2366 = vset.pattern.permute.xlu0 0
          %2367 = vperm.xlu0 %2366, %v2293
          %v2368 = vpop.permute.xlu0 %2367
          %2371 = vset.pattern.permute.xlu0 0
          %2372 = vperm.xlu0 %2371, %v2294
          %v2373 = vpop.permute.xlu0 %2372
          %v2375 = vmul.f32 %v2247, %v2298
          %v2376 = vmul.f32 %v2248, %v2303
          %v2377 = vmul.f32 %v2249, %v2308
          %v2378 = vmul.f32 %v2250, %v2313
          %v2379 = vmul.f32 %v2251, %v2318
          %v2380 = vmul.f32 %v2252, %v2323
          %v2381 = vmul.f32 %v2253, %v2328
          %v2382 = vmul.f32 %v2254, %v2333
          %v2383 = vmul.f32 %v2255, %v2338
          %v2384 = vmul.f32 %v2256, %v2343
          %v2385 = vmul.f32 %v2257, %v2348
          %v2386 = vmul.f32 %v2258, %v2353
          %v2387 = vmul.f32 %v2259, %v2358
          %v2388 = vmul.f32 %v2260, %v2363
          %v2389 = vmul.f32 %v2261, %v2368
          %v2390 = vmul.f32 %v2262, %v2373
          %v2391 = vpack.c.bf16 %v2375, %v2375
          %v2392 = vpack.c.bf16 %v2376, %v2376
          %v2393 = vpack.c.bf16 %v2377, %v2377
          %v2394 = vpack.c.bf16 %v2378, %v2378
          %v2395 = vpack.c.bf16 %v2379, %v2379
          %v2396 = vpack.c.bf16 %v2380, %v2380
          %v2397 = vpack.c.bf16 %v2381, %v2381
          %v2398 = vpack.c.bf16 %v2382, %v2382
          %v2399 = vpack.c.bf16 %v2383, %v2383
          %v2400 = vpack.c.bf16 %v2384, %v2384
          %v2401 = vpack.c.bf16 %v2385, %v2385
          %v2402 = vpack.c.bf16 %v2386, %v2386
          %v2403 = vpack.c.bf16 %v2387, %v2387
          %v2404 = vpack.c.bf16 %v2388, %v2388
          %v2405 = vpack.c.bf16 %v2389, %v2389
          %v2406 = vpack.c.bf16 %v2390, %v2390
          %v2407 = vld [vmem:[%s7] sm:$0xf]
          %v2408 = vld [vmem:[%s7 + $0x4] sm:$0xf]
          %v2409 = vld [vmem:[%s7 + $0x8] sm:$0xf]
          %v2410 = vld [vmem:[%s7 + $0xc] sm:$0xf]
          %v2411 = vld [vmem:[%s7 + $0x10] sm:$0xf]
          %v2412 = vld [vmem:[%s7 + $0x14] sm:$0xf]
          %v2413 = vld [vmem:[%s7 + $0x18] sm:$0xf]
          %v2414 = vld [vmem:[%s7 + $0x1c] sm:$0xf]
          %v2423 = vunpack.c.l.b16 %v2391
          %v2424 = vunpack.c.l.b16 %v2392
          %v2425 = vunpack.c.l.b16 %v2393
          %v2426 = vunpack.c.l.b16 %v2394
          %v2427 = vunpack.c.l.b16 %v2395
          %v2428 = vunpack.c.l.b16 %v2396
          %v2429 = vunpack.c.l.b16 %v2397
          %v2430 = vunpack.c.l.b16 %v2398
          %v2431 = vpack.c.b16 %v2424, %v2423
          %v2432 = vpack.c.b16 %v2426, %v2425
          %v2433 = vpack.c.b16 %v2428, %v2427
          %v2434 = vpack.c.b16 %v2430, %v2429
          %v2439 = vunpack.c.l.b16 %v2407
          %v2440 = vunpack.c.l.b16 %v2408
          %v2441 = vunpack.c.l.b16 %v2409
          %v2442 = vunpack.c.l.b16 %v2410
          %v2443 = vpack.c.b16 %v2440, %v2439
          %v2444 = vpack.c.b16 %v2442, %v2441
          %v2448 = vsel %vm1364, %v2431, 0
          %v2451 = vsel %vm1364, %v2432, 0
          %v2454 = vsel %vm1364, %v2433, 0
          %v2457 = vsel %vm1364, %v2434, 0
          %2459 = vmatpush.bf16.msra.mxu0 0
          %2460 = vmatpush.bf16.msra.mxu0 0
          %2461 = vmatpush.bf16.msra.mxu0 0
          %2462 = vmatpush.bf16.msra.mxu0 0
          %2463 = vmatpush.bf16.msra.mxu0 0
          %2464 = vmatpush.bf16.msra.mxu0 0
          %2465 = vmatpush.bf16.msra.mxu0 %v2444
          %2466 = vmatpush.bf16.msra.mxu0 %v2443
          %2467 = vmatmul.bf16.gmra.mxu0 %v2448
          %v2468 = vpop.f32.mrf.mxu0
          %v2469 = vadd.f32 0.0, %v2468
          %v2470 = vpop.f32.mrf.mxu0
          %v2471 = vadd.f32 0.0, %v2470
          %2472 = vmatmul.bf16.gmra.mxu0 %v2451
          %v2473 = vpop.f32.mrf.mxu0
          %v2474 = vadd.f32 0.0, %v2473
          %v2475 = vpop.f32.mrf.mxu0
          %v2476 = vadd.f32 0.0, %v2475
          %2477 = vmatmul.bf16.gmra.mxu0 %v2454
          %v2478 = vpop.f32.mrf.mxu0
          %v2479 = vadd.f32 0.0, %v2478
          %v2480 = vpop.f32.mrf.mxu0
          %v2481 = vadd.f32 0.0, %v2480
          %2482 = vmatmul.bf16.gmra.mxu0 %v2457
          %v2483 = vpop.f32.mrf.mxu0
          %v2484 = vadd.f32 0.0, %v2483
          %v2485 = vpop.f32.mrf.mxu0
          %v2486 = vadd.f32 0.0, %v2485
          %2487 = vdwg.mxu0
          %v2496 = vunpack.c.l.b16 %v2399
          %v2497 = vunpack.c.l.b16 %v2400
          %v2498 = vunpack.c.l.b16 %v2401
          %v2499 = vunpack.c.l.b16 %v2402
          %v2500 = vunpack.c.l.b16 %v2403
          %v2501 = vunpack.c.l.b16 %v2404
          %v2502 = vunpack.c.l.b16 %v2405
          %v2503 = vunpack.c.l.b16 %v2406
          %v2504 = vpack.c.b16 %v2497, %v2496
          %v2505 = vpack.c.b16 %v2499, %v2498
          %v2506 = vpack.c.b16 %v2501, %v2500
          %v2507 = vpack.c.b16 %v2503, %v2502
          %v2512 = vunpack.c.l.b16 %v2411
          %v2513 = vunpack.c.l.b16 %v2412
          %v2514 = vunpack.c.l.b16 %v2413
          %v2515 = vunpack.c.l.b16 %v2414
          %v2516 = vpack.c.b16 %v2513, %v2512
          %v2517 = vpack.c.b16 %v2515, %v2514
          %v2521 = vsel %vm1364, %v2504, 0
          %v2524 = vsel %vm1364, %v2505, 0
          %v2527 = vsel %vm1364, %v2506, 0
          %v2530 = vsel %vm1364, %v2507, 0
          %2532 = vmatpush.bf16.msra.mxu0 0
          %2533 = vmatpush.bf16.msra.mxu0 0
          %2534 = vmatpush.bf16.msra.mxu0 0
          %2535 = vmatpush.bf16.msra.mxu0 0
          %2536 = vmatpush.bf16.msra.mxu0 0
          %2537 = vmatpush.bf16.msra.mxu0 0
          %2538 = vmatpush.bf16.msra.mxu0 %v2517
          %2539 = vmatpush.bf16.msra.mxu0 %v2516
          %2540 = vmatmul.bf16.gmra.mxu0 %v2521
          %v2541 = vpop.f32.mrf.mxu0
          %v2542 = vadd.f32 0.0, %v2541
          %v2543 = vpop.f32.mrf.mxu0
          %v2544 = vadd.f32 0.0, %v2543
          %2545 = vmatmul.bf16.gmra.mxu0 %v2524
          %v2546 = vpop.f32.mrf.mxu0
          %v2547 = vadd.f32 0.0, %v2546
          %v2548 = vpop.f32.mrf.mxu0
          %v2549 = vadd.f32 0.0, %v2548
          %2550 = vmatmul.bf16.gmra.mxu0 %v2527
          %v2551 = vpop.f32.mrf.mxu0
          %v2552 = vadd.f32 0.0, %v2551
          %v2553 = vpop.f32.mrf.mxu0
          %v2554 = vadd.f32 0.0, %v2553
          %2555 = vmatmul.bf16.gmra.mxu0 %v2530
          %v2556 = vpop.f32.mrf.mxu0
          %v2557 = vadd.f32 0.0, %v2556
          %v2558 = vpop.f32.mrf.mxu0
          %v2559 = vadd.f32 0.0, %v2558
          %2560 = vdwg.mxu0
          %v2561 = vsel %vm1527, %v2469, 0.0
          %v2562 = vsel %vm1527, %v2542, 0.0
          %v2563 = vadd.f32 %v2561, %v2562
          %v2564 = vsel %vm1527, %v2471, 0.0
          %v2565 = vsel %vm1527, %v2544, 0.0
          %v2566 = vadd.f32 %v2564, %v2565
          %v2567 = vsel %vm1527, %v2474, 0.0
          %v2568 = vsel %vm1527, %v2547, 0.0
          %v2569 = vadd.f32 %v2567, %v2568
          %v2570 = vsel %vm1527, %v2476, 0.0
          %v2571 = vsel %vm1527, %v2549, 0.0
          %v2572 = vadd.f32 %v2570, %v2571
          %v2573 = vsel %vm1527, %v2479, 0.0
          %v2574 = vsel %vm1527, %v2552, 0.0
          %v2575 = vadd.f32 %v2573, %v2574
          %v2576 = vsel %vm1527, %v2481, 0.0
          %v2577 = vsel %vm1527, %v2554, 0.0
          %v2578 = vadd.f32 %v2576, %v2577
          %v2579 = vsel %vm1527, %v2484, 0.0
          %v2580 = vsel %vm1527, %v2557, 0.0
          %v2581 = vadd.f32 %v2579, %v2580
          %v2582 = vsel %vm1527, %v2486, 0.0
          %v2583 = vsel %vm1527, %v2559, 0.0
          %v2584 = vadd.f32 %v2582, %v2583
          %v2585 = vld [vmem:[%s8] sm:$0x1]
          %v2587 = vperm.slane %v2585, 0
          %v2589 = vadd.f32 %v2563, %v2587
          %v2590 = vadd.f32 %v2566, %v2587
          %v2591 = vadd.f32 %v2569, %v2587
          %v2592 = vadd.f32 %v2572, %v2587
          %v2593 = vadd.f32 %v2575, %v2587
          %v2594 = vadd.f32 %v2578, %v2587
          %v2595 = vadd.f32 %v2581, %v2587
          %v2596 = vadd.f32 %v2584, %v2587
          %v2597 = vld [vmem:[%s1221] sm:$0xf]
          %v2598 = vld [vmem:[%s1221 + $0x4] sm:$0xf]
          %v2599 = vld [vmem:[%s1221 + $0x8] sm:$0xf]
          %v2600 = vld [vmem:[%s1221 + $0xc] sm:$0xf]
          %v2601 = vld [vmem:[%s1221 + $0x10] sm:$0xf]
          %v2602 = vld [vmem:[%s1221 + $0x14] sm:$0xf]
          %v2603 = vld [vmem:[%s1221 + $0x18] sm:$0xf]
          %v2604 = vld [vmem:[%s1221 + $0x1c] sm:$0xf]
          %v2605 = vunpack.c.l.bf16 %v2597
          %v2606 = vunpack.c.l.bf16 %v2598
          %v2607 = vunpack.c.l.bf16 %v2599
          %v2608 = vunpack.c.l.bf16 %v2600
          %v2609 = vunpack.c.l.bf16 %v2601
          %v2610 = vunpack.c.l.bf16 %v2602
          %v2611 = vunpack.c.l.bf16 %v2603
          %v2612 = vunpack.c.l.bf16 %v2604
          %v2613 = vadd.f32 %v2589, %v2605
          %v2614 = vadd.f32 %v2590, %v2606
          %v2615 = vadd.f32 %v2591, %v2607
          %v2616 = vadd.f32 %v2592, %v2608
          %v2617 = vadd.f32 %v2593, %v2609
          %v2618 = vadd.f32 %v2594, %v2610
          %v2619 = vadd.f32 %v2595, %v2611
          %v2620 = vadd.f32 %v2596, %v2612
          %v2621 = vld [vmem:[%s9] sm:$0x1]
          %v2622 = vld [vmem:[%s10] sm:$0x1]
          %v2623 = vsel %vm1527, %v2613, 0.0
          %2624 = vadd.xlane.f32.xlu0 %v2623
          %v2625 = vpop.xlane.xlu0 %2624
          %v2626 = vsel %vm1527, %v2614, 0.0
          %2627 = vadd.xlane.f32.xlu0 %v2626
          %v2628 = vpop.xlane.xlu0 %2627
          %v2629 = vsel %vm1527, %v2615, 0.0
          %2630 = vadd.xlane.f32.xlu0 %v2629
          %v2631 = vpop.xlane.xlu0 %2630
          %v2632 = vsel %vm1527, %v2616, 0.0
          %2633 = vadd.xlane.f32.xlu0 %v2632
          %v2634 = vpop.xlane.xlu0 %2633
          %v2635 = vsel %vm1527, %v2617, 0.0
          %2636 = vadd.xlane.f32.xlu0 %v2635
          %v2637 = vpop.xlane.xlu0 %2636
          %v2638 = vsel %vm1527, %v2618, 0.0
          %2639 = vadd.xlane.f32.xlu0 %v2638
          %v2640 = vpop.xlane.xlu0 %2639
          %v2641 = vsel %vm1527, %v2619, 0.0
          %2642 = vadd.xlane.f32.xlu0 %v2641
          %v2643 = vpop.xlane.xlu0 %2642
          %v2644 = vsel %vm1527, %v2620, 0.0
          %2645 = vadd.xlane.f32.xlu0 %v2644
          %v2646 = vpop.xlane.xlu0 %2645
          %v2647 = vrcp.pop 64.0
          %v2648 = vmul.f32 64.0, %v2647
          %v2649 = vsub.f32 1.0, %v2648
          %v2650 = vmul.f32 %v2647, %v2649
          %v2651 = vadd.f32 %v2647, %v2650
          %vm2652 = vweird.f32 %v2647
          %v2653 = vsel %vm2652, %v2647, %v2651
          %v2654 = vmul.f32 %v2625, %v2653
          %v2655 = vmul.f32 %v2628, %v2653
          %v2656 = vmul.f32 %v2631, %v2653
          %v2657 = vmul.f32 %v2634, %v2653
          %v2658 = vmul.f32 %v2637, %v2653
          %v2659 = vmul.f32 %v2640, %v2653
          %v2660 = vmul.f32 %v2643, %v2653
          %v2661 = vmul.f32 %v2646, %v2653
          %v2662 = vsub.f32 %v2613, %v2654
          %v2663 = vsub.f32 %v2614, %v2655
          %v2664 = vsub.f32 %v2615, %v2656
          %v2665 = vsub.f32 %v2616, %v2657
          %v2666 = vsub.f32 %v2617, %v2658
          %v2667 = vsub.f32 %v2618, %v2659
          %v2668 = vsub.f32 %v2619, %v2660
          %v2669 = vsub.f32 %v2620, %v2661
          %v2670 = vmul.f32 %v2662, %v2662
          %v2671 = vmul.f32 %v2663, %v2663
          %v2672 = vmul.f32 %v2664, %v2664
          %v2673 = vmul.f32 %v2665, %v2665
          %v2674 = vmul.f32 %v2666, %v2666
          %v2675 = vmul.f32 %v2667, %v2667
          %v2676 = vmul.f32 %v2668, %v2668
          %v2677 = vmul.f32 %v2669, %v2669
          %v2678 = vsel %vm1527, %v2670, 0.0
          %2679 = vadd.xlane.f32.xlu0 %v2678
          %v2680 = vpop.xlane.xlu0 %2679
          %v2681 = vsel %vm1527, %v2671, 0.0
          %2682 = vadd.xlane.f32.xlu0 %v2681
          %v2683 = vpop.xlane.xlu0 %2682
          %v2684 = vsel %vm1527, %v2672, 0.0
          %2685 = vadd.xlane.f32.xlu0 %v2684
          %v2686 = vpop.xlane.xlu0 %2685
          %v2687 = vsel %vm1527, %v2673, 0.0
          %2688 = vadd.xlane.f32.xlu0 %v2687
          %v2689 = vpop.xlane.xlu0 %2688
          %v2690 = vsel %vm1527, %v2674, 0.0
          %2691 = vadd.xlane.f32.xlu0 %v2690
          %v2692 = vpop.xlane.xlu0 %2691
          %v2693 = vsel %vm1527, %v2675, 0.0
          %2694 = vadd.xlane.f32.xlu0 %v2693
          %v2695 = vpop.xlane.xlu0 %2694
          %v2696 = vsel %vm1527, %v2676, 0.0
          %2697 = vadd.xlane.f32.xlu0 %v2696
          %v2698 = vpop.xlane.xlu0 %2697
          %v2699 = vsel %vm1527, %v2677, 0.0
          %2700 = vadd.xlane.f32.xlu0 %v2699
          %v2701 = vpop.xlane.xlu0 %2700
          %v2702 = vmul.f32 %v2680, %v2653
          %v2703 = vmul.f32 %v2683, %v2653
          %v2704 = vmul.f32 %v2686, %v2653
          %v2705 = vmul.f32 %v2689, %v2653
          %v2706 = vmul.f32 %v2692, %v2653
          %v2707 = vmul.f32 %v2695, %v2653
          %v2708 = vmul.f32 %v2698, %v2653
          %v2709 = vmul.f32 %v2701, %v2653
          %v2710 = vadd.f32 %v2702, 1e-05
          %v2711 = vadd.f32 %v2703, 1e-05
          %v2712 = vadd.f32 %v2704, 1e-05
          %v2713 = vadd.f32 %v2705, 1e-05
          %v2714 = vadd.f32 %v2706, 1e-05
          %v2715 = vadd.f32 %v2707, 1e-05
          %v2716 = vadd.f32 %v2708, 1e-05
          %v2717 = vadd.f32 %v2709, 1e-05
          %v2718 = vrsqrt.pop %v2710
          %v2719 = vmul.f32 %v2718, %v2710
          %v2720 = vmul.f32 %v2719, %v2718
          %v2721 = vmul.f32 0.5, %v2720
          %v2722 = vsub.f32 1.5, %v2721
          %v2723 = vmul.f32 %v2718, %v2722
          %vm2724 = vweird.f32 %v2710
          %vm2725 = vweird.f32 %v2718
          %vm2726 = vmor %vm2724, %vm2725
          %v2727 = vsel %vm2726, %v2718, %v2723
          %v2728 = vrsqrt.pop %v2711
          %v2729 = vmul.f32 %v2728, %v2711
          %v2730 = vmul.f32 %v2729, %v2728
          %v2731 = vmul.f32 0.5, %v2730
          %v2732 = vsub.f32 1.5, %v2731
          %v2733 = vmul.f32 %v2728, %v2732
          %vm2734 = vweird.f32 %v2711
          %vm2735 = vweird.f32 %v2728
          %vm2736 = vmor %vm2734, %vm2735
          %v2737 = vsel %vm2736, %v2728, %v2733
          %v2738 = vrsqrt.pop %v2712
          %v2739 = vmul.f32 %v2738, %v2712
          %v2740 = vmul.f32 %v2739, %v2738
          %v2741 = vmul.f32 0.5, %v2740
          %v2742 = vsub.f32 1.5, %v2741
          %v2743 = vmul.f32 %v2738, %v2742
          %vm2744 = vweird.f32 %v2712
          %vm2745 = vweird.f32 %v2738
          %vm2746 = vmor %vm2744, %vm2745
          %v2747 = vsel %vm2746, %v2738, %v2743
          %v2748 = vrsqrt.pop %v2713
          %v2749 = vmul.f32 %v2748, %v2713
          %v2750 = vmul.f32 %v2749, %v2748
          %v2751 = vmul.f32 0.5, %v2750
          %v2752 = vsub.f32 1.5, %v2751
          %v2753 = vmul.f32 %v2748, %v2752
          %vm2754 = vweird.f32 %v2713
          %vm2755 = vweird.f32 %v2748
          %vm2756 = vmor %vm2754, %vm2755
          %v2757 = vsel %vm2756, %v2748, %v2753
          %v2758 = vrsqrt.pop %v2714
          %v2759 = vmul.f32 %v2758, %v2714
          %v2760 = vmul.f32 %v2759, %v2758
          %v2761 = vmul.f32 0.5, %v2760
          %v2762 = vsub.f32 1.5, %v2761
          %v2763 = vmul.f32 %v2758, %v2762
          %vm2764 = vweird.f32 %v2714
          %vm2765 = vweird.f32 %v2758
          %vm2766 = vmor %vm2764, %vm2765
          %v2767 = vsel %vm2766, %v2758, %v2763
          %v2768 = vrsqrt.pop %v2715
          %v2769 = vmul.f32 %v2768, %v2715
          %v2770 = vmul.f32 %v2769, %v2768
          %v2771 = vmul.f32 0.5, %v2770
          %v2772 = vsub.f32 1.5, %v2771
          %v2773 = vmul.f32 %v2768, %v2772
          %vm2774 = vweird.f32 %v2715
          %vm2775 = vweird.f32 %v2768
          %vm2776 = vmor %vm2774, %vm2775
          %v2777 = vsel %vm2776, %v2768, %v2773
          %v2778 = vrsqrt.pop %v2716
          %v2779 = vmul.f32 %v2778, %v2716
          %v2780 = vmul.f32 %v2779, %v2778
          %v2781 = vmul.f32 0.5, %v2780
          %v2782 = vsub.f32 1.5, %v2781
          %v2783 = vmul.f32 %v2778, %v2782
          %vm2784 = vweird.f32 %v2716
          %vm2785 = vweird.f32 %v2778
          %vm2786 = vmor %vm2784, %vm2785
          %v2787 = vsel %vm2786, %v2778, %v2783
          %v2788 = vrsqrt.pop %v2717
          %v2789 = vmul.f32 %v2788, %v2717
          %v2790 = vmul.f32 %v2789, %v2788
          %v2791 = vmul.f32 0.5, %v2790
          %v2792 = vsub.f32 1.5, %v2791
          %v2793 = vmul.f32 %v2788, %v2792
          %vm2794 = vweird.f32 %v2717
          %vm2795 = vweird.f32 %v2788
          %vm2796 = vmor %vm2794, %vm2795
          %v2797 = vsel %vm2796, %v2788, %v2793
          %v2798 = vmul.f32 %v2662, %v2727
          %v2799 = vmul.f32 %v2663, %v2737
          %v2800 = vmul.f32 %v2664, %v2747
          %v2801 = vmul.f32 %v2665, %v2757
          %v2802 = vmul.f32 %v2666, %v2767
          %v2803 = vmul.f32 %v2667, %v2777
          %v2804 = vmul.f32 %v2668, %v2787
          %v2805 = vmul.f32 %v2669, %v2797
          %v2807 = vperm.slane %v2621, 0
          %v2809 = vmul.f32 %v2798, %v2807
          %v2810 = vmul.f32 %v2799, %v2807
          %v2811 = vmul.f32 %v2800, %v2807
          %v2812 = vmul.f32 %v2801, %v2807
          %v2813 = vmul.f32 %v2802, %v2807
          %v2814 = vmul.f32 %v2803, %v2807
          %v2815 = vmul.f32 %v2804, %v2807
          %v2816 = vmul.f32 %v2805, %v2807
          %v2818 = vperm.slane %v2622, 0
          %v2820 = vadd.f32 %v2809, %v2818
          %v2821 = vadd.f32 %v2810, %v2818
          %v2822 = vadd.f32 %v2811, %v2818
          %v2823 = vadd.f32 %v2812, %v2818
          %v2824 = vadd.f32 %v2813, %v2818
          %v2825 = vadd.f32 %v2814, %v2818
          %v2826 = vadd.f32 %v2815, %v2818
          %v2827 = vadd.f32 %v2816, %v2818
          %v2828 = vpack.c.bf16 %v2821, %v2820
          %v2829 = vpack.c.bf16 %v2823, %v2822
          %v2830 = vpack.c.bf16 %v2825, %v2824
          %v2831 = vpack.c.bf16 %v2827, %v2826
          %v2832 = vld [vmem:[%s11] sm:$0xf]
          %v2833 = vld [vmem:[%s11 + $0x4] sm:$0xf]
          %v2834 = vld [vmem:[%s11 + $0x8] sm:$0xf]
          %v2835 = vld [vmem:[%s11 + $0xc] sm:$0xf]
          %v2836 = vld [vmem:[%s11 + $0x10] sm:$0xf]
          %v2837 = vld [vmem:[%s11 + $0x14] sm:$0xf]
          %v2838 = vld [vmem:[%s11 + $0x18] sm:$0xf]
          %v2839 = vld [vmem:[%s11 + $0x1c] sm:$0xf]
          %v2848 = vunpack.c.l.b16 %v2832
          %v2849 = vunpack.c.l.b16 %v2833
          %v2850 = vunpack.c.l.b16 %v2834
          %v2851 = vunpack.c.l.b16 %v2835
          %v2852 = vunpack.c.l.b16 %v2836
          %v2853 = vunpack.c.l.b16 %v2837
          %v2854 = vunpack.c.l.b16 %v2838
          %v2855 = vunpack.c.l.b16 %v2839
          %v2856 = vpack.c.b16 %v2849, %v2848
          %v2857 = vpack.c.b16 %v2851, %v2850
          %v2858 = vpack.c.b16 %v2853, %v2852
          %v2859 = vpack.c.b16 %v2855, %v2854
          %v2865 = vsel %vm1527, %v2828, 0
          %v2868 = vsel %vm1527, %v2829, 0
          %v2871 = vsel %vm1527, %v2830, 0
          %v2874 = vsel %vm1527, %v2831, 0
          %2876 = vmatpush.bf16.msra.mxu0 0
          %2877 = vmatpush.bf16.msra.mxu0 0
          %2878 = vmatpush.bf16.msra.mxu0 0
          %2879 = vmatpush.bf16.msra.mxu0 0
          %2880 = vmatpush.bf16.msra.mxu0 %v2859
          %2881 = vmatpush.bf16.msra.mxu0 %v2858
          %2882 = vmatpush.bf16.msra.mxu0 %v2857
          %2883 = vmatpush.bf16.msra.mxu0 %v2856
          %2884 = vmatmul.bf16.gmra.mxu0 %v2865
          %v2885 = vpop.f32.mrf.mxu0
          %v2886 = vadd.f32 0.0, %v2885
          %v2887 = vpop.f32.mrf.mxu0
          %v2888 = vadd.f32 0.0, %v2887
          %2889 = vmatmul.bf16.gmra.mxu0 %v2868
          %v2890 = vpop.f32.mrf.mxu0
          %v2891 = vadd.f32 0.0, %v2890
          %v2892 = vpop.f32.mrf.mxu0
          %v2893 = vadd.f32 0.0, %v2892
          %2894 = vmatmul.bf16.gmra.mxu0 %v2871
          %v2895 = vpop.f32.mrf.mxu0
          %v2896 = vadd.f32 0.0, %v2895
          %v2897 = vpop.f32.mrf.mxu0
          %v2898 = vadd.f32 0.0, %v2897
          %2899 = vmatmul.bf16.gmra.mxu0 %v2874
          %v2900 = vpop.f32.mrf.mxu0
          %v2901 = vadd.f32 0.0, %v2900
          %v2902 = vpop.f32.mrf.mxu0
          %v2903 = vadd.f32 0.0, %v2902
          %2904 = vdwg.mxu0
          %v2905 = vpack.c.bf16 %v2886, %v2886
          %v2906 = vpack.c.bf16 %v2888, %v2888
          %v2907 = vpack.c.bf16 %v2891, %v2891
          %v2908 = vpack.c.bf16 %v2893, %v2893
          %v2909 = vpack.c.bf16 %v2896, %v2896
          %v2910 = vpack.c.bf16 %v2898, %v2898
          %v2911 = vpack.c.bf16 %v2901, %v2901
          %v2912 = vpack.c.bf16 %v2903, %v2903
          %2921 = vrot.lane.b32.xlu0 %v2905, 96
          %v2922 = vpop.permute.xlu0 %2921
          %2923 = vrot.lane.b32.xlu0 %v2906, 96
          %v2924 = vpop.permute.xlu0 %2923
          %2925 = vrot.lane.b32.xlu0 %v2907, 96
          %v2926 = vpop.permute.xlu0 %2925
          %2927 = vrot.lane.b32.xlu0 %v2908, 96
          %v2928 = vpop.permute.xlu0 %2927
          %2929 = vrot.lane.b32.xlu0 %v2909, 96
          %v2930 = vpop.permute.xlu0 %2929
          %2931 = vrot.lane.b32.xlu0 %v2910, 96
          %v2932 = vpop.permute.xlu0 %2931
          %2933 = vrot.lane.b32.xlu0 %v2911, 96
          %v2934 = vpop.permute.xlu0 %2933
          %2935 = vrot.lane.b32.xlu0 %v2912, 96
          %v2936 = vpop.permute.xlu0 %2935
          %v2937 = vld [vmem:[%s1230] sm:$0xf]
          %v2938 = vld [vmem:[%s1230 + $0x4] sm:$0xf]
          %v2939 = vunpack.c.l.b16 %v2905
          %v2940 = vunpack.c.l.b16 %v2906
          %v2941 = vunpack.c.l.b16 %v2907
          %v2942 = vunpack.c.l.b16 %v2908
          %v2943 = vunpack.c.l.b16 %v2909
          %v2944 = vunpack.c.l.b16 %v2910
          %v2945 = vunpack.c.l.b16 %v2911
          %v2946 = vunpack.c.l.b16 %v2912
          %v2947 = vpack.c.b16 %v2940, %v2939
          %v2948 = vpack.c.b16 %v2942, %v2941
          %v2949 = vpack.c.b16 %v2944, %v2943
          %v2950 = vpack.c.b16 %v2946, %v2945
          %v2952 = vsel %vm1364, %v2947, 0
          %v2955 = vsel %vm1364, %v2948, 0
          %v2958 = vsel %vm1364, %v2949, 0
          %v2961 = vsel %vm1364, %v2950, 0
          %v2964 = vsel %vm1364, %v2937, 0
          %2966 = vmatpush.bf16.xpose.msra.mxu0 0
          %2967 = vmatpush.bf16.xpose.msra.mxu0 0
          %2968 = vmatpush.bf16.xpose.msra.mxu0 0
          %2969 = vmatpush.bf16.xpose.msra.mxu0 0
          %2970 = vmatpush.bf16.xpose.msra.mxu0 0
          %2971 = vmatpush.bf16.xpose.msra.mxu0 0
          %2972 = vmatpush.bf16.xpose.msra.mxu0 0
          %2973 = vmatpush.bf16.xpose.msra.mxu0 %v2964
          %2974 = vmatmul.bf16.gmra.mxu0 %v2952
          %v2975 = vpop.f32.mrf.mxu0
          %v2976 = vadd.f32 0.0, %v2975
          %v2977 = vpop.f32.mrf.mxu0
          %v2978 = vadd.f32 0.0, %v2977
          %2979 = vmatmul.bf16.gmra.mxu0 %v2955
          %v2980 = vpop.f32.mrf.mxu0
          %v2981 = vadd.f32 0.0, %v2980
          %v2982 = vpop.f32.mrf.mxu0
          %v2983 = vadd.f32 0.0, %v2982
          %2984 = vmatmul.bf16.gmra.mxu0 %v2958
          %v2985 = vpop.f32.mrf.mxu0
          %v2986 = vadd.f32 0.0, %v2985
          %v2987 = vpop.f32.mrf.mxu0
          %v2988 = vadd.f32 0.0, %v2987
          %2989 = vmatmul.bf16.gmra.mxu0 %v2961
          %v2990 = vpop.f32.mrf.mxu0
          %v2991 = vadd.f32 0.0, %v2990
          %v2992 = vpop.f32.mrf.mxu0
          %v2993 = vadd.f32 0.0, %v2992
          %2994 = vdwg.mxu0
          %v2995 = vunpack.c.l.b16 %v2922
          %v2996 = vunpack.c.l.b16 %v2924
          %v2997 = vunpack.c.l.b16 %v2926
          %v2998 = vunpack.c.l.b16 %v2928
          %v2999 = vunpack.c.l.b16 %v2930
          %v3000 = vunpack.c.l.b16 %v2932
          %v3001 = vunpack.c.l.b16 %v2934
          %v3002 = vunpack.c.l.b16 %v2936
          %v3003 = vpack.c.b16 %v2996, %v2995
          %v3004 = vpack.c.b16 %v2998, %v2997
          %v3005 = vpack.c.b16 %v3000, %v2999
          %v3006 = vpack.c.b16 %v3002, %v3001
          %v3008 = vsel %vm1364, %v3003, 0
          %v3011 = vsel %vm1364, %v3004, 0
          %v3014 = vsel %vm1364, %v3005, 0
          %v3017 = vsel %vm1364, %v3006, 0
          %v3020 = vsel %vm1364, %v2938, 0
          %3022 = vmatpush.bf16.xpose.msra.mxu0 0
          %3023 = vmatpush.bf16.xpose.msra.mxu0 0
          %3024 = vmatpush.bf16.xpose.msra.mxu0 0
          %3025 = vmatpush.bf16.xpose.msra.mxu0 0
          %3026 = vmatpush.bf16.xpose.msra.mxu0 0
          %3027 = vmatpush.bf16.xpose.msra.mxu0 0
          %3028 = vmatpush.bf16.xpose.msra.mxu0 0
          %3029 = vmatpush.bf16.xpose.msra.mxu0 %v3020
          %3030 = vmatmul.bf16.gmra.mxu0 %v3008
          %v3031 = vpop.f32.mrf.mxu0
          %v3032 = vadd.f32 0.0, %v3031
          %v3033 = vpop.f32.mrf.mxu0
          %v3034 = vadd.f32 0.0, %v3033
          %3035 = vmatmul.bf16.gmra.mxu0 %v3011
          %v3036 = vpop.f32.mrf.mxu0
          %v3037 = vadd.f32 0.0, %v3036
          %v3038 = vpop.f32.mrf.mxu0
          %v3039 = vadd.f32 0.0, %v3038
          %3040 = vmatmul.bf16.gmra.mxu0 %v3014
          %v3041 = vpop.f32.mrf.mxu0
          %v3042 = vadd.f32 0.0, %v3041
          %v3043 = vpop.f32.mrf.mxu0
          %v3044 = vadd.f32 0.0, %v3043
          %3045 = vmatmul.bf16.gmra.mxu0 %v3017
          %v3046 = vpop.f32.mrf.mxu0
          %v3047 = vadd.f32 0.0, %v3046
          %v3048 = vpop.f32.mrf.mxu0
          %v3049 = vadd.f32 0.0, %v3048
          %3050 = vdwg.mxu0
          %vm3051 = vcmask 64512
          %v3052 = vsel %vm3051, %v2976, -inf
          %3053 = vmax.xlane.f32.xlu0 %v3052
          %v3054 = vpop.xlane.xlu0 %3053
          %v3055 = vsel %vm3051, %v2978, -inf
          %3056 = vmax.xlane.f32.xlu0 %v3055
          %v3057 = vpop.xlane.xlu0 %3056
          %v3058 = vsel %vm3051, %v2981, -inf
          %3059 = vmax.xlane.f32.xlu0 %v3058
          %v3060 = vpop.xlane.xlu0 %3059
          %v3061 = vsel %vm3051, %v2983, -inf
          %3062 = vmax.xlane.f32.xlu0 %v3061
          %v3063 = vpop.xlane.xlu0 %3062
          %v3064 = vsel %vm3051, %v2986, -inf
          %3065 = vmax.xlane.f32.xlu0 %v3064
          %v3066 = vpop.xlane.xlu0 %3065
          %v3067 = vsel %vm3051, %v2988, -inf
          %3068 = vmax.xlane.f32.xlu0 %v3067
          %v3069 = vpop.xlane.xlu0 %3068
          %v3070 = vsel %vm3051, %v2991, -inf
          %3071 = vmax.xlane.f32.xlu0 %v3070
          %v3072 = vpop.xlane.xlu0 %3071
          %v3073 = vsel %vm3051, %v2993, -inf
          %3074 = vmax.xlane.f32.xlu0 %v3073
          %v3075 = vpop.xlane.xlu0 %3074
          %v3076 = vsel %vm3051, %v3032, -inf
          %3077 = vmax.xlane.f32.xlu0 %v3076
          %v3078 = vpop.xlane.xlu0 %3077
          %v3079 = vsel %vm3051, %v3034, -inf
          %3080 = vmax.xlane.f32.xlu0 %v3079
          %v3081 = vpop.xlane.xlu0 %3080
          %v3082 = vsel %vm3051, %v3037, -inf
          %3083 = vmax.xlane.f32.xlu0 %v3082
          %v3084 = vpop.xlane.xlu0 %3083
          %v3085 = vsel %vm3051, %v3039, -inf
          %3086 = vmax.xlane.f32.xlu0 %v3085
          %v3087 = vpop.xlane.xlu0 %3086
          %v3088 = vsel %vm3051, %v3042, -inf
          %3089 = vmax.xlane.f32.xlu0 %v3088
          %v3090 = vpop.xlane.xlu0 %3089
          %v3091 = vsel %vm3051, %v3044, -inf
          %3092 = vmax.xlane.f32.xlu0 %v3091
          %v3093 = vpop.xlane.xlu0 %3092
          %v3094 = vsel %vm3051, %v3047, -inf
          %3095 = vmax.xlane.f32.xlu0 %v3094
          %v3096 = vpop.xlane.xlu0 %3095
          %v3097 = vsel %vm3051, %v3049, -inf
          %3098 = vmax.xlane.f32.xlu0 %v3097
          %v3099 = vpop.xlane.xlu0 %3098
          %v3100 = vsub.f32 %v2976, %v3054
          %v3101 = vsub.f32 %v2978, %v3057
          %v3102 = vsub.f32 %v2981, %v3060
          %v3103 = vsub.f32 %v2983, %v3063
          %v3104 = vsub.f32 %v2986, %v3066
          %v3105 = vsub.f32 %v2988, %v3069
          %v3106 = vsub.f32 %v2991, %v3072
          %v3107 = vsub.f32 %v2993, %v3075
          %v3108 = vsub.f32 %v3032, %v3078
          %v3109 = vsub.f32 %v3034, %v3081
          %v3110 = vsub.f32 %v3037, %v3084
          %v3111 = vsub.f32 %v3039, %v3087
          %v3112 = vsub.f32 %v3042, %v3090
          %v3113 = vsub.f32 %v3044, %v3093
          %v3114 = vsub.f32 %v3047, %v3096
          %v3115 = vsub.f32 %v3049, %v3099
          %v3116 = vmul.f32 %v3100, 1.442695
          %v3117 = vpow.pop %v3116
          %v3118 = vmul.f32 %v3101, 1.442695
          %v3119 = vpow.pop %v3118
          %v3120 = vmul.f32 %v3102, 1.442695
          %v3121 = vpow.pop %v3120
          %v3122 = vmul.f32 %v3103, 1.442695
          %v3123 = vpow.pop %v3122
          %v3124 = vmul.f32 %v3104, 1.442695
          %v3125 = vpow.pop %v3124
          %v3126 = vmul.f32 %v3105, 1.442695
          %v3127 = vpow.pop %v3126
          %v3128 = vmul.f32 %v3106, 1.442695
          %v3129 = vpow.pop %v3128
          %v3130 = vmul.f32 %v3107, 1.442695
          %v3131 = vpow.pop %v3130
          %v3132 = vmul.f32 %v3108, 1.442695
          %v3133 = vpow.pop %v3132
          %v3134 = vmul.f32 %v3109, 1.442695
          %v3135 = vpow.pop %v3134
          %v3136 = vmul.f32 %v3110, 1.442695
          %v3137 = vpow.pop %v3136
          %v3138 = vmul.f32 %v3111, 1.442695
          %v3139 = vpow.pop %v3138
          %v3140 = vmul.f32 %v3112, 1.442695
          %v3141 = vpow.pop %v3140
          %v3142 = vmul.f32 %v3113, 1.442695
          %v3143 = vpow.pop %v3142
          %v3144 = vmul.f32 %v3114, 1.442695
          %v3145 = vpow.pop %v3144
          %v3146 = vmul.f32 %v3115, 1.442695
          %v3147 = vpow.pop %v3146
          %v3148 = vsel %vm3051, %v3117, 0.0
          %3149 = vadd.xlane.f32.xlu0 %v3148
          %v3150 = vpop.xlane.xlu0 %3149
          %v3151 = vsel %vm3051, %v3119, 0.0
          %3152 = vadd.xlane.f32.xlu0 %v3151
          %v3153 = vpop.xlane.xlu0 %3152
          %v3154 = vsel %vm3051, %v3121, 0.0
          %3155 = vadd.xlane.f32.xlu0 %v3154
          %v3156 = vpop.xlane.xlu0 %3155
          %v3157 = vsel %vm3051, %v3123, 0.0
          %3158 = vadd.xlane.f32.xlu0 %v3157
          %v3159 = vpop.xlane.xlu0 %3158
          %v3160 = vsel %vm3051, %v3125, 0.0
          %3161 = vadd.xlane.f32.xlu0 %v3160
          %v3162 = vpop.xlane.xlu0 %3161
          %v3163 = vsel %vm3051, %v3127, 0.0
          %3164 = vadd.xlane.f32.xlu0 %v3163
          %v3165 = vpop.xlane.xlu0 %3164
          %v3166 = vsel %vm3051, %v3129, 0.0
          %3167 = vadd.xlane.f32.xlu0 %v3166
          %v3168 = vpop.xlane.xlu0 %3167
          %v3169 = vsel %vm3051, %v3131, 0.0
          %3170 = vadd.xlane.f32.xlu0 %v3169
          %v3171 = vpop.xlane.xlu0 %3170
          %v3172 = vsel %vm3051, %v3133, 0.0
          %3173 = vadd.xlane.f32.xlu0 %v3172
          %v3174 = vpop.xlane.xlu0 %3173
          %v3175 = vsel %vm3051, %v3135, 0.0
          %3176 = vadd.xlane.f32.xlu0 %v3175
          %v3177 = vpop.xlane.xlu0 %3176
          %v3178 = vsel %vm3051, %v3137, 0.0
          %3179 = vadd.xlane.f32.xlu0 %v3178
          %v3180 = vpop.xlane.xlu0 %3179
          %v3181 = vsel %vm3051, %v3139, 0.0
          %3182 = vadd.xlane.f32.xlu0 %v3181
          %v3183 = vpop.xlane.xlu0 %3182
          %v3184 = vsel %vm3051, %v3141, 0.0
          %3185 = vadd.xlane.f32.xlu0 %v3184
          %v3186 = vpop.xlane.xlu0 %3185
          %v3187 = vsel %vm3051, %v3143, 0.0
          %3188 = vadd.xlane.f32.xlu0 %v3187
          %v3189 = vpop.xlane.xlu0 %3188
          %v3190 = vsel %vm3051, %v3145, 0.0
          %3191 = vadd.xlane.f32.xlu0 %v3190
          %v3192 = vpop.xlane.xlu0 %3191
          %v3193 = vsel %vm3051, %v3147, 0.0
          %3194 = vadd.xlane.f32.xlu0 %v3193
          %v3195 = vpop.xlane.xlu0 %3194
          %v3196 = vrcp.pop %v3150
          %v3197 = vmul.f32 %v3150, %v3196
          %v3198 = vsub.f32 1.0, %v3197
          %v3199 = vmul.f32 %v3196, %v3198
          %v3200 = vadd.f32 %v3196, %v3199
          %vm3201 = vweird.f32 %v3150
          %vm3202 = vweird.f32 %v3196
          %vm3203 = vmor %vm3201, %vm3202
          %v3204 = vsel %vm3203, %v3196, %v3200
          %v3205 = vand.u32 2147483647, %v3150
          %vm3206 = vcmp.eq.f32.partialorder %v3205, 8.507059e+37
          %v3207 = vand.u32 %v3150, 2147483648
          %v3208 = vor.u32 1.1754944e-38, %v3207
          %v3209 = vsel %vm3206, %v3208, %v3204
          %v3210 = vmul.f32 %v3117, %v3209
          %v3211 = vrcp.pop %v3153
          %v3212 = vmul.f32 %v3153, %v3211
          %v3213 = vsub.f32 1.0, %v3212
          %v3214 = vmul.f32 %v3211, %v3213
          %v3215 = vadd.f32 %v3211, %v3214
          %vm3216 = vweird.f32 %v3153
          %vm3217 = vweird.f32 %v3211
          %vm3218 = vmor %vm3216, %vm3217
          %v3219 = vsel %vm3218, %v3211, %v3215
          %v3220 = vand.u32 2147483647, %v3153
          %vm3221 = vcmp.eq.f32.partialorder %v3220, 8.507059e+37
          %v3222 = vand.u32 %v3153, 2147483648
          %v3223 = vor.u32 1.1754944e-38, %v3222
          %v3224 = vsel %vm3221, %v3223, %v3219
          %v3225 = vmul.f32 %v3119, %v3224
          %v3226 = vrcp.pop %v3156
          %v3227 = vmul.f32 %v3156, %v3226
          %v3228 = vsub.f32 1.0, %v3227
          %v3229 = vmul.f32 %v3226, %v3228
          %v3230 = vadd.f32 %v3226, %v3229
          %vm3231 = vweird.f32 %v3156
          %vm3232 = vweird.f32 %v3226
          %vm3233 = vmor %vm3231, %vm3232
          %v3234 = vsel %vm3233, %v3226, %v3230
          %v3235 = vand.u32 2147483647, %v3156
          %vm3236 = vcmp.eq.f32.partialorder %v3235, 8.507059e+37
          %v3237 = vand.u32 %v3156, 2147483648
          %v3238 = vor.u32 1.1754944e-38, %v3237
          %v3239 = vsel %vm3236, %v3238, %v3234
          %v3240 = vmul.f32 %v3121, %v3239
          %v3241 = vrcp.pop %v3159
          %v3242 = vmul.f32 %v3159, %v3241
          %v3243 = vsub.f32 1.0, %v3242
          %v3244 = vmul.f32 %v3241, %v3243
          %v3245 = vadd.f32 %v3241, %v3244
          %vm3246 = vweird.f32 %v3159
          %vm3247 = vweird.f32 %v3241
          %vm3248 = vmor %vm3246, %vm3247
          %v3249 = vsel %vm3248, %v3241, %v3245
          %v3250 = vand.u32 2147483647, %v3159
          %vm3251 = vcmp.eq.f32.partialorder %v3250, 8.507059e+37
          %v3252 = vand.u32 %v3159, 2147483648
          %v3253 = vor.u32 1.1754944e-38, %v3252
          %v3254 = vsel %vm3251, %v3253, %v3249
          %v3255 = vmul.f32 %v3123, %v3254
          %v3256 = vrcp.pop %v3162
          %v3257 = vmul.f32 %v3162, %v3256
          %v3258 = vsub.f32 1.0, %v3257
          %v3259 = vmul.f32 %v3256, %v3258
          %v3260 = vadd.f32 %v3256, %v3259
          %vm3261 = vweird.f32 %v3162
          %vm3262 = vweird.f32 %v3256
          %vm3263 = vmor %vm3261, %vm3262
          %v3264 = vsel %vm3263, %v3256, %v3260
          %v3265 = vand.u32 2147483647, %v3162
          %vm3266 = vcmp.eq.f32.partialorder %v3265, 8.507059e+37
          %v3267 = vand.u32 %v3162, 2147483648
          %v3268 = vor.u32 1.1754944e-38, %v3267
          %v3269 = vsel %vm3266, %v3268, %v3264
          %v3270 = vmul.f32 %v3125, %v3269
          %v3271 = vrcp.pop %v3165
          %v3272 = vmul.f32 %v3165, %v3271
          %v3273 = vsub.f32 1.0, %v3272
          %v3274 = vmul.f32 %v3271, %v3273
          %v3275 = vadd.f32 %v3271, %v3274
          %vm3276 = vweird.f32 %v3165
          %vm3277 = vweird.f32 %v3271
          %vm3278 = vmor %vm3276, %vm3277
          %v3279 = vsel %vm3278, %v3271, %v3275
          %v3280 = vand.u32 2147483647, %v3165
          %vm3281 = vcmp.eq.f32.partialorder %v3280, 8.507059e+37
          %v3282 = vand.u32 %v3165, 2147483648
          %v3283 = vor.u32 1.1754944e-38, %v3282
          %v3284 = vsel %vm3281, %v3283, %v3279
          %v3285 = vmul.f32 %v3127, %v3284
          %v3286 = vrcp.pop %v3168
          %v3287 = vmul.f32 %v3168, %v3286
          %v3288 = vsub.f32 1.0, %v3287
          %v3289 = vmul.f32 %v3286, %v3288
          %v3290 = vadd.f32 %v3286, %v3289
          %vm3291 = vweird.f32 %v3168
          %vm3292 = vweird.f32 %v3286
          %vm3293 = vmor %vm3291, %vm3292
          %v3294 = vsel %vm3293, %v3286, %v3290
          %v3295 = vand.u32 2147483647, %v3168
          %vm3296 = vcmp.eq.f32.partialorder %v3295, 8.507059e+37
          %v3297 = vand.u32 %v3168, 2147483648
          %v3298 = vor.u32 1.1754944e-38, %v3297
          %v3299 = vsel %vm3296, %v3298, %v3294
          %v3300 = vmul.f32 %v3129, %v3299
          %v3301 = vrcp.pop %v3171
          %v3302 = vmul.f32 %v3171, %v3301
          %v3303 = vsub.f32 1.0, %v3302
          %v3304 = vmul.f32 %v3301, %v3303
          %v3305 = vadd.f32 %v3301, %v3304
          %vm3306 = vweird.f32 %v3171
          %vm3307 = vweird.f32 %v3301
          %vm3308 = vmor %vm3306, %vm3307
          %v3309 = vsel %vm3308, %v3301, %v3305
          %v3310 = vand.u32 2147483647, %v3171
          %vm3311 = vcmp.eq.f32.partialorder %v3310, 8.507059e+37
          %v3312 = vand.u32 %v3171, 2147483648
          %v3313 = vor.u32 1.1754944e-38, %v3312
          %v3314 = vsel %vm3311, %v3313, %v3309
          %v3315 = vmul.f32 %v3131, %v3314
          %v3316 = vrcp.pop %v3174
          %v3317 = vmul.f32 %v3174, %v3316
          %v3318 = vsub.f32 1.0, %v3317
          %v3319 = vmul.f32 %v3316, %v3318
          %v3320 = vadd.f32 %v3316, %v3319
          %vm3321 = vweird.f32 %v3174
          %vm3322 = vweird.f32 %v3316
          %vm3323 = vmor %vm3321, %vm3322
          %v3324 = vsel %vm3323, %v3316, %v3320
          %v3325 = vand.u32 2147483647, %v3174
          %vm3326 = vcmp.eq.f32.partialorder %v3325, 8.507059e+37
          %v3327 = vand.u32 %v3174, 2147483648
          %v3328 = vor.u32 1.1754944e-38, %v3327
          %v3329 = vsel %vm3326, %v3328, %v3324
          %v3330 = vmul.f32 %v3133, %v3329
          %v3331 = vrcp.pop %v3177
          %v3332 = vmul.f32 %v3177, %v3331
          %v3333 = vsub.f32 1.0, %v3332
          %v3334 = vmul.f32 %v3331, %v3333
          %v3335 = vadd.f32 %v3331, %v3334
          %vm3336 = vweird.f32 %v3177
          %vm3337 = vweird.f32 %v3331
          %vm3338 = vmor %vm3336, %vm3337
          %v3339 = vsel %vm3338, %v3331, %v3335
          %v3340 = vand.u32 2147483647, %v3177
          %vm3341 = vcmp.eq.f32.partialorder %v3340, 8.507059e+37
          %v3342 = vand.u32 %v3177, 2147483648
          %v3343 = vor.u32 1.1754944e-38, %v3342
          %v3344 = vsel %vm3341, %v3343, %v3339
          %v3345 = vmul.f32 %v3135, %v3344
          %v3346 = vrcp.pop %v3180
          %v3347 = vmul.f32 %v3180, %v3346
          %v3348 = vsub.f32 1.0, %v3347
          %v3349 = vmul.f32 %v3346, %v3348
          %v3350 = vadd.f32 %v3346, %v3349
          %vm3351 = vweird.f32 %v3180
          %vm3352 = vweird.f32 %v3346
          %vm3353 = vmor %vm3351, %vm3352
          %v3354 = vsel %vm3353, %v3346, %v3350
          %v3355 = vand.u32 2147483647, %v3180
          %vm3356 = vcmp.eq.f32.partialorder %v3355, 8.507059e+37
          %v3357 = vand.u32 %v3180, 2147483648
          %v3358 = vor.u32 1.1754944e-38, %v3357
          %v3359 = vsel %vm3356, %v3358, %v3354
          %v3360 = vmul.f32 %v3137, %v3359
          %v3361 = vrcp.pop %v3183
          %v3362 = vmul.f32 %v3183, %v3361
          %v3363 = vsub.f32 1.0, %v3362
          %v3364 = vmul.f32 %v3361, %v3363
          %v3365 = vadd.f32 %v3361, %v3364
          %vm3366 = vweird.f32 %v3183
          %vm3367 = vweird.f32 %v3361
          %vm3368 = vmor %vm3366, %vm3367
          %v3369 = vsel %vm3368, %v3361, %v3365
          %v3370 = vand.u32 2147483647, %v3183
          %vm3371 = vcmp.eq.f32.partialorder %v3370, 8.507059e+37
          %v3372 = vand.u32 %v3183, 2147483648
          %v3373 = vor.u32 1.1754944e-38, %v3372
          %v3374 = vsel %vm3371, %v3373, %v3369
          %v3375 = vmul.f32 %v3139, %v3374
          %v3376 = vrcp.pop %v3186
          %v3377 = vmul.f32 %v3186, %v3376
          %v3378 = vsub.f32 1.0, %v3377
          %v3379 = vmul.f32 %v3376, %v3378
          %v3380 = vadd.f32 %v3376, %v3379
          %vm3381 = vweird.f32 %v3186
          %vm3382 = vweird.f32 %v3376
          %vm3383 = vmor %vm3381, %vm3382
          %v3384 = vsel %vm3383, %v3376, %v3380
          %v3385 = vand.u32 2147483647, %v3186
          %vm3386 = vcmp.eq.f32.partialorder %v3385, 8.507059e+37
          %v3387 = vand.u32 %v3186, 2147483648
          %v3388 = vor.u32 1.1754944e-38, %v3387
          %v3389 = vsel %vm3386, %v3388, %v3384
          %v3390 = vmul.f32 %v3141, %v3389
          %v3391 = vrcp.pop %v3189
          %v3392 = vmul.f32 %v3189, %v3391
          %v3393 = vsub.f32 1.0, %v3392
          %v3394 = vmul.f32 %v3391, %v3393
          %v3395 = vadd.f32 %v3391, %v3394
          %vm3396 = vweird.f32 %v3189
          %vm3397 = vweird.f32 %v3391
          %vm3398 = vmor %vm3396, %vm3397
          %v3399 = vsel %vm3398, %v3391, %v3395
          %v3400 = vand.u32 2147483647, %v3189
          %vm3401 = vcmp.eq.f32.partialorder %v3400, 8.507059e+37
          %v3402 = vand.u32 %v3189, 2147483648
          %v3403 = vor.u32 1.1754944e-38, %v3402
          %v3404 = vsel %vm3401, %v3403, %v3399
          %v3405 = vmul.f32 %v3143, %v3404
          %v3406 = vrcp.pop %v3192
          %v3407 = vmul.f32 %v3192, %v3406
          %v3408 = vsub.f32 1.0, %v3407
          %v3409 = vmul.f32 %v3406, %v3408
          %v3410 = vadd.f32 %v3406, %v3409
          %vm3411 = vweird.f32 %v3192
          %vm3412 = vweird.f32 %v3406
          %vm3413 = vmor %vm3411, %vm3412
          %v3414 = vsel %vm3413, %v3406, %v3410
          %v3415 = vand.u32 2147483647, %v3192
          %vm3416 = vcmp.eq.f32.partialorder %v3415, 8.507059e+37
          %v3417 = vand.u32 %v3192, 2147483648
          %v3418 = vor.u32 1.1754944e-38, %v3417
          %v3419 = vsel %vm3416, %v3418, %v3414
          %v3420 = vmul.f32 %v3145, %v3419
          %v3421 = vrcp.pop %v3195
          %v3422 = vmul.f32 %v3195, %v3421
          %v3423 = vsub.f32 1.0, %v3422
          %v3424 = vmul.f32 %v3421, %v3423
          %v3425 = vadd.f32 %v3421, %v3424
          %vm3426 = vweird.f32 %v3195
          %vm3427 = vweird.f32 %v3421
          %vm3428 = vmor %vm3426, %vm3427
          %v3429 = vsel %vm3428, %v3421, %v3425
          %v3430 = vand.u32 2147483647, %v3195
          %vm3431 = vcmp.eq.f32.partialorder %v3430, 8.507059e+37
          %v3432 = vand.u32 %v3195, 2147483648
          %v3433 = vor.u32 1.1754944e-38, %v3432
          %v3434 = vsel %vm3431, %v3433, %v3429
          %v3435 = vmul.f32 %v3147, %v3434
          %v3436 = vpack.c.bf16 %v3210, %v3210
          %v3437 = vpack.c.bf16 %v3225, %v3225
          %v3438 = vpack.c.bf16 %v3240, %v3240
          %v3439 = vpack.c.bf16 %v3255, %v3255
          %v3440 = vpack.c.bf16 %v3270, %v3270
          %v3441 = vpack.c.bf16 %v3285, %v3285
          %v3442 = vpack.c.bf16 %v3300, %v3300
          %v3443 = vpack.c.bf16 %v3315, %v3315
          %v3444 = vpack.c.bf16 %v3330, %v3330
          %v3445 = vpack.c.bf16 %v3345, %v3345
          %v3446 = vpack.c.bf16 %v3360, %v3360
          %v3447 = vpack.c.bf16 %v3375, %v3375
          %v3448 = vpack.c.bf16 %v3390, %v3390
          %v3449 = vpack.c.bf16 %v3405, %v3405
          %v3450 = vpack.c.bf16 %v3420, %v3420
          %v3451 = vpack.c.bf16 %v3435, %v3435
          %v3452 = vld [vmem:[%s1235] sm:$0xf]
          %v3453 = vld [vmem:[%s1235 + $0x4] sm:$0xf]
          %v3462 = vunpack.c.l.b16 %v3436
          %v3463 = vunpack.c.l.b16 %v3437
          %v3464 = vunpack.c.l.b16 %v3438
          %v3465 = vunpack.c.l.b16 %v3439
          %v3466 = vunpack.c.l.b16 %v3440
          %v3467 = vunpack.c.l.b16 %v3441
          %v3468 = vunpack.c.l.b16 %v3442
          %v3469 = vunpack.c.l.b16 %v3443
          %v3470 = vpack.c.b16 %v3463, %v3462
          %v3471 = vpack.c.b16 %v3465, %v3464
          %v3472 = vpack.c.b16 %v3467, %v3466
          %v3473 = vpack.c.b16 %v3469, %v3468
          %v3475 = vsel %vm3051, %v3470, 0
          %v3478 = vsel %vm3051, %v3471, 0
          %v3481 = vsel %vm3051, %v3472, 0
          %v3484 = vsel %vm3051, %v3473, 0
          %vm3486 = vcmask 1043456
          %v3488 = vsel %vm3486, %v3452, 0
          %3490 = vmatpush.bf16.msra.mxu0 0
          %3491 = vmatpush.bf16.msra.mxu0 0
          %3492 = vmatpush.bf16.msra.mxu0 0
          %3493 = vmatpush.bf16.msra.mxu0 0
          %3494 = vmatpush.bf16.msra.mxu0 0
          %3495 = vmatpush.bf16.msra.mxu0 0
          %3496 = vmatpush.bf16.msra.mxu0 0
          %3497 = vmatpush.bf16.msra.mxu0 %v3488
          %3498 = vmatmul.bf16.gmra.mxu0 %v3475
          %v3499 = vpop.f32.mrf.mxu0
          %v3500 = vadd.f32 0.0, %v3499
          %v3501 = vpop.f32.mrf.mxu0
          %v3502 = vadd.f32 0.0, %v3501
          %3503 = vmatmul.bf16.gmra.mxu0 %v3478
          %v3504 = vpop.f32.mrf.mxu0
          %v3505 = vadd.f32 0.0, %v3504
          %v3506 = vpop.f32.mrf.mxu0
          %v3507 = vadd.f32 0.0, %v3506
          %3508 = vmatmul.bf16.gmra.mxu0 %v3481
          %v3509 = vpop.f32.mrf.mxu0
          %v3510 = vadd.f32 0.0, %v3509
          %v3511 = vpop.f32.mrf.mxu0
          %v3512 = vadd.f32 0.0, %v3511
          %3513 = vmatmul.bf16.gmra.mxu0 %v3484
          %v3514 = vpop.f32.mrf.mxu0
          %v3515 = vadd.f32 0.0, %v3514
          %v3516 = vpop.f32.mrf.mxu0
          %v3517 = vadd.f32 0.0, %v3516
          %3518 = vdwg.mxu0
          %v3527 = vunpack.c.l.b16 %v3444
          %v3528 = vunpack.c.l.b16 %v3445
          %v3529 = vunpack.c.l.b16 %v3446
          %v3530 = vunpack.c.l.b16 %v3447
          %v3531 = vunpack.c.l.b16 %v3448
          %v3532 = vunpack.c.l.b16 %v3449
          %v3533 = vunpack.c.l.b16 %v3450
          %v3534 = vunpack.c.l.b16 %v3451
          %v3535 = vpack.c.b16 %v3528, %v3527
          %v3536 = vpack.c.b16 %v3530, %v3529
          %v3537 = vpack.c.b16 %v3532, %v3531
          %v3538 = vpack.c.b16 %v3534, %v3533
          %v3540 = vsel %vm3051, %v3535, 0
          %v3543 = vsel %vm3051, %v3536, 0
          %v3546 = vsel %vm3051, %v3537, 0
          %v3549 = vsel %vm3051, %v3538, 0
          %v3552 = vsel %vm3486, %v3453, 0
          %3554 = vmatpush.bf16.msra.mxu0 0
          %3555 = vmatpush.bf16.msra.mxu0 0
          %3556 = vmatpush.bf16.msra.mxu0 0
          %3557 = vmatpush.bf16.msra.mxu0 0
          %3558 = vmatpush.bf16.msra.mxu0 0
          %3559 = vmatpush.bf16.msra.mxu0 0
          %3560 = vmatpush.bf16.msra.mxu0 0
          %3561 = vmatpush.bf16.msra.mxu0 %v3552
          %3562 = vmatmul.bf16.gmra.mxu0 %v3540
          %v3563 = vpop.f32.mrf.mxu0
          %v3564 = vadd.f32 0.0, %v3563
          %v3565 = vpop.f32.mrf.mxu0
          %v3566 = vadd.f32 0.0, %v3565
          %3567 = vmatmul.bf16.gmra.mxu0 %v3543
          %v3568 = vpop.f32.mrf.mxu0
          %v3569 = vadd.f32 0.0, %v3568
          %v3570 = vpop.f32.mrf.mxu0
          %v3571 = vadd.f32 0.0, %v3570
          %3572 = vmatmul.bf16.gmra.mxu0 %v3546
          %v3573 = vpop.f32.mrf.mxu0
          %v3574 = vadd.f32 0.0, %v3573
          %v3575 = vpop.f32.mrf.mxu0
          %v3576 = vadd.f32 0.0, %v3575
          %3577 = vmatmul.bf16.gmra.mxu0 %v3549
          %v3578 = vpop.f32.mrf.mxu0
          %v3579 = vadd.f32 0.0, %v3578
          %v3580 = vpop.f32.mrf.mxu0
          %v3581 = vadd.f32 0.0, %v3580
          %3582 = vdwg.mxu0
          %v3583 = vpack.c.bf16 %v3500, %v3500
          %v3584 = vpack.c.bf16 %v3502, %v3502
          %v3585 = vpack.c.bf16 %v3505, %v3505
          %v3586 = vpack.c.bf16 %v3507, %v3507
          %v3587 = vpack.c.bf16 %v3510, %v3510
          %v3588 = vpack.c.bf16 %v3512, %v3512
          %v3589 = vpack.c.bf16 %v3515, %v3515
          %v3590 = vpack.c.bf16 %v3517, %v3517
          %v3591 = vpack.c.bf16 %v3564, %v3564
          %v3592 = vpack.c.bf16 %v3566, %v3566
          %v3593 = vpack.c.bf16 %v3569, %v3569
          %v3594 = vpack.c.bf16 %v3571, %v3571
          %v3595 = vpack.c.bf16 %v3574, %v3574
          %v3596 = vpack.c.bf16 %v3576, %v3576
          %v3597 = vpack.c.bf16 %v3579, %v3579
          %v3598 = vpack.c.bf16 %v3581, %v3581
          %v3599 = vld [vmem:[%s12] sm:$0xf]
          %v3600 = vld [vmem:[%s12 + $0x4] sm:$0xf]
          %v3601 = vld [vmem:[%s12 + $0x8] sm:$0xf]
          %v3602 = vld [vmem:[%s12 + $0xc] sm:$0xf]
          %v3603 = vld [vmem:[%s12 + $0x10] sm:$0xf]
          %v3604 = vld [vmem:[%s12 + $0x14] sm:$0xf]
          %v3605 = vld [vmem:[%s12 + $0x18] sm:$0xf]
          %v3606 = vld [vmem:[%s12 + $0x1c] sm:$0xf]
          %v3615 = vunpack.c.l.b16 %v3583
          %v3616 = vunpack.c.l.b16 %v3584
          %v3617 = vunpack.c.l.b16 %v3585
          %v3618 = vunpack.c.l.b16 %v3586
          %v3619 = vunpack.c.l.b16 %v3587
          %v3620 = vunpack.c.l.b16 %v3588
          %v3621 = vunpack.c.l.b16 %v3589
          %v3622 = vunpack.c.l.b16 %v3590
          %v3623 = vpack.c.b16 %v3616, %v3615
          %v3624 = vpack.c.b16 %v3618, %v3617
          %v3625 = vpack.c.b16 %v3620, %v3619
          %v3626 = vpack.c.b16 %v3622, %v3621
          %v3631 = vunpack.c.l.b16 %v3599
          %v3632 = vunpack.c.l.b16 %v3600
          %v3633 = vunpack.c.l.b16 %v3601
          %v3634 = vunpack.c.l.b16 %v3602
          %v3635 = vpack.c.b16 %v3632, %v3631
          %v3636 = vpack.c.b16 %v3634, %v3633
          %v3640 = vsel %vm1364, %v3623, 0
          %v3643 = vsel %vm1364, %v3624, 0
          %v3646 = vsel %vm1364, %v3625, 0
          %v3649 = vsel %vm1364, %v3626, 0
          %3651 = vmatpush.bf16.msra.mxu0 0
          %3652 = vmatpush.bf16.msra.mxu0 0
          %3653 = vmatpush.bf16.msra.mxu0 0
          %3654 = vmatpush.bf16.msra.mxu0 0
          %3655 = vmatpush.bf16.msra.mxu0 0
          %3656 = vmatpush.bf16.msra.mxu0 0
          %3657 = vmatpush.bf16.msra.mxu0 %v3636
          %3658 = vmatpush.bf16.msra.mxu0 %v3635
          %3659 = vmatmul.bf16.gmra.mxu0 %v3640
          %v3660 = vpop.f32.mrf.mxu0
          %v3661 = vadd.f32 0.0, %v3660
          %v3662 = vpop.f32.mrf.mxu0
          %v3663 = vadd.f32 0.0, %v3662
          %3664 = vmatmul.bf16.gmra.mxu0 %v3643
          %v3665 = vpop.f32.mrf.mxu0
          %v3666 = vadd.f32 0.0, %v3665
          %v3667 = vpop.f32.mrf.mxu0
          %v3668 = vadd.f32 0.0, %v3667
          %3669 = vmatmul.bf16.gmra.mxu0 %v3646
          %v3670 = vpop.f32.mrf.mxu0
          %v3671 = vadd.f32 0.0, %v3670
          %v3672 = vpop.f32.mrf.mxu0
          %v3673 = vadd.f32 0.0, %v3672
          %3674 = vmatmul.bf16.gmra.mxu0 %v3649
          %v3675 = vpop.f32.mrf.mxu0
          %v3676 = vadd.f32 0.0, %v3675
          %v3677 = vpop.f32.mrf.mxu0
          %v3678 = vadd.f32 0.0, %v3677
          %3679 = vdwg.mxu0
          %v3688 = vunpack.c.l.b16 %v3591
          %v3689 = vunpack.c.l.b16 %v3592
          %v3690 = vunpack.c.l.b16 %v3593
          %v3691 = vunpack.c.l.b16 %v3594
          %v3692 = vunpack.c.l.b16 %v3595
          %v3693 = vunpack.c.l.b16 %v3596
          %v3694 = vunpack.c.l.b16 %v3597
          %v3695 = vunpack.c.l.b16 %v3598
          %v3696 = vpack.c.b16 %v3689, %v3688
          %v3697 = vpack.c.b16 %v3691, %v3690
          %v3698 = vpack.c.b16 %v3693, %v3692
          %v3699 = vpack.c.b16 %v3695, %v3694
          %v3704 = vunpack.c.l.b16 %v3603
          %v3705 = vunpack.c.l.b16 %v3604
          %v3706 = vunpack.c.l.b16 %v3605
          %v3707 = vunpack.c.l.b16 %v3606
          %v3708 = vpack.c.b16 %v3705, %v3704
          %v3709 = vpack.c.b16 %v3707, %v3706
          %v3713 = vsel %vm1364, %v3696, 0
          %v3716 = vsel %vm1364, %v3697, 0
          %v3719 = vsel %vm1364, %v3698, 0
          %v3722 = vsel %vm1364, %v3699, 0
          %3724 = vmatpush.bf16.msra.mxu0 0
          %3725 = vmatpush.bf16.msra.mxu0 0
          %3726 = vmatpush.bf16.msra.mxu0 0
          %3727 = vmatpush.bf16.msra.mxu0 0
          %3728 = vmatpush.bf16.msra.mxu0 0
          %3729 = vmatpush.bf16.msra.mxu0 0
          %3730 = vmatpush.bf16.msra.mxu0 %v3709
          %3731 = vmatpush.bf16.msra.mxu0 %v3708
          %3732 = vmatmul.bf16.gmra.mxu0 %v3713
          %v3733 = vpop.f32.mrf.mxu0
          %v3734 = vadd.f32 0.0, %v3733
          %v3735 = vpop.f32.mrf.mxu0
          %v3736 = vadd.f32 0.0, %v3735
          %3737 = vmatmul.bf16.gmra.mxu0 %v3716
          %v3738 = vpop.f32.mrf.mxu0
          %v3739 = vadd.f32 0.0, %v3738
          %v3740 = vpop.f32.mrf.mxu0
          %v3741 = vadd.f32 0.0, %v3740
          %3742 = vmatmul.bf16.gmra.mxu0 %v3719
          %v3743 = vpop.f32.mrf.mxu0
          %v3744 = vadd.f32 0.0, %v3743
          %v3745 = vpop.f32.mrf.mxu0
          %v3746 = vadd.f32 0.0, %v3745
          %3747 = vmatmul.bf16.gmra.mxu0 %v3722
          %v3748 = vpop.f32.mrf.mxu0
          %v3749 = vadd.f32 0.0, %v3748
          %v3750 = vpop.f32.mrf.mxu0
          %v3751 = vadd.f32 0.0, %v3750
          %3752 = vdwg.mxu0
          %v3753 = vsel %vm1527, %v3661, 0.0
          %v3754 = vsel %vm1527, %v3734, 0.0
          %v3755 = vadd.f32 %v3753, %v3754
          %v3756 = vsel %vm1527, %v3663, 0.0
          %v3757 = vsel %vm1527, %v3736, 0.0
          %v3758 = vadd.f32 %v3756, %v3757
          %v3759 = vsel %vm1527, %v3666, 0.0
          %v3760 = vsel %vm1527, %v3739, 0.0
          %v3761 = vadd.f32 %v3759, %v3760
          %v3762 = vsel %vm1527, %v3668, 0.0
          %v3763 = vsel %vm1527, %v3741, 0.0
          %v3764 = vadd.f32 %v3762, %v3763
          %v3765 = vsel %vm1527, %v3671, 0.0
          %v3766 = vsel %vm1527, %v3744, 0.0
          %v3767 = vadd.f32 %v3765, %v3766
          %v3768 = vsel %vm1527, %v3673, 0.0
          %v3769 = vsel %vm1527, %v3746, 0.0
          %v3770 = vadd.f32 %v3768, %v3769
          %v3771 = vsel %vm1527, %v3676, 0.0
          %v3772 = vsel %vm1527, %v3749, 0.0
          %v3773 = vadd.f32 %v3771, %v3772
          %v3774 = vsel %vm1527, %v3678, 0.0
          %v3775 = vsel %vm1527, %v3751, 0.0
          %v3776 = vadd.f32 %v3774, %v3775
          %v3777 = vld [vmem:[%s13] sm:$0x1]
          %v3779 = vperm.slane %v3777, 0
          %v3781 = vadd.f32 %v3755, %v3779
          %v3782 = vadd.f32 %v3758, %v3779
          %v3783 = vadd.f32 %v3761, %v3779
          %v3784 = vadd.f32 %v3764, %v3779
          %v3785 = vadd.f32 %v3767, %v3779
          %v3786 = vadd.f32 %v3770, %v3779
          %v3787 = vadd.f32 %v3773, %v3779
          %v3788 = vadd.f32 %v3776, %v3779
          %v3789 = vadd.f32 %v3781, %v2613
          %v3790 = vadd.f32 %v3782, %v2614
          %v3791 = vadd.f32 %v3783, %v2615
          %v3792 = vadd.f32 %v3784, %v2616
          %v3793 = vadd.f32 %v3785, %v2617
          %v3794 = vadd.f32 %v3786, %v2618
          %v3795 = vadd.f32 %v3787, %v2619
          %v3796 = vadd.f32 %v3788, %v2620
          %v3797 = vld [vmem:[%s14] sm:$0x1]
          %v3798 = vld [vmem:[%s15] sm:$0x1]
          %v3799 = vsel %vm1527, %v3789, 0.0
          %3800 = vadd.xlane.f32.xlu0 %v3799
          %v3801 = vpop.xlane.xlu0 %3800
          %v3802 = vsel %vm1527, %v3790, 0.0
          %3803 = vadd.xlane.f32.xlu0 %v3802
          %v3804 = vpop.xlane.xlu0 %3803
          %v3805 = vsel %vm1527, %v3791, 0.0
          %3806 = vadd.xlane.f32.xlu0 %v3805
          %v3807 = vpop.xlane.xlu0 %3806
          %v3808 = vsel %vm1527, %v3792, 0.0
          %3809 = vadd.xlane.f32.xlu0 %v3808
          %v3810 = vpop.xlane.xlu0 %3809
          %v3811 = vsel %vm1527, %v3793, 0.0
          %3812 = vadd.xlane.f32.xlu0 %v3811
          %v3813 = vpop.xlane.xlu0 %3812
          %v3814 = vsel %vm1527, %v3794, 0.0
          %3815 = vadd.xlane.f32.xlu0 %v3814
          %v3816 = vpop.xlane.xlu0 %3815
          %v3817 = vsel %vm1527, %v3795, 0.0
          %3818 = vadd.xlane.f32.xlu0 %v3817
          %v3819 = vpop.xlane.xlu0 %3818
          %v3820 = vsel %vm1527, %v3796, 0.0
          %3821 = vadd.xlane.f32.xlu0 %v3820
          %v3822 = vpop.xlane.xlu0 %3821
          %v3823 = vmul.f32 %v3801, %v2653
          %v3824 = vmul.f32 %v3804, %v2653
          %v3825 = vmul.f32 %v3807, %v2653
          %v3826 = vmul.f32 %v3810, %v2653
          %v3827 = vmul.f32 %v3813, %v2653
          %v3828 = vmul.f32 %v3816, %v2653
          %v3829 = vmul.f32 %v3819, %v2653
          %v3830 = vmul.f32 %v3822, %v2653
          %v3831 = vsub.f32 %v3789, %v3823
          %v3832 = vsub.f32 %v3790, %v3824
          %v3833 = vsub.f32 %v3791, %v3825
          %v3834 = vsub.f32 %v3792, %v3826
          %v3835 = vsub.f32 %v3793, %v3827
          %v3836 = vsub.f32 %v3794, %v3828
          %v3837 = vsub.f32 %v3795, %v3829
          %v3838 = vsub.f32 %v3796, %v3830
          %v3839 = vmul.f32 %v3831, %v3831
          %v3840 = vmul.f32 %v3832, %v3832
          %v3841 = vmul.f32 %v3833, %v3833
          %v3842 = vmul.f32 %v3834, %v3834
          %v3843 = vmul.f32 %v3835, %v3835
          %v3844 = vmul.f32 %v3836, %v3836
          %v3845 = vmul.f32 %v3837, %v3837
          %v3846 = vmul.f32 %v3838, %v3838
          %v3847 = vsel %vm1527, %v3839, 0.0
          %3848 = vadd.xlane.f32.xlu0 %v3847
          %v3849 = vpop.xlane.xlu0 %3848
          %v3850 = vsel %vm1527, %v3840, 0.0
          %3851 = vadd.xlane.f32.xlu0 %v3850
          %v3852 = vpop.xlane.xlu0 %3851
          %v3853 = vsel %vm1527, %v3841, 0.0
          %3854 = vadd.xlane.f32.xlu0 %v3853
          %v3855 = vpop.xlane.xlu0 %3854
          %v3856 = vsel %vm1527, %v3842, 0.0
          %3857 = vadd.xlane.f32.xlu0 %v3856
          %v3858 = vpop.xlane.xlu0 %3857
          %v3859 = vsel %vm1527, %v3843, 0.0
          %3860 = vadd.xlane.f32.xlu0 %v3859
          %v3861 = vpop.xlane.xlu0 %3860
          %v3862 = vsel %vm1527, %v3844, 0.0
          %3863 = vadd.xlane.f32.xlu0 %v3862
          %v3864 = vpop.xlane.xlu0 %3863
          %v3865 = vsel %vm1527, %v3845, 0.0
          %3866 = vadd.xlane.f32.xlu0 %v3865
          %v3867 = vpop.xlane.xlu0 %3866
          %v3868 = vsel %vm1527, %v3846, 0.0
          %3869 = vadd.xlane.f32.xlu0 %v3868
          %v3870 = vpop.xlane.xlu0 %3869
          %v3871 = vmul.f32 %v3849, %v2653
          %v3872 = vmul.f32 %v3852, %v2653
          %v3873 = vmul.f32 %v3855, %v2653
          %v3874 = vmul.f32 %v3858, %v2653
          %v3875 = vmul.f32 %v3861, %v2653
          %v3876 = vmul.f32 %v3864, %v2653
          %v3877 = vmul.f32 %v3867, %v2653
          %v3878 = vmul.f32 %v3870, %v2653
          %v3879 = vadd.f32 %v3871, 1e-05
          %v3880 = vadd.f32 %v3872, 1e-05
          %v3881 = vadd.f32 %v3873, 1e-05
          %v3882 = vadd.f32 %v3874, 1e-05
          %v3883 = vadd.f32 %v3875, 1e-05
          %v3884 = vadd.f32 %v3876, 1e-05
          %v3885 = vadd.f32 %v3877, 1e-05
          %v3886 = vadd.f32 %v3878, 1e-05
          %v3887 = vrsqrt.pop %v3879
          %v3888 = vmul.f32 %v3887, %v3879
          %v3889 = vmul.f32 %v3888, %v3887
          %v3890 = vmul.f32 0.5, %v3889
          %v3891 = vsub.f32 1.5, %v3890
          %v3892 = vmul.f32 %v3887, %v3891
          %vm3893 = vweird.f32 %v3879
          %vm3894 = vweird.f32 %v3887
          %vm3895 = vmor %vm3893, %vm3894
          %v3896 = vsel %vm3895, %v3887, %v3892
          %v3897 = vrsqrt.pop %v3880
          %v3898 = vmul.f32 %v3897, %v3880
          %v3899 = vmul.f32 %v3898, %v3897
          %v3900 = vmul.f32 0.5, %v3899
          %v3901 = vsub.f32 1.5, %v3900
          %v3902 = vmul.f32 %v3897, %v3901
          %vm3903 = vweird.f32 %v3880
          %vm3904 = vweird.f32 %v3897
          %vm3905 = vmor %vm3903, %vm3904
          %v3906 = vsel %vm3905, %v3897, %v3902
          %v3907 = vrsqrt.pop %v3881
          %v3908 = vmul.f32 %v3907, %v3881
          %v3909 = vmul.f32 %v3908, %v3907
          %v3910 = vmul.f32 0.5, %v3909
          %v3911 = vsub.f32 1.5, %v3910
          %v3912 = vmul.f32 %v3907, %v3911
          %vm3913 = vweird.f32 %v3881
          %vm3914 = vweird.f32 %v3907
          %vm3915 = vmor %vm3913, %vm3914
          %v3916 = vsel %vm3915, %v3907, %v3912
          %v3917 = vrsqrt.pop %v3882
          %v3918 = vmul.f32 %v3917, %v3882
          %v3919 = vmul.f32 %v3918, %v3917
          %v3920 = vmul.f32 0.5, %v3919
          %v3921 = vsub.f32 1.5, %v3920
          %v3922 = vmul.f32 %v3917, %v3921
          %vm3923 = vweird.f32 %v3882
          %vm3924 = vweird.f32 %v3917
          %vm3925 = vmor %vm3923, %vm3924
          %v3926 = vsel %vm3925, %v3917, %v3922
          %v3927 = vrsqrt.pop %v3883
          %v3928 = vmul.f32 %v3927, %v3883
          %v3929 = vmul.f32 %v3928, %v3927
          %v3930 = vmul.f32 0.5, %v3929
          %v3931 = vsub.f32 1.5, %v3930
          %v3932 = vmul.f32 %v3927, %v3931
          %vm3933 = vweird.f32 %v3883
          %vm3934 = vweird.f32 %v3927
          %vm3935 = vmor %vm3933, %vm3934
          %v3936 = vsel %vm3935, %v3927, %v3932
          %v3937 = vrsqrt.pop %v3884
          %v3938 = vmul.f32 %v3937, %v3884
          %v3939 = vmul.f32 %v3938, %v3937
          %v3940 = vmul.f32 0.5, %v3939
          %v3941 = vsub.f32 1.5, %v3940
          %v3942 = vmul.f32 %v3937, %v3941
          %vm3943 = vweird.f32 %v3884
          %vm3944 = vweird.f32 %v3937
          %vm3945 = vmor %vm3943, %vm3944
          %v3946 = vsel %vm3945, %v3937, %v3942
          %v3947 = vrsqrt.pop %v3885
          %v3948 = vmul.f32 %v3947, %v3885
          %v3949 = vmul.f32 %v3948, %v3947
          %v3950 = vmul.f32 0.5, %v3949
          %v3951 = vsub.f32 1.5, %v3950
          %v3952 = vmul.f32 %v3947, %v3951
          %vm3953 = vweird.f32 %v3885
          %vm3954 = vweird.f32 %v3947
          %vm3955 = vmor %vm3953, %vm3954
          %v3956 = vsel %vm3955, %v3947, %v3952
          %v3957 = vrsqrt.pop %v3886
          %v3958 = vmul.f32 %v3957, %v3886
          %v3959 = vmul.f32 %v3958, %v3957
          %v3960 = vmul.f32 0.5, %v3959
          %v3961 = vsub.f32 1.5, %v3960
          %v3962 = vmul.f32 %v3957, %v3961
          %vm3963 = vweird.f32 %v3886
          %vm3964 = vweird.f32 %v3957
          %vm3965 = vmor %vm3963, %vm3964
          %v3966 = vsel %vm3965, %v3957, %v3962
          %v3967 = vmul.f32 %v3831, %v3896
          %v3968 = vmul.f32 %v3832, %v3906
          %v3969 = vmul.f32 %v3833, %v3916
          %v3970 = vmul.f32 %v3834, %v3926
          %v3971 = vmul.f32 %v3835, %v3936
          %v3972 = vmul.f32 %v3836, %v3946
          %v3973 = vmul.f32 %v3837, %v3956
          %v3974 = vmul.f32 %v3838, %v3966
          %v3976 = vperm.slane %v3797, 0
          %v3978 = vmul.f32 %v3967, %v3976
          %v3979 = vmul.f32 %v3968, %v3976
          %v3980 = vmul.f32 %v3969, %v3976
          %v3981 = vmul.f32 %v3970, %v3976
          %v3982 = vmul.f32 %v3971, %v3976
          %v3983 = vmul.f32 %v3972, %v3976
          %v3984 = vmul.f32 %v3973, %v3976
          %v3985 = vmul.f32 %v3974, %v3976
          %v3987 = vperm.slane %v3798, 0
          %v3989 = vadd.f32 %v3978, %v3987
          %v3990 = vadd.f32 %v3979, %v3987
          %v3991 = vadd.f32 %v3980, %v3987
          %v3992 = vadd.f32 %v3981, %v3987
          %v3993 = vadd.f32 %v3982, %v3987
          %v3994 = vadd.f32 %v3983, %v3987
          %v3995 = vadd.f32 %v3984, %v3987
          %v3996 = vadd.f32 %v3985, %v3987
          %v3997 = vpack.c.bf16 %v3990, %v3989
          %v3998 = vpack.c.bf16 %v3992, %v3991
          %v3999 = vpack.c.bf16 %v3994, %v3993
          %v4000 = vpack.c.bf16 %v3996, %v3995
          %v4001 = vld [vmem:[%s16] sm:$0xff]
          %v4002 = vld [vmem:[%s16 + $0x8] sm:$0xff]
          %v4003 = vld [vmem:[%s16 + $0x10] sm:$0xff]
          %v4004 = vld [vmem:[%s16 + $0x18] sm:$0xff]
          %v4005 = vld [vmem:[%s16 + $0x20] sm:$0xff]
          %v4006 = vld [vmem:[%s16 + $0x28] sm:$0xff]
          %v4007 = vld [vmem:[%s16 + $0x30] sm:$0xff]
          %v4008 = vld [vmem:[%s16 + $0x38] sm:$0xff]
          %v4009 = vld [vmem:[%s17] sm:$0x3]
          %v4011 = vperm.slane %v4009, 0
          %v4012 = vperm.slane %v4009, 1
          %v4023 = vunpack.c.l.b16 %v4001
          %v4024 = vunpack.c.h.b16 %v4001
          %v4025 = vunpack.c.l.b16 %v4002
          %v4026 = vunpack.c.h.b16 %v4002
          %v4027 = vunpack.c.l.b16 %v4003
          %v4028 = vunpack.c.h.b16 %v4003
          %v4029 = vunpack.c.l.b16 %v4004
          %v4030 = vunpack.c.h.b16 %v4004
          %v4031 = vunpack.c.l.b16 %v4005
          %v4032 = vunpack.c.h.b16 %v4005
          %v4033 = vunpack.c.l.b16 %v4006
          %v4034 = vunpack.c.h.b16 %v4006
          %v4035 = vunpack.c.l.b16 %v4007
          %v4036 = vunpack.c.h.b16 %v4007
          %v4037 = vunpack.c.l.b16 %v4008
          %v4038 = vunpack.c.h.b16 %v4008
          %v4039 = vpack.c.b16 %v4025, %v4023
          %v4040 = vpack.c.b16 %v4026, %v4024
          %v4041 = vpack.c.b16 %v4029, %v4027
          %v4042 = vpack.c.b16 %v4030, %v4028
          %v4043 = vpack.c.b16 %v4033, %v4031
          %v4044 = vpack.c.b16 %v4034, %v4032
          %v4045 = vpack.c.b16 %v4037, %v4035
          %v4046 = vpack.c.b16 %v4038, %v4036
          %v4056 = vsel %vm1527, %v3997, 0
          %v4059 = vsel %vm1527, %v3998, 0
          %v4062 = vsel %vm1527, %v3999, 0
          %v4065 = vsel %vm1527, %v4000, 0
          %4067 = vmatpush.bf16.msra.mxu0 0
          %4068 = vmatpush.bf16.msra.mxu0 0
          %4069 = vmatpush.bf16.msra.mxu0 0
          %4070 = vmatpush.bf16.msra.mxu0 0
          %4071 = vmatpush.bf16.msra.mxu0 %v4045
          %4072 = vmatpush.bf16.msra.mxu0 %v4043
          %4073 = vmatpush.bf16.msra.mxu0 %v4041
          %4074 = vmatpush.bf16.msra.mxu0 %v4039
          %4075 = vmatmul.bf16.gmra.mxu0 %v4056
          %v4076 = vpop.f32.mrf.mxu0
          %v4077 = vadd.f32 %v4011, %v4076
          %v4078 = vpop.f32.mrf.mxu0
          %v4079 = vadd.f32 %v4011, %v4078
          %4080 = vmatmul.bf16.gmra.mxu0 %v4059
          %v4081 = vpop.f32.mrf.mxu0
          %v4082 = vadd.f32 %v4011, %v4081
          %v4083 = vpop.f32.mrf.mxu0
          %v4084 = vadd.f32 %v4011, %v4083
          %4085 = vmatmul.bf16.gmra.mxu0 %v4062
          %v4086 = vpop.f32.mrf.mxu0
          %v4087 = vadd.f32 %v4011, %v4086
          %v4088 = vpop.f32.mrf.mxu0
          %v4089 = vadd.f32 %v4011, %v4088
          %4090 = vmatmul.bf16.gmra.mxu0 %v4065
          %v4091 = vpop.f32.mrf.mxu0
          %v4092 = vadd.f32 %v4011, %v4091
          %v4093 = vpop.f32.mrf.mxu0
          %v4094 = vadd.f32 %v4011, %v4093
          %4095 = vdwg.mxu0
          %4096 = vmatpush.bf16.msra.mxu0 0
          %4097 = vmatpush.bf16.msra.mxu0 0
          %4098 = vmatpush.bf16.msra.mxu0 0
          %4099 = vmatpush.bf16.msra.mxu0 0
          %4100 = vmatpush.bf16.msra.mxu0 %v4046
          %4101 = vmatpush.bf16.msra.mxu0 %v4044
          %4102 = vmatpush.bf16.msra.mxu0 %v4042
          %4103 = vmatpush.bf16.msra.mxu0 %v4040
          %4104 = vmatmul.bf16.gmra.mxu0 %v4056
          %v4105 = vpop.f32.mrf.mxu0
          %v4106 = vadd.f32 %v4012, %v4105
          %v4107 = vpop.f32.mrf.mxu0
          %v4108 = vadd.f32 %v4012, %v4107
          %4109 = vmatmul.bf16.gmra.mxu0 %v4059
          %v4110 = vpop.f32.mrf.mxu0
          %v4111 = vadd.f32 %v4012, %v4110
          %v4112 = vpop.f32.mrf.mxu0
          %v4113 = vadd.f32 %v4012, %v4112
          %4114 = vmatmul.bf16.gmra.mxu0 %v4062
          %v4115 = vpop.f32.mrf.mxu0
          %v4116 = vadd.f32 %v4012, %v4115
          %v4117 = vpop.f32.mrf.mxu0
          %v4118 = vadd.f32 %v4012, %v4117
          %4119 = vmatmul.bf16.gmra.mxu0 %v4065
          %v4120 = vpop.f32.mrf.mxu0
          %v4121 = vadd.f32 %v4012, %v4120
          %v4122 = vpop.f32.mrf.mxu0
          %v4123 = vadd.f32 %v4012, %v4122
          %4124 = vdwg.mxu0
          %v4125 = vld [vmem:[%s18] sm:$0xff]
          %v4126 = vld [vmem:[%s18 + $0x8] sm:$0xff]
          %v4127 = vld [vmem:[%s18 + $0x10] sm:$0xff]
          %v4128 = vld [vmem:[%s18 + $0x18] sm:$0xff]
          %v4129 = vld [vmem:[%s18 + $0x20] sm:$0xff]
          %v4130 = vld [vmem:[%s18 + $0x28] sm:$0xff]
          %v4131 = vld [vmem:[%s18 + $0x30] sm:$0xff]
          %v4132 = vld [vmem:[%s18 + $0x38] sm:$0xff]
          %v4133 = vld [vmem:[%s19] sm:$0x3]
          %v4135 = vperm.slane %v4133, 0
          %v4136 = vperm.slane %v4133, 1
          %v4147 = vunpack.c.l.b16 %v4125
          %v4148 = vunpack.c.h.b16 %v4125
          %v4149 = vunpack.c.l.b16 %v4126
          %v4150 = vunpack.c.h.b16 %v4126
          %v4151 = vunpack.c.l.b16 %v4127
          %v4152 = vunpack.c.h.b16 %v4127
          %v4153 = vunpack.c.l.b16 %v4128
          %v4154 = vunpack.c.h.b16 %v4128
          %v4155 = vunpack.c.l.b16 %v4129
          %v4156 = vunpack.c.h.b16 %v4129
          %v4157 = vunpack.c.l.b16 %v4130
          %v4158 = vunpack.c.h.b16 %v4130
          %v4159 = vunpack.c.l.b16 %v4131
          %v4160 = vunpack.c.h.b16 %v4131
          %v4161 = vunpack.c.l.b16 %v4132
          %v4162 = vunpack.c.h.b16 %v4132
          %v4163 = vpack.c.b16 %v4149, %v4147
          %v4164 = vpack.c.b16 %v4150, %v4148
          %v4165 = vpack.c.b16 %v4153, %v4151
          %v4166 = vpack.c.b16 %v4154, %v4152
          %v4167 = vpack.c.b16 %v4157, %v4155
          %v4168 = vpack.c.b16 %v4158, %v4156
          %v4169 = vpack.c.b16 %v4161, %v4159
          %v4170 = vpack.c.b16 %v4162, %v4160
          %4179 = vmatpush.bf16.msra.mxu0 0
          %4180 = vmatpush.bf16.msra.mxu0 0
          %4181 = vmatpush.bf16.msra.mxu0 0
          %4182 = vmatpush.bf16.msra.mxu0 0
          %4183 = vmatpush.bf16.msra.mxu0 %v4169
          %4184 = vmatpush.bf16.msra.mxu0 %v4167
          %4185 = vmatpush.bf16.msra.mxu0 %v4165
          %4186 = vmatpush.bf16.msra.mxu0 %v4163
          %4187 = vmatmul.bf16.gmra.mxu0 %v4056
          %v4188 = vpop.f32.mrf.mxu0
          %v4189 = vadd.f32 %v4135, %v4188
          %v4190 = vpop.f32.mrf.mxu0
          %v4191 = vadd.f32 %v4135, %v4190
          %4192 = vmatmul.bf16.gmra.mxu0 %v4059
          %v4193 = vpop.f32.mrf.mxu0
          %v4194 = vadd.f32 %v4135, %v4193
          %v4195 = vpop.f32.mrf.mxu0
          %v4196 = vadd.f32 %v4135, %v4195
          %4197 = vmatmul.bf16.gmra.mxu0 %v4062
          %v4198 = vpop.f32.mrf.mxu0
          %v4199 = vadd.f32 %v4135, %v4198
          %v4200 = vpop.f32.mrf.mxu0
          %v4201 = vadd.f32 %v4135, %v4200
          %4202 = vmatmul.bf16.gmra.mxu0 %v4065
          %v4203 = vpop.f32.mrf.mxu0
          %v4204 = vadd.f32 %v4135, %v4203
          %v4205 = vpop.f32.mrf.mxu0
          %v4206 = vadd.f32 %v4135, %v4205
          %4207 = vdwg.mxu0
          %4208 = vmatpush.bf16.msra.mxu0 0
          %4209 = vmatpush.bf16.msra.mxu0 0
          %4210 = vmatpush.bf16.msra.mxu0 0
          %4211 = vmatpush.bf16.msra.mxu0 0
          %4212 = vmatpush.bf16.msra.mxu0 %v4170
          %4213 = vmatpush.bf16.msra.mxu0 %v4168
          %4214 = vmatpush.bf16.msra.mxu0 %v4166
          %4215 = vmatpush.bf16.msra.mxu0 %v4164
          %4216 = vmatmul.bf16.gmra.mxu0 %v4056
          %v4217 = vpop.f32.mrf.mxu0
          %v4218 = vadd.f32 %v4136, %v4217
          %v4219 = vpop.f32.mrf.mxu0
          %v4220 = vadd.f32 %v4136, %v4219
          %4221 = vmatmul.bf16.gmra.mxu0 %v4059
          %v4222 = vpop.f32.mrf.mxu0
          %v4223 = vadd.f32 %v4136, %v4222
          %v4224 = vpop.f32.mrf.mxu0
          %v4225 = vadd.f32 %v4136, %v4224
          %4226 = vmatmul.bf16.gmra.mxu0 %v4062
          %v4227 = vpop.f32.mrf.mxu0
          %v4228 = vadd.f32 %v4136, %v4227
          %v4229 = vpop.f32.mrf.mxu0
          %v4230 = vadd.f32 %v4136, %v4229
          %4231 = vmatmul.bf16.gmra.mxu0 %v4065
          %v4232 = vpop.f32.mrf.mxu0
          %v4233 = vadd.f32 %v4136, %v4232
          %v4234 = vpop.f32.mrf.mxu0
          %v4235 = vadd.f32 %v4136, %v4234
          %4236 = vdwg.mxu0
          %v4237 = vmul.f32 %v4189, 0.5
          %v4238 = vmul.f32 %v4218, 0.5
          %v4239 = vmul.f32 %v4191, 0.5
          %v4240 = vmul.f32 %v4220, 0.5
          %v4241 = vmul.f32 %v4194, 0.5
          %v4242 = vmul.f32 %v4223, 0.5
          %v4243 = vmul.f32 %v4196, 0.5
          %v4244 = vmul.f32 %v4225, 0.5
          %v4245 = vmul.f32 %v4199, 0.5
          %v4246 = vmul.f32 %v4228, 0.5
          %v4247 = vmul.f32 %v4201, 0.5
          %v4248 = vmul.f32 %v4230, 0.5
          %v4249 = vmul.f32 %v4204, 0.5
          %v4250 = vmul.f32 %v4233, 0.5
          %v4251 = vmul.f32 %v4206, 0.5
          %v4252 = vmul.f32 %v4235, 0.5
          %v4253 = vmul.f32 %v4189, 0.70710677
          %v4254 = vmul.f32 %v4218, 0.70710677
          %v4255 = vmul.f32 %v4191, 0.70710677
          %v4256 = vmul.f32 %v4220, 0.70710677
          %v4257 = vmul.f32 %v4194, 0.70710677
          %v4258 = vmul.f32 %v4223, 0.70710677
          %v4259 = vmul.f32 %v4196, 0.70710677
          %v4260 = vmul.f32 %v4225, 0.70710677
          %v4261 = vmul.f32 %v4199, 0.70710677
          %v4262 = vmul.f32 %v4228, 0.70710677
          %v4263 = vmul.f32 %v4201, 0.70710677
          %v4264 = vmul.f32 %v4230, 0.70710677
          %v4265 = vmul.f32 %v4204, 0.70710677
          %v4266 = vmul.f32 %v4233, 0.70710677
          %v4267 = vmul.f32 %v4206, 0.70710677
          %v4268 = vmul.f32 %v4235, 0.70710677
          %v4269 = vmul.f32 %v4253, %v4253
          %v4270 = vmin.f32 16.0, %v4269
          %v4271 = vmul.f32 %v4270, 2.1237322e-06
          %v4272 = vadd.f32 %v4271, 0.00028619796
          %v4273 = vmul.f32 %v4270, %v4272
          %v4274 = vadd.f32 %v4273, 0.0036580483
          %v4275 = vmul.f32 %v4270, %v4274
          %v4276 = vadd.f32 %v4275, 0.05243302
          %v4277 = vmul.f32 %v4270, %v4276
          %v4278 = vadd.f32 %v4277, 0.18741608
          %v4279 = vmul.f32 %v4270, %v4278
          %v4280 = vadd.f32 %v4279, 1.1283791
          %v4281 = vmul.f32 %v4253, %v4280
          %v4282 = vmul.f32 %v4270, 3.8918573e-05
          %v4283 = vadd.f32 %v4282, 0.001143296
          %v4284 = vmul.f32 %v4270, %v4283
          %v4285 = vadd.f32 %v4284, 0.014752088
          %v4286 = vmul.f32 %v4270, %v4285
          %v4287 = vadd.f32 %v4286, 0.112945676
          %v4288 = vmul.f32 %v4270, %v4287
          %v4289 = vadd.f32 %v4288, 0.4994258
          %v4290 = vmul.f32 %v4270, %v4289
          %v4291 = vadd.f32 %v4290, 1.0
          %v4292 = vrcp.pop %v4291
          %v4293 = vmul.f32 %v4291, %v4292
          %v4294 = vsub.f32 1.0, %v4293
          %v4295 = vmul.f32 %v4292, %v4294
          %v4296 = vadd.f32 %v4292, %v4295
          %vm4297 = vweird.f32 %v4291
          %vm4298 = vweird.f32 %v4292
          %vm4299 = vmor %vm4297, %vm4298
          %v4300 = vsel %vm4299, %v4292, %v4296
          %v4301 = vand.u32 2147483647, %v4291
          %vm4302 = vcmp.eq.f32.partialorder %v4301, 8.507059e+37
          %v4303 = vand.u32 %v4291, 2147483648
          %v4304 = vor.u32 1.1754944e-38, %v4303
          %v4305 = vsel %vm4302, %v4304, %v4300
          %v4306 = vmul.f32 %v4281, %v4305
          %v4307 = vmin.f32 %v4306, 1.0
          %v4308 = vmax.f32 %v4307, -1.0
          %v4309 = vmul.f32 %v4254, %v4254
          %v4310 = vmin.f32 16.0, %v4309
          %v4311 = vmul.f32 %v4310, 2.1237322e-06
          %v4312 = vadd.f32 %v4311, 0.00028619796
          %v4313 = vmul.f32 %v4310, %v4312
          %v4314 = vadd.f32 %v4313, 0.0036580483
          %v4315 = vmul.f32 %v4310, %v4314
          %v4316 = vadd.f32 %v4315, 0.05243302
          %v4317 = vmul.f32 %v4310, %v4316
          %v4318 = vadd.f32 %v4317, 0.18741608
          %v4319 = vmul.f32 %v4310, %v4318
          %v4320 = vadd.f32 %v4319, 1.1283791
          %v4321 = vmul.f32 %v4254, %v4320
          %v4322 = vmul.f32 %v4310, 3.8918573e-05
          %v4323 = vadd.f32 %v4322, 0.001143296
          %v4324 = vmul.f32 %v4310, %v4323
          %v4325 = vadd.f32 %v4324, 0.014752088
          %v4326 = vmul.f32 %v4310, %v4325
          %v4327 = vadd.f32 %v4326, 0.112945676
          %v4328 = vmul.f32 %v4310, %v4327
          %v4329 = vadd.f32 %v4328, 0.4994258
          %v4330 = vmul.f32 %v4310, %v4329
          %v4331 = vadd.f32 %v4330, 1.0
          %v4332 = vrcp.pop %v4331
          %v4333 = vmul.f32 %v4331, %v4332
          %v4334 = vsub.f32 1.0, %v4333
          %v4335 = vmul.f32 %v4332, %v4334
          %v4336 = vadd.f32 %v4332, %v4335
          %vm4337 = vweird.f32 %v4331
          %vm4338 = vweird.f32 %v4332
          %vm4339 = vmor %vm4337, %vm4338
          %v4340 = vsel %vm4339, %v4332, %v4336
          %v4341 = vand.u32 2147483647, %v4331
          %vm4342 = vcmp.eq.f32.partialorder %v4341, 8.507059e+37
          %v4343 = vand.u32 %v4331, 2147483648
          %v4344 = vor.u32 1.1754944e-38, %v4343
          %v4345 = vsel %vm4342, %v4344, %v4340
          %v4346 = vmul.f32 %v4321, %v4345
          %v4347 = vmin.f32 %v4346, 1.0
          %v4348 = vmax.f32 %v4347, -1.0
          %v4349 = vmul.f32 %v4255, %v4255
          %v4350 = vmin.f32 16.0, %v4349
          %v4351 = vmul.f32 %v4350, 2.1237322e-06
          %v4352 = vadd.f32 %v4351, 0.00028619796
          %v4353 = vmul.f32 %v4350, %v4352
          %v4354 = vadd.f32 %v4353, 0.0036580483
          %v4355 = vmul.f32 %v4350, %v4354
          %v4356 = vadd.f32 %v4355, 0.05243302
          %v4357 = vmul.f32 %v4350, %v4356
          %v4358 = vadd.f32 %v4357, 0.18741608
          %v4359 = vmul.f32 %v4350, %v4358
          %v4360 = vadd.f32 %v4359, 1.1283791
          %v4361 = vmul.f32 %v4255, %v4360
          %v4362 = vmul.f32 %v4350, 3.8918573e-05
          %v4363 = vadd.f32 %v4362, 0.001143296
          %v4364 = vmul.f32 %v4350, %v4363
          %v4365 = vadd.f32 %v4364, 0.014752088
          %v4366 = vmul.f32 %v4350, %v4365
          %v4367 = vadd.f32 %v4366, 0.112945676
          %v4368 = vmul.f32 %v4350, %v4367
          %v4369 = vadd.f32 %v4368, 0.4994258
          %v4370 = vmul.f32 %v4350, %v4369
          %v4371 = vadd.f32 %v4370, 1.0
          %v4372 = vrcp.pop %v4371
          %v4373 = vmul.f32 %v4371, %v4372
          %v4374 = vsub.f32 1.0, %v4373
          %v4375 = vmul.f32 %v4372, %v4374
          %v4376 = vadd.f32 %v4372, %v4375
          %vm4377 = vweird.f32 %v4371
          %vm4378 = vweird.f32 %v4372
          %vm4379 = vmor %vm4377, %vm4378
          %v4380 = vsel %vm4379, %v4372, %v4376
          %v4381 = vand.u32 2147483647, %v4371
          %vm4382 = vcmp.eq.f32.partialorder %v4381, 8.507059e+37
          %v4383 = vand.u32 %v4371, 2147483648
          %v4384 = vor.u32 1.1754944e-38, %v4383
          %v4385 = vsel %vm4382, %v4384, %v4380
          %v4386 = vmul.f32 %v4361, %v4385
          %v4387 = vmin.f32 %v4386, 1.0
          %v4388 = vmax.f32 %v4387, -1.0
          %v4389 = vmul.f32 %v4256, %v4256
          %v4390 = vmin.f32 16.0, %v4389
          %v4391 = vmul.f32 %v4390, 2.1237322e-06
          %v4392 = vadd.f32 %v4391, 0.00028619796
          %v4393 = vmul.f32 %v4390, %v4392
          %v4394 = vadd.f32 %v4393, 0.0036580483
          %v4395 = vmul.f32 %v4390, %v4394
          %v4396 = vadd.f32 %v4395, 0.05243302
          %v4397 = vmul.f32 %v4390, %v4396
          %v4398 = vadd.f32 %v4397, 0.18741608
          %v4399 = vmul.f32 %v4390, %v4398
          %v4400 = vadd.f32 %v4399, 1.1283791
          %v4401 = vmul.f32 %v4256, %v4400
          %v4402 = vmul.f32 %v4390, 3.8918573e-05
          %v4403 = vadd.f32 %v4402, 0.001143296
          %v4404 = vmul.f32 %v4390, %v4403
          %v4405 = vadd.f32 %v4404, 0.014752088
          %v4406 = vmul.f32 %v4390, %v4405
          %v4407 = vadd.f32 %v4406, 0.112945676
          %v4408 = vmul.f32 %v4390, %v4407
          %v4409 = vadd.f32 %v4408, 0.4994258
          %v4410 = vmul.f32 %v4390, %v4409
          %v4411 = vadd.f32 %v4410, 1.0
          %v4412 = vrcp.pop %v4411
          %v4413 = vmul.f32 %v4411, %v4412
          %v4414 = vsub.f32 1.0, %v4413
          %v4415 = vmul.f32 %v4412, %v4414
          %v4416 = vadd.f32 %v4412, %v4415
          %vm4417 = vweird.f32 %v4411
          %vm4418 = vweird.f32 %v4412
          %vm4419 = vmor %vm4417, %vm4418
          %v4420 = vsel %vm4419, %v4412, %v4416
          %v4421 = vand.u32 2147483647, %v4411
          %vm4422 = vcmp.eq.f32.partialorder %v4421, 8.507059e+37
          %v4423 = vand.u32 %v4411, 2147483648
          %v4424 = vor.u32 1.1754944e-38, %v4423
          %v4425 = vsel %vm4422, %v4424, %v4420
          %v4426 = vmul.f32 %v4401, %v4425
          %v4427 = vmin.f32 %v4426, 1.0
          %v4428 = vmax.f32 %v4427, -1.0
          %v4429 = vmul.f32 %v4257, %v4257
          %v4430 = vmin.f32 16.0, %v4429
          %v4431 = vmul.f32 %v4430, 2.1237322e-06
          %v4432 = vadd.f32 %v4431, 0.00028619796
          %v4433 = vmul.f32 %v4430, %v4432
          %v4434 = vadd.f32 %v4433, 0.0036580483
          %v4435 = vmul.f32 %v4430, %v4434
          %v4436 = vadd.f32 %v4435, 0.05243302
          %v4437 = vmul.f32 %v4430, %v4436
          %v4438 = vadd.f32 %v4437, 0.18741608
          %v4439 = vmul.f32 %v4430, %v4438
          %v4440 = vadd.f32 %v4439, 1.1283791
          %v4441 = vmul.f32 %v4257, %v4440
          %v4442 = vmul.f32 %v4430, 3.8918573e-05
          %v4443 = vadd.f32 %v4442, 0.001143296
          %v4444 = vmul.f32 %v4430, %v4443
          %v4445 = vadd.f32 %v4444, 0.014752088
          %v4446 = vmul.f32 %v4430, %v4445
          %v4447 = vadd.f32 %v4446, 0.112945676
          %v4448 = vmul.f32 %v4430, %v4447
          %v4449 = vadd.f32 %v4448, 0.4994258
          %v4450 = vmul.f32 %v4430, %v4449
          %v4451 = vadd.f32 %v4450, 1.0
          %v4452 = vrcp.pop %v4451
          %v4453 = vmul.f32 %v4451, %v4452
          %v4454 = vsub.f32 1.0, %v4453
          %v4455 = vmul.f32 %v4452, %v4454
          %v4456 = vadd.f32 %v4452, %v4455
          %vm4457 = vweird.f32 %v4451
          %vm4458 = vweird.f32 %v4452
          %vm4459 = vmor %vm4457, %vm4458
          %v4460 = vsel %vm4459, %v4452, %v4456
          %v4461 = vand.u32 2147483647, %v4451
          %vm4462 = vcmp.eq.f32.partialorder %v4461, 8.507059e+37
          %v4463 = vand.u32 %v4451, 2147483648
          %v4464 = vor.u32 1.1754944e-38, %v4463
          %v4465 = vsel %vm4462, %v4464, %v4460
          %v4466 = vmul.f32 %v4441, %v4465
          %v4467 = vmin.f32 %v4466, 1.0
          %v4468 = vmax.f32 %v4467, -1.0
          %v4469 = vmul.f32 %v4258, %v4258
          %v4470 = vmin.f32 16.0, %v4469
          %v4471 = vmul.f32 %v4470, 2.1237322e-06
          %v4472 = vadd.f32 %v4471, 0.00028619796
          %v4473 = vmul.f32 %v4470, %v4472
          %v4474 = vadd.f32 %v4473, 0.0036580483
          %v4475 = vmul.f32 %v4470, %v4474
          %v4476 = vadd.f32 %v4475, 0.05243302
          %v4477 = vmul.f32 %v4470, %v4476
          %v4478 = vadd.f32 %v4477, 0.18741608
          %v4479 = vmul.f32 %v4470, %v4478
          %v4480 = vadd.f32 %v4479, 1.1283791
          %v4481 = vmul.f32 %v4258, %v4480
          %v4482 = vmul.f32 %v4470, 3.8918573e-05
          %v4483 = vadd.f32 %v4482, 0.001143296
          %v4484 = vmul.f32 %v4470, %v4483
          %v4485 = vadd.f32 %v4484, 0.014752088
          %v4486 = vmul.f32 %v4470, %v4485
          %v4487 = vadd.f32 %v4486, 0.112945676
          %v4488 = vmul.f32 %v4470, %v4487
          %v4489 = vadd.f32 %v4488, 0.4994258
          %v4490 = vmul.f32 %v4470, %v4489
          %v4491 = vadd.f32 %v4490, 1.0
          %v4492 = vrcp.pop %v4491
          %v4493 = vmul.f32 %v4491, %v4492
          %v4494 = vsub.f32 1.0, %v4493
          %v4495 = vmul.f32 %v4492, %v4494
          %v4496 = vadd.f32 %v4492, %v4495
          %vm4497 = vweird.f32 %v4491
          %vm4498 = vweird.f32 %v4492
          %vm4499 = vmor %vm4497, %vm4498
          %v4500 = vsel %vm4499, %v4492, %v4496
          %v4501 = vand.u32 2147483647, %v4491
          %vm4502 = vcmp.eq.f32.partialorder %v4501, 8.507059e+37
          %v4503 = vand.u32 %v4491, 2147483648
          %v4504 = vor.u32 1.1754944e-38, %v4503
          %v4505 = vsel %vm4502, %v4504, %v4500
          %v4506 = vmul.f32 %v4481, %v4505
          %v4507 = vmin.f32 %v4506, 1.0
          %v4508 = vmax.f32 %v4507, -1.0
          %v4509 = vmul.f32 %v4259, %v4259
          %v4510 = vmin.f32 16.0, %v4509
          %v4511 = vmul.f32 %v4510, 2.1237322e-06
          %v4512 = vadd.f32 %v4511, 0.00028619796
          %v4513 = vmul.f32 %v4510, %v4512
          %v4514 = vadd.f32 %v4513, 0.0036580483
          %v4515 = vmul.f32 %v4510, %v4514
          %v4516 = vadd.f32 %v4515, 0.05243302
          %v4517 = vmul.f32 %v4510, %v4516
          %v4518 = vadd.f32 %v4517, 0.18741608
          %v4519 = vmul.f32 %v4510, %v4518
          %v4520 = vadd.f32 %v4519, 1.1283791
          %v4521 = vmul.f32 %v4259, %v4520
          %v4522 = vmul.f32 %v4510, 3.8918573e-05
          %v4523 = vadd.f32 %v4522, 0.001143296
          %v4524 = vmul.f32 %v4510, %v4523
          %v4525 = vadd.f32 %v4524, 0.014752088
          %v4526 = vmul.f32 %v4510, %v4525
          %v4527 = vadd.f32 %v4526, 0.112945676
          %v4528 = vmul.f32 %v4510, %v4527
          %v4529 = vadd.f32 %v4528, 0.4994258
          %v4530 = vmul.f32 %v4510, %v4529
          %v4531 = vadd.f32 %v4530, 1.0
          %v4532 = vrcp.pop %v4531
          %v4533 = vmul.f32 %v4531, %v4532
          %v4534 = vsub.f32 1.0, %v4533
          %v4535 = vmul.f32 %v4532, %v4534
          %v4536 = vadd.f32 %v4532, %v4535
          %vm4537 = vweird.f32 %v4531
          %vm4538 = vweird.f32 %v4532
          %vm4539 = vmor %vm4537, %vm4538
          %v4540 = vsel %vm4539, %v4532, %v4536
          %v4541 = vand.u32 2147483647, %v4531
          %vm4542 = vcmp.eq.f32.partialorder %v4541, 8.507059e+37
          %v4543 = vand.u32 %v4531, 2147483648
          %v4544 = vor.u32 1.1754944e-38, %v4543
          %v4545 = vsel %vm4542, %v4544, %v4540
          %v4546 = vmul.f32 %v4521, %v4545
          %v4547 = vmin.f32 %v4546, 1.0
          %v4548 = vmax.f32 %v4547, -1.0
          %v4549 = vmul.f32 %v4260, %v4260
          %v4550 = vmin.f32 16.0, %v4549
          %v4551 = vmul.f32 %v4550, 2.1237322e-06
          %v4552 = vadd.f32 %v4551, 0.00028619796
          %v4553 = vmul.f32 %v4550, %v4552
          %v4554 = vadd.f32 %v4553, 0.0036580483
          %v4555 = vmul.f32 %v4550, %v4554
          %v4556 = vadd.f32 %v4555, 0.05243302
          %v4557 = vmul.f32 %v4550, %v4556
          %v4558 = vadd.f32 %v4557, 0.18741608
          %v4559 = vmul.f32 %v4550, %v4558
          %v4560 = vadd.f32 %v4559, 1.1283791
          %v4561 = vmul.f32 %v4260, %v4560
          %v4562 = vmul.f32 %v4550, 3.8918573e-05
          %v4563 = vadd.f32 %v4562, 0.001143296
          %v4564 = vmul.f32 %v4550, %v4563
          %v4565 = vadd.f32 %v4564, 0.014752088
          %v4566 = vmul.f32 %v4550, %v4565
          %v4567 = vadd.f32 %v4566, 0.112945676
          %v4568 = vmul.f32 %v4550, %v4567
          %v4569 = vadd.f32 %v4568, 0.4994258
          %v4570 = vmul.f32 %v4550, %v4569
          %v4571 = vadd.f32 %v4570, 1.0
          %v4572 = vrcp.pop %v4571
          %v4573 = vmul.f32 %v4571, %v4572
          %v4574 = vsub.f32 1.0, %v4573
          %v4575 = vmul.f32 %v4572, %v4574
          %v4576 = vadd.f32 %v4572, %v4575
          %vm4577 = vweird.f32 %v4571
          %vm4578 = vweird.f32 %v4572
          %vm4579 = vmor %vm4577, %vm4578
          %v4580 = vsel %vm4579, %v4572, %v4576
          %v4581 = vand.u32 2147483647, %v4571
          %vm4582 = vcmp.eq.f32.partialorder %v4581, 8.507059e+37
          %v4583 = vand.u32 %v4571, 2147483648
          %v4584 = vor.u32 1.1754944e-38, %v4583
          %v4585 = vsel %vm4582, %v4584, %v4580
          %v4586 = vmul.f32 %v4561, %v4585
          %v4587 = vmin.f32 %v4586, 1.0
          %v4588 = vmax.f32 %v4587, -1.0
          %v4589 = vmul.f32 %v4261, %v4261
          %v4590 = vmin.f32 16.0, %v4589
          %v4591 = vmul.f32 %v4590, 2.1237322e-06
          %v4592 = vadd.f32 %v4591, 0.00028619796
          %v4593 = vmul.f32 %v4590, %v4592
          %v4594 = vadd.f32 %v4593, 0.0036580483
          %v4595 = vmul.f32 %v4590, %v4594
          %v4596 = vadd.f32 %v4595, 0.05243302
          %v4597 = vmul.f32 %v4590, %v4596
          %v4598 = vadd.f32 %v4597, 0.18741608
          %v4599 = vmul.f32 %v4590, %v4598
          %v4600 = vadd.f32 %v4599, 1.1283791
          %v4601 = vmul.f32 %v4261, %v4600
          %v4602 = vmul.f32 %v4590, 3.8918573e-05
          %v4603 = vadd.f32 %v4602, 0.001143296
          %v4604 = vmul.f32 %v4590, %v4603
          %v4605 = vadd.f32 %v4604, 0.014752088
          %v4606 = vmul.f32 %v4590, %v4605
          %v4607 = vadd.f32 %v4606, 0.112945676
          %v4608 = vmul.f32 %v4590, %v4607
          %v4609 = vadd.f32 %v4608, 0.4994258
          %v4610 = vmul.f32 %v4590, %v4609
          %v4611 = vadd.f32 %v4610, 1.0
          %v4612 = vrcp.pop %v4611
          %v4613 = vmul.f32 %v4611, %v4612
          %v4614 = vsub.f32 1.0, %v4613
          %v4615 = vmul.f32 %v4612, %v4614
          %v4616 = vadd.f32 %v4612, %v4615
          %vm4617 = vweird.f32 %v4611
          %vm4618 = vweird.f32 %v4612
          %vm4619 = vmor %vm4617, %vm4618
          %v4620 = vsel %vm4619, %v4612, %v4616
          %v4621 = vand.u32 2147483647, %v4611
          %vm4622 = vcmp.eq.f32.partialorder %v4621, 8.507059e+37
          %v4623 = vand.u32 %v4611, 2147483648
          %v4624 = vor.u32 1.1754944e-38, %v4623
          %v4625 = vsel %vm4622, %v4624, %v4620
          %v4626 = vmul.f32 %v4601, %v4625
          %v4627 = vmin.f32 %v4626, 1.0
          %v4628 = vmax.f32 %v4627, -1.0
          %v4629 = vmul.f32 %v4262, %v4262
          %v4630 = vmin.f32 16.0, %v4629
          %v4631 = vmul.f32 %v4630, 2.1237322e-06
          %v4632 = vadd.f32 %v4631, 0.00028619796
          %v4633 = vmul.f32 %v4630, %v4632
          %v4634 = vadd.f32 %v4633, 0.0036580483
          %v4635 = vmul.f32 %v4630, %v4634
          %v4636 = vadd.f32 %v4635, 0.05243302
          %v4637 = vmul.f32 %v4630, %v4636
          %v4638 = vadd.f32 %v4637, 0.18741608
          %v4639 = vmul.f32 %v4630, %v4638
          %v4640 = vadd.f32 %v4639, 1.1283791
          %v4641 = vmul.f32 %v4262, %v4640
          %v4642 = vmul.f32 %v4630, 3.8918573e-05
          %v4643 = vadd.f32 %v4642, 0.001143296
          %v4644 = vmul.f32 %v4630, %v4643
          %v4645 = vadd.f32 %v4644, 0.014752088
          %v4646 = vmul.f32 %v4630, %v4645
          %v4647 = vadd.f32 %v4646, 0.112945676
          %v4648 = vmul.f32 %v4630, %v4647
          %v4649 = vadd.f32 %v4648, 0.4994258
          %v4650 = vmul.f32 %v4630, %v4649
          %v4651 = vadd.f32 %v4650, 1.0
          %v4652 = vrcp.pop %v4651
          %v4653 = vmul.f32 %v4651, %v4652
          %v4654 = vsub.f32 1.0, %v4653
          %v4655 = vmul.f32 %v4652, %v4654
          %v4656 = vadd.f32 %v4652, %v4655
          %vm4657 = vweird.f32 %v4651
          %vm4658 = vweird.f32 %v4652
          %vm4659 = vmor %vm4657, %vm4658
          %v4660 = vsel %vm4659, %v4652, %v4656
          %v4661 = vand.u32 2147483647, %v4651
          %vm4662 = vcmp.eq.f32.partialorder %v4661, 8.507059e+37
          %v4663 = vand.u32 %v4651, 2147483648
          %v4664 = vor.u32 1.1754944e-38, %v4663
          %v4665 = vsel %vm4662, %v4664, %v4660
          %v4666 = vmul.f32 %v4641, %v4665
          %v4667 = vmin.f32 %v4666, 1.0
          %v4668 = vmax.f32 %v4667, -1.0
          %v4669 = vmul.f32 %v4263, %v4263
          %v4670 = vmin.f32 16.0, %v4669
          %v4671 = vmul.f32 %v4670, 2.1237322e-06
          %v4672 = vadd.f32 %v4671, 0.00028619796
          %v4673 = vmul.f32 %v4670, %v4672
          %v4674 = vadd.f32 %v4673, 0.0036580483
          %v4675 = vmul.f32 %v4670, %v4674
          %v4676 = vadd.f32 %v4675, 0.05243302
          %v4677 = vmul.f32 %v4670, %v4676
          %v4678 = vadd.f32 %v4677, 0.18741608
          %v4679 = vmul.f32 %v4670, %v4678
          %v4680 = vadd.f32 %v4679, 1.1283791
          %v4681 = vmul.f32 %v4263, %v4680
          %v4682 = vmul.f32 %v4670, 3.8918573e-05
          %v4683 = vadd.f32 %v4682, 0.001143296
          %v4684 = vmul.f32 %v4670, %v4683
          %v4685 = vadd.f32 %v4684, 0.014752088
          %v4686 = vmul.f32 %v4670, %v4685
          %v4687 = vadd.f32 %v4686, 0.112945676
          %v4688 = vmul.f32 %v4670, %v4687
          %v4689 = vadd.f32 %v4688, 0.4994258
          %v4690 = vmul.f32 %v4670, %v4689
          %v4691 = vadd.f32 %v4690, 1.0
          %v4692 = vrcp.pop %v4691
          %v4693 = vmul.f32 %v4691, %v4692
          %v4694 = vsub.f32 1.0, %v4693
          %v4695 = vmul.f32 %v4692, %v4694
          %v4696 = vadd.f32 %v4692, %v4695
          %vm4697 = vweird.f32 %v4691
          %vm4698 = vweird.f32 %v4692
          %vm4699 = vmor %vm4697, %vm4698
          %v4700 = vsel %vm4699, %v4692, %v4696
          %v4701 = vand.u32 2147483647, %v4691
          %vm4702 = vcmp.eq.f32.partialorder %v4701, 8.507059e+37
          %v4703 = vand.u32 %v4691, 2147483648
          %v4704 = vor.u32 1.1754944e-38, %v4703
          %v4705 = vsel %vm4702, %v4704, %v4700
          %v4706 = vmul.f32 %v4681, %v4705
          %v4707 = vmin.f32 %v4706, 1.0
          %v4708 = vmax.f32 %v4707, -1.0
          %v4709 = vmul.f32 %v4264, %v4264
          %v4710 = vmin.f32 16.0, %v4709
          %v4711 = vmul.f32 %v4710, 2.1237322e-06
          %v4712 = vadd.f32 %v4711, 0.00028619796
          %v4713 = vmul.f32 %v4710, %v4712
          %v4714 = vadd.f32 %v4713, 0.0036580483
          %v4715 = vmul.f32 %v4710, %v4714
          %v4716 = vadd.f32 %v4715, 0.05243302
          %v4717 = vmul.f32 %v4710, %v4716
          %v4718 = vadd.f32 %v4717, 0.18741608
          %v4719 = vmul.f32 %v4710, %v4718
          %v4720 = vadd.f32 %v4719, 1.1283791
          %v4721 = vmul.f32 %v4264, %v4720
          %v4722 = vmul.f32 %v4710, 3.8918573e-05
          %v4723 = vadd.f32 %v4722, 0.001143296
          %v4724 = vmul.f32 %v4710, %v4723
          %v4725 = vadd.f32 %v4724, 0.014752088
          %v4726 = vmul.f32 %v4710, %v4725
          %v4727 = vadd.f32 %v4726, 0.112945676
          %v4728 = vmul.f32 %v4710, %v4727
          %v4729 = vadd.f32 %v4728, 0.4994258
          %v4730 = vmul.f32 %v4710, %v4729
          %v4731 = vadd.f32 %v4730, 1.0
          %v4732 = vrcp.pop %v4731
          %v4733 = vmul.f32 %v4731, %v4732
          %v4734 = vsub.f32 1.0, %v4733
          %v4735 = vmul.f32 %v4732, %v4734
          %v4736 = vadd.f32 %v4732, %v4735
          %vm4737 = vweird.f32 %v4731
          %vm4738 = vweird.f32 %v4732
          %vm4739 = vmor %vm4737, %vm4738
          %v4740 = vsel %vm4739, %v4732, %v4736
          %v4741 = vand.u32 2147483647, %v4731
          %vm4742 = vcmp.eq.f32.partialorder %v4741, 8.507059e+37
          %v4743 = vand.u32 %v4731, 2147483648
          %v4744 = vor.u32 1.1754944e-38, %v4743
          %v4745 = vsel %vm4742, %v4744, %v4740
          %v4746 = vmul.f32 %v4721, %v4745
          %v4747 = vmin.f32 %v4746, 1.0
          %v4748 = vmax.f32 %v4747, -1.0
          %v4749 = vmul.f32 %v4265, %v4265
          %v4750 = vmin.f32 16.0, %v4749
          %v4751 = vmul.f32 %v4750, 2.1237322e-06
          %v4752 = vadd.f32 %v4751, 0.00028619796
          %v4753 = vmul.f32 %v4750, %v4752
          %v4754 = vadd.f32 %v4753, 0.0036580483
          %v4755 = vmul.f32 %v4750, %v4754
          %v4756 = vadd.f32 %v4755, 0.05243302
          %v4757 = vmul.f32 %v4750, %v4756
          %v4758 = vadd.f32 %v4757, 0.18741608
          %v4759 = vmul.f32 %v4750, %v4758
          %v4760 = vadd.f32 %v4759, 1.1283791
          %v4761 = vmul.f32 %v4265, %v4760
          %v4762 = vmul.f32 %v4750, 3.8918573e-05
          %v4763 = vadd.f32 %v4762, 0.001143296
          %v4764 = vmul.f32 %v4750, %v4763
          %v4765 = vadd.f32 %v4764, 0.014752088
          %v4766 = vmul.f32 %v4750, %v4765
          %v4767 = vadd.f32 %v4766, 0.112945676
          %v4768 = vmul.f32 %v4750, %v4767
          %v4769 = vadd.f32 %v4768, 0.4994258
          %v4770 = vmul.f32 %v4750, %v4769
          %v4771 = vadd.f32 %v4770, 1.0
          %v4772 = vrcp.pop %v4771
          %v4773 = vmul.f32 %v4771, %v4772
          %v4774 = vsub.f32 1.0, %v4773
          %v4775 = vmul.f32 %v4772, %v4774
          %v4776 = vadd.f32 %v4772, %v4775
          %vm4777 = vweird.f32 %v4771
          %vm4778 = vweird.f32 %v4772
          %vm4779 = vmor %vm4777, %vm4778
          %v4780 = vsel %vm4779, %v4772, %v4776
          %v4781 = vand.u32 2147483647, %v4771
          %vm4782 = vcmp.eq.f32.partialorder %v4781, 8.507059e+37
          %v4783 = vand.u32 %v4771, 2147483648
          %v4784 = vor.u32 1.1754944e-38, %v4783
          %v4785 = vsel %vm4782, %v4784, %v4780
          %v4786 = vmul.f32 %v4761, %v4785
          %v4787 = vmin.f32 %v4786, 1.0
          %v4788 = vmax.f32 %v4787, -1.0
          %v4789 = vmul.f32 %v4266, %v4266
          %v4790 = vmin.f32 16.0, %v4789
          %v4791 = vmul.f32 %v4790, 2.1237322e-06
          %v4792 = vadd.f32 %v4791, 0.00028619796
          %v4793 = vmul.f32 %v4790, %v4792
          %v4794 = vadd.f32 %v4793, 0.0036580483
          %v4795 = vmul.f32 %v4790, %v4794
          %v4796 = vadd.f32 %v4795, 0.05243302
          %v4797 = vmul.f32 %v4790, %v4796
          %v4798 = vadd.f32 %v4797, 0.18741608
          %v4799 = vmul.f32 %v4790, %v4798
          %v4800 = vadd.f32 %v4799, 1.1283791
          %v4801 = vmul.f32 %v4266, %v4800
          %v4802 = vmul.f32 %v4790, 3.8918573e-05
          %v4803 = vadd.f32 %v4802, 0.001143296
          %v4804 = vmul.f32 %v4790, %v4803
          %v4805 = vadd.f32 %v4804, 0.014752088
          %v4806 = vmul.f32 %v4790, %v4805
          %v4807 = vadd.f32 %v4806, 0.112945676
          %v4808 = vmul.f32 %v4790, %v4807
          %v4809 = vadd.f32 %v4808, 0.4994258
          %v4810 = vmul.f32 %v4790, %v4809
          %v4811 = vadd.f32 %v4810, 1.0
          %v4812 = vrcp.pop %v4811
          %v4813 = vmul.f32 %v4811, %v4812
          %v4814 = vsub.f32 1.0, %v4813
          %v4815 = vmul.f32 %v4812, %v4814
          %v4816 = vadd.f32 %v4812, %v4815
          %vm4817 = vweird.f32 %v4811
          %vm4818 = vweird.f32 %v4812
          %vm4819 = vmor %vm4817, %vm4818
          %v4820 = vsel %vm4819, %v4812, %v4816
          %v4821 = vand.u32 2147483647, %v4811
          %vm4822 = vcmp.eq.f32.partialorder %v4821, 8.507059e+37
          %v4823 = vand.u32 %v4811, 2147483648
          %v4824 = vor.u32 1.1754944e-38, %v4823
          %v4825 = vsel %vm4822, %v4824, %v4820
          %v4826 = vmul.f32 %v4801, %v4825
          %v4827 = vmin.f32 %v4826, 1.0
          %v4828 = vmax.f32 %v4827, -1.0
          %v4829 = vmul.f32 %v4267, %v4267
          %v4830 = vmin.f32 16.0, %v4829
          %v4831 = vmul.f32 %v4830, 2.1237322e-06
          %v4832 = vadd.f32 %v4831, 0.00028619796
          %v4833 = vmul.f32 %v4830, %v4832
          %v4834 = vadd.f32 %v4833, 0.0036580483
          %v4835 = vmul.f32 %v4830, %v4834
          %v4836 = vadd.f32 %v4835, 0.05243302
          %v4837 = vmul.f32 %v4830, %v4836
          %v4838 = vadd.f32 %v4837, 0.18741608
          %v4839 = vmul.f32 %v4830, %v4838
          %v4840 = vadd.f32 %v4839, 1.1283791
          %v4841 = vmul.f32 %v4267, %v4840
          %v4842 = vmul.f32 %v4830, 3.8918573e-05
          %v4843 = vadd.f32 %v4842, 0.001143296
          %v4844 = vmul.f32 %v4830, %v4843
          %v4845 = vadd.f32 %v4844, 0.014752088
          %v4846 = vmul.f32 %v4830, %v4845
          %v4847 = vadd.f32 %v4846, 0.112945676
          %v4848 = vmul.f32 %v4830, %v4847
          %v4849 = vadd.f32 %v4848, 0.4994258
          %v4850 = vmul.f32 %v4830, %v4849
          %v4851 = vadd.f32 %v4850, 1.0
          %v4852 = vrcp.pop %v4851
          %v4853 = vmul.f32 %v4851, %v4852
          %v4854 = vsub.f32 1.0, %v4853
          %v4855 = vmul.f32 %v4852, %v4854
          %v4856 = vadd.f32 %v4852, %v4855
          %vm4857 = vweird.f32 %v4851
          %vm4858 = vweird.f32 %v4852
          %vm4859 = vmor %vm4857, %vm4858
          %v4860 = vsel %vm4859, %v4852, %v4856
          %v4861 = vand.u32 2147483647, %v4851
          %vm4862 = vcmp.eq.f32.partialorder %v4861, 8.507059e+37
          %v4863 = vand.u32 %v4851, 2147483648
          %v4864 = vor.u32 1.1754944e-38, %v4863
          %v4865 = vsel %vm4862, %v4864, %v4860
          %v4866 = vmul.f32 %v4841, %v4865
          %v4867 = vmin.f32 %v4866, 1.0
          %v4868 = vmax.f32 %v4867, -1.0
          %v4869 = vmul.f32 %v4268, %v4268
          %v4870 = vmin.f32 16.0, %v4869
          %v4871 = vmul.f32 %v4870, 2.1237322e-06
          %v4872 = vadd.f32 %v4871, 0.00028619796
          %v4873 = vmul.f32 %v4870, %v4872
          %v4874 = vadd.f32 %v4873, 0.0036580483
          %v4875 = vmul.f32 %v4870, %v4874
          %v4876 = vadd.f32 %v4875, 0.05243302
          %v4877 = vmul.f32 %v4870, %v4876
          %v4878 = vadd.f32 %v4877, 0.18741608
          %v4879 = vmul.f32 %v4870, %v4878
          %v4880 = vadd.f32 %v4879, 1.1283791
          %v4881 = vmul.f32 %v4268, %v4880
          %v4882 = vmul.f32 %v4870, 3.8918573e-05
          %v4883 = vadd.f32 %v4882, 0.001143296
          %v4884 = vmul.f32 %v4870, %v4883
          %v4885 = vadd.f32 %v4884, 0.014752088
          %v4886 = vmul.f32 %v4870, %v4885
          %v4887 = vadd.f32 %v4886, 0.112945676
          %v4888 = vmul.f32 %v4870, %v4887
          %v4889 = vadd.f32 %v4888, 0.4994258
          %v4890 = vmul.f32 %v4870, %v4889
          %v4891 = vadd.f32 %v4890, 1.0
          %v4892 = vrcp.pop %v4891
          %v4893 = vmul.f32 %v4891, %v4892
          %v4894 = vsub.f32 1.0, %v4893
          %v4895 = vmul.f32 %v4892, %v4894
          %v4896 = vadd.f32 %v4892, %v4895
          %vm4897 = vweird.f32 %v4891
          %vm4898 = vweird.f32 %v4892
          %vm4899 = vmor %vm4897, %vm4898
          %v4900 = vsel %vm4899, %v4892, %v4896
          %v4901 = vand.u32 2147483647, %v4891
          %vm4902 = vcmp.eq.f32.partialorder %v4901, 8.507059e+37
          %v4903 = vand.u32 %v4891, 2147483648
          %v4904 = vor.u32 1.1754944e-38, %v4903
          %v4905 = vsel %vm4902, %v4904, %v4900
          %v4906 = vmul.f32 %v4881, %v4905
          %v4907 = vmin.f32 %v4906, 1.0
          %v4908 = vmax.f32 %v4907, -1.0
          %v4909 = vadd.f32 %v4308, 1.0
          %v4910 = vadd.f32 %v4348, 1.0
          %v4911 = vadd.f32 %v4388, 1.0
          %v4912 = vadd.f32 %v4428, 1.0
          %v4913 = vadd.f32 %v4468, 1.0
          %v4914 = vadd.f32 %v4508, 1.0
          %v4915 = vadd.f32 %v4548, 1.0
          %v4916 = vadd.f32 %v4588, 1.0
          %v4917 = vadd.f32 %v4628, 1.0
          %v4918 = vadd.f32 %v4668, 1.0
          %v4919 = vadd.f32 %v4708, 1.0
          %v4920 = vadd.f32 %v4748, 1.0
          %v4921 = vadd.f32 %v4788, 1.0
          %v4922 = vadd.f32 %v4828, 1.0
          %v4923 = vadd.f32 %v4868, 1.0
          %v4924 = vadd.f32 %v4908, 1.0
          %v4925 = vmul.f32 %v4237, %v4909
          %v4926 = vmul.f32 %v4238, %v4910
          %v4927 = vmul.f32 %v4239, %v4911
          %v4928 = vmul.f32 %v4240, %v4912
          %v4929 = vmul.f32 %v4241, %v4913
          %v4930 = vmul.f32 %v4242, %v4914
          %v4931 = vmul.f32 %v4243, %v4915
          %v4932 = vmul.f32 %v4244, %v4916
          %v4933 = vmul.f32 %v4245, %v4917
          %v4934 = vmul.f32 %v4246, %v4918
          %v4935 = vmul.f32 %v4247, %v4919
          %v4936 = vmul.f32 %v4248, %v4920
          %v4937 = vmul.f32 %v4249, %v4921
          %v4938 = vmul.f32 %v4250, %v4922
          %v4939 = vmul.f32 %v4251, %v4923
          %v4940 = vmul.f32 %v4252, %v4924
          %v4941 = vmul.f32 %v4077, %v4925
          %v4942 = vmul.f32 %v4106, %v4926
          %v4943 = vmul.f32 %v4079, %v4927
          %v4944 = vmul.f32 %v4108, %v4928
          %v4945 = vmul.f32 %v4082, %v4929
          %v4946 = vmul.f32 %v4111, %v4930
          %v4947 = vmul.f32 %v4084, %v4931
          %v4948 = vmul.f32 %v4113, %v4932
          %v4949 = vmul.f32 %v4087, %v4933
          %v4950 = vmul.f32 %v4116, %v4934
          %v4951 = vmul.f32 %v4089, %v4935
          %v4952 = vmul.f32 %v4118, %v4936
          %v4953 = vmul.f32 %v4092, %v4937
          %v4954 = vmul.f32 %v4121, %v4938
          %v4955 = vmul.f32 %v4094, %v4939
          %v4956 = vmul.f32 %v4123, %v4940
          %v4957 = vpack.c.bf16 %v4943, %v4941
          %v4958 = vpack.c.bf16 %v4944, %v4942
          %v4959 = vpack.c.bf16 %v4947, %v4945
          %v4960 = vpack.c.bf16 %v4948, %v4946
          %v4961 = vpack.c.bf16 %v4951, %v4949
          %v4962 = vpack.c.bf16 %v4952, %v4950
          %v4963 = vpack.c.bf16 %v4955, %v4953
          %v4964 = vpack.c.bf16 %v4956, %v4954
          %v4965 = vld [vmem:[%s20] sm:$0xf]
          %v4966 = vld [vmem:[%s20 + $0x4] sm:$0xf]
          %v4967 = vld [vmem:[%s20 + $0x8] sm:$0xf]
          %v4968 = vld [vmem:[%s20 + $0xc] sm:$0xf]
          %v4969 = vld [vmem:[%s20 + $0x10] sm:$0xf]
          %v4970 = vld [vmem:[%s20 + $0x14] sm:$0xf]
          %v4971 = vld [vmem:[%s20 + $0x18] sm:$0xf]
          %v4972 = vld [vmem:[%s20 + $0x1c] sm:$0xf]
          %v4973 = vld [vmem:[%s20 + $0x20] sm:$0xf]
          %v4974 = vld [vmem:[%s20 + $0x24] sm:$0xf]
          %v4975 = vld [vmem:[%s20 + $0x28] sm:$0xf]
          %v4976 = vld [vmem:[%s20 + $0x2c] sm:$0xf]
          %v4977 = vld [vmem:[%s20 + $0x30] sm:$0xf]
          %v4978 = vld [vmem:[%s20 + $0x34] sm:$0xf]
          %v4979 = vld [vmem:[%s20 + $0x38] sm:$0xf]
          %v4980 = vld [vmem:[%s20 + $0x3c] sm:$0xf]
          %v4981 = vld [vmem:[%s20 + $0x40] sm:$0xf]
          %v4982 = vld [vmem:[%s20 + $0x44] sm:$0xf]
          %v4983 = vld [vmem:[%s20 + $0x48] sm:$0xf]
          %v4984 = vld [vmem:[%s20 + $0x4c] sm:$0xf]
          %v4985 = vld [vmem:[%s20 + $0x50] sm:$0xf]
          %v4986 = vld [vmem:[%s20 + $0x54] sm:$0xf]
          %v4987 = vld [vmem:[%s20 + $0x58] sm:$0xf]
          %v4988 = vld [vmem:[%s20 + $0x5c] sm:$0xf]
          %v4989 = vld [vmem:[%s20 + $0x60] sm:$0xf]
          %v4990 = vld [vmem:[%s20 + $0x64] sm:$0xf]
          %v4991 = vld [vmem:[%s20 + $0x68] sm:$0xf]
          %v4992 = vld [vmem:[%s20 + $0x6c] sm:$0xf]
          %v4993 = vld [vmem:[%s20 + $0x70] sm:$0xf]
          %v4994 = vld [vmem:[%s20 + $0x74] sm:$0xf]
          %v4995 = vld [vmem:[%s20 + $0x78] sm:$0xf]
          %v4996 = vld [vmem:[%s20 + $0x7c] sm:$0xf]
          %v4997 = vld [vmem:[%s21] sm:$0x1]
          %v4999 = vperm.slane %v4997, 0
          %v5033 = vunpack.c.l.b16 %v4965
          %v5034 = vunpack.c.l.b16 %v4966
          %v5035 = vunpack.c.l.b16 %v4967
          %v5036 = vunpack.c.l.b16 %v4968
          %v5037 = vunpack.c.l.b16 %v4969
          %v5038 = vunpack.c.l.b16 %v4970
          %v5039 = vunpack.c.l.b16 %v4971
          %v5040 = vunpack.c.l.b16 %v4972
          %v5041 = vunpack.c.l.b16 %v4973
          %v5042 = vunpack.c.l.b16 %v4974
          %v5043 = vunpack.c.l.b16 %v4975
          %v5044 = vunpack.c.l.b16 %v4976
          %v5045 = vunpack.c.l.b16 %v4977
          %v5046 = vunpack.c.l.b16 %v4978
          %v5047 = vunpack.c.l.b16 %v4979
          %v5048 = vunpack.c.l.b16 %v4980
          %v5049 = vunpack.c.l.b16 %v4981
          %v5050 = vunpack.c.l.b16 %v4982
          %v5051 = vunpack.c.l.b16 %v4983
          %v5052 = vunpack.c.l.b16 %v4984
          %v5053 = vunpack.c.l.b16 %v4985
          %v5054 = vunpack.c.l.b16 %v4986
          %v5055 = vunpack.c.l.b16 %v4987
          %v5056 = vunpack.c.l.b16 %v4988
          %v5057 = vunpack.c.l.b16 %v4989
          %v5058 = vunpack.c.l.b16 %v4990
          %v5059 = vunpack.c.l.b16 %v4991
          %v5060 = vunpack.c.l.b16 %v4992
          %v5061 = vunpack.c.l.b16 %v4993
          %v5062 = vunpack.c.l.b16 %v4994
          %v5063 = vunpack.c.l.b16 %v4995
          %v5064 = vunpack.c.l.b16 %v4996
          %v5065 = vpack.c.b16 %v5034, %v5033
          %v5066 = vpack.c.b16 %v5036, %v5035
          %v5067 = vpack.c.b16 %v5038, %v5037
          %v5068 = vpack.c.b16 %v5040, %v5039
          %v5069 = vpack.c.b16 %v5042, %v5041
          %v5070 = vpack.c.b16 %v5044, %v5043
          %v5071 = vpack.c.b16 %v5046, %v5045
          %v5072 = vpack.c.b16 %v5048, %v5047
          %v5073 = vpack.c.b16 %v5050, %v5049
          %v5074 = vpack.c.b16 %v5052, %v5051
          %v5075 = vpack.c.b16 %v5054, %v5053
          %v5076 = vpack.c.b16 %v5056, %v5055
          %v5077 = vpack.c.b16 %v5058, %v5057
          %v5078 = vpack.c.b16 %v5060, %v5059
          %v5079 = vpack.c.b16 %v5062, %v5061
          %v5080 = vpack.c.b16 %v5064, %v5063
          %5097 = vmatpush.bf16.msra.mxu0 %v5072
          %5098 = vmatpush.bf16.msra.mxu0 %v5071
          %5099 = vmatpush.bf16.msra.mxu0 %v5070
          %5100 = vmatpush.bf16.msra.mxu0 %v5069
          %5101 = vmatpush.bf16.msra.mxu0 %v5068
          %5102 = vmatpush.bf16.msra.mxu0 %v5067
          %5103 = vmatpush.bf16.msra.mxu0 %v5066
          %5104 = vmatpush.bf16.msra.mxu0 %v5065
          %5105 = vmatmul.bf16.gmra.mxu0 %v4957
          %v5106 = vpop.f32.mrf.mxu0
          %v5107 = vadd.f32 %v4999, %v5106
          %v5108 = vpop.f32.mrf.mxu0
          %v5109 = vadd.f32 %v4999, %v5108
          %5110 = vmatmul.bf16.gmra.mxu0 %v4959
          %v5111 = vpop.f32.mrf.mxu0
          %v5112 = vadd.f32 %v4999, %v5111
          %v5113 = vpop.f32.mrf.mxu0
          %v5114 = vadd.f32 %v4999, %v5113
          %5115 = vmatmul.bf16.gmra.mxu0 %v4961
          %v5116 = vpop.f32.mrf.mxu0
          %v5117 = vadd.f32 %v4999, %v5116
          %v5118 = vpop.f32.mrf.mxu0
          %v5119 = vadd.f32 %v4999, %v5118
          %5120 = vmatmul.bf16.gmra.mxu0 %v4963
          %v5121 = vpop.f32.mrf.mxu0
          %v5122 = vadd.f32 %v4999, %v5121
          %v5123 = vpop.f32.mrf.mxu0
          %v5124 = vadd.f32 %v4999, %v5123
          %5125 = vdwg.mxu0
          %5126 = vmatpush.bf16.msra.mxu0 %v5080
          %5127 = vmatpush.bf16.msra.mxu0 %v5079
          %5128 = vmatpush.bf16.msra.mxu0 %v5078
          %5129 = vmatpush.bf16.msra.mxu0 %v5077
          %5130 = vmatpush.bf16.msra.mxu0 %v5076
          %5131 = vmatpush.bf16.msra.mxu0 %v5075
          %5132 = vmatpush.bf16.msra.mxu0 %v5074
          %5133 = vmatpush.bf16.msra.mxu0 %v5073
          %5134 = vmatmul.bf16.gmra.mxu0 %v4958
          %v5135 = vpop.f32.mrf.mxu0
          %v5136 = vadd.f32 %v5107, %v5135
          %v5137 = vpop.f32.mrf.mxu0
          %v5138 = vadd.f32 %v5109, %v5137
          %5139 = vmatmul.bf16.gmra.mxu0 %v4960
          %v5140 = vpop.f32.mrf.mxu0
          %v5141 = vadd.f32 %v5112, %v5140
          %v5142 = vpop.f32.mrf.mxu0
          %v5143 = vadd.f32 %v5114, %v5142
          %5144 = vmatmul.bf16.gmra.mxu0 %v4962
          %v5145 = vpop.f32.mrf.mxu0
          %v5146 = vadd.f32 %v5117, %v5145
          %v5147 = vpop.f32.mrf.mxu0
          %v5148 = vadd.f32 %v5119, %v5147
          %5149 = vmatmul.bf16.gmra.mxu0 %v4964
          %v5150 = vpop.f32.mrf.mxu0
          %v5151 = vadd.f32 %v5122, %v5150
          %v5152 = vpop.f32.mrf.mxu0
          %v5153 = vadd.f32 %v5124, %v5152
          %5154 = vdwg.mxu0
          %v5155 = vadd.f32 %v5136, %v3789
          %v5156 = vadd.f32 %v5138, %v3790
          %v5157 = vadd.f32 %v5141, %v3791
          %v5158 = vadd.f32 %v5143, %v3792
          %v5159 = vadd.f32 %v5146, %v3793
          %v5160 = vadd.f32 %v5148, %v3794
          %v5161 = vadd.f32 %v5151, %v3795
          %v5162 = vadd.f32 %v5153, %v3796
          %v5163 = vpack.c.bf16 %v5156, %v5155
          %v5164 = vpack.c.bf16 %v5158, %v5157
          %v5165 = vpack.c.bf16 %v5160, %v5159
          %v5166 = vpack.c.bf16 %v5162, %v5161
          %v5167 = vld [vmem:[%s22] sm:$0xf]
          %v5168 = vld [vmem:[%s22 + $0x4] sm:$0xf]
          %v5169 = vld [vmem:[%s22 + $0x8] sm:$0xf]
          %v5170 = vld [vmem:[%s22 + $0xc] sm:$0xf]
          %v5171 = vld [vmem:[%s22 + $0x10] sm:$0xf]
          %v5172 = vld [vmem:[%s22 + $0x14] sm:$0xf]
          %v5173 = vld [vmem:[%s22 + $0x18] sm:$0xf]
          %v5174 = vld [vmem:[%s22 + $0x1c] sm:$0xf]
          %v5175 = vld [vmem:[%s23] sm:$0x1]
          %v5177 = vperm.slane %v5175, 0
          %v5187 = vunpack.c.l.b16 %v5167
          %v5188 = vunpack.c.l.b16 %v5168
          %v5189 = vunpack.c.l.b16 %v5169
          %v5190 = vunpack.c.l.b16 %v5170
          %v5191 = vunpack.c.l.b16 %v5171
          %v5192 = vunpack.c.l.b16 %v5172
          %v5193 = vunpack.c.l.b16 %v5173
          %v5194 = vunpack.c.l.b16 %v5174
          %v5195 = vpack.c.b16 %v5188, %v5187
          %v5196 = vpack.c.b16 %v5190, %v5189
          %v5197 = vpack.c.b16 %v5192, %v5191
          %v5198 = vpack.c.b16 %v5194, %v5193
          %v5204 = vsel %vm1527, %v5163, 0
          %v5207 = vsel %vm1527, %v5164, 0
          %v5210 = vsel %vm1527, %v5165, 0
          %v5213 = vsel %vm1527, %v5166, 0
          %5215 = vmatpush.bf16.msra.mxu0 0
          %5216 = vmatpush.bf16.msra.mxu0 0
          %5217 = vmatpush.bf16.msra.mxu0 0
          %5218 = vmatpush.bf16.msra.mxu0 0
          %5219 = vmatpush.bf16.msra.mxu0 %v5198
          %5220 = vmatpush.bf16.msra.mxu0 %v5197
          %5221 = vmatpush.bf16.msra.mxu0 %v5196
          %5222 = vmatpush.bf16.msra.mxu0 %v5195
          %5223 = vmatmul.bf16.gmra.mxu0 %v5204
          %v5224 = vpop.f32.mrf.mxu0
          %v5225 = vadd.f32 %v5177, %v5224
          %v5226 = vpop.f32.mrf.mxu0
          %v5227 = vadd.f32 %v5177, %v5226
          %5228 = vmatmul.bf16.gmra.mxu0 %v5207
          %v5229 = vpop.f32.mrf.mxu0
          %v5230 = vadd.f32 %v5177, %v5229
          %v5231 = vpop.f32.mrf.mxu0
          %v5232 = vadd.f32 %v5177, %v5231
          %5233 = vmatmul.bf16.gmra.mxu0 %v5210
          %v5234 = vpop.f32.mrf.mxu0
          %v5235 = vadd.f32 %v5177, %v5234
          %v5236 = vpop.f32.mrf.mxu0
          %v5237 = vadd.f32 %v5177, %v5236
          %5238 = vmatmul.bf16.gmra.mxu0 %v5213
          %v5239 = vpop.f32.mrf.mxu0
          %v5240 = vadd.f32 %v5177, %v5239
          %v5241 = vpop.f32.mrf.mxu0
          %v5242 = vadd.f32 %v5177, %v5241
          %5243 = vdwg.mxu0
          %v5244 = vld [vmem:[%s1211] sm:$0xf]
          %v5245 = vld [vmem:[%s1211 + $0x4] sm:$0xf]
          %v5246 = vld [vmem:[%s1211 + $0x8] sm:$0xf]
          %v5247 = vld [vmem:[%s1211 + $0xc] sm:$0xf]
          %v5248 = vld [vmem:[%s1211 + $0x10] sm:$0xf]
          %v5249 = vld [vmem:[%s1211 + $0x14] sm:$0xf]
          %v5250 = vld [vmem:[%s1211 + $0x18] sm:$0xf]
          %v5251 = vld [vmem:[%s1211 + $0x1c] sm:$0xf]
          %v5252 = vunpack.c.l.bf16 %v5244
          %v5253 = vunpack.c.l.bf16 %v5245
          %v5254 = vunpack.c.l.bf16 %v5246
          %v5255 = vunpack.c.l.bf16 %v5247
          %v5256 = vunpack.c.l.bf16 %v5248
          %v5257 = vunpack.c.l.bf16 %v5249
          %v5258 = vunpack.c.l.bf16 %v5250
          %v5259 = vunpack.c.l.bf16 %v5251
          %v5260 = vadd.f32 %v5225, %v5252
          %v5261 = vadd.f32 %v5227, %v5253
          %v5262 = vadd.f32 %v5230, %v5254
          %v5263 = vadd.f32 %v5232, %v5255
          %v5264 = vadd.f32 %v5235, %v5256
          %v5265 = vadd.f32 %v5237, %v5257
          %v5266 = vadd.f32 %v5240, %v5258
          %v5267 = vadd.f32 %v5242, %v5259
          %5268 = vst.msk [vmem:[%s1202] sm:$0xff] %vm1527, %v5260
          %5269 = vst.msk [vmem:[%s1202 + $0x8] sm:$0xff] %vm1527, %v5261
          %5270 = vst.msk [vmem:[%s1202 + $0x10] sm:$0xff] %vm1527, %v5262
          %5271 = vst.msk [vmem:[%s1202 + $0x18] sm:$0xff] %vm1527, %v5263
          %5272 = vst.msk [vmem:[%s1202 + $0x20] sm:$0xff] %vm1527, %v5264
          %5273 = vst.msk [vmem:[%s1202 + $0x28] sm:$0xff] %vm1527, %v5265
          %5274 = vst.msk [vmem:[%s1202 + $0x30] sm:$0xff] %vm1527, %v5266
          %5275 = vst.msk [vmem:[%s1202 + $0x38] sm:$0xff] %vm1527, %v5267
        $region247: #{unet_attention_block.3} parent=226 // pred_fallthru
          _
        %s5276 = sand.u32 %s616, 1
        %s5277 = scalar_lea.sflag [#allocation9], %s5276
        %s5278 = sand.u32 %s616, 1
        %s5279 = smul.addr %s5278, 64
        %s5280 = scalar_lea.vmem [#allocation8], %s5279
        // Predicated region
        $region248: #{unet_attention_block.3} parent=226 // pred_check
          %p5281 = pneg %p626
        $region249: #{unet_attention_block.3} parent=226 // pred_check_branch
          %5283 = sbr.rel (%p5281) target = $region251
        $region250: #{unet_attention_block.3} parent=226 // pred_region
          %s5284 = smul.u32 8, %s44
          %5286 = vsyncadd %s5277, 0
          %s5287 = smul.addr %s43, 32
          %s5288 = sadd.s32 %s5284, %s5287
          %s5289 = smul.addr %s5288, 8
          %s5290 = scalar_lea.hbm %s24, %s5289
          %s5291 = sshll.u32 %s5280, 4
          %s5292 = int_to_ptr.vmem [resolvable:$true] %s5291
          %s5293 = sshll.u32 %s5290, 4
          %s5294 = int_to_ptr.hbm [resolvable:$true] %s5293
          %5299 = dma.vmem_to_hbm [thread:$0]  %s5292, 1024, %s5294, %s5277, 128, 128, 8
        $region251: #{unet_attention_block.3} parent=226 // pred_fallthru
          _
      $region227: #{unet_attention_block.3} parent=5 // pred_fallthru
        _
      %p5300 = scmp.le.s32.totalorder 2, %s33
      // Predicated region
      $region252: #{unet_attention_block.3} parent=5 // pred_check
        %p5301 = pneg %p5300
      $region253: #{unet_attention_block.3} parent=5 // pred_check_branch
        %5303 = sbr.rel (%p5301) target = $region255
      $region254: #{unet_attention_block.3} parent=5 // pred_region
        %s5304 = ssub.s32 %s33, 2
        // Predicated region
        $region256: #{unet_attention_block.3} parent=254 // pred_check
          %p5305 = pneg %p632
        $region257: #{unet_attention_block.3} parent=254 // pred_check_branch
          %5307 = sbr.rel (%p5305) target = $region259
        $region258: #{unet_attention_block.3} parent=254 // pred_region
          %s5308 = sand.u32 %s617, 1
          %s5309 = scalar_lea.sflag [#allocation9], %s5308
          %s5310 = sand.u32 %s617, 1
          %s5311 = smul.addr %s5310, 64
          %s5312 = scalar_lea.vmem [#allocation8], %s5311
          %5314 = dma.done %s5309, 1024
        $region259: #{unet_attention_block.3} parent=254 // pred_fallthru
          _
      $region255: #{unet_attention_block.3} parent=5 // pred_fallthru
        _
    $region6: #{unet_attention_block.3} parent=1 // loop_footer
      %s37 = sadd.s32 1, %s33
    $region7: #{unet_attention_block.3} parent=1 // loop_footer_branch
      %32 = sbr.rel target = $region3
    $region8: #{unet_attention_block.3} parent=1 // loop_exit
      _
    %5315 = vsyncpa [#allocation9], 1
    %s5316 = scalar_lea.sflag [#allocation9], 1
    %5317 = vsyncpa %s5316, 1

</llo_original>
